<compile_context>
chip_gen: v6e
topology: v6e:2x2x1
jax: 0.10.0
libtpu: 0.0.40
codegen_flags: <defaults>
</compile_context>

<pallas_src>
import jax
import jax.numpy as jnp
from jax.experimental import pallas as pl
from jax.experimental.pallas import tpu as pltpu

# ---- small synthetic KoBERT-like config ------------------------------------
VOCAB = 128
MAX_POS = 32
NUM_LAYERS = 2
NUM_HEADS = 2
HIDDEN = 32
HEAD_DIM = HIDDEN // NUM_HEADS
INTERMEDIATE = 64
NUM_ANSWERS = 5
OUT_LANES = 128          # lane-dense (padded) logits width
B_TILE = 16              # batches per grid step -> B_TILE*S = 128 rows / program
LN_EPS = 1e-12


def _layer_norm(x, g, b):
    mu = jnp.mean(x, axis=-1, keepdims=True)
    var = jnp.mean(jnp.square(x - mu), axis=-1, keepdims=True)
    return (x - mu) * jax.lax.rsqrt(var + LN_EPS) * g + b


# ---------------------------------------------------------------------------
# Fused kernel: all encoder layers + pooler + classifier for one batch tile.
# Activations: (B_TILE*S, H) float32 slab resident for the whole kernel.
# Weights: stacked along a leading NUM_LAYERS axis (bf16); layer loop unrolled.
# ---------------------------------------------------------------------------
def fused_forward_kernel(x_ref, bias_ref,
                         wqkv_ref, bqkv_ref, wo_ref, bo_ref,
                         ln1g_ref, ln1b_ref, w1_ref, b1_ref,
                         w2_ref, b2_ref, ln2g_ref, ln2b_ref,
                         wp_ref, bp_ref, wc_ref, bc_ref,
                         logits_ref):
    Bt, S, _ = bias_ref.shape
    H, HD, NH = HIDDEN, HEAD_DIM, NUM_HEADS
    rows = Bt * S
    scale = 1.0 / float(HD) ** 0.5

    x = x_ref[...]                                  # (rows, H) f32 resident slab

    # Attention-mask bias broadcast to every head ONCE (hoisted out of layers).
    bias_bh = jnp.concatenate([bias_ref[...]] * NH, axis=0)     # (NH*Bt, S, S)

    for layer in range(NUM_LAYERS):                 # static unroll
        # ---- fused QKV: one (rows, H) x (H, 3H) bf16 matmul, f32 acc ----
        qkv = jnp.dot(x.astype(jnp.bfloat16), wqkv_ref[layer],
                      preferred_element_type=jnp.float32) + bqkv_ref[layer]

        # ---- fold heads into the leading batch dim: (NH*Bt, S, HD) ----
        def fold(base):
            parts = [qkv[:, base + h * HD: base + (h + 1) * HD]
                     for h in range(NH)]
            return jnp.concatenate(parts, axis=0).reshape(NH * Bt, S, HD)

        qh = fold(0).astype(jnp.bfloat16)
        kh = fold(H).astype(jnp.bfloat16)
        vh = fold(2 * H).astype(jnp.bfloat16)

        # ---- attention: ONE batched score matmul over all (batch, head) ----
        scores = jnp.einsum('bqd,bkd->bqk', qh, kh,
                            preferred_element_type=jnp.float32) * scale
        scores = scores + bias_bh

        # manual softmax: exp on VPU/EUP, divide via approx EUP reciprocal
        m = jnp.max(scores, axis=-1, keepdims=True)
        e = jnp.exp(scores - m)
        probs = e * pl.reciprocal(jnp.sum(e, axis=-1, keepdims=True), approx=True)

        ctx = jnp.einsum('bqk,bkd->bqd', probs.astype(jnp.bfloat16), vh,
                         preferred_element_type=jnp.float32)    # (NH*Bt, S, HD)

        # unfold heads back onto the lane dim (head-major columns match Wo rows)
        ctx_r = ctx.reshape(NH, rows, HD)
        ctx2d = jnp.concatenate([ctx_r[h] for h in range(NH)], axis=1)

        attn_out = jnp.dot(ctx2d.astype(jnp.bfloat16), wo_ref[layer],
                           preferred_element_type=jnp.float32) + bo_ref[layer]
        x = _layer_norm(x + attn_out, ln1g_ref[layer], ln1b_ref[layer])

        # ---- FFN ----
        # TODO(synk): PyTorch/HF BERT uses exact erf-GELU; tanh approximation
        # used here for robust Mosaic lowering.
        h1 = jax.nn.gelu(
            jnp.dot(x.astype(jnp.bfloat16), w1_ref[layer],
                    preferred_element_type=jnp.float32) + b1_ref[layer],
            approximate=True)
        ffn_out = jnp.dot(h1.astype(jnp.bfloat16), w2_ref[layer],
                          preferred_element_type=jnp.float32) + b2_ref[layer]
        x = _layer_norm(x + ffn_out, ln2g_ref[layer], ln2b_ref[layer])

    # ---- pooler (tanh(CLS @ Wp + bp)) + dropout(identity, eval) + classifier.
    # Classifier weight is zero-padded to 128 columns -> lane-dense store.
    cls_tok = x.reshape(Bt, S, H)[:, 0, :]                       # (Bt, H)
    pooled = jnp.tanh(
        jnp.dot(cls_tok.astype(jnp.bfloat16), wp_ref[...],
                preferred_element_type=jnp.float32) + bp_ref[...])
    logits_ref[...] = (
        jnp.dot(pooled.astype(jnp.bfloat16), wc_ref[...],
                preferred_element_type=jnp.float32) + bc_ref[...])


def fused_forward(x2d, attn_bias, p):
    B, S = attn_bias.shape[0], attn_bias.shape[1]
    assert B % B_TILE == 0
    grid = (B // B_TILE,)

    weights = (p["wqkv"], p["bqkv"], p["wo"], p["bo"],
               p["ln1_g"], p["ln1_b"], p["w1"], p["b1"],
               p["w2"], p["b2"], p["ln2_g"], p["ln2_b"],
               p["pooler_w"], p["pooler_b"], p["cls_w"], p["cls_b"])
    # Full-array blocks, constant index map -> weights fetched once, resident.
    weight_specs = [pl.BlockSpec(w.shape, lambda i, nd=w.ndim: (0,) * nd)
                    for w in weights]

    in_specs = ([pl.BlockSpec((B_TILE * S, HIDDEN), lambda i: (i, 0)),
                 pl.BlockSpec((B_TILE, S, S), lambda i: (i, 0, 0))]
                + weight_specs)
    out_spec = pl.BlockSpec((B_TILE, OUT_LANES), lambda i: (i, 0))

    return pl.pallas_call(
        fused_forward_kernel,
        out_shape=jax.ShapeDtypeStruct((B, OUT_LANES), jnp.float32),
        grid=grid,
        in_specs=in_specs,
        out_specs=out_spec,
        compiler_params=pltpu.CompilerParams(
            dimension_semantics=("parallel",)),
    )(x2d, attn_bias, *weights)


# ---------------------------------------------------------------------------
# Deterministic parameter initialization (synthetic, no checkpoint load).
# Matmul weights stored bf16 (f32 accumulation in the kernel); everything
# elementwise (biases, LN params, embeddings) stays f32.
# ---------------------------------------------------------------------------
def init_params(key):
    def nrm(k, shape, scale=0.02):
        return (scale * jax.random.normal(k, shape)).astype(jnp.float32)

    keys = iter(jax.random.split(key, 64))

    cls_w = jnp.zeros((HIDDEN, OUT_LANES), jnp.float32)
    cls_w = cls_w.at[:, :NUM_ANSWERS].set(nrm(next(keys), (HIDDEN, NUM_ANSWERS)))

    params = {
        "word_emb": nrm(next(keys), (VOCAB, HIDDEN)),
        "pos_emb": nrm(next(keys), (MAX_POS, HIDDEN)),
        "type_emb": nrm(next(keys), (2, HIDDEN)),
        "emb_ln_g": jnp.ones((1, HIDDEN), jnp.float32),
        "emb_ln_b": jnp.zeros((1, HIDDEN), jnp.float32),
        "pooler_w": nrm(next(keys), (HIDDEN, HIDDEN)).astype(jnp.bfloat16),
        "pooler_b": jnp.zeros((1, HIDDEN), jnp.float32),
        "cls_w": cls_w.astype(jnp.bfloat16),          # (H, 128) lane-dense, padded
        "cls_b": jnp.zeros((1, OUT_LANES), jnp.float32),
    }

    wqkv, wo, w1, w2 = [], [], [], []
    for _ in range(NUM_LAYERS):
        # fused [Wq | Wk | Wv] along the output dimension -> (H, 3H)
        wqkv.append(jnp.concatenate(
            [nrm(next(keys), (HIDDEN, HIDDEN)) for _ in range(3)], axis=1))
        wo.append(nrm(next(keys), (HIDDEN, HIDDEN)))
        w1.append(nrm(next(keys), (HIDDEN, INTERMEDIATE)))
        w2.append(nrm(next(keys), (INTERMEDIATE, HIDDEN)))

    L = NUM_LAYERS
    params.update({
        "wqkv": jnp.stack(wqkv).astype(jnp.bfloat16),              # (L, H, 3H)
        "bqkv": jnp.zeros((L, 1, 3 * HIDDEN), jnp.float32),
        "wo": jnp.stack(wo).astype(jnp.bfloat16),                  # (L, H, H)
        "bo": jnp.zeros((L, 1, HIDDEN), jnp.float32),
        "ln1_g": jnp.ones((L, 1, HIDDEN), jnp.float32),
        "ln1_b": jnp.zeros((L, 1, HIDDEN), jnp.float32),
        "w1": jnp.stack(w1).astype(jnp.bfloat16),                  # (L, H, I)
        "b1": jnp.zeros((L, 1, INTERMEDIATE), jnp.float32),
        "w2": jnp.stack(w2).astype(jnp.bfloat16),                  # (L, I, H)
        "b2": jnp.zeros((L, 1, HIDDEN), jnp.float32),
        "ln2_g": jnp.ones((L, 1, HIDDEN), jnp.float32),
        "ln2_b": jnp.zeros((L, 1, HIDDEN), jnp.float32),
    })
    return params


def kobert_persona_chatbot_forward(params, input_ids, attention_mask):
    """Equivalent of KobertPersonaChatbot.forward (eval mode, dropout = id)."""
    B, S = input_ids.shape
    # ---- embeddings (glue: gathers + layernorm in plain JAX) ----
    # token_type_ids default to 0 (same as the HF module when not passed).
    pos_ids = jnp.arange(S, dtype=jnp.int32)
    emb = (params["word_emb"][input_ids]
           + params["pos_emb"][pos_ids][None, :, :]
           + params["type_emb"][0][None, None, :])
    emb = _layer_norm(emb, params["emb_ln_g"][None], params["emb_ln_b"][None])
    x2d = emb.reshape(B * S, HIDDEN).astype(jnp.float32)

    # attention-mask bias precomputed ONCE as a full (B, S, S) tensor.
    attn_bias = jnp.broadcast_to(
        (1.0 - attention_mask.astype(jnp.float32))[:, None, :] * -1e4, (B, S, S))

    # ---- fused Pallas kernel: encoder layers + pooler + classifier ----
    logits_padded = fused_forward(x2d, attn_bias, params)     # (B, 128)
    return logits_padded[:, :NUM_ANSWERS]


# ---------------------------------------------------------------------------
# Pure-JAX reference (same math, same bf16 cast points) for correctness check.
# ---------------------------------------------------------------------------
def _reference_forward(params, input_ids, attention_mask):
    B, S = input_ids.shape
    pos_ids = jnp.arange(S, dtype=jnp.int32)
    x = (params["word_emb"][input_ids]
         + params["pos_emb"][pos_ids][None, :, :]
         + params["type_emb"][0][None, None, :])
    x = _layer_norm(x, params["emb_ln_g"][None], params["emb_ln_b"][None])
    x = x.reshape(B * S, HIDDEN)
    bias = (1.0 - attention_mask.astype(jnp.float32))[:, None, :] * -1e4

    for l in range(NUM_LAYERS):
        qkv = (jnp.dot(x.astype(jnp.bfloat16), params["wqkv"][l],
                       preferred_element_type=jnp.float32) + params["bqkv"][l])
        q, k, v = jnp.split(qkv, 3, axis=-1)

        def heads(t):
            return (t.reshape(B, S, NUM_HEADS, HEAD_DIM)
                    .transpose(0, 2, 1, 3).astype(jnp.bfloat16))

        qh, kh, vh = heads(q), heads(k), heads(v)
        scores = (jnp.einsum('bhqd,bhkd->bhqk', qh, kh,
                             preferred_element_type=jnp.float32)
                  / (HEAD_DIM ** 0.5) + bias[:, None, :, :])
        probs = jax.nn.softmax(scores, axis=-1)
        ctx = (jnp.einsum('bhqk,bhkd->bhqd', probs.astype(jnp.bfloat16), vh,
                          preferred_element_type=jnp.float32)
               .transpose(0, 2, 1, 3).reshape(B * S, HIDDEN))
        attn_out = (jnp.dot(ctx.astype(jnp.bfloat16), params["wo"][l],
                            preferred_element_type=jnp.float32) + params["bo"][l])
        x = _layer_norm(x + attn_out, params["ln1_g"][l], params["ln1_b"][l])
        h1 = jax.nn.gelu(
            jnp.dot(x.astype(jnp.bfloat16), params["w1"][l],
                    preferred_element_type=jnp.float32) + params["b1"][l],
            approximate=True)
        ffn = (jnp.dot(h1.astype(jnp.bfloat16), params["w2"][l],
                       preferred_element_type=jnp.float32) + params["b2"][l])
        x = _layer_norm(x + ffn, params["ln2_g"][l], params["ln2_b"][l])

    cls = x.reshape(B, S, HIDDEN)[:, 0, :]
    pooled = jnp.tanh(
        jnp.dot(cls.astype(jnp.bfloat16), params["pooler_w"],
                preferred_element_type=jnp.float32) + params["pooler_b"])
    logits = (jnp.dot(pooled.astype(jnp.bfloat16), params["cls_w"],
                      preferred_element_type=jnp.float32) + params["cls_b"])
    return logits[:, :NUM_ANSWERS]


if __name__ == "__main__":
    B, S = 32, 8          # B*S = 256 rows total, 128 rows per grid step
    key = jax.random.PRNGKey(0)
    k_params, k_ids = jax.random.split(key)

    params = init_params(k_params)
    input_ids = jax.random.randint(k_ids, (B, S), 0, VOCAB, dtype=jnp.int32)
    lengths = 1 + (jnp.arange(B, dtype=jnp.int32) % S)            # 1..8, deterministic
    attention_mask = (jnp.arange(S, dtype=jnp.int32)[None, :]
                      < lengths[:, None]).astype(jnp.int32)

    logits = kobert_persona_chatbot_forward(params, input_ids, attention_mask)
    logits = jax.block_until_ready(logits)
    assert logits.shape == (B, NUM_ANSWERS) and logits.dtype == jnp.float32
    assert bool(jnp.all(jnp.isfinite(logits)))

    ref = _reference_forward(params, input_ids, attention_mask)
    assert bool(jnp.allclose(logits, ref, rtol=2e-2, atol=5e-3)), \
        float(jnp.max(jnp.abs(logits - ref)))
    print("KERNEL_OK")
</pallas_src>

<mosaic_0001>
module attributes {stable_mosaic.version = 11 : i64} {
  func.func @fused_forward_kernel(%arg0: i32, %arg1: memref<128x32xf32, #tpu.memory_space<vmem>>, %arg2: memref<16x8x8xf32, #tpu.memory_space<vmem>>, %arg3: memref<2x32x96xbf16, #tpu.memory_space<vmem>>, %arg4: memref<2x1x96xf32, #tpu.memory_space<vmem>>, %arg5: memref<2x32x32xbf16, #tpu.memory_space<vmem>>, %arg6: memref<2x1x32xf32, #tpu.memory_space<vmem>>, %arg7: memref<2x1x32xf32, #tpu.memory_space<vmem>>, %arg8: memref<2x1x32xf32, #tpu.memory_space<vmem>>, %arg9: memref<2x32x64xbf16, #tpu.memory_space<vmem>>, %arg10: memref<2x1x64xf32, #tpu.memory_space<vmem>>, %arg11: memref<2x64x32xbf16, #tpu.memory_space<vmem>>, %arg12: memref<2x1x32xf32, #tpu.memory_space<vmem>>, %arg13: memref<2x1x32xf32, #tpu.memory_space<vmem>>, %arg14: memref<2x1x32xf32, #tpu.memory_space<vmem>>, %arg15: memref<32x32xbf16, #tpu.memory_space<vmem>>, %arg16: memref<1x32xf32, #tpu.memory_space<vmem>>, %arg17: memref<32x128xbf16, #tpu.memory_space<vmem>>, %arg18: memref<1x128xf32, #tpu.memory_space<vmem>>, %arg19: memref<16x128xf32, #tpu.memory_space<vmem>>) attributes {dimension_semantics = [#tpu.dimension_semantics<parallel>], iteration_bounds = array<i64: 2>, scalar_prefetch = 0 : i64, scratch_operands = 0 : i64, tpu.core_type = #tpu.core_type<tc>, window_params = [{transform_indices = @transform_0, window_bounds = array<i64: 128, 32>}, {transform_indices = @transform_1, window_bounds = array<i64: 16, 8, 8>}, {pipeline_mode = #tpu.pipeline_mode<synchronous>, transform_indices = @transform_2, window_bounds = array<i64: 2, 32, 96>}, {pipeline_mode = #tpu.pipeline_mode<synchronous>, transform_indices = @transform_3, window_bounds = array<i64: 2, 1, 96>}, {pipeline_mode = #tpu.pipeline_mode<synchronous>, transform_indices = @transform_4, window_bounds = array<i64: 2, 32, 32>}, {pipeline_mode = #tpu.pipeline_mode<synchronous>, transform_indices = @transform_5, window_bounds = array<i64: 2, 1, 32>}, {pipeline_mode = #tpu.pipeline_mode<synchronous>, transform_indices = @transform_6, window_bounds = array<i64: 2, 1, 32>}, {pipeline_mode = #tpu.pipeline_mode<synchronous>, transform_indices = @transform_7, window_bounds = array<i64: 2, 1, 32>}, {pipeline_mode = #tpu.pipeline_mode<synchronous>, transform_indices = @transform_8, window_bounds = array<i64: 2, 32, 64>}, {pipeline_mode = #tpu.pipeline_mode<synchronous>, transform_indices = @transform_9, window_bounds = array<i64: 2, 1, 64>}, {pipeline_mode = #tpu.pipeline_mode<synchronous>, transform_indices = @transform_10, window_bounds = array<i64: 2, 64, 32>}, {pipeline_mode = #tpu.pipeline_mode<synchronous>, transform_indices = @transform_11, window_bounds = array<i64: 2, 1, 32>}, {pipeline_mode = #tpu.pipeline_mode<synchronous>, transform_indices = @transform_12, window_bounds = array<i64: 2, 1, 32>}, {pipeline_mode = #tpu.pipeline_mode<synchronous>, transform_indices = @transform_13, window_bounds = array<i64: 2, 1, 32>}, {pipeline_mode = #tpu.pipeline_mode<synchronous>, transform_indices = @transform_14, window_bounds = array<i64: 32, 32>}, {pipeline_mode = #tpu.pipeline_mode<synchronous>, transform_indices = @transform_15, window_bounds = array<i64: 1, 32>}, {pipeline_mode = #tpu.pipeline_mode<synchronous>, transform_indices = @transform_16, window_bounds = array<i64: 32, 128>}, {pipeline_mode = #tpu.pipeline_mode<synchronous>, transform_indices = @transform_17, window_bounds = array<i64: 1, 128>}, {transform_indices = @transform_18, window_bounds = array<i64: 16, 128>}]} {
    %c0 = arith.constant 0 : index
    %c0_0 = arith.constant 0 : index
    %0 = vector.load %arg1[%c0, %c0_0] : memref<128x32xf32, #tpu.memory_space<vmem>>, vector<128x32xf32>
    %c0_1 = arith.constant 0 : index
    %c0_2 = arith.constant 0 : index
    %c0_3 = arith.constant 0 : index
    %1 = vector.load %arg2[%c0_1, %c0_2, %c0_3] : memref<16x8x8xf32, #tpu.memory_space<vmem>>, vector<16x8x8xf32>
    %2 = tpu.concatenate %1, %1 in 0 : vector<16x8x8xf32>, vector<16x8x8xf32> -> vector<32x8x8xf32>
    %3 = arith.truncf %0 : vector<128x32xf32> to vector<128x32xbf16>
    %c0_4 = arith.constant 0 : index
    %c0_5 = arith.constant 0 : index
    %c0_6 = arith.constant 0 : index
    %4 = vector.load %arg3[%c0_4, %c0_5, %c0_6] : memref<2x32x96xbf16, #tpu.memory_space<vmem>>, vector<1x32x96xbf16>
    %5 = vector.shape_cast %4 : vector<1x32x96xbf16> to vector<32x96xbf16>
    %cst = arith.constant dense<0.000000e+00> : vector<128x96xf32>
    %6 = tpu.matmul %3, %5, %cst {dimension_numbers = #tpu.dot_dimension_numbers<[1], [0], [0], [1], [0, 0, 1, 1], [], []>} : vector<128x32xbf16>, vector<32x96xbf16>, vector<128x96xf32> -> vector<128x96xf32>
    %c0_7 = arith.constant 0 : index
    %c0_8 = arith.constant 0 : index
    %c0_9 = arith.constant 0 : index
    %7 = vector.load %arg4[%c0_7, %c0_8, %c0_9] : memref<2x1x96xf32, #tpu.memory_space<vmem>>, vector<1x1x96xf32>
    %8 = vector.shape_cast %7 : vector<1x1x96xf32> to vector<1x96xf32>
    %9 = vector.broadcast %8 : vector<1x96xf32> to vector<128x96xf32>
    %10 = arith.addf %6, %9 : vector<128x96xf32>
    %11 = vector.extract_strided_slice %10 {offsets = [0, 0], sizes = [128, 16], strides = [1, 1]} : vector<128x96xf32> to vector<128x16xf32>
    %12 = vector.extract_strided_slice %10 {offsets = [0, 16], sizes = [128, 16], strides = [1, 1]} : vector<128x96xf32> to vector<128x16xf32>
    %13 = tpu.concatenate %11, %12 in 0 : vector<128x16xf32>, vector<128x16xf32> -> vector<256x16xf32>
    %14 = vector.shape_cast %13 : vector<256x16xf32> to vector<32x8x16xf32>
    %15 = arith.truncf %14 : vector<32x8x16xf32> to vector<32x8x16xbf16>
    %16 = vector.extract_strided_slice %10 {offsets = [0, 32], sizes = [128, 16], strides = [1, 1]} : vector<128x96xf32> to vector<128x16xf32>
    %17 = vector.extract_strided_slice %10 {offsets = [0, 48], sizes = [128, 16], strides = [1, 1]} : vector<128x96xf32> to vector<128x16xf32>
    %18 = tpu.concatenate %16, %17 in 0 : vector<128x16xf32>, vector<128x16xf32> -> vector<256x16xf32>
    %19 = vector.shape_cast %18 : vector<256x16xf32> to vector<32x8x16xf32>
    %20 = arith.truncf %19 : vector<32x8x16xf32> to vector<32x8x16xbf16>
    %21 = vector.extract_strided_slice %10 {offsets = [0, 64], sizes = [128, 16], strides = [1, 1]} : vector<128x96xf32> to vector<128x16xf32>
    %22 = vector.extract_strided_slice %10 {offsets = [0, 80], sizes = [128, 16], strides = [1, 1]} : vector<128x96xf32> to vector<128x16xf32>
    %23 = tpu.concatenate %21, %22 in 0 : vector<128x16xf32>, vector<128x16xf32> -> vector<256x16xf32>
    %24 = vector.shape_cast %23 : vector<256x16xf32> to vector<32x8x16xf32>
    %25 = arith.truncf %24 : vector<32x8x16xf32> to vector<32x8x16xbf16>
    "tpu.trace_start"() <{level = 10 : i32, message = "bqd,bkd->bqk"}> : () -> ()
    %cst_10 = arith.constant dense<0.000000e+00> : vector<32x8x8xf32>
    %26 = tpu.matmul %15, %20, %cst_10 {dimension_numbers = #tpu.dot_dimension_numbers<[2], [2], [1], [1], [0, 0, 0, 1, 1, 1], [0], [0]>} : vector<32x8x16xbf16>, vector<32x8x16xbf16>, vector<32x8x8xf32> -> vector<32x8x8xf32>
    "tpu.trace_stop"() : () -> ()
    %cst_11 = arith.constant 2.500000e-01 : f32
    %27 = vector.broadcast %cst_11 : f32 to vector<32x8x8xf32>
    %28 = arith.mulf %26, %27 : vector<32x8x8xf32>
    %29 = arith.addf %28, %2 : vector<32x8x8xf32>
    %cst_12 = arith.constant dense<0xFF800000> : vector<32x8xf32>
    %30 = vector.multi_reduction <maximumf>, %29, %cst_12 [2] : vector<32x8x8xf32> to vector<32x8xf32>
    %31 = vector.shape_cast %30 : vector<32x8xf32> to vector<32x8x1xf32>
    %32 = vector.broadcast %31 : vector<32x8x1xf32> to vector<32x8x8xf32>
    %33 = arith.subf %29, %32 : vector<32x8x8xf32>
    %34 = math.exp %33 : vector<32x8x8xf32>
    %cst_13 = arith.constant dense<0.000000e+00> : vector<32x8xf32>
    %35 = vector.multi_reduction <add>, %34, %cst_13 [2] : vector<32x8x8xf32> to vector<32x8xf32>
    %36 = vector.shape_cast %35 : vector<32x8xf32> to vector<32x8x1xf32>
    %37 = tpu.reciprocal %36 {approx = true} : vector<32x8x1xf32> -> vector<32x8x1xf32>
    %38 = vector.broadcast %37 : vector<32x8x1xf32> to vector<32x8x8xf32>
    %39 = arith.mulf %34, %38 : vector<32x8x8xf32>
    %40 = arith.truncf %39 : vector<32x8x8xf32> to vector<32x8x8xbf16>
    "tpu.trace_start"() <{level = 10 : i32, message = "bqk,bkd->bqd"}> : () -> ()
    %cst_14 = arith.constant dense<0.000000e+00> : vector<32x8x16xf32>
    %41 = tpu.matmul %40, %25, %cst_14 {dimension_numbers = #tpu.dot_dimension_numbers<[2], [1], [1], [2], [0, 0, 0, 1, 1, 2], [0], [0]>} : vector<32x8x8xbf16>, vector<32x8x16xbf16>, vector<32x8x16xf32> -> vector<32x8x16xf32>
    "tpu.trace_stop"() : () -> ()
    %42 = vector.shape_cast %41 : vector<32x8x16xf32> to vector<2x128x16xf32>
    %43 = vector.extract_strided_slice %42 {offsets = [0, 0, 0], sizes = [1, 128, 16], strides = [1, 1, 1]} : vector<2x128x16xf32> to vector<1x128x16xf32>
    %44 = vector.shape_cast %43 : vector<1x128x16xf32> to vector<128x16xf32>
    %45 = vector.extract_strided_slice %42 {offsets = [1, 0, 0], sizes = [1, 128, 16], strides = [1, 1, 1]} : vector<2x128x16xf32> to vector<1x128x16xf32>
    %46 = vector.shape_cast %45 : vector<1x128x16xf32> to vector<128x16xf32>
    %47 = tpu.concatenate %44, %46 in 1 : vector<128x16xf32>, vector<128x16xf32> -> vector<128x32xf32>
    %48 = arith.truncf %47 : vector<128x32xf32> to vector<128x32xbf16>
    %c0_15 = arith.constant 0 : index
    %c0_16 = arith.constant 0 : index
    %c0_17 = arith.constant 0 : index
    %49 = vector.load %arg5[%c0_15, %c0_16, %c0_17] : memref<2x32x32xbf16, #tpu.memory_space<vmem>>, vector<1x32x32xbf16>
    %50 = vector.shape_cast %49 : vector<1x32x32xbf16> to vector<32x32xbf16>
    %cst_18 = arith.constant dense<0.000000e+00> : vector<128x32xf32>
    %51 = tpu.matmul %48, %50, %cst_18 {dimension_numbers = #tpu.dot_dimension_numbers<[1], [0], [0], [1], [0, 0, 1, 1], [], []>} : vector<128x32xbf16>, vector<32x32xbf16>, vector<128x32xf32> -> vector<128x32xf32>
    %c0_19 = arith.constant 0 : index
    %c0_20 = arith.constant 0 : index
    %c0_21 = arith.constant 0 : index
    %52 = vector.load %arg6[%c0_19, %c0_20, %c0_21] : memref<2x1x32xf32, #tpu.memory_space<vmem>>, vector<1x1x32xf32>
    %53 = vector.shape_cast %52 : vector<1x1x32xf32> to vector<1x32xf32>
    %54 = vector.broadcast %53 : vector<1x32xf32> to vector<128x32xf32>
    %55 = arith.addf %51, %54 : vector<128x32xf32>
    %56 = arith.addf %0, %55 : vector<128x32xf32>
    %c0_22 = arith.constant 0 : index
    %c0_23 = arith.constant 0 : index
    %c0_24 = arith.constant 0 : index
    %57 = vector.load %arg7[%c0_22, %c0_23, %c0_24] : memref<2x1x32xf32, #tpu.memory_space<vmem>>, vector<1x1x32xf32>
    %58 = vector.shape_cast %57 : vector<1x1x32xf32> to vector<1x32xf32>
    %c0_25 = arith.constant 0 : index
    %c0_26 = arith.constant 0 : index
    %c0_27 = arith.constant 0 : index
    %59 = vector.load %arg8[%c0_25, %c0_26, %c0_27] : memref<2x1x32xf32, #tpu.memory_space<vmem>>, vector<1x1x32xf32>
    %60 = vector.shape_cast %59 : vector<1x1x32xf32> to vector<1x32xf32>
    %cst_28 = arith.constant dense<0.000000e+00> : vector<128xf32>
    %61 = vector.multi_reduction <add>, %56, %cst_28 [1] : vector<128x32xf32> to vector<128xf32>
    %62 = vector.shape_cast %61 : vector<128xf32> to vector<128x1xf32>
    %cst_29 = arith.constant 3.200000e+01 : f32
    %63 = vector.broadcast %cst_29 : f32 to vector<128x1xf32>
    %64 = arith.divf %62, %63 : vector<128x1xf32>
    %65 = vector.broadcast %64 : vector<128x1xf32> to vector<128x32xf32>
    %66 = arith.subf %56, %65 : vector<128x32xf32>
    %67 = arith.mulf %66, %66 : vector<128x32xf32>
    %cst_30 = arith.constant dense<0.000000e+00> : vector<128xf32>
    %68 = vector.multi_reduction <add>, %67, %cst_30 [1] : vector<128x32xf32> to vector<128xf32>
    %69 = vector.shape_cast %68 : vector<128xf32> to vector<128x1xf32>
    %cst_31 = arith.constant 3.200000e+01 : f32
    %70 = vector.broadcast %cst_31 : f32 to vector<128x1xf32>
    %71 = arith.divf %69, %70 : vector<128x1xf32>
    %72 = vector.broadcast %64 : vector<128x1xf32> to vector<128x32xf32>
    %73 = arith.subf %56, %72 : vector<128x32xf32>
    %cst_32 = arith.constant 9.99999996E-13 : f32
    %74 = vector.broadcast %cst_32 : f32 to vector<128x1xf32>
    %75 = arith.addf %71, %74 : vector<128x1xf32>
    %76 = math.rsqrt %75 : vector<128x1xf32>
    %77 = vector.broadcast %76 : vector<128x1xf32> to vector<128x32xf32>
    %78 = arith.mulf %73, %77 : vector<128x32xf32>
    %79 = vector.broadcast %58 : vector<1x32xf32> to vector<128x32xf32>
    %80 = arith.mulf %78, %79 : vector<128x32xf32>
    %81 = vector.broadcast %60 : vector<1x32xf32> to vector<128x32xf32>
    %82 = arith.addf %80, %81 : vector<128x32xf32>
    %83 = arith.truncf %82 : vector<128x32xf32> to vector<128x32xbf16>
    %c0_33 = arith.constant 0 : index
    %c0_34 = arith.constant 0 : index
    %c0_35 = arith.constant 0 : index
    %84 = vector.load %arg9[%c0_33, %c0_34, %c0_35] : memref<2x32x64xbf16, #tpu.memory_space<vmem>>, vector<1x32x64xbf16>
    %85 = vector.shape_cast %84 : vector<1x32x64xbf16> to vector<32x64xbf16>
    %cst_36 = arith.constant dense<0.000000e+00> : vector<128x64xf32>
    %86 = tpu.matmul %83, %85, %cst_36 {dimension_numbers = #tpu.dot_dimension_numbers<[1], [0], [0], [1], [0, 0, 1, 1], [], []>} : vector<128x32xbf16>, vector<32x64xbf16>, vector<128x64xf32> -> vector<128x64xf32>
    %c0_37 = arith.constant 0 : index
    %c0_38 = arith.constant 0 : index
    %c0_39 = arith.constant 0 : index
    %87 = vector.load %arg10[%c0_37, %c0_38, %c0_39] : memref<2x1x64xf32, #tpu.memory_space<vmem>>, vector<1x1x64xf32>
    %88 = vector.shape_cast %87 : vector<1x1x64xf32> to vector<1x64xf32>
    %89 = vector.broadcast %88 : vector<1x64xf32> to vector<128x64xf32>
    %90 = arith.addf %86, %89 : vector<128x64xf32>
    %91 = arith.mulf %90, %90 : vector<128x64xf32>
    %92 = arith.mulf %90, %91 : vector<128x64xf32>
    %cst_40 = arith.constant 4.471500e-02 : f32
    %93 = vector.broadcast %cst_40 : f32 to vector<128x64xf32>
    %94 = arith.mulf %93, %92 : vector<128x64xf32>
    %95 = arith.addf %90, %94 : vector<128x64xf32>
    %cst_41 = arith.constant 0.797884583 : f32
    %96 = vector.broadcast %cst_41 : f32 to vector<128x64xf32>
    %97 = arith.mulf %96, %95 : vector<128x64xf32>
    %98 = math.tanh %97 : vector<128x64xf32>
    %cst_42 = arith.constant 1.000000e+00 : f32
    %99 = vector.broadcast %cst_42 : f32 to vector<128x64xf32>
    %100 = arith.addf %99, %98 : vector<128x64xf32>
    %cst_43 = arith.constant 5.000000e-01 : f32
    %101 = vector.broadcast %cst_43 : f32 to vector<128x64xf32>
    %102 = arith.mulf %101, %100 : vector<128x64xf32>
    %103 = arith.mulf %90, %102 : vector<128x64xf32>
    %104 = arith.truncf %103 : vector<128x64xf32> to vector<128x64xbf16>
    %c0_44 = arith.constant 0 : index
    %c0_45 = arith.constant 0 : index
    %c0_46 = arith.constant 0 : index
    %105 = vector.load %arg11[%c0_44, %c0_45, %c0_46] : memref<2x64x32xbf16, #tpu.memory_space<vmem>>, vector<1x64x32xbf16>
    %106 = vector.shape_cast %105 : vector<1x64x32xbf16> to vector<64x32xbf16>
    %cst_47 = arith.constant dense<0.000000e+00> : vector<128x32xf32>
    %107 = tpu.matmul %104, %106, %cst_47 {dimension_numbers = #tpu.dot_dimension_numbers<[1], [0], [0], [1], [0, 0, 1, 1], [], []>} : vector<128x64xbf16>, vector<64x32xbf16>, vector<128x32xf32> -> vector<128x32xf32>
    %c0_48 = arith.constant 0 : index
    %c0_49 = arith.constant 0 : index
    %c0_50 = arith.constant 0 : index
    %108 = vector.load %arg12[%c0_48, %c0_49, %c0_50] : memref<2x1x32xf32, #tpu.memory_space<vmem>>, vector<1x1x32xf32>
    %109 = vector.shape_cast %108 : vector<1x1x32xf32> to vector<1x32xf32>
    %110 = vector.broadcast %109 : vector<1x32xf32> to vector<128x32xf32>
    %111 = arith.addf %107, %110 : vector<128x32xf32>
    %112 = arith.addf %82, %111 : vector<128x32xf32>
    %c0_51 = arith.constant 0 : index
    %c0_52 = arith.constant 0 : index
    %c0_53 = arith.constant 0 : index
    %113 = vector.load %arg13[%c0_51, %c0_52, %c0_53] : memref<2x1x32xf32, #tpu.memory_space<vmem>>, vector<1x1x32xf32>
    %114 = vector.shape_cast %113 : vector<1x1x32xf32> to vector<1x32xf32>
    %c0_54 = arith.constant 0 : index
    %c0_55 = arith.constant 0 : index
    %c0_56 = arith.constant 0 : index
    %115 = vector.load %arg14[%c0_54, %c0_55, %c0_56] : memref<2x1x32xf32, #tpu.memory_space<vmem>>, vector<1x1x32xf32>
    %116 = vector.shape_cast %115 : vector<1x1x32xf32> to vector<1x32xf32>
    %cst_57 = arith.constant dense<0.000000e+00> : vector<128xf32>
    %117 = vector.multi_reduction <add>, %112, %cst_57 [1] : vector<128x32xf32> to vector<128xf32>
    %118 = vector.shape_cast %117 : vector<128xf32> to vector<128x1xf32>
    %cst_58 = arith.constant 3.200000e+01 : f32
    %119 = vector.broadcast %cst_58 : f32 to vector<128x1xf32>
    %120 = arith.divf %118, %119 : vector<128x1xf32>
    %121 = vector.broadcast %120 : vector<128x1xf32> to vector<128x32xf32>
    %122 = arith.subf %112, %121 : vector<128x32xf32>
    %123 = arith.mulf %122, %122 : vector<128x32xf32>
    %cst_59 = arith.constant dense<0.000000e+00> : vector<128xf32>
    %124 = vector.multi_reduction <add>, %123, %cst_59 [1] : vector<128x32xf32> to vector<128xf32>
    %125 = vector.shape_cast %124 : vector<128xf32> to vector<128x1xf32>
    %cst_60 = arith.constant 3.200000e+01 : f32
    %126 = vector.broadcast %cst_60 : f32 to vector<128x1xf32>
    %127 = arith.divf %125, %126 : vector<128x1xf32>
    %128 = vector.broadcast %120 : vector<128x1xf32> to vector<128x32xf32>
    %129 = arith.subf %112, %128 : vector<128x32xf32>
    %cst_61 = arith.constant 9.99999996E-13 : f32
    %130 = vector.broadcast %cst_61 : f32 to vector<128x1xf32>
    %131 = arith.addf %127, %130 : vector<128x1xf32>
    %132 = math.rsqrt %131 : vector<128x1xf32>
    %133 = vector.broadcast %132 : vector<128x1xf32> to vector<128x32xf32>
    %134 = arith.mulf %129, %133 : vector<128x32xf32>
    %135 = vector.broadcast %114 : vector<1x32xf32> to vector<128x32xf32>
    %136 = arith.mulf %134, %135 : vector<128x32xf32>
    %137 = vector.broadcast %116 : vector<1x32xf32> to vector<128x32xf32>
    %138 = arith.addf %136, %137 : vector<128x32xf32>
    %139 = arith.truncf %138 : vector<128x32xf32> to vector<128x32xbf16>
    %c1 = arith.constant 1 : index
    %c0_62 = arith.constant 0 : index
    %c0_63 = arith.constant 0 : index
    %140 = vector.load %arg3[%c1, %c0_62, %c0_63] : memref<2x32x96xbf16, #tpu.memory_space<vmem>>, vector<1x32x96xbf16>
    %141 = vector.shape_cast %140 : vector<1x32x96xbf16> to vector<32x96xbf16>
    %cst_64 = arith.constant dense<0.000000e+00> : vector<128x96xf32>
    %142 = tpu.matmul %139, %141, %cst_64 {dimension_numbers = #tpu.dot_dimension_numbers<[1], [0], [0], [1], [0, 0, 1, 1], [], []>} : vector<128x32xbf16>, vector<32x96xbf16>, vector<128x96xf32> -> vector<128x96xf32>
    %c1_65 = arith.constant 1 : index
    %c0_66 = arith.constant 0 : index
    %c0_67 = arith.constant 0 : index
    %143 = vector.load %arg4[%c1_65, %c0_66, %c0_67] : memref<2x1x96xf32, #tpu.memory_space<vmem>>, vector<1x1x96xf32>
    %144 = vector.shape_cast %143 : vector<1x1x96xf32> to vector<1x96xf32>
    %145 = vector.broadcast %144 : vector<1x96xf32> to vector<128x96xf32>
    %146 = arith.addf %142, %145 : vector<128x96xf32>
    %147 = vector.extract_strided_slice %146 {offsets = [0, 0], sizes = [128, 16], strides = [1, 1]} : vector<128x96xf32> to vector<128x16xf32>
    %148 = vector.extract_strided_slice %146 {offsets = [0, 16], sizes = [128, 16], strides = [1, 1]} : vector<128x96xf32> to vector<128x16xf32>
    %149 = tpu.concatenate %147, %148 in 0 : vector<128x16xf32>, vector<128x16xf32> -> vector<256x16xf32>
    %150 = vector.shape_cast %149 : vector<256x16xf32> to vector<32x8x16xf32>
    %151 = arith.truncf %150 : vector<32x8x16xf32> to vector<32x8x16xbf16>
    %152 = vector.extract_strided_slice %146 {offsets = [0, 32], sizes = [128, 16], strides = [1, 1]} : vector<128x96xf32> to vector<128x16xf32>
    %153 = vector.extract_strided_slice %146 {offsets = [0, 48], sizes = [128, 16], strides = [1, 1]} : vector<128x96xf32> to vector<128x16xf32>
    %154 = tpu.concatenate %152, %153 in 0 : vector<128x16xf32>, vector<128x16xf32> -> vector<256x16xf32>
    %155 = vector.shape_cast %154 : vector<256x16xf32> to vector<32x8x16xf32>
    %156 = arith.truncf %155 : vector<32x8x16xf32> to vector<32x8x16xbf16>
    %157 = vector.extract_strided_slice %146 {offsets = [0, 64], sizes = [128, 16], strides = [1, 1]} : vector<128x96xf32> to vector<128x16xf32>
    %158 = vector.extract_strided_slice %146 {offsets = [0, 80], sizes = [128, 16], strides = [1, 1]} : vector<128x96xf32> to vector<128x16xf32>
    %159 = tpu.concatenate %157, %158 in 0 : vector<128x16xf32>, vector<128x16xf32> -> vector<256x16xf32>
    %160 = vector.shape_cast %159 : vector<256x16xf32> to vector<32x8x16xf32>
    %161 = arith.truncf %160 : vector<32x8x16xf32> to vector<32x8x16xbf16>
    "tpu.trace_start"() <{level = 10 : i32, message = "bqd,bkd->bqk"}> : () -> ()
    %cst_68 = arith.constant dense<0.000000e+00> : vector<32x8x8xf32>
    %162 = tpu.matmul %151, %156, %cst_68 {dimension_numbers = #tpu.dot_dimension_numbers<[2], [2], [1], [1], [0, 0, 0, 1, 1, 1], [0], [0]>} : vector<32x8x16xbf16>, vector<32x8x16xbf16>, vector<32x8x8xf32> -> vector<32x8x8xf32>
    "tpu.trace_stop"() : () -> ()
    %cst_69 = arith.constant 2.500000e-01 : f32
    %163 = vector.broadcast %cst_69 : f32 to vector<32x8x8xf32>
    %164 = arith.mulf %162, %163 : vector<32x8x8xf32>
    %165 = arith.addf %164, %2 : vector<32x8x8xf32>
    %cst_70 = arith.constant dense<0xFF800000> : vector<32x8xf32>
    %166 = vector.multi_reduction <maximumf>, %165, %cst_70 [2] : vector<32x8x8xf32> to vector<32x8xf32>
    %167 = vector.shape_cast %166 : vector<32x8xf32> to vector<32x8x1xf32>
    %168 = vector.broadcast %167 : vector<32x8x1xf32> to vector<32x8x8xf32>
    %169 = arith.subf %165, %168 : vector<32x8x8xf32>
    %170 = math.exp %169 : vector<32x8x8xf32>
    %cst_71 = arith.constant dense<0.000000e+00> : vector<32x8xf32>
    %171 = vector.multi_reduction <add>, %170, %cst_71 [2] : vector<32x8x8xf32> to vector<32x8xf32>
    %172 = vector.shape_cast %171 : vector<32x8xf32> to vector<32x8x1xf32>
    %173 = tpu.reciprocal %172 {approx = true} : vector<32x8x1xf32> -> vector<32x8x1xf32>
    %174 = vector.broadcast %173 : vector<32x8x1xf32> to vector<32x8x8xf32>
    %175 = arith.mulf %170, %174 : vector<32x8x8xf32>
    %176 = arith.truncf %175 : vector<32x8x8xf32> to vector<32x8x8xbf16>
    "tpu.trace_start"() <{level = 10 : i32, message = "bqk,bkd->bqd"}> : () -> ()
    %cst_72 = arith.constant dense<0.000000e+00> : vector<32x8x16xf32>
    %177 = tpu.matmul %176, %161, %cst_72 {dimension_numbers = #tpu.dot_dimension_numbers<[2], [1], [1], [2], [0, 0, 0, 1, 1, 2], [0], [0]>} : vector<32x8x8xbf16>, vector<32x8x16xbf16>, vector<32x8x16xf32> -> vector<32x8x16xf32>
    "tpu.trace_stop"() : () -> ()
    %178 = vector.shape_cast %177 : vector<32x8x16xf32> to vector<2x128x16xf32>
    %179 = vector.extract_strided_slice %178 {offsets = [0, 0, 0], sizes = [1, 128, 16], strides = [1, 1, 1]} : vector<2x128x16xf32> to vector<1x128x16xf32>
    %180 = vector.shape_cast %179 : vector<1x128x16xf32> to vector<128x16xf32>
    %181 = vector.extract_strided_slice %178 {offsets = [1, 0, 0], sizes = [1, 128, 16], strides = [1, 1, 1]} : vector<2x128x16xf32> to vector<1x128x16xf32>
    %182 = vector.shape_cast %181 : vector<1x128x16xf32> to vector<128x16xf32>
    %183 = tpu.concatenate %180, %182 in 1 : vector<128x16xf32>, vector<128x16xf32> -> vector<128x32xf32>
    %184 = arith.truncf %183 : vector<128x32xf32> to vector<128x32xbf16>
    %c1_73 = arith.constant 1 : index
    %c0_74 = arith.constant 0 : index
    %c0_75 = arith.constant 0 : index
    %185 = vector.load %arg5[%c1_73, %c0_74, %c0_75] : memref<2x32x32xbf16, #tpu.memory_space<vmem>>, vector<1x32x32xbf16>
    %186 = vector.shape_cast %185 : vector<1x32x32xbf16> to vector<32x32xbf16>
    %cst_76 = arith.constant dense<0.000000e+00> : vector<128x32xf32>
    %187 = tpu.matmul %184, %186, %cst_76 {dimension_numbers = #tpu.dot_dimension_numbers<[1], [0], [0], [1], [0, 0, 1, 1], [], []>} : vector<128x32xbf16>, vector<32x32xbf16>, vector<128x32xf32> -> vector<128x32xf32>
    %c1_77 = arith.constant 1 : index
    %c0_78 = arith.constant 0 : index
    %c0_79 = arith.constant 0 : index
    %188 = vector.load %arg6[%c1_77, %c0_78, %c0_79] : memref<2x1x32xf32, #tpu.memory_space<vmem>>, vector<1x1x32xf32>
    %189 = vector.shape_cast %188 : vector<1x1x32xf32> to vector<1x32xf32>
    %190 = vector.broadcast %189 : vector<1x32xf32> to vector<128x32xf32>
    %191 = arith.addf %187, %190 : vector<128x32xf32>
    %192 = arith.addf %138, %191 : vector<128x32xf32>
    %c1_80 = arith.constant 1 : index
    %c0_81 = arith.constant 0 : index
    %c0_82 = arith.constant 0 : index
    %193 = vector.load %arg7[%c1_80, %c0_81, %c0_82] : memref<2x1x32xf32, #tpu.memory_space<vmem>>, vector<1x1x32xf32>
    %194 = vector.shape_cast %193 : vector<1x1x32xf32> to vector<1x32xf32>
    %c1_83 = arith.constant 1 : index
    %c0_84 = arith.constant 0 : index
    %c0_85 = arith.constant 0 : index
    %195 = vector.load %arg8[%c1_83, %c0_84, %c0_85] : memref<2x1x32xf32, #tpu.memory_space<vmem>>, vector<1x1x32xf32>
    %196 = vector.shape_cast %195 : vector<1x1x32xf32> to vector<1x32xf32>
    %cst_86 = arith.constant dense<0.000000e+00> : vector<128xf32>
    %197 = vector.multi_reduction <add>, %192, %cst_86 [1] : vector<128x32xf32> to vector<128xf32>
    %198 = vector.shape_cast %197 : vector<128xf32> to vector<128x1xf32>
    %cst_87 = arith.constant 3.200000e+01 : f32
    %199 = vector.broadcast %cst_87 : f32 to vector<128x1xf32>
    %200 = arith.divf %198, %199 : vector<128x1xf32>
    %201 = vector.broadcast %200 : vector<128x1xf32> to vector<128x32xf32>
    %202 = arith.subf %192, %201 : vector<128x32xf32>
    %203 = arith.mulf %202, %202 : vector<128x32xf32>
    %cst_88 = arith.constant dense<0.000000e+00> : vector<128xf32>
    %204 = vector.multi_reduction <add>, %203, %cst_88 [1] : vector<128x32xf32> to vector<128xf32>
    %205 = vector.shape_cast %204 : vector<128xf32> to vector<128x1xf32>
    %cst_89 = arith.constant 3.200000e+01 : f32
    %206 = vector.broadcast %cst_89 : f32 to vector<128x1xf32>
    %207 = arith.divf %205, %206 : vector<128x1xf32>
    %208 = vector.broadcast %200 : vector<128x1xf32> to vector<128x32xf32>
    %209 = arith.subf %192, %208 : vector<128x32xf32>
    %cst_90 = arith.constant 9.99999996E-13 : f32
    %210 = vector.broadcast %cst_90 : f32 to vector<128x1xf32>
    %211 = arith.addf %207, %210 : vector<128x1xf32>
    %212 = math.rsqrt %211 : vector<128x1xf32>
    %213 = vector.broadcast %212 : vector<128x1xf32> to vector<128x32xf32>
    %214 = arith.mulf %209, %213 : vector<128x32xf32>
    %215 = vector.broadcast %194 : vector<1x32xf32> to vector<128x32xf32>
    %216 = arith.mulf %214, %215 : vector<128x32xf32>
    %217 = vector.broadcast %196 : vector<1x32xf32> to vector<128x32xf32>
    %218 = arith.addf %216, %217 : vector<128x32xf32>
    %219 = arith.truncf %218 : vector<128x32xf32> to vector<128x32xbf16>
    %c1_91 = arith.constant 1 : index
    %c0_92 = arith.constant 0 : index
    %c0_93 = arith.constant 0 : index
    %220 = vector.load %arg9[%c1_91, %c0_92, %c0_93] : memref<2x32x64xbf16, #tpu.memory_space<vmem>>, vector<1x32x64xbf16>
    %221 = vector.shape_cast %220 : vector<1x32x64xbf16> to vector<32x64xbf16>
    %cst_94 = arith.constant dense<0.000000e+00> : vector<128x64xf32>
    %222 = tpu.matmul %219, %221, %cst_94 {dimension_numbers = #tpu.dot_dimension_numbers<[1], [0], [0], [1], [0, 0, 1, 1], [], []>} : vector<128x32xbf16>, vector<32x64xbf16>, vector<128x64xf32> -> vector<128x64xf32>
    %c1_95 = arith.constant 1 : index
    %c0_96 = arith.constant 0 : index
    %c0_97 = arith.constant 0 : index
    %223 = vector.load %arg10[%c1_95, %c0_96, %c0_97] : memref<2x1x64xf32, #tpu.memory_space<vmem>>, vector<1x1x64xf32>
    %224 = vector.shape_cast %223 : vector<1x1x64xf32> to vector<1x64xf32>
    %225 = vector.broadcast %224 : vector<1x64xf32> to vector<128x64xf32>
    %226 = arith.addf %222, %225 : vector<128x64xf32>
    %227 = arith.mulf %226, %226 : vector<128x64xf32>
    %228 = arith.mulf %226, %227 : vector<128x64xf32>
    %cst_98 = arith.constant 4.471500e-02 : f32
    %229 = vector.broadcast %cst_98 : f32 to vector<128x64xf32>
    %230 = arith.mulf %229, %228 : vector<128x64xf32>
    %231 = arith.addf %226, %230 : vector<128x64xf32>
    %cst_99 = arith.constant 0.797884583 : f32
    %232 = vector.broadcast %cst_99 : f32 to vector<128x64xf32>
    %233 = arith.mulf %232, %231 : vector<128x64xf32>
    %234 = math.tanh %233 : vector<128x64xf32>
    %cst_100 = arith.constant 1.000000e+00 : f32
    %235 = vector.broadcast %cst_100 : f32 to vector<128x64xf32>
    %236 = arith.addf %235, %234 : vector<128x64xf32>
    %cst_101 = arith.constant 5.000000e-01 : f32
    %237 = vector.broadcast %cst_101 : f32 to vector<128x64xf32>
    %238 = arith.mulf %237, %236 : vector<128x64xf32>
    %239 = arith.mulf %226, %238 : vector<128x64xf32>
    %240 = arith.truncf %239 : vector<128x64xf32> to vector<128x64xbf16>
    %c1_102 = arith.constant 1 : index
    %c0_103 = arith.constant 0 : index
    %c0_104 = arith.constant 0 : index
    %241 = vector.load %arg11[%c1_102, %c0_103, %c0_104] : memref<2x64x32xbf16, #tpu.memory_space<vmem>>, vector<1x64x32xbf16>
    %242 = vector.shape_cast %241 : vector<1x64x32xbf16> to vector<64x32xbf16>
    %cst_105 = arith.constant dense<0.000000e+00> : vector<128x32xf32>
    %243 = tpu.matmul %240, %242, %cst_105 {dimension_numbers = #tpu.dot_dimension_numbers<[1], [0], [0], [1], [0, 0, 1, 1], [], []>} : vector<128x64xbf16>, vector<64x32xbf16>, vector<128x32xf32> -> vector<128x32xf32>
    %c1_106 = arith.constant 1 : index
    %c0_107 = arith.constant 0 : index
    %c0_108 = arith.constant 0 : index
    %244 = vector.load %arg12[%c1_106, %c0_107, %c0_108] : memref<2x1x32xf32, #tpu.memory_space<vmem>>, vector<1x1x32xf32>
    %245 = vector.shape_cast %244 : vector<1x1x32xf32> to vector<1x32xf32>
    %246 = vector.broadcast %245 : vector<1x32xf32> to vector<128x32xf32>
    %247 = arith.addf %243, %246 : vector<128x32xf32>
    %248 = arith.addf %218, %247 : vector<128x32xf32>
    %c1_109 = arith.constant 1 : index
    %c0_110 = arith.constant 0 : index
    %c0_111 = arith.constant 0 : index
    %249 = vector.load %arg13[%c1_109, %c0_110, %c0_111] : memref<2x1x32xf32, #tpu.memory_space<vmem>>, vector<1x1x32xf32>
    %250 = vector.shape_cast %249 : vector<1x1x32xf32> to vector<1x32xf32>
    %c1_112 = arith.constant 1 : index
    %c0_113 = arith.constant 0 : index
    %c0_114 = arith.constant 0 : index
    %251 = vector.load %arg14[%c1_112, %c0_113, %c0_114] : memref<2x1x32xf32, #tpu.memory_space<vmem>>, vector<1x1x32xf32>
    %252 = vector.shape_cast %251 : vector<1x1x32xf32> to vector<1x32xf32>
    %cst_115 = arith.constant dense<0.000000e+00> : vector<128xf32>
    %253 = vector.multi_reduction <add>, %248, %cst_115 [1] : vector<128x32xf32> to vector<128xf32>
    %254 = vector.shape_cast %253 : vector<128xf32> to vector<128x1xf32>
    %cst_116 = arith.constant 3.200000e+01 : f32
    %255 = vector.broadcast %cst_116 : f32 to vector<128x1xf32>
    %256 = arith.divf %254, %255 : vector<128x1xf32>
    %257 = vector.broadcast %256 : vector<128x1xf32> to vector<128x32xf32>
    %258 = arith.subf %248, %257 : vector<128x32xf32>
    %259 = arith.mulf %258, %258 : vector<128x32xf32>
    %cst_117 = arith.constant dense<0.000000e+00> : vector<128xf32>
    %260 = vector.multi_reduction <add>, %259, %cst_117 [1] : vector<128x32xf32> to vector<128xf32>
    %261 = vector.shape_cast %260 : vector<128xf32> to vector<128x1xf32>
    %cst_118 = arith.constant 3.200000e+01 : f32
    %262 = vector.broadcast %cst_118 : f32 to vector<128x1xf32>
    %263 = arith.divf %261, %262 : vector<128x1xf32>
    %264 = vector.broadcast %256 : vector<128x1xf32> to vector<128x32xf32>
    %265 = arith.subf %248, %264 : vector<128x32xf32>
    %cst_119 = arith.constant 9.99999996E-13 : f32
    %266 = vector.broadcast %cst_119 : f32 to vector<128x1xf32>
    %267 = arith.addf %263, %266 : vector<128x1xf32>
    %268 = math.rsqrt %267 : vector<128x1xf32>
    %269 = vector.broadcast %268 : vector<128x1xf32> to vector<128x32xf32>
    %270 = arith.mulf %265, %269 : vector<128x32xf32>
    %271 = vector.broadcast %250 : vector<1x32xf32> to vector<128x32xf32>
    %272 = arith.mulf %270, %271 : vector<128x32xf32>
    %273 = vector.broadcast %252 : vector<1x32xf32> to vector<128x32xf32>
    %274 = arith.addf %272, %273 : vector<128x32xf32>
    %275 = vector.shape_cast %274 : vector<128x32xf32> to vector<16x8x32xf32>
    %276 = vector.extract_strided_slice %275 {offsets = [0, 0, 0], sizes = [16, 1, 32], strides = [1, 1, 1]} : vector<16x8x32xf32> to vector<16x1x32xf32>
    %277 = vector.shape_cast %276 : vector<16x1x32xf32> to vector<16x32xf32>
    %278 = arith.truncf %277 : vector<16x32xf32> to vector<16x32xbf16>
    %c0_120 = arith.constant 0 : index
    %c0_121 = arith.constant 0 : index
    %279 = vector.load %arg15[%c0_120, %c0_121] : memref<32x32xbf16, #tpu.memory_space<vmem>>, vector<32x32xbf16>
    %cst_122 = arith.constant dense<0.000000e+00> : vector<16x32xf32>
    %280 = tpu.matmul %278, %279, %cst_122 {dimension_numbers = #tpu.dot_dimension_numbers<[1], [0], [0], [1], [0, 0, 1, 1], [], []>} : vector<16x32xbf16>, vector<32x32xbf16>, vector<16x32xf32> -> vector<16x32xf32>
    %c0_123 = arith.constant 0 : index
    %c0_124 = arith.constant 0 : index
    %281 = vector.load %arg16[%c0_123, %c0_124] : memref<1x32xf32, #tpu.memory_space<vmem>>, vector<1x32xf32>
    %282 = vector.broadcast %281 : vector<1x32xf32> to vector<16x32xf32>
    %283 = arith.addf %280, %282 : vector<16x32xf32>
    %284 = math.tanh %283 : vector<16x32xf32>
    %285 = arith.truncf %284 : vector<16x32xf32> to vector<16x32xbf16>
    %c0_125 = arith.constant 0 : index
    %c0_126 = arith.constant 0 : index
    %286 = vector.load %arg17[%c0_125, %c0_126] : memref<32x128xbf16, #tpu.memory_space<vmem>>, vector<32x128xbf16>
    %cst_127 = arith.constant dense<0.000000e+00> : vector<16x128xf32>
    %287 = tpu.matmul %285, %286, %cst_127 {dimension_numbers = #tpu.dot_dimension_numbers<[1], [0], [0], [1], [0, 0, 1, 1], [], []>} : vector<16x32xbf16>, vector<32x128xbf16>, vector<16x128xf32> -> vector<16x128xf32>
    %c0_128 = arith.constant 0 : index
    %c0_129 = arith.constant 0 : index
    %288 = vector.load %arg18[%c0_128, %c0_129] : memref<1x128xf32, #tpu.memory_space<vmem>>, vector<1x128xf32>
    %289 = vector.broadcast %288 : vector<1x128xf32> to vector<16x128xf32>
    %290 = arith.addf %287, %289 : vector<16x128xf32>
    %c0_130 = arith.constant 0 : index
    %c0_131 = arith.constant 0 : index
    %291 = vector.load %arg19[%c0_130, %c0_131] : memref<16x128xf32, #tpu.memory_space<vmem>>, vector<16x128xf32>
    tpu.vector_store %arg19[%c0_130, %c0_131], %290 {strides = array<i32>} : memref<16x128xf32, #tpu.memory_space<vmem>>, vector<16x128xf32>,
    return
  }
  func.func @transform_0(%arg0: i32) -> (i32, i32) {
    %c0_i32 = arith.constant 0 : i32
    %c0_i32_0 = arith.constant 0 : i32
    return %arg0, %c0_i32 : i32, i32
  }
  func.func @transform_1(%arg0: i32) -> (i32, i32, i32) {
    %c0_i32 = arith.constant 0 : i32
    %c0_i32_0 = arith.constant 0 : i32
    %c0_i32_1 = arith.constant 0 : i32
    return %arg0, %c0_i32, %c0_i32_0 : i32, i32, i32
  }
  func.func @transform_2(%arg0: i32) -> (i32, i32, i32) {
    %c0_i32 = arith.constant 0 : i32
    %c0_i32_0 = arith.constant 0 : i32
    %c0_i32_1 = arith.constant 0 : i32
    %c0_i32_2 = arith.constant 0 : i32
    return %c0_i32, %c0_i32_0, %c0_i32_1 : i32, i32, i32
  }
  func.func @transform_3(%arg0: i32) -> (i32, i32, i32) {
    %c0_i32 = arith.constant 0 : i32
    %c0_i32_0 = arith.constant 0 : i32
    %c0_i32_1 = arith.constant 0 : i32
    %c0_i32_2 = arith.constant 0 : i32
    return %c0_i32, %c0_i32_0, %c0_i32_1 : i32, i32, i32
  }
  func.func @transform_4(%arg0: i32) -> (i32, i32, i32) {
    %c0_i32 = arith.constant 0 : i32
    %c0_i32_0 = arith.constant 0 : i32
    %c0_i32_1 = arith.constant 0 : i32
    %c0_i32_2 = arith.constant 0 : i32
    return %c0_i32, %c0_i32_0, %c0_i32_1 : i32, i32, i32
  }
  func.func @transform_5(%arg0: i32) -> (i32, i32, i32) {
    %c0_i32 = arith.constant 0 : i32
    %c0_i32_0 = arith.constant 0 : i32
    %c0_i32_1 = arith.constant 0 : i32
    %c0_i32_2 = arith.constant 0 : i32
    return %c0_i32, %c0_i32_0, %c0_i32_1 : i32, i32, i32
  }
  func.func @transform_6(%arg0: i32) -> (i32, i32, i32) {
    %c0_i32 = arith.constant 0 : i32
    %c0_i32_0 = arith.constant 0 : i32
    %c0_i32_1 = arith.constant 0 : i32
    %c0_i32_2 = arith.constant 0 : i32
    return %c0_i32, %c0_i32_0, %c0_i32_1 : i32, i32, i32
  }
  func.func @transform_7(%arg0: i32) -> (i32, i32, i32) {
    %c0_i32 = arith.constant 0 : i32
    %c0_i32_0 = arith.constant 0 : i32
    %c0_i32_1 = arith.constant 0 : i32
    %c0_i32_2 = arith.constant 0 : i32
    return %c0_i32, %c0_i32_0, %c0_i32_1 : i32, i32, i32
  }
  func.func @transform_8(%arg0: i32) -> (i32, i32, i32) {
    %c0_i32 = arith.constant 0 : i32
    %c0_i32_0 = arith.constant 0 : i32
    %c0_i32_1 = arith.constant 0 : i32
    %c0_i32_2 = arith.constant 0 : i32
    return %c0_i32, %c0_i32_0, %c0_i32_1 : i32, i32, i32
  }
  func.func @transform_9(%arg0: i32) -> (i32, i32, i32) {
    %c0_i32 = arith.constant 0 : i32
    %c0_i32_0 = arith.constant 0 : i32
    %c0_i32_1 = arith.constant 0 : i32
    %c0_i32_2 = arith.constant 0 : i32
    return %c0_i32, %c0_i32_0, %c0_i32_1 : i32, i32, i32
  }
  func.func @transform_10(%arg0: i32) -> (i32, i32, i32) {
    %c0_i32 = arith.constant 0 : i32
    %c0_i32_0 = arith.constant 0 : i32
    %c0_i32_1 = arith.constant 0 : i32
    %c0_i32_2 = arith.constant 0 : i32
    return %c0_i32, %c0_i32_0, %c0_i32_1 : i32, i32, i32
  }
  func.func @transform_11(%arg0: i32) -> (i32, i32, i32) {
    %c0_i32 = arith.constant 0 : i32
    %c0_i32_0 = arith.constant 0 : i32
    %c0_i32_1 = arith.constant 0 : i32
    %c0_i32_2 = arith.constant 0 : i32
    return %c0_i32, %c0_i32_0, %c0_i32_1 : i32, i32, i32
  }
  func.func @transform_12(%arg0: i32) -> (i32, i32, i32) {
    %c0_i32 = arith.constant 0 : i32
    %c0_i32_0 = arith.constant 0 : i32
    %c0_i32_1 = arith.constant 0 : i32
    %c0_i32_2 = arith.constant 0 : i32
    return %c0_i32, %c0_i32_0, %c0_i32_1 : i32, i32, i32
  }
  func.func @transform_13(%arg0: i32) -> (i32, i32, i32) {
    %c0_i32 = arith.constant 0 : i32
    %c0_i32_0 = arith.constant 0 : i32
    %c0_i32_1 = arith.constant 0 : i32
    %c0_i32_2 = arith.constant 0 : i32
    return %c0_i32, %c0_i32_0, %c0_i32_1 : i32, i32, i32
  }
  func.func @transform_14(%arg0: i32) -> (i32, i32) {
    %c0_i32 = arith.constant 0 : i32
    %c0_i32_0 = arith.constant 0 : i32
    %c0_i32_1 = arith.constant 0 : i32
    return %c0_i32, %c0_i32_0 : i32, i32
  }
  func.func @transform_15(%arg0: i32) -> (i32, i32) {
    %c0_i32 = arith.constant 0 : i32
    %c0_i32_0 = arith.constant 0 : i32
    %c0_i32_1 = arith.constant 0 : i32
    return %c0_i32, %c0_i32_0 : i32, i32
  }
  func.func @transform_16(%arg0: i32) -> (i32, i32) {
    %c0_i32 = arith.constant 0 : i32
    %c0_i32_0 = arith.constant 0 : i32
    %c0_i32_1 = arith.constant 0 : i32
    return %c0_i32, %c0_i32_0 : i32, i32
  }
  func.func @transform_17(%arg0: i32) -> (i32, i32) {
    %c0_i32 = arith.constant 0 : i32
    %c0_i32_0 = arith.constant 0 : i32
    %c0_i32_1 = arith.constant 0 : i32
    return %c0_i32, %c0_i32_0 : i32, i32
  }
  func.func @transform_18(%arg0: i32) -> (i32, i32) {
    %c0_i32 = arith.constant 0 : i32
    %c0_i32_0 = arith.constant 0 : i32
    return %arg0, %c0_i32 : i32, i32
  }
}

</mosaic_0001>

<llo_original>
// kernel: tpu_custom_call.1
$region0: #{tpu_custom_call.1}
  #allocation0 [shape = 'u32[]', space=smem, size = 0x4, offset = 0x4, fixed_abs, tag = 'smem constant byte address 0x4 - core index']
  #allocation1 [shape = 'u32[144,128]{1,0:T(1,128)}', space=vmem, size = 0x12000, scoped, tag = 'internal scratch']
  %s0 = inlined_call_operand.vmem [shape: f32[256,32], index: 0, kind: input, shape index: {}]
  %s1 = inlined_call_operand.vmem [shape: f32[32,8,8], index: 1, kind: input, shape index: {}]
  %s2 = inlined_call_operand.vmem [shape: bf16[2,32,96], index: 2, kind: input, shape index: {}]
  %s3 = inlined_call_operand.vmem [shape: f32[2,1,96], index: 3, kind: input, shape index: {}]
  %s4 = inlined_call_operand.vmem [shape: bf16[2,32,32], index: 4, kind: input, shape index: {}]
  %s5 = inlined_call_operand.vmem [shape: f32[2,1,32], index: 5, kind: input, shape index: {}]
  %s6 = inlined_call_operand.vmem [shape: f32[2,1,32], index: 6, kind: input, shape index: {}]
  %s7 = inlined_call_operand.vmem [shape: f32[2,1,32], index: 7, kind: input, shape index: {}]
  %s8 = inlined_call_operand.vmem [shape: bf16[2,32,64], index: 8, kind: input, shape index: {}]
  %s9 = inlined_call_operand.vmem [shape: f32[2,1,64], index: 9, kind: input, shape index: {}]
  %s10 = inlined_call_operand.vmem [shape: bf16[2,64,32], index: 10, kind: input, shape index: {}]
  %s11 = inlined_call_operand.vmem [shape: f32[2,1,32], index: 11, kind: input, shape index: {}]
  %s12 = inlined_call_operand.vmem [shape: f32[2,1,32], index: 12, kind: input, shape index: {}]
  %s13 = inlined_call_operand.vmem [shape: f32[2,1,32], index: 13, kind: input, shape index: {}]
  %s14 = inlined_call_operand.vmem [shape: bf16[32,32], index: 14, kind: input, shape index: {}]
  %s15 = inlined_call_operand.vmem [shape: f32[1,32], index: 15, kind: input, shape index: {}]
  %s16 = inlined_call_operand.vmem [shape: bf16[32,128], index: 16, kind: input, shape index: {}]
  %s17 = inlined_call_operand.vmem [shape: f32[1,128], index: 17, kind: input, shape index: {}]
  %s18 = inlined_call_operand.hbm [shape: f32[32,128], index: 18, kind: output, shape index: {}]
  %s19 = sld [smem:[#allocation0]]
  $region105: #{tpu_custom_call.1} parent=0
    _
  %s21 = ssub.s32 1, %s19
  %s22 = scalar_select 0, %s21, %s19
  $region1: #{tpu_custom_call.1} parent=0
    #allocation2 [shape = 'u8[16384]{0}', space=vmem, size = 0x4000, scoped, tag = 'output window, operand 0']
    #allocation3 [shape = 's32[2]{0}', space=sflag, size = 0x8, scoped, tag = 'scoped memory for tpu_custom_call.1']
    %23 = vsyncpa [#allocation3], 0
    %s24 = scalar_lea.sflag [#allocation3], 1
    %25 = vsyncpa %s24, 0
    loop: start=0, step=1, limit=4
    $region2: #{tpu_custom_call.1} parent=1 // loop_pre_header
      _
    $region3: #{tpu_custom_call.1} parent=1 // loop_header
      %s27 = sphi 0, %s31
      %p28 = scmp.ge.s32.totalorder %s27, 4
      %s37 = sphi 0, %s39
      %s40 = sphi 0, %s37
      %s41 = sphi 0, %s40
      %s57 = sphi 0, %s41
      %s63 = sphi 0, %s65
      %s66 = sphi 0, %s63
      %s67 = sphi 0, %s66
      %s83 = sphi 0, %s67
      %s87 = sphi 0, %s87
      %s89 = sphi 0, %s87
      %s90 = sphi 0, %s89
      %s104 = sphi 0, %s90
      %s108 = sphi 0, %s108
      %s110 = sphi 0, %s108
      %s111 = sphi 0, %s110
      %s125 = sphi 0, %s111
      %s129 = sphi 0, %s129
      %s131 = sphi 0, %s129
      %s132 = sphi 0, %s131
      %s146 = sphi 0, %s132
      %s150 = sphi 0, %s150
      %s152 = sphi 0, %s150
      %s153 = sphi 0, %s152
      %s167 = sphi 0, %s153
      %s171 = sphi 0, %s171
      %s173 = sphi 0, %s171
      %s174 = sphi 0, %s173
      %s188 = sphi 0, %s174
      %s192 = sphi 0, %s192
      %s194 = sphi 0, %s192
      %s195 = sphi 0, %s194
      %s209 = sphi 0, %s195
      %s213 = sphi 0, %s213
      %s215 = sphi 0, %s213
      %s216 = sphi 0, %s215
      %s230 = sphi 0, %s216
      %s234 = sphi 0, %s234
      %s236 = sphi 0, %s234
      %s237 = sphi 0, %s236
      %s251 = sphi 0, %s237
      %s255 = sphi 0, %s255
      %s257 = sphi 0, %s255
      %s258 = sphi 0, %s257
      %s272 = sphi 0, %s258
      %s276 = sphi 0, %s276
      %s278 = sphi 0, %s276
      %s279 = sphi 0, %s278
      %s293 = sphi 0, %s279
      %s297 = sphi 0, %s297
      %s299 = sphi 0, %s297
      %s300 = sphi 0, %s299
      %s314 = sphi 0, %s300
      %s318 = sphi 0, %s318
      %s320 = sphi 0, %s318
      %s321 = sphi 0, %s320
      %s335 = sphi 0, %s321
      %s339 = sphi 0, %s339
      %s341 = sphi 0, %s339
      %s342 = sphi 0, %s341
      %s356 = sphi 0, %s342
      %s360 = sphi 0, %s360
      %s362 = sphi 0, %s360
      %s363 = sphi 0, %s362
      %s377 = sphi 0, %s363
      %s381 = sphi 0, %s381
      %s383 = sphi 0, %s381
      %s384 = sphi 0, %s383
      %s398 = sphi 0, %s384
      %s402 = sphi 0, %s402
      %s404 = sphi 0, %s402
      %s405 = sphi 0, %s404
      %s419 = sphi 0, %s405
      %s425 = sphi 0, %s427
      %s428 = sphi 0, %s425
      %s429 = sphi 0, %s428
      %s445 = sphi 0, %s429
    $region4: #{tpu_custom_call.1} parent=1 // loop_header_branch
      %30 = sbr.rel (%p28) target = $region8
    $region5: #{tpu_custom_call.1} parent=1 // loop_body
      %s32 = ssub.s32 %s27, 1
      %s33 = ssub.s32 %s27, 2
      %s34 = sadd.s32 %s27, 1
      %s35 = ssub.s32 %s27, %s34
      %p36 = scmp.eq.s32.totalorder %s35, 0
      %s38 = sadd.s32 %s37, 1
      %s39 = scalar_select %p36, %s37, %s38
      %p42 = pneg %p36
      %p43 = scmp.eq.s32.totalorder %s27, 1
      %p44 = por %p42, %p43
      %p45 = scmp.ne.s32.totalorder %s37, %s40
      %p46 = scmp.eq.s32.totalorder %s27, 0
      %p47 = por %p45, %p46
      %p48 = scmp.ne.s32.totalorder %s37, %s40
      %p49 = scmp.eq.s32.totalorder %s32, 1
      %p50 = por %p48, %p49
      %p51 = scmp.ne.s32.totalorder %s40, %s41
      %p52 = scmp.eq.s32.totalorder %s32, 0
      %p53 = por %p51, %p52
      %p54 = scmp.ne.s32.totalorder %s40, %s41
      %p55 = scmp.eq.s32.totalorder %s33, 1
      %p56 = por %p54, %p55
      %p58 = scmp.ne.s32.totalorder %s41, %s57
      %p59 = scmp.eq.s32.totalorder %s33, 0
      %p60 = por %p58, %p59
      %s61 = ssub.s32 %s27, %s34
      %p62 = scmp.eq.s32.totalorder %s61, 0
      %s64 = sadd.s32 %s63, 1
      %s65 = scalar_select %p62, %s63, %s64
      %p68 = pneg %p62
      %p69 = scmp.eq.s32.totalorder %s27, 1
      %p70 = por %p68, %p69
      %p71 = scmp.ne.s32.totalorder %s63, %s66
      %p72 = scmp.eq.s32.totalorder %s27, 0
      %p73 = por %p71, %p72
      %p74 = scmp.ne.s32.totalorder %s63, %s66
      %p75 = scmp.eq.s32.totalorder %s32, 1
      %p76 = por %p74, %p75
      %p77 = scmp.ne.s32.totalorder %s66, %s67
      %p78 = scmp.eq.s32.totalorder %s32, 0
      %p79 = por %p77, %p78
      %p80 = scmp.ne.s32.totalorder %s66, %s67
      %p81 = scmp.eq.s32.totalorder %s33, 1
      %p82 = por %p80, %p81
      %p84 = scmp.ne.s32.totalorder %s67, %s83
      %p85 = scmp.eq.s32.totalorder %s33, 0
      %p86 = por %p84, %p85
      %s88 = sadd.s32 %s87, 1
      %p91 = scmp.eq.s32.totalorder %s27, 1
      %p92 = scmp.ne.s32.totalorder %s87, %s89
      %p93 = scmp.eq.s32.totalorder %s27, 0
      %p94 = por %p92, %p93
      %p95 = scmp.ne.s32.totalorder %s87, %s89
      %p96 = scmp.eq.s32.totalorder %s32, 1
      %p97 = por %p95, %p96
      %p98 = scmp.ne.s32.totalorder %s89, %s90
      %p99 = scmp.eq.s32.totalorder %s32, 0
      %p100 = por %p98, %p99
      %p101 = scmp.ne.s32.totalorder %s89, %s90
      %p102 = scmp.eq.s32.totalorder %s33, 1
      %p103 = por %p101, %p102
      %p105 = scmp.ne.s32.totalorder %s90, %s104
      %p106 = scmp.eq.s32.totalorder %s33, 0
      %p107 = por %p105, %p106
      %s109 = sadd.s32 %s108, 1
      %p112 = scmp.eq.s32.totalorder %s27, 1
      %p113 = scmp.ne.s32.totalorder %s108, %s110
      %p114 = scmp.eq.s32.totalorder %s27, 0
      %p115 = por %p113, %p114
      %p116 = scmp.ne.s32.totalorder %s108, %s110
      %p117 = scmp.eq.s32.totalorder %s32, 1
      %p118 = por %p116, %p117
      %p119 = scmp.ne.s32.totalorder %s110, %s111
      %p120 = scmp.eq.s32.totalorder %s32, 0
      %p121 = por %p119, %p120
      %p122 = scmp.ne.s32.totalorder %s110, %s111
      %p123 = scmp.eq.s32.totalorder %s33, 1
      %p124 = por %p122, %p123
      %p126 = scmp.ne.s32.totalorder %s111, %s125
      %p127 = scmp.eq.s32.totalorder %s33, 0
      %p128 = por %p126, %p127
      %s130 = sadd.s32 %s129, 1
      %p133 = scmp.eq.s32.totalorder %s27, 1
      %p134 = scmp.ne.s32.totalorder %s129, %s131
      %p135 = scmp.eq.s32.totalorder %s27, 0
      %p136 = por %p134, %p135
      %p137 = scmp.ne.s32.totalorder %s129, %s131
      %p138 = scmp.eq.s32.totalorder %s32, 1
      %p139 = por %p137, %p138
      %p140 = scmp.ne.s32.totalorder %s131, %s132
      %p141 = scmp.eq.s32.totalorder %s32, 0
      %p142 = por %p140, %p141
      %p143 = scmp.ne.s32.totalorder %s131, %s132
      %p144 = scmp.eq.s32.totalorder %s33, 1
      %p145 = por %p143, %p144
      %p147 = scmp.ne.s32.totalorder %s132, %s146
      %p148 = scmp.eq.s32.totalorder %s33, 0
      %p149 = por %p147, %p148
      %s151 = sadd.s32 %s150, 1
      %p154 = scmp.eq.s32.totalorder %s27, 1
      %p155 = scmp.ne.s32.totalorder %s150, %s152
      %p156 = scmp.eq.s32.totalorder %s27, 0
      %p157 = por %p155, %p156
      %p158 = scmp.ne.s32.totalorder %s150, %s152
      %p159 = scmp.eq.s32.totalorder %s32, 1
      %p160 = por %p158, %p159
      %p161 = scmp.ne.s32.totalorder %s152, %s153
      %p162 = scmp.eq.s32.totalorder %s32, 0
      %p163 = por %p161, %p162
      %p164 = scmp.ne.s32.totalorder %s152, %s153
      %p165 = scmp.eq.s32.totalorder %s33, 1
      %p166 = por %p164, %p165
      %p168 = scmp.ne.s32.totalorder %s153, %s167
      %p169 = scmp.eq.s32.totalorder %s33, 0
      %p170 = por %p168, %p169
      %s172 = sadd.s32 %s171, 1
      %p175 = scmp.eq.s32.totalorder %s27, 1
      %p176 = scmp.ne.s32.totalorder %s171, %s173
      %p177 = scmp.eq.s32.totalorder %s27, 0
      %p178 = por %p176, %p177
      %p179 = scmp.ne.s32.totalorder %s171, %s173
      %p180 = scmp.eq.s32.totalorder %s32, 1
      %p181 = por %p179, %p180
      %p182 = scmp.ne.s32.totalorder %s173, %s174
      %p183 = scmp.eq.s32.totalorder %s32, 0
      %p184 = por %p182, %p183
      %p185 = scmp.ne.s32.totalorder %s173, %s174
      %p186 = scmp.eq.s32.totalorder %s33, 1
      %p187 = por %p185, %p186
      %p189 = scmp.ne.s32.totalorder %s174, %s188
      %p190 = scmp.eq.s32.totalorder %s33, 0
      %p191 = por %p189, %p190
      %s193 = sadd.s32 %s192, 1
      %p196 = scmp.eq.s32.totalorder %s27, 1
      %p197 = scmp.ne.s32.totalorder %s192, %s194
      %p198 = scmp.eq.s32.totalorder %s27, 0
      %p199 = por %p197, %p198
      %p200 = scmp.ne.s32.totalorder %s192, %s194
      %p201 = scmp.eq.s32.totalorder %s32, 1
      %p202 = por %p200, %p201
      %p203 = scmp.ne.s32.totalorder %s194, %s195
      %p204 = scmp.eq.s32.totalorder %s32, 0
      %p205 = por %p203, %p204
      %p206 = scmp.ne.s32.totalorder %s194, %s195
      %p207 = scmp.eq.s32.totalorder %s33, 1
      %p208 = por %p206, %p207
      %p210 = scmp.ne.s32.totalorder %s195, %s209
      %p211 = scmp.eq.s32.totalorder %s33, 0
      %p212 = por %p210, %p211
      %s214 = sadd.s32 %s213, 1
      %p217 = scmp.eq.s32.totalorder %s27, 1
      %p218 = scmp.ne.s32.totalorder %s213, %s215
      %p219 = scmp.eq.s32.totalorder %s27, 0
      %p220 = por %p218, %p219
      %p221 = scmp.ne.s32.totalorder %s213, %s215
      %p222 = scmp.eq.s32.totalorder %s32, 1
      %p223 = por %p221, %p222
      %p224 = scmp.ne.s32.totalorder %s215, %s216
      %p225 = scmp.eq.s32.totalorder %s32, 0
      %p226 = por %p224, %p225
      %p227 = scmp.ne.s32.totalorder %s215, %s216
      %p228 = scmp.eq.s32.totalorder %s33, 1
      %p229 = por %p227, %p228
      %p231 = scmp.ne.s32.totalorder %s216, %s230
      %p232 = scmp.eq.s32.totalorder %s33, 0
      %p233 = por %p231, %p232
      %s235 = sadd.s32 %s234, 1
      %p238 = scmp.eq.s32.totalorder %s27, 1
      %p239 = scmp.ne.s32.totalorder %s234, %s236
      %p240 = scmp.eq.s32.totalorder %s27, 0
      %p241 = por %p239, %p240
      %p242 = scmp.ne.s32.totalorder %s234, %s236
      %p243 = scmp.eq.s32.totalorder %s32, 1
      %p244 = por %p242, %p243
      %p245 = scmp.ne.s32.totalorder %s236, %s237
      %p246 = scmp.eq.s32.totalorder %s32, 0
      %p247 = por %p245, %p246
      %p248 = scmp.ne.s32.totalorder %s236, %s237
      %p249 = scmp.eq.s32.totalorder %s33, 1
      %p250 = por %p248, %p249
      %p252 = scmp.ne.s32.totalorder %s237, %s251
      %p253 = scmp.eq.s32.totalorder %s33, 0
      %p254 = por %p252, %p253
      %s256 = sadd.s32 %s255, 1
      %p259 = scmp.eq.s32.totalorder %s27, 1
      %p260 = scmp.ne.s32.totalorder %s255, %s257
      %p261 = scmp.eq.s32.totalorder %s27, 0
      %p262 = por %p260, %p261
      %p263 = scmp.ne.s32.totalorder %s255, %s257
      %p264 = scmp.eq.s32.totalorder %s32, 1
      %p265 = por %p263, %p264
      %p266 = scmp.ne.s32.totalorder %s257, %s258
      %p267 = scmp.eq.s32.totalorder %s32, 0
      %p268 = por %p266, %p267
      %p269 = scmp.ne.s32.totalorder %s257, %s258
      %p270 = scmp.eq.s32.totalorder %s33, 1
      %p271 = por %p269, %p270
      %p273 = scmp.ne.s32.totalorder %s258, %s272
      %p274 = scmp.eq.s32.totalorder %s33, 0
      %p275 = por %p273, %p274
      %s277 = sadd.s32 %s276, 1
      %p280 = scmp.eq.s32.totalorder %s27, 1
      %p281 = scmp.ne.s32.totalorder %s276, %s278
      %p282 = scmp.eq.s32.totalorder %s27, 0
      %p283 = por %p281, %p282
      %p284 = scmp.ne.s32.totalorder %s276, %s278
      %p285 = scmp.eq.s32.totalorder %s32, 1
      %p286 = por %p284, %p285
      %p287 = scmp.ne.s32.totalorder %s278, %s279
      %p288 = scmp.eq.s32.totalorder %s32, 0
      %p289 = por %p287, %p288
      %p290 = scmp.ne.s32.totalorder %s278, %s279
      %p291 = scmp.eq.s32.totalorder %s33, 1
      %p292 = por %p290, %p291
      %p294 = scmp.ne.s32.totalorder %s279, %s293
      %p295 = scmp.eq.s32.totalorder %s33, 0
      %p296 = por %p294, %p295
      %s298 = sadd.s32 %s297, 1
      %p301 = scmp.eq.s32.totalorder %s27, 1
      %p302 = scmp.ne.s32.totalorder %s297, %s299
      %p303 = scmp.eq.s32.totalorder %s27, 0
      %p304 = por %p302, %p303
      %p305 = scmp.ne.s32.totalorder %s297, %s299
      %p306 = scmp.eq.s32.totalorder %s32, 1
      %p307 = por %p305, %p306
      %p308 = scmp.ne.s32.totalorder %s299, %s300
      %p309 = scmp.eq.s32.totalorder %s32, 0
      %p310 = por %p308, %p309
      %p311 = scmp.ne.s32.totalorder %s299, %s300
      %p312 = scmp.eq.s32.totalorder %s33, 1
      %p313 = por %p311, %p312
      %p315 = scmp.ne.s32.totalorder %s300, %s314
      %p316 = scmp.eq.s32.totalorder %s33, 0
      %p317 = por %p315, %p316
      %s319 = sadd.s32 %s318, 1
      %p322 = scmp.eq.s32.totalorder %s27, 1
      %p323 = scmp.ne.s32.totalorder %s318, %s320
      %p324 = scmp.eq.s32.totalorder %s27, 0
      %p325 = por %p323, %p324
      %p326 = scmp.ne.s32.totalorder %s318, %s320
      %p327 = scmp.eq.s32.totalorder %s32, 1
      %p328 = por %p326, %p327
      %p329 = scmp.ne.s32.totalorder %s320, %s321
      %p330 = scmp.eq.s32.totalorder %s32, 0
      %p331 = por %p329, %p330
      %p332 = scmp.ne.s32.totalorder %s320, %s321
      %p333 = scmp.eq.s32.totalorder %s33, 1
      %p334 = por %p332, %p333
      %p336 = scmp.ne.s32.totalorder %s321, %s335
      %p337 = scmp.eq.s32.totalorder %s33, 0
      %p338 = por %p336, %p337
      %s340 = sadd.s32 %s339, 1
      %p343 = scmp.eq.s32.totalorder %s27, 1
      %p344 = scmp.ne.s32.totalorder %s339, %s341
      %p345 = scmp.eq.s32.totalorder %s27, 0
      %p346 = por %p344, %p345
      %p347 = scmp.ne.s32.totalorder %s339, %s341
      %p348 = scmp.eq.s32.totalorder %s32, 1
      %p349 = por %p347, %p348
      %p350 = scmp.ne.s32.totalorder %s341, %s342
      %p351 = scmp.eq.s32.totalorder %s32, 0
      %p352 = por %p350, %p351
      %p353 = scmp.ne.s32.totalorder %s341, %s342
      %p354 = scmp.eq.s32.totalorder %s33, 1
      %p355 = por %p353, %p354
      %p357 = scmp.ne.s32.totalorder %s342, %s356
      %p358 = scmp.eq.s32.totalorder %s33, 0
      %p359 = por %p357, %p358
      %s361 = sadd.s32 %s360, 1
      %p364 = scmp.eq.s32.totalorder %s27, 1
      %p365 = scmp.ne.s32.totalorder %s360, %s362
      %p366 = scmp.eq.s32.totalorder %s27, 0
      %p367 = por %p365, %p366
      %p368 = scmp.ne.s32.totalorder %s360, %s362
      %p369 = scmp.eq.s32.totalorder %s32, 1
      %p370 = por %p368, %p369
      %p371 = scmp.ne.s32.totalorder %s362, %s363
      %p372 = scmp.eq.s32.totalorder %s32, 0
      %p373 = por %p371, %p372
      %p374 = scmp.ne.s32.totalorder %s362, %s363
      %p375 = scmp.eq.s32.totalorder %s33, 1
      %p376 = por %p374, %p375
      %p378 = scmp.ne.s32.totalorder %s363, %s377
      %p379 = scmp.eq.s32.totalorder %s33, 0
      %p380 = por %p378, %p379
      %s382 = sadd.s32 %s381, 1
      %p385 = scmp.eq.s32.totalorder %s27, 1
      %p386 = scmp.ne.s32.totalorder %s381, %s383
      %p387 = scmp.eq.s32.totalorder %s27, 0
      %p388 = por %p386, %p387
      %p389 = scmp.ne.s32.totalorder %s381, %s383
      %p390 = scmp.eq.s32.totalorder %s32, 1
      %p391 = por %p389, %p390
      %p392 = scmp.ne.s32.totalorder %s383, %s384
      %p393 = scmp.eq.s32.totalorder %s32, 0
      %p394 = por %p392, %p393
      %p395 = scmp.ne.s32.totalorder %s383, %s384
      %p396 = scmp.eq.s32.totalorder %s33, 1
      %p397 = por %p395, %p396
      %p399 = scmp.ne.s32.totalorder %s384, %s398
      %p400 = scmp.eq.s32.totalorder %s33, 0
      %p401 = por %p399, %p400
      %s403 = sadd.s32 %s402, 1
      %p406 = scmp.eq.s32.totalorder %s27, 1
      %p407 = scmp.ne.s32.totalorder %s402, %s404
      %p408 = scmp.eq.s32.totalorder %s27, 0
      %p409 = por %p407, %p408
      %p410 = scmp.ne.s32.totalorder %s402, %s404
      %p411 = scmp.eq.s32.totalorder %s32, 1
      %p412 = por %p410, %p411
      %p413 = scmp.ne.s32.totalorder %s404, %s405
      %p414 = scmp.eq.s32.totalorder %s32, 0
      %p415 = por %p413, %p414
      %p416 = scmp.ne.s32.totalorder %s404, %s405
      %p417 = scmp.eq.s32.totalorder %s33, 1
      %p418 = por %p416, %p417
      %p420 = scmp.ne.s32.totalorder %s405, %s419
      %p421 = scmp.eq.s32.totalorder %s33, 0
      %p422 = por %p420, %p421
      %s423 = ssub.s32 %s27, %s34
      %p424 = scmp.eq.s32.totalorder %s423, 0
      %s426 = sadd.s32 %s425, 1
      %s427 = scalar_select %p424, %s425, %s426
      %p430 = pneg %p424
      %p431 = scmp.eq.s32.totalorder %s27, 1
      %p432 = por %p430, %p431
      %p433 = scmp.ne.s32.totalorder %s425, %s428
      %p434 = scmp.eq.s32.totalorder %s27, 0
      %p435 = por %p433, %p434
      %p436 = scmp.ne.s32.totalorder %s425, %s428
      %p437 = scmp.eq.s32.totalorder %s32, 1
      %p438 = por %p436, %p437
      %p439 = scmp.ne.s32.totalorder %s428, %s429
      %p440 = scmp.eq.s32.totalorder %s32, 0
      %p441 = por %p439, %p440
      %p442 = scmp.ne.s32.totalorder %s428, %s429
      %p443 = scmp.eq.s32.totalorder %s33, 1
      %p444 = por %p442, %p443
      %p446 = scmp.ne.s32.totalorder %s429, %s445
      %p447 = scmp.eq.s32.totalorder %s33, 0
      %p448 = por %p446, %p447
      %p449 = scmp.le.s32.totalorder 1, %s27
      %p450 = scmp.lt.s32.totalorder %s27, 3
      %p451 = pnand %p449, %p450
      %p452 = pneg %p451
      // Predicated region
      $region9: #{tpu_custom_call.1} parent=5 // pred_check
        _
      $region10: #{tpu_custom_call.1} parent=5 // pred_check_branch
        %454 = sbr.rel (%p451) target = $region12
      $region11: #{tpu_custom_call.1} parent=5 // pred_region
        %s455 = ssub.s32 %s27, 1
        // Predicated region
        $region13: #{tpu_custom_call.1} parent=11 // pred_check
          %p456 = pneg %p100
        $region14: #{tpu_custom_call.1} parent=11 // pred_check_branch
          %458 = sbr.rel (%p456) target = $region16
        $region15: #{tpu_custom_call.1} parent=11 // pred_region
          _
        $region16: #{tpu_custom_call.1} parent=11 // pred_fallthru
          _
        // Predicated region
        $region17: #{tpu_custom_call.1} parent=11 // pred_check
          %p459 = pneg %p121
        $region18: #{tpu_custom_call.1} parent=11 // pred_check_branch
          %461 = sbr.rel (%p459) target = $region20
        $region19: #{tpu_custom_call.1} parent=11 // pred_region
          _
        $region20: #{tpu_custom_call.1} parent=11 // pred_fallthru
          _
        // Predicated region
        $region21: #{tpu_custom_call.1} parent=11 // pred_check
          %p462 = pneg %p142
        $region22: #{tpu_custom_call.1} parent=11 // pred_check_branch
          %464 = sbr.rel (%p462) target = $region24
        $region23: #{tpu_custom_call.1} parent=11 // pred_region
          _
        $region24: #{tpu_custom_call.1} parent=11 // pred_fallthru
          _
        // Predicated region
        $region25: #{tpu_custom_call.1} parent=11 // pred_check
          %p465 = pneg %p163
        $region26: #{tpu_custom_call.1} parent=11 // pred_check_branch
          %467 = sbr.rel (%p465) target = $region28
        $region27: #{tpu_custom_call.1} parent=11 // pred_region
          _
        $region28: #{tpu_custom_call.1} parent=11 // pred_fallthru
          _
        // Predicated region
        $region29: #{tpu_custom_call.1} parent=11 // pred_check
          %p468 = pneg %p184
        $region30: #{tpu_custom_call.1} parent=11 // pred_check_branch
          %470 = sbr.rel (%p468) target = $region32
        $region31: #{tpu_custom_call.1} parent=11 // pred_region
          _
        $region32: #{tpu_custom_call.1} parent=11 // pred_fallthru
          _
        // Predicated region
        $region33: #{tpu_custom_call.1} parent=11 // pred_check
          %p471 = pneg %p205
        $region34: #{tpu_custom_call.1} parent=11 // pred_check_branch
          %473 = sbr.rel (%p471) target = $region36
        $region35: #{tpu_custom_call.1} parent=11 // pred_region
          _
        $region36: #{tpu_custom_call.1} parent=11 // pred_fallthru
          _
        // Predicated region
        $region37: #{tpu_custom_call.1} parent=11 // pred_check
          %p474 = pneg %p226
        $region38: #{tpu_custom_call.1} parent=11 // pred_check_branch
          %476 = sbr.rel (%p474) target = $region40
        $region39: #{tpu_custom_call.1} parent=11 // pred_region
          _
        $region40: #{tpu_custom_call.1} parent=11 // pred_fallthru
          _
        // Predicated region
        $region41: #{tpu_custom_call.1} parent=11 // pred_check
          %p477 = pneg %p247
        $region42: #{tpu_custom_call.1} parent=11 // pred_check_branch
          %479 = sbr.rel (%p477) target = $region44
        $region43: #{tpu_custom_call.1} parent=11 // pred_region
          _
        $region44: #{tpu_custom_call.1} parent=11 // pred_fallthru
          _
        // Predicated region
        $region45: #{tpu_custom_call.1} parent=11 // pred_check
          %p480 = pneg %p268
        $region46: #{tpu_custom_call.1} parent=11 // pred_check_branch
          %482 = sbr.rel (%p480) target = $region48
        $region47: #{tpu_custom_call.1} parent=11 // pred_region
          _
        $region48: #{tpu_custom_call.1} parent=11 // pred_fallthru
          _
        // Predicated region
        $region49: #{tpu_custom_call.1} parent=11 // pred_check
          %p483 = pneg %p289
        $region50: #{tpu_custom_call.1} parent=11 // pred_check_branch
          %485 = sbr.rel (%p483) target = $region52
        $region51: #{tpu_custom_call.1} parent=11 // pred_region
          _
        $region52: #{tpu_custom_call.1} parent=11 // pred_fallthru
          _
        // Predicated region
        $region53: #{tpu_custom_call.1} parent=11 // pred_check
          %p486 = pneg %p310
        $region54: #{tpu_custom_call.1} parent=11 // pred_check_branch
          %488 = sbr.rel (%p486) target = $region56
        $region55: #{tpu_custom_call.1} parent=11 // pred_region
          _
        $region56: #{tpu_custom_call.1} parent=11 // pred_fallthru
          _
        // Predicated region
        $region57: #{tpu_custom_call.1} parent=11 // pred_check
          %p489 = pneg %p331
        $region58: #{tpu_custom_call.1} parent=11 // pred_check_branch
          %491 = sbr.rel (%p489) target = $region60
        $region59: #{tpu_custom_call.1} parent=11 // pred_region
          _
        $region60: #{tpu_custom_call.1} parent=11 // pred_fallthru
          _
        // Predicated region
        $region61: #{tpu_custom_call.1} parent=11 // pred_check
          %p492 = pneg %p352
        $region62: #{tpu_custom_call.1} parent=11 // pred_check_branch
          %494 = sbr.rel (%p492) target = $region64
        $region63: #{tpu_custom_call.1} parent=11 // pred_region
          _
        $region64: #{tpu_custom_call.1} parent=11 // pred_fallthru
          _
        // Predicated region
        $region65: #{tpu_custom_call.1} parent=11 // pred_check
          %p495 = pneg %p373
        $region66: #{tpu_custom_call.1} parent=11 // pred_check_branch
          %497 = sbr.rel (%p495) target = $region68
        $region67: #{tpu_custom_call.1} parent=11 // pred_region
          _
        $region68: #{tpu_custom_call.1} parent=11 // pred_fallthru
          _
        // Predicated region
        $region69: #{tpu_custom_call.1} parent=11 // pred_check
          %p498 = pneg %p394
        $region70: #{tpu_custom_call.1} parent=11 // pred_check_branch
          %500 = sbr.rel (%p498) target = $region72
        $region71: #{tpu_custom_call.1} parent=11 // pred_region
          _
        $region72: #{tpu_custom_call.1} parent=11 // pred_fallthru
          _
        // Predicated region
        $region73: #{tpu_custom_call.1} parent=11 // pred_check
          %p501 = pneg %p415
        $region74: #{tpu_custom_call.1} parent=11 // pred_check_branch
          %503 = sbr.rel (%p501) target = $region76
        $region75: #{tpu_custom_call.1} parent=11 // pred_region
          _
        $region76: #{tpu_custom_call.1} parent=11 // pred_fallthru
          _
      $region12: #{tpu_custom_call.1} parent=5 // pred_fallthru
        _
      %p504 = scmp.lt.s32.totalorder %s27, 2
      // Predicated region
      $region77: #{tpu_custom_call.1} parent=5 // pred_check
        %p505 = pneg %p504
      $region78: #{tpu_custom_call.1} parent=5 // pred_check_branch
        %507 = sbr.rel (%p505) target = $region80
      $region79: #{tpu_custom_call.1} parent=5 // pred_region
        // Predicated region
        $region81: #{tpu_custom_call.1} parent=79 // pred_check
          %p508 = pneg %p47
        $region82: #{tpu_custom_call.1} parent=79 // pred_check_branch
          %510 = sbr.rel (%p508) target = $region84
        $region83: #{tpu_custom_call.1} parent=79 // pred_region
          %s511 = smul.u32 16, %s27
          %p512 = scmp.lt.s32.totalorder %s511, 31
          %s513 = scalar_select %p512, %s511, 31
          %s514 = smul.addr %s513, 8
          %s515 = scalar_lea.vmem %s0, %s514
          %s516 = smul.u32 16, %s27
        $region84: #{tpu_custom_call.1} parent=79 // pred_fallthru
          _
        // Predicated region
        $region85: #{tpu_custom_call.1} parent=79 // pred_check
          %p517 = pneg %p73
        $region86: #{tpu_custom_call.1} parent=79 // pred_check_branch
          %519 = sbr.rel (%p517) target = $region88
        $region87: #{tpu_custom_call.1} parent=79 // pred_region
          %s520 = smul.u32 16, %s27
          %p521 = scmp.lt.s32.totalorder %s520, 31
          %s522 = scalar_select %p521, %s520, 31
          %s523 = smul.addr %s522, 8
          %s524 = scalar_lea.vmem %s1, %s523
          %s525 = smul.u32 16, %s27
        $region88: #{tpu_custom_call.1} parent=79 // pred_fallthru
          _
      $region80: #{tpu_custom_call.1} parent=5 // pred_fallthru
        _
      %p526 = scmp.le.s32.totalorder 1, %s27
      %p527 = scmp.lt.s32.totalorder %s27, 3
      %p528 = pnand %p526, %p527
      %p529 = pneg %p528
      // Predicated region
      $region89: #{tpu_custom_call.1} parent=5 // pred_check
        _
      $region90: #{tpu_custom_call.1} parent=5 // pred_check_branch
        %531 = sbr.rel (%p528) target = $region92
      $region91: #{tpu_custom_call.1} parent=5 // pred_region
        %s532 = ssub.s32 %s27, 1
        %s533 = smul.u32 16, %s32
        %p534 = scmp.lt.s32.totalorder %s533, 31
        %s535 = scalar_select %p534, %s533, 31
        %s536 = smul.addr %s535, 8
        %s537 = scalar_lea.vmem %s0, %s536
        %p538 = pneg %p53
        %p539 = pneg %p50
        %s540 = smul.u32 16, %s32
        %p541 = scmp.lt.s32.totalorder %s540, 31
        %s542 = scalar_select %p541, %s540, 31
        %s543 = smul.addr %s542, 8
        %s544 = scalar_lea.vmem %s1, %s543
        %p545 = pneg %p79
        %p546 = pneg %p76
        %p547 = pneg %p100
        %p548 = pneg %p97
        %p549 = pneg %p121
        %p550 = pneg %p118
        %p551 = pneg %p142
        %p552 = pneg %p139
        %p553 = pneg %p163
        %p554 = pneg %p160
        %p555 = pneg %p184
        %p556 = pneg %p181
        %p557 = pneg %p205
        %p558 = pneg %p202
        %p559 = pneg %p226
        %p560 = pneg %p223
        %p561 = pneg %p247
        %p562 = pneg %p244
        %p563 = pneg %p268
        %p564 = pneg %p265
        %p565 = pneg %p289
        %p566 = pneg %p286
        %p567 = pneg %p310
        %p568 = pneg %p307
        %p569 = pneg %p331
        %p570 = pneg %p328
        %p571 = pneg %p352
        %p572 = pneg %p349
        %p573 = pneg %p373
        %p574 = pneg %p370
        %p575 = pneg %p394
        %p576 = pneg %p391
        %p577 = pneg %p415
        %p578 = pneg %p412
        %p579 = pneg %p441
        %p580 = pneg %p438
        %s581 = sand.u32 %s428, 1
        %s582 = scalar_lea.sflag [#allocation3], %s581
        %s583 = sand.u32 %s428, 1
        %s584 = smul.addr %s583, 16
        %s585 = scalar_lea.vmem [#allocation2], %s584
        %s586 = smul.u32 16, %s32
        %p587 = scmp.lt.s32.totalorder %s586, 31
        %s588 = scalar_select %p587, %s586, 31
        %s589 = smul.addr %s588, 8
        %s590 = scalar_lea.vmem %s0, %s589
        %s591 = smul.u32 16, %s32
        %s592 = smul.u32 16, %s32
        %p593 = scmp.lt.s32.totalorder %s592, 31
        %s594 = scalar_select %p593, %s592, 31
        %s595 = smul.addr %s594, 8
        %s596 = scalar_lea.vmem %s1, %s595
        %s597 = smul.u32 16, %s32
        %s598 = smul.u32 2, %s32
        %v600 = vld [vmem:[%s590] sm:$0xff]
        %v601 = vld [vmem:[%s590 + $0x8] sm:$0xff]
        %v602 = vld [vmem:[%s590 + $0x10] sm:$0xff]
        %v603 = vld [vmem:[%s590 + $0x18] sm:$0xff]
        %v604 = vld [vmem:[%s590 + $0x20] sm:$0xff]
        %v605 = vld [vmem:[%s590 + $0x28] sm:$0xff]
        %v606 = vld [vmem:[%s590 + $0x30] sm:$0xff]
        %v607 = vld [vmem:[%s590 + $0x38] sm:$0xff]
        %v608 = vld [vmem:[%s590 + $0x40] sm:$0xff]
        %v609 = vld [vmem:[%s590 + $0x48] sm:$0xff]
        %v610 = vld [vmem:[%s590 + $0x50] sm:$0xff]
        %v611 = vld [vmem:[%s590 + $0x58] sm:$0xff]
        %v612 = vld [vmem:[%s590 + $0x60] sm:$0xff]
        %v613 = vld [vmem:[%s590 + $0x68] sm:$0xff]
        %v614 = vld [vmem:[%s590 + $0x70] sm:$0xff]
        %v615 = vld [vmem:[%s590 + $0x78] sm:$0xff]
        %v616 = vld [vmem:[%s596] sm:$0xff]
        %v617 = vld [vmem:[%s596 + $0x8] sm:$0xff]
        %v618 = vld [vmem:[%s596 + $0x10] sm:$0xff]
        %v619 = vld [vmem:[%s596 + $0x18] sm:$0xff]
        %v620 = vld [vmem:[%s596 + $0x20] sm:$0xff]
        %v621 = vld [vmem:[%s596 + $0x28] sm:$0xff]
        %v622 = vld [vmem:[%s596 + $0x30] sm:$0xff]
        %v623 = vld [vmem:[%s596 + $0x38] sm:$0xff]
        %v624 = vld [vmem:[%s596 + $0x40] sm:$0xff]
        %v625 = vld [vmem:[%s596 + $0x48] sm:$0xff]
        %v626 = vld [vmem:[%s596 + $0x50] sm:$0xff]
        %v627 = vld [vmem:[%s596 + $0x58] sm:$0xff]
        %v628 = vld [vmem:[%s596 + $0x60] sm:$0xff]
        %v629 = vld [vmem:[%s596 + $0x68] sm:$0xff]
        %v630 = vld [vmem:[%s596 + $0x70] sm:$0xff]
        %v631 = vld [vmem:[%s596 + $0x78] sm:$0xff]
        %v632 = vpack.c.bf16 %v601, %v600
        %v633 = vpack.c.bf16 %v603, %v602
        %v634 = vpack.c.bf16 %v605, %v604
        %v635 = vpack.c.bf16 %v607, %v606
        %v636 = vpack.c.bf16 %v609, %v608
        %v637 = vpack.c.bf16 %v611, %v610
        %v638 = vpack.c.bf16 %v613, %v612
        %v639 = vpack.c.bf16 %v615, %v614
        %v640 = vld [vmem:[%s2] sm:$0xf]
        %v641 = vld [vmem:[%s2 + $0x4] sm:$0xf]
        %v642 = vld [vmem:[%s2 + $0x8] sm:$0xf]
        %v643 = vld [vmem:[%s2 + $0xc] sm:$0xf]
        %v644 = vld [vmem:[%s3] sm:$0x1]
        %v646 = vlaneseq
        %v647 = vshrl.u32 %v646, 7
        %v648 = vsub.s32 0, %v647
        %v649 = vrot.slane %v644, %v648
        %v655 = vunpack.c.l.b16 %v640
        %v656 = vunpack.c.l.b16 %v641
        %v657 = vunpack.c.l.b16 %v642
        %v658 = vunpack.c.l.b16 %v643
        %v659 = vpack.c.b16 %v656, %v655
        %v660 = vpack.c.b16 %v658, %v657
        %vm663 = vcmask 261120
        %v665 = vsel %vm663, %v632, 0
        %v668 = vsel %vm663, %v633, 0
        %v671 = vsel %vm663, %v634, 0
        %v674 = vsel %vm663, %v635, 0
        %v677 = vsel %vm663, %v636, 0
        %v680 = vsel %vm663, %v637, 0
        %v683 = vsel %vm663, %v638, 0
        %v686 = vsel %vm663, %v639, 0
        %688 = vmatprep.subr.bf16.mxu0 0
        %689 = vmatpush1.bf16.msra.mxu0 0
        %690 = vmatprep.subr.bf16.mxu0 0
        %691 = vmatpush1.bf16.msra.mxu0 0
        %692 = vmatprep.subr.bf16.mxu0 0
        %693 = vmatpush1.bf16.msra.mxu0 0
        %694 = vmatprep.subr.bf16.mxu0 0
        %695 = vmatpush1.bf16.msra.mxu0 0
        %696 = vmatprep.subr.bf16.mxu0 0
        %697 = vmatpush1.bf16.msra.mxu0 0
        %698 = vmatprep.subr.bf16.mxu0 0
        %699 = vmatpush1.bf16.msra.mxu0 0
        %700 = vmatprep.subr.bf16.mxu0 0
        %701 = vmatpush1.bf16.msra.mxu0 %v660
        %702 = vmatprep.subr.bf16.mxu0 0
        %703 = vmatpush1.bf16.msra.mxu0 %v659
        %704 = vmatprep.subr.bf16.mxu0 0
        %705 = vmatpush2.bf16.msra.mxu0 0
        %706 = vmatprep.subr.bf16.mxu0 0
        %707 = vmatpush2.bf16.msra.mxu0 0
        %708 = vmatprep.subr.bf16.mxu0 0
        %709 = vmatpush2.bf16.msra.mxu0 0
        %710 = vmatprep.subr.bf16.mxu0 0
        %711 = vmatpush2.bf16.msra.mxu0 0
        %712 = vmatprep.subr.bf16.mxu0 0
        %713 = vmatpush2.bf16.msra.mxu0 0
        %714 = vmatprep.subr.bf16.mxu0 0
        %715 = vmatpush2.bf16.msra.mxu0 0
        %716 = vmatprep.subr.bf16.mxu0 0
        %717 = vmatpush2.bf16.msra.mxu0 0
        %718 = vmatprep.subr.bf16.mxu0 0
        %719 = vmatpush2.bf16.msra.mxu0 0
        %720 = vmatprep.mubr.bf16.mxu0 0
        %721 = vmatmul.mubr.bf16.gmra.mxu0 %v665
        %v722 = vpop.f32.mrf.mxu0
        %v723 = vadd.f32 %v649, %v722
        %v724 = vpop.f32.mrf.mxu0
        %v725 = vpop.f32.mrf.mxu0
        %v726 = vadd.f32 %v649, %v725
        %v727 = vpop.f32.mrf.mxu0
        %728 = vmatprep.mubr.bf16.mxu0 0
        %729 = vmatmul.mubr.bf16.gmra.mxu0 %v668
        %v730 = vpop.f32.mrf.mxu0
        %v731 = vadd.f32 %v649, %v730
        %v732 = vpop.f32.mrf.mxu0
        %v733 = vpop.f32.mrf.mxu0
        %v734 = vadd.f32 %v649, %v733
        %v735 = vpop.f32.mrf.mxu0
        %736 = vmatprep.mubr.bf16.mxu0 0
        %737 = vmatmul.mubr.bf16.gmra.mxu0 %v671
        %v738 = vpop.f32.mrf.mxu0
        %v739 = vadd.f32 %v649, %v738
        %v740 = vpop.f32.mrf.mxu0
        %v741 = vpop.f32.mrf.mxu0
        %v742 = vadd.f32 %v649, %v741
        %v743 = vpop.f32.mrf.mxu0
        %744 = vmatprep.mubr.bf16.mxu0 0
        %745 = vmatmul.mubr.bf16.gmra.mxu0 %v674
        %v746 = vpop.f32.mrf.mxu0
        %v747 = vadd.f32 %v649, %v746
        %v748 = vpop.f32.mrf.mxu0
        %v749 = vpop.f32.mrf.mxu0
        %v750 = vadd.f32 %v649, %v749
        %v751 = vpop.f32.mrf.mxu0
        %752 = vmatprep.mubr.bf16.mxu0 0
        %753 = vmatmul.mubr.bf16.gmra.mxu0 %v677
        %v754 = vpop.f32.mrf.mxu0
        %v755 = vadd.f32 %v649, %v754
        %v756 = vpop.f32.mrf.mxu0
        %v757 = vpop.f32.mrf.mxu0
        %v758 = vadd.f32 %v649, %v757
        %v759 = vpop.f32.mrf.mxu0
        %760 = vmatprep.mubr.bf16.mxu0 0
        %761 = vmatmul.mubr.bf16.gmra.mxu0 %v680
        %v762 = vpop.f32.mrf.mxu0
        %v763 = vadd.f32 %v649, %v762
        %v764 = vpop.f32.mrf.mxu0
        %v765 = vpop.f32.mrf.mxu0
        %v766 = vadd.f32 %v649, %v765
        %v767 = vpop.f32.mrf.mxu0
        %768 = vmatprep.mubr.bf16.mxu0 0
        %769 = vmatmul.mubr.bf16.gmra.mxu0 %v683
        %v770 = vpop.f32.mrf.mxu0
        %v771 = vadd.f32 %v649, %v770
        %v772 = vpop.f32.mrf.mxu0
        %v773 = vpop.f32.mrf.mxu0
        %v774 = vadd.f32 %v649, %v773
        %v775 = vpop.f32.mrf.mxu0
        %776 = vmatprep.mubr.bf16.mxu0 0
        %777 = vmatmul.mubr.bf16.gmra.mxu0 %v686
        %v778 = vpop.f32.mrf.mxu0
        %v779 = vadd.f32 %v649, %v778
        %v780 = vpop.f32.mrf.mxu0
        %v781 = vpop.f32.mrf.mxu0
        %v782 = vadd.f32 %v649, %v781
        %v783 = vpop.f32.mrf.mxu0
        %784 = vdwg.mxu0
        %801 = vrot.lane.b32.xlu0 %v723, 112
        %v802 = vpop.permute.xlu0 %801
        %803 = vrot.lane.b32.xlu0 %v726, 112
        %v804 = vpop.permute.xlu0 %803
        %805 = vrot.lane.b32.xlu0 %v731, 112
        %v806 = vpop.permute.xlu0 %805
        %807 = vrot.lane.b32.xlu0 %v734, 112
        %v808 = vpop.permute.xlu0 %807
        %809 = vrot.lane.b32.xlu0 %v739, 112
        %v810 = vpop.permute.xlu0 %809
        %811 = vrot.lane.b32.xlu0 %v742, 112
        %v812 = vpop.permute.xlu0 %811
        %813 = vrot.lane.b32.xlu0 %v747, 112
        %v814 = vpop.permute.xlu0 %813
        %815 = vrot.lane.b32.xlu0 %v750, 112
        %v816 = vpop.permute.xlu0 %815
        %817 = vrot.lane.b32.xlu0 %v755, 112
        %v818 = vpop.permute.xlu0 %817
        %819 = vrot.lane.b32.xlu0 %v758, 112
        %v820 = vpop.permute.xlu0 %819
        %821 = vrot.lane.b32.xlu0 %v763, 112
        %v822 = vpop.permute.xlu0 %821
        %823 = vrot.lane.b32.xlu0 %v766, 112
        %v824 = vpop.permute.xlu0 %823
        %825 = vrot.lane.b32.xlu0 %v771, 112
        %v826 = vpop.permute.xlu0 %825
        %827 = vrot.lane.b32.xlu0 %v774, 112
        %v828 = vpop.permute.xlu0 %827
        %829 = vrot.lane.b32.xlu0 %v779, 112
        %v830 = vpop.permute.xlu0 %829
        %831 = vrot.lane.b32.xlu0 %v782, 112
        %v832 = vpop.permute.xlu0 %831
        %v849 = vpack.c.bf16 %v723, %v723
        %v850 = vpack.c.bf16 %v726, %v726
        %v851 = vpack.c.bf16 %v731, %v731
        %v852 = vpack.c.bf16 %v734, %v734
        %v853 = vpack.c.bf16 %v739, %v739
        %v854 = vpack.c.bf16 %v742, %v742
        %v855 = vpack.c.bf16 %v747, %v747
        %v856 = vpack.c.bf16 %v750, %v750
        %v857 = vpack.c.bf16 %v755, %v755
        %v858 = vpack.c.bf16 %v758, %v758
        %v859 = vpack.c.bf16 %v763, %v763
        %v860 = vpack.c.bf16 %v766, %v766
        %v861 = vpack.c.bf16 %v771, %v771
        %v862 = vpack.c.bf16 %v774, %v774
        %v863 = vpack.c.bf16 %v779, %v779
        %v864 = vpack.c.bf16 %v782, %v782
        %v865 = vpack.c.bf16 %v802, %v802
        %v866 = vpack.c.bf16 %v804, %v804
        %v867 = vpack.c.bf16 %v806, %v806
        %v868 = vpack.c.bf16 %v808, %v808
        %v869 = vpack.c.bf16 %v810, %v810
        %v870 = vpack.c.bf16 %v812, %v812
        %v871 = vpack.c.bf16 %v814, %v814
        %v872 = vpack.c.bf16 %v816, %v816
        %v873 = vpack.c.bf16 %v818, %v818
        %v874 = vpack.c.bf16 %v820, %v820
        %v875 = vpack.c.bf16 %v822, %v822
        %v876 = vpack.c.bf16 %v824, %v824
        %v877 = vpack.c.bf16 %v826, %v826
        %v878 = vpack.c.bf16 %v828, %v828
        %v879 = vpack.c.bf16 %v830, %v830
        %v880 = vpack.c.bf16 %v832, %v832
        %882 = vrot.lane.b32.xlu0 %v849, 96
        %v883 = vpop.permute.xlu0 %882
        %vm884 = vcmask 130048
        %v886 = vsel %vm884, %v849, 0
        %v889 = vsel %vm884, %v883, 0
        %891 = vmatprep.subr.bf16.mxu0 0
        %892 = vmatpush1.bf16.xpose.msra.mxu0 0
        %893 = vmatprep.subr.bf16.mxu0 0
        %894 = vmatpush1.bf16.xpose.msra.mxu0 0
        %895 = vmatprep.subr.bf16.mxu0 0
        %896 = vmatpush1.bf16.xpose.msra.mxu0 0
        %897 = vmatprep.subr.bf16.mxu0 0
        %898 = vmatpush1.bf16.xpose.msra.mxu0 0
        %899 = vmatprep.subr.bf16.mxu0 0
        %900 = vmatpush1.bf16.xpose.msra.mxu0 0
        %901 = vmatprep.subr.bf16.mxu0 0
        %902 = vmatpush1.bf16.xpose.msra.mxu0 0
        %903 = vmatprep.subr.bf16.mxu0 0
        %904 = vmatpush1.bf16.xpose.msra.mxu0 0
        %905 = vmatprep.subr.bf16.mxu0 0
        %906 = vmatpush1.bf16.xpose.msra.mxu0 %v889
        %907 = vmatprep.subr.bf16.mxu0 0
        %908 = vmatpush2.bf16.xpose.msra.mxu0 0
        %909 = vmatprep.subr.bf16.mxu0 0
        %910 = vmatpush2.bf16.xpose.msra.mxu0 0
        %911 = vmatprep.subr.bf16.mxu0 0
        %912 = vmatpush2.bf16.xpose.msra.mxu0 0
        %913 = vmatprep.subr.bf16.mxu0 0
        %914 = vmatpush2.bf16.xpose.msra.mxu0 0
        %915 = vmatprep.subr.bf16.mxu0 0
        %916 = vmatpush2.bf16.xpose.msra.mxu0 0
        %917 = vmatprep.subr.bf16.mxu0 0
        %918 = vmatpush2.bf16.xpose.msra.mxu0 0
        %919 = vmatprep.subr.bf16.mxu0 0
        %920 = vmatpush2.bf16.xpose.msra.mxu0 0
        %921 = vmatprep.subr.bf16.mxu0 0
        %922 = vmatpush2.bf16.xpose.msra.mxu0 0
        %923 = vmatprep.mubr.bf16.mxu0 0
        %924 = vmatmul.mubr.bf16.gmra.mxu0 %v886
        %v925 = vpop.f32.mrf.mxu0
        %v926 = vadd.f32 0.0, %v925
        %v927 = vpop.f32.mrf.mxu0
        %v928 = vpop.f32.mrf.mxu0
        %v929 = vpop.f32.mrf.mxu0
        %930 = vdwg.mxu0
        %932 = vrot.lane.b32.xlu0 %v850, 96
        %v933 = vpop.permute.xlu0 %932
        %v935 = vsel %vm884, %v850, 0
        %v938 = vsel %vm884, %v933, 0
        %940 = vmatprep.subr.bf16.mxu0 0
        %941 = vmatpush1.bf16.xpose.msra.mxu0 0
        %942 = vmatprep.subr.bf16.mxu0 0
        %943 = vmatpush1.bf16.xpose.msra.mxu0 0
        %944 = vmatprep.subr.bf16.mxu0 0
        %945 = vmatpush1.bf16.xpose.msra.mxu0 0
        %946 = vmatprep.subr.bf16.mxu0 0
        %947 = vmatpush1.bf16.xpose.msra.mxu0 0
        %948 = vmatprep.subr.bf16.mxu0 0
        %949 = vmatpush1.bf16.xpose.msra.mxu0 0
        %950 = vmatprep.subr.bf16.mxu0 0
        %951 = vmatpush1.bf16.xpose.msra.mxu0 0
        %952 = vmatprep.subr.bf16.mxu0 0
        %953 = vmatpush1.bf16.xpose.msra.mxu0 0
        %954 = vmatprep.subr.bf16.mxu0 0
        %955 = vmatpush1.bf16.xpose.msra.mxu0 %v938
        %956 = vmatprep.subr.bf16.mxu0 0
        %957 = vmatpush2.bf16.xpose.msra.mxu0 0
        %958 = vmatprep.subr.bf16.mxu0 0
        %959 = vmatpush2.bf16.xpose.msra.mxu0 0
        %960 = vmatprep.subr.bf16.mxu0 0
        %961 = vmatpush2.bf16.xpose.msra.mxu0 0
        %962 = vmatprep.subr.bf16.mxu0 0
        %963 = vmatpush2.bf16.xpose.msra.mxu0 0
        %964 = vmatprep.subr.bf16.mxu0 0
        %965 = vmatpush2.bf16.xpose.msra.mxu0 0
        %966 = vmatprep.subr.bf16.mxu0 0
        %967 = vmatpush2.bf16.xpose.msra.mxu0 0
        %968 = vmatprep.subr.bf16.mxu0 0
        %969 = vmatpush2.bf16.xpose.msra.mxu0 0
        %970 = vmatprep.subr.bf16.mxu0 0
        %971 = vmatpush2.bf16.xpose.msra.mxu0 0
        %972 = vmatprep.mubr.bf16.mxu0 0
        %973 = vmatmul.mubr.bf16.gmra.mxu0 %v935
        %v974 = vpop.f32.mrf.mxu0
        %v975 = vadd.f32 0.0, %v974
        %v976 = vpop.f32.mrf.mxu0
        %v977 = vpop.f32.mrf.mxu0
        %v978 = vpop.f32.mrf.mxu0
        %979 = vdwg.mxu0
        %981 = vrot.lane.b32.xlu0 %v851, 96
        %v982 = vpop.permute.xlu0 %981
        %v984 = vsel %vm884, %v851, 0
        %v987 = vsel %vm884, %v982, 0
        %989 = vmatprep.subr.bf16.mxu0 0
        %990 = vmatpush1.bf16.xpose.msra.mxu0 0
        %991 = vmatprep.subr.bf16.mxu0 0
        %992 = vmatpush1.bf16.xpose.msra.mxu0 0
        %993 = vmatprep.subr.bf16.mxu0 0
        %994 = vmatpush1.bf16.xpose.msra.mxu0 0
        %995 = vmatprep.subr.bf16.mxu0 0
        %996 = vmatpush1.bf16.xpose.msra.mxu0 0
        %997 = vmatprep.subr.bf16.mxu0 0
        %998 = vmatpush1.bf16.xpose.msra.mxu0 0
        %999 = vmatprep.subr.bf16.mxu0 0
        %1000 = vmatpush1.bf16.xpose.msra.mxu0 0
        %1001 = vmatprep.subr.bf16.mxu0 0
        %1002 = vmatpush1.bf16.xpose.msra.mxu0 0
        %1003 = vmatprep.subr.bf16.mxu0 0
        %1004 = vmatpush1.bf16.xpose.msra.mxu0 %v987
        %1005 = vmatprep.subr.bf16.mxu0 0
        %1006 = vmatpush2.bf16.xpose.msra.mxu0 0
        %1007 = vmatprep.subr.bf16.mxu0 0
        %1008 = vmatpush2.bf16.xpose.msra.mxu0 0
        %1009 = vmatprep.subr.bf16.mxu0 0
        %1010 = vmatpush2.bf16.xpose.msra.mxu0 0
        %1011 = vmatprep.subr.bf16.mxu0 0
        %1012 = vmatpush2.bf16.xpose.msra.mxu0 0
        %1013 = vmatprep.subr.bf16.mxu0 0
        %1014 = vmatpush2.bf16.xpose.msra.mxu0 0
        %1015 = vmatprep.subr.bf16.mxu0 0
        %1016 = vmatpush2.bf16.xpose.msra.mxu0 0
        %1017 = vmatprep.subr.bf16.mxu0 0
        %1018 = vmatpush2.bf16.xpose.msra.mxu0 0
        %1019 = vmatprep.subr.bf16.mxu0 0
        %1020 = vmatpush2.bf16.xpose.msra.mxu0 0
        %1021 = vmatprep.mubr.bf16.mxu0 0
        %1022 = vmatmul.mubr.bf16.gmra.mxu0 %v984
        %v1023 = vpop.f32.mrf.mxu0
        %v1024 = vadd.f32 0.0, %v1023
        %v1025 = vpop.f32.mrf.mxu0
        %v1026 = vpop.f32.mrf.mxu0
        %v1027 = vpop.f32.mrf.mxu0
        %1028 = vdwg.mxu0
        %1030 = vrot.lane.b32.xlu0 %v852, 96
        %v1031 = vpop.permute.xlu0 %1030
        %v1033 = vsel %vm884, %v852, 0
        %v1036 = vsel %vm884, %v1031, 0
        %1038 = vmatprep.subr.bf16.mxu0 0
        %1039 = vmatpush1.bf16.xpose.msra.mxu0 0
        %1040 = vmatprep.subr.bf16.mxu0 0
        %1041 = vmatpush1.bf16.xpose.msra.mxu0 0
        %1042 = vmatprep.subr.bf16.mxu0 0
        %1043 = vmatpush1.bf16.xpose.msra.mxu0 0
        %1044 = vmatprep.subr.bf16.mxu0 0
        %1045 = vmatpush1.bf16.xpose.msra.mxu0 0
        %1046 = vmatprep.subr.bf16.mxu0 0
        %1047 = vmatpush1.bf16.xpose.msra.mxu0 0
        %1048 = vmatprep.subr.bf16.mxu0 0
        %1049 = vmatpush1.bf16.xpose.msra.mxu0 0
        %1050 = vmatprep.subr.bf16.mxu0 0
        %1051 = vmatpush1.bf16.xpose.msra.mxu0 0
        %1052 = vmatprep.subr.bf16.mxu0 0
        %1053 = vmatpush1.bf16.xpose.msra.mxu0 %v1036
        %1054 = vmatprep.subr.bf16.mxu0 0
        %1055 = vmatpush2.bf16.xpose.msra.mxu0 0
        %1056 = vmatprep.subr.bf16.mxu0 0
        %1057 = vmatpush2.bf16.xpose.msra.mxu0 0
        %1058 = vmatprep.subr.bf16.mxu0 0
        %1059 = vmatpush2.bf16.xpose.msra.mxu0 0
        %1060 = vmatprep.subr.bf16.mxu0 0
        %1061 = vmatpush2.bf16.xpose.msra.mxu0 0
        %1062 = vmatprep.subr.bf16.mxu0 0
        %1063 = vmatpush2.bf16.xpose.msra.mxu0 0
        %1064 = vmatprep.subr.bf16.mxu0 0
        %1065 = vmatpush2.bf16.xpose.msra.mxu0 0
        %1066 = vmatprep.subr.bf16.mxu0 0
        %1067 = vmatpush2.bf16.xpose.msra.mxu0 0
        %1068 = vmatprep.subr.bf16.mxu0 0
        %1069 = vmatpush2.bf16.xpose.msra.mxu0 0
        %1070 = vmatprep.mubr.bf16.mxu0 0
        %1071 = vmatmul.mubr.bf16.gmra.mxu0 %v1033
        %v1072 = vpop.f32.mrf.mxu0
        %v1073 = vadd.f32 0.0, %v1072
        %v1074 = vpop.f32.mrf.mxu0
        %v1075 = vpop.f32.mrf.mxu0
        %v1076 = vpop.f32.mrf.mxu0
        %1077 = vdwg.mxu0
        %1079 = vrot.lane.b32.xlu0 %v853, 96
        %v1080 = vpop.permute.xlu0 %1079
        %v1082 = vsel %vm884, %v853, 0
        %v1085 = vsel %vm884, %v1080, 0
        %1087 = vmatprep.subr.bf16.mxu0 0
        %1088 = vmatpush1.bf16.xpose.msra.mxu0 0
        %1089 = vmatprep.subr.bf16.mxu0 0
        %1090 = vmatpush1.bf16.xpose.msra.mxu0 0
        %1091 = vmatprep.subr.bf16.mxu0 0
        %1092 = vmatpush1.bf16.xpose.msra.mxu0 0
        %1093 = vmatprep.subr.bf16.mxu0 0
        %1094 = vmatpush1.bf16.xpose.msra.mxu0 0
        %1095 = vmatprep.subr.bf16.mxu0 0
        %1096 = vmatpush1.bf16.xpose.msra.mxu0 0
        %1097 = vmatprep.subr.bf16.mxu0 0
        %1098 = vmatpush1.bf16.xpose.msra.mxu0 0
        %1099 = vmatprep.subr.bf16.mxu0 0
        %1100 = vmatpush1.bf16.xpose.msra.mxu0 0
        %1101 = vmatprep.subr.bf16.mxu0 0
        %1102 = vmatpush1.bf16.xpose.msra.mxu0 %v1085
        %1103 = vmatprep.subr.bf16.mxu0 0
        %1104 = vmatpush2.bf16.xpose.msra.mxu0 0
        %1105 = vmatprep.subr.bf16.mxu0 0
        %1106 = vmatpush2.bf16.xpose.msra.mxu0 0
        %1107 = vmatprep.subr.bf16.mxu0 0
        %1108 = vmatpush2.bf16.xpose.msra.mxu0 0
        %1109 = vmatprep.subr.bf16.mxu0 0
        %1110 = vmatpush2.bf16.xpose.msra.mxu0 0
        %1111 = vmatprep.subr.bf16.mxu0 0
        %1112 = vmatpush2.bf16.xpose.msra.mxu0 0
        %1113 = vmatprep.subr.bf16.mxu0 0
        %1114 = vmatpush2.bf16.xpose.msra.mxu0 0
        %1115 = vmatprep.subr.bf16.mxu0 0
        %1116 = vmatpush2.bf16.xpose.msra.mxu0 0
        %1117 = vmatprep.subr.bf16.mxu0 0
        %1118 = vmatpush2.bf16.xpose.msra.mxu0 0
        %1119 = vmatprep.mubr.bf16.mxu0 0
        %1120 = vmatmul.mubr.bf16.gmra.mxu0 %v1082
        %v1121 = vpop.f32.mrf.mxu0
        %v1122 = vadd.f32 0.0, %v1121
        %v1123 = vpop.f32.mrf.mxu0
        %v1124 = vpop.f32.mrf.mxu0
        %v1125 = vpop.f32.mrf.mxu0
        %1126 = vdwg.mxu0
        %1128 = vrot.lane.b32.xlu0 %v854, 96
        %v1129 = vpop.permute.xlu0 %1128
        %v1131 = vsel %vm884, %v854, 0
        %v1134 = vsel %vm884, %v1129, 0
        %1136 = vmatprep.subr.bf16.mxu0 0
        %1137 = vmatpush1.bf16.xpose.msra.mxu0 0
        %1138 = vmatprep.subr.bf16.mxu0 0
        %1139 = vmatpush1.bf16.xpose.msra.mxu0 0
        %1140 = vmatprep.subr.bf16.mxu0 0
        %1141 = vmatpush1.bf16.xpose.msra.mxu0 0
        %1142 = vmatprep.subr.bf16.mxu0 0
        %1143 = vmatpush1.bf16.xpose.msra.mxu0 0
        %1144 = vmatprep.subr.bf16.mxu0 0
        %1145 = vmatpush1.bf16.xpose.msra.mxu0 0
        %1146 = vmatprep.subr.bf16.mxu0 0
        %1147 = vmatpush1.bf16.xpose.msra.mxu0 0
        %1148 = vmatprep.subr.bf16.mxu0 0
        %1149 = vmatpush1.bf16.xpose.msra.mxu0 0
        %1150 = vmatprep.subr.bf16.mxu0 0
        %1151 = vmatpush1.bf16.xpose.msra.mxu0 %v1134
        %1152 = vmatprep.subr.bf16.mxu0 0
        %1153 = vmatpush2.bf16.xpose.msra.mxu0 0
        %1154 = vmatprep.subr.bf16.mxu0 0
        %1155 = vmatpush2.bf16.xpose.msra.mxu0 0
        %1156 = vmatprep.subr.bf16.mxu0 0
        %1157 = vmatpush2.bf16.xpose.msra.mxu0 0
        %1158 = vmatprep.subr.bf16.mxu0 0
        %1159 = vmatpush2.bf16.xpose.msra.mxu0 0
        %1160 = vmatprep.subr.bf16.mxu0 0
        %1161 = vmatpush2.bf16.xpose.msra.mxu0 0
        %1162 = vmatprep.subr.bf16.mxu0 0
        %1163 = vmatpush2.bf16.xpose.msra.mxu0 0
        %1164 = vmatprep.subr.bf16.mxu0 0
        %1165 = vmatpush2.bf16.xpose.msra.mxu0 0
        %1166 = vmatprep.subr.bf16.mxu0 0
        %1167 = vmatpush2.bf16.xpose.msra.mxu0 0
        %1168 = vmatprep.mubr.bf16.mxu0 0
        %1169 = vmatmul.mubr.bf16.gmra.mxu0 %v1131
        %v1170 = vpop.f32.mrf.mxu0
        %v1171 = vadd.f32 0.0, %v1170
        %v1172 = vpop.f32.mrf.mxu0
        %v1173 = vpop.f32.mrf.mxu0
        %v1174 = vpop.f32.mrf.mxu0
        %1175 = vdwg.mxu0
        %1177 = vrot.lane.b32.xlu0 %v855, 96
        %v1178 = vpop.permute.xlu0 %1177
        %v1180 = vsel %vm884, %v855, 0
        %v1183 = vsel %vm884, %v1178, 0
        %1185 = vmatprep.subr.bf16.mxu0 0
        %1186 = vmatpush1.bf16.xpose.msra.mxu0 0
        %1187 = vmatprep.subr.bf16.mxu0 0
        %1188 = vmatpush1.bf16.xpose.msra.mxu0 0
        %1189 = vmatprep.subr.bf16.mxu0 0
        %1190 = vmatpush1.bf16.xpose.msra.mxu0 0
        %1191 = vmatprep.subr.bf16.mxu0 0
        %1192 = vmatpush1.bf16.xpose.msra.mxu0 0
        %1193 = vmatprep.subr.bf16.mxu0 0
        %1194 = vmatpush1.bf16.xpose.msra.mxu0 0
        %1195 = vmatprep.subr.bf16.mxu0 0
        %1196 = vmatpush1.bf16.xpose.msra.mxu0 0
        %1197 = vmatprep.subr.bf16.mxu0 0
        %1198 = vmatpush1.bf16.xpose.msra.mxu0 0
        %1199 = vmatprep.subr.bf16.mxu0 0
        %1200 = vmatpush1.bf16.xpose.msra.mxu0 %v1183
        %1201 = vmatprep.subr.bf16.mxu0 0
        %1202 = vmatpush2.bf16.xpose.msra.mxu0 0
        %1203 = vmatprep.subr.bf16.mxu0 0
        %1204 = vmatpush2.bf16.xpose.msra.mxu0 0
        %1205 = vmatprep.subr.bf16.mxu0 0
        %1206 = vmatpush2.bf16.xpose.msra.mxu0 0
        %1207 = vmatprep.subr.bf16.mxu0 0
        %1208 = vmatpush2.bf16.xpose.msra.mxu0 0
        %1209 = vmatprep.subr.bf16.mxu0 0
        %1210 = vmatpush2.bf16.xpose.msra.mxu0 0
        %1211 = vmatprep.subr.bf16.mxu0 0
        %1212 = vmatpush2.bf16.xpose.msra.mxu0 0
        %1213 = vmatprep.subr.bf16.mxu0 0
        %1214 = vmatpush2.bf16.xpose.msra.mxu0 0
        %1215 = vmatprep.subr.bf16.mxu0 0
        %1216 = vmatpush2.bf16.xpose.msra.mxu0 0
        %1217 = vmatprep.mubr.bf16.mxu0 0
        %1218 = vmatmul.mubr.bf16.gmra.mxu0 %v1180
        %v1219 = vpop.f32.mrf.mxu0
        %v1220 = vadd.f32 0.0, %v1219
        %v1221 = vpop.f32.mrf.mxu0
        %v1222 = vpop.f32.mrf.mxu0
        %v1223 = vpop.f32.mrf.mxu0
        %1224 = vdwg.mxu0
        %1226 = vrot.lane.b32.xlu0 %v856, 96
        %v1227 = vpop.permute.xlu0 %1226
        %v1229 = vsel %vm884, %v856, 0
        %v1232 = vsel %vm884, %v1227, 0
        %1234 = vmatprep.subr.bf16.mxu0 0
        %1235 = vmatpush1.bf16.xpose.msra.mxu0 0
        %1236 = vmatprep.subr.bf16.mxu0 0
        %1237 = vmatpush1.bf16.xpose.msra.mxu0 0
        %1238 = vmatprep.subr.bf16.mxu0 0
        %1239 = vmatpush1.bf16.xpose.msra.mxu0 0
        %1240 = vmatprep.subr.bf16.mxu0 0
        %1241 = vmatpush1.bf16.xpose.msra.mxu0 0
        %1242 = vmatprep.subr.bf16.mxu0 0
        %1243 = vmatpush1.bf16.xpose.msra.mxu0 0
        %1244 = vmatprep.subr.bf16.mxu0 0
        %1245 = vmatpush1.bf16.xpose.msra.mxu0 0
        %1246 = vmatprep.subr.bf16.mxu0 0
        %1247 = vmatpush1.bf16.xpose.msra.mxu0 0
        %1248 = vmatprep.subr.bf16.mxu0 0
        %1249 = vmatpush1.bf16.xpose.msra.mxu0 %v1232
        %1250 = vmatprep.subr.bf16.mxu0 0
        %1251 = vmatpush2.bf16.xpose.msra.mxu0 0
        %1252 = vmatprep.subr.bf16.mxu0 0
        %1253 = vmatpush2.bf16.xpose.msra.mxu0 0
        %1254 = vmatprep.subr.bf16.mxu0 0
        %1255 = vmatpush2.bf16.xpose.msra.mxu0 0
        %1256 = vmatprep.subr.bf16.mxu0 0
        %1257 = vmatpush2.bf16.xpose.msra.mxu0 0
        %1258 = vmatprep.subr.bf16.mxu0 0
        %1259 = vmatpush2.bf16.xpose.msra.mxu0 0
        %1260 = vmatprep.subr.bf16.mxu0 0
        %1261 = vmatpush2.bf16.xpose.msra.mxu0 0
        %1262 = vmatprep.subr.bf16.mxu0 0
        %1263 = vmatpush2.bf16.xpose.msra.mxu0 0
        %1264 = vmatprep.subr.bf16.mxu0 0
        %1265 = vmatpush2.bf16.xpose.msra.mxu0 0
        %1266 = vmatprep.mubr.bf16.mxu0 0
        %1267 = vmatmul.mubr.bf16.gmra.mxu0 %v1229
        %v1268 = vpop.f32.mrf.mxu0
        %v1269 = vadd.f32 0.0, %v1268
        %v1270 = vpop.f32.mrf.mxu0
        %v1271 = vpop.f32.mrf.mxu0
        %v1272 = vpop.f32.mrf.mxu0
        %1273 = vdwg.mxu0
        %1275 = vrot.lane.b32.xlu0 %v857, 96
        %v1276 = vpop.permute.xlu0 %1275
        %v1278 = vsel %vm884, %v857, 0
        %v1281 = vsel %vm884, %v1276, 0
        %1283 = vmatprep.subr.bf16.mxu0 0
        %1284 = vmatpush1.bf16.xpose.msra.mxu0 0
        %1285 = vmatprep.subr.bf16.mxu0 0
        %1286 = vmatpush1.bf16.xpose.msra.mxu0 0
        %1287 = vmatprep.subr.bf16.mxu0 0
        %1288 = vmatpush1.bf16.xpose.msra.mxu0 0
        %1289 = vmatprep.subr.bf16.mxu0 0
        %1290 = vmatpush1.bf16.xpose.msra.mxu0 0
        %1291 = vmatprep.subr.bf16.mxu0 0
        %1292 = vmatpush1.bf16.xpose.msra.mxu0 0
        %1293 = vmatprep.subr.bf16.mxu0 0
        %1294 = vmatpush1.bf16.xpose.msra.mxu0 0
        %1295 = vmatprep.subr.bf16.mxu0 0
        %1296 = vmatpush1.bf16.xpose.msra.mxu0 0
        %1297 = vmatprep.subr.bf16.mxu0 0
        %1298 = vmatpush1.bf16.xpose.msra.mxu0 %v1281
        %1299 = vmatprep.subr.bf16.mxu0 0
        %1300 = vmatpush2.bf16.xpose.msra.mxu0 0
        %1301 = vmatprep.subr.bf16.mxu0 0
        %1302 = vmatpush2.bf16.xpose.msra.mxu0 0
        %1303 = vmatprep.subr.bf16.mxu0 0
        %1304 = vmatpush2.bf16.xpose.msra.mxu0 0
        %1305 = vmatprep.subr.bf16.mxu0 0
        %1306 = vmatpush2.bf16.xpose.msra.mxu0 0
        %1307 = vmatprep.subr.bf16.mxu0 0
        %1308 = vmatpush2.bf16.xpose.msra.mxu0 0
        %1309 = vmatprep.subr.bf16.mxu0 0
        %1310 = vmatpush2.bf16.xpose.msra.mxu0 0
        %1311 = vmatprep.subr.bf16.mxu0 0
        %1312 = vmatpush2.bf16.xpose.msra.mxu0 0
        %1313 = vmatprep.subr.bf16.mxu0 0
        %1314 = vmatpush2.bf16.xpose.msra.mxu0 0
        %1315 = vmatprep.mubr.bf16.mxu0 0
        %1316 = vmatmul.mubr.bf16.gmra.mxu0 %v1278
        %v1317 = vpop.f32.mrf.mxu0
        %v1318 = vadd.f32 0.0, %v1317
        %v1319 = vpop.f32.mrf.mxu0
        %v1320 = vpop.f32.mrf.mxu0
        %v1321 = vpop.f32.mrf.mxu0
        %1322 = vdwg.mxu0
        %1324 = vrot.lane.b32.xlu0 %v858, 96
        %v1325 = vpop.permute.xlu0 %1324
        %v1327 = vsel %vm884, %v858, 0
        %v1330 = vsel %vm884, %v1325, 0
        %1332 = vmatprep.subr.bf16.mxu0 0
        %1333 = vmatpush1.bf16.xpose.msra.mxu0 0
        %1334 = vmatprep.subr.bf16.mxu0 0
        %1335 = vmatpush1.bf16.xpose.msra.mxu0 0
        %1336 = vmatprep.subr.bf16.mxu0 0
        %1337 = vmatpush1.bf16.xpose.msra.mxu0 0
        %1338 = vmatprep.subr.bf16.mxu0 0
        %1339 = vmatpush1.bf16.xpose.msra.mxu0 0
        %1340 = vmatprep.subr.bf16.mxu0 0
        %1341 = vmatpush1.bf16.xpose.msra.mxu0 0
        %1342 = vmatprep.subr.bf16.mxu0 0
        %1343 = vmatpush1.bf16.xpose.msra.mxu0 0
        %1344 = vmatprep.subr.bf16.mxu0 0
        %1345 = vmatpush1.bf16.xpose.msra.mxu0 0
        %1346 = vmatprep.subr.bf16.mxu0 0
        %1347 = vmatpush1.bf16.xpose.msra.mxu0 %v1330
        %1348 = vmatprep.subr.bf16.mxu0 0
        %1349 = vmatpush2.bf16.xpose.msra.mxu0 0
        %1350 = vmatprep.subr.bf16.mxu0 0
        %1351 = vmatpush2.bf16.xpose.msra.mxu0 0
        %1352 = vmatprep.subr.bf16.mxu0 0
        %1353 = vmatpush2.bf16.xpose.msra.mxu0 0
        %1354 = vmatprep.subr.bf16.mxu0 0
        %1355 = vmatpush2.bf16.xpose.msra.mxu0 0
        %1356 = vmatprep.subr.bf16.mxu0 0
        %1357 = vmatpush2.bf16.xpose.msra.mxu0 0
        %1358 = vmatprep.subr.bf16.mxu0 0
        %1359 = vmatpush2.bf16.xpose.msra.mxu0 0
        %1360 = vmatprep.subr.bf16.mxu0 0
        %1361 = vmatpush2.bf16.xpose.msra.mxu0 0
        %1362 = vmatprep.subr.bf16.mxu0 0
        %1363 = vmatpush2.bf16.xpose.msra.mxu0 0
        %1364 = vmatprep.mubr.bf16.mxu0 0
        %1365 = vmatmul.mubr.bf16.gmra.mxu0 %v1327
        %v1366 = vpop.f32.mrf.mxu0
        %v1367 = vadd.f32 0.0, %v1366
        %v1368 = vpop.f32.mrf.mxu0
        %v1369 = vpop.f32.mrf.mxu0
        %v1370 = vpop.f32.mrf.mxu0
        %1371 = vdwg.mxu0
        %1373 = vrot.lane.b32.xlu0 %v859, 96
        %v1374 = vpop.permute.xlu0 %1373
        %v1376 = vsel %vm884, %v859, 0
        %v1379 = vsel %vm884, %v1374, 0
        %1381 = vmatprep.subr.bf16.mxu0 0
        %1382 = vmatpush1.bf16.xpose.msra.mxu0 0
        %1383 = vmatprep.subr.bf16.mxu0 0
        %1384 = vmatpush1.bf16.xpose.msra.mxu0 0
        %1385 = vmatprep.subr.bf16.mxu0 0
        %1386 = vmatpush1.bf16.xpose.msra.mxu0 0
        %1387 = vmatprep.subr.bf16.mxu0 0
        %1388 = vmatpush1.bf16.xpose.msra.mxu0 0
        %1389 = vmatprep.subr.bf16.mxu0 0
        %1390 = vmatpush1.bf16.xpose.msra.mxu0 0
        %1391 = vmatprep.subr.bf16.mxu0 0
        %1392 = vmatpush1.bf16.xpose.msra.mxu0 0
        %1393 = vmatprep.subr.bf16.mxu0 0
        %1394 = vmatpush1.bf16.xpose.msra.mxu0 0
        %1395 = vmatprep.subr.bf16.mxu0 0
        %1396 = vmatpush1.bf16.xpose.msra.mxu0 %v1379
        %1397 = vmatprep.subr.bf16.mxu0 0
        %1398 = vmatpush2.bf16.xpose.msra.mxu0 0
        %1399 = vmatprep.subr.bf16.mxu0 0
        %1400 = vmatpush2.bf16.xpose.msra.mxu0 0
        %1401 = vmatprep.subr.bf16.mxu0 0
        %1402 = vmatpush2.bf16.xpose.msra.mxu0 0
        %1403 = vmatprep.subr.bf16.mxu0 0
        %1404 = vmatpush2.bf16.xpose.msra.mxu0 0
        %1405 = vmatprep.subr.bf16.mxu0 0
        %1406 = vmatpush2.bf16.xpose.msra.mxu0 0
        %1407 = vmatprep.subr.bf16.mxu0 0
        %1408 = vmatpush2.bf16.xpose.msra.mxu0 0
        %1409 = vmatprep.subr.bf16.mxu0 0
        %1410 = vmatpush2.bf16.xpose.msra.mxu0 0
        %1411 = vmatprep.subr.bf16.mxu0 0
        %1412 = vmatpush2.bf16.xpose.msra.mxu0 0
        %1413 = vmatprep.mubr.bf16.mxu0 0
        %1414 = vmatmul.mubr.bf16.gmra.mxu0 %v1376
        %v1415 = vpop.f32.mrf.mxu0
        %v1416 = vadd.f32 0.0, %v1415
        %v1417 = vpop.f32.mrf.mxu0
        %v1418 = vpop.f32.mrf.mxu0
        %v1419 = vpop.f32.mrf.mxu0
        %1420 = vdwg.mxu0
        %1422 = vrot.lane.b32.xlu0 %v860, 96
        %v1423 = vpop.permute.xlu0 %1422
        %v1425 = vsel %vm884, %v860, 0
        %v1428 = vsel %vm884, %v1423, 0
        %1430 = vmatprep.subr.bf16.mxu0 0
        %1431 = vmatpush1.bf16.xpose.msra.mxu0 0
        %1432 = vmatprep.subr.bf16.mxu0 0
        %1433 = vmatpush1.bf16.xpose.msra.mxu0 0
        %1434 = vmatprep.subr.bf16.mxu0 0
        %1435 = vmatpush1.bf16.xpose.msra.mxu0 0
        %1436 = vmatprep.subr.bf16.mxu0 0
        %1437 = vmatpush1.bf16.xpose.msra.mxu0 0
        %1438 = vmatprep.subr.bf16.mxu0 0
        %1439 = vmatpush1.bf16.xpose.msra.mxu0 0
        %1440 = vmatprep.subr.bf16.mxu0 0
        %1441 = vmatpush1.bf16.xpose.msra.mxu0 0
        %1442 = vmatprep.subr.bf16.mxu0 0
        %1443 = vmatpush1.bf16.xpose.msra.mxu0 0
        %1444 = vmatprep.subr.bf16.mxu0 0
        %1445 = vmatpush1.bf16.xpose.msra.mxu0 %v1428
        %1446 = vmatprep.subr.bf16.mxu0 0
        %1447 = vmatpush2.bf16.xpose.msra.mxu0 0
        %1448 = vmatprep.subr.bf16.mxu0 0
        %1449 = vmatpush2.bf16.xpose.msra.mxu0 0
        %1450 = vmatprep.subr.bf16.mxu0 0
        %1451 = vmatpush2.bf16.xpose.msra.mxu0 0
        %1452 = vmatprep.subr.bf16.mxu0 0
        %1453 = vmatpush2.bf16.xpose.msra.mxu0 0
        %1454 = vmatprep.subr.bf16.mxu0 0
        %1455 = vmatpush2.bf16.xpose.msra.mxu0 0
        %1456 = vmatprep.subr.bf16.mxu0 0
        %1457 = vmatpush2.bf16.xpose.msra.mxu0 0
        %1458 = vmatprep.subr.bf16.mxu0 0
        %1459 = vmatpush2.bf16.xpose.msra.mxu0 0
        %1460 = vmatprep.subr.bf16.mxu0 0
        %1461 = vmatpush2.bf16.xpose.msra.mxu0 0
        %1462 = vmatprep.mubr.bf16.mxu0 0
        %1463 = vmatmul.mubr.bf16.gmra.mxu0 %v1425
        %v1464 = vpop.f32.mrf.mxu0
        %v1465 = vadd.f32 0.0, %v1464
        %v1466 = vpop.f32.mrf.mxu0
        %v1467 = vpop.f32.mrf.mxu0
        %v1468 = vpop.f32.mrf.mxu0
        %1469 = vdwg.mxu0
        %1471 = vrot.lane.b32.xlu0 %v861, 96
        %v1472 = vpop.permute.xlu0 %1471
        %v1474 = vsel %vm884, %v861, 0
        %v1477 = vsel %vm884, %v1472, 0
        %1479 = vmatprep.subr.bf16.mxu0 0
        %1480 = vmatpush1.bf16.xpose.msra.mxu0 0
        %1481 = vmatprep.subr.bf16.mxu0 0
        %1482 = vmatpush1.bf16.xpose.msra.mxu0 0
        %1483 = vmatprep.subr.bf16.mxu0 0
        %1484 = vmatpush1.bf16.xpose.msra.mxu0 0
        %1485 = vmatprep.subr.bf16.mxu0 0
        %1486 = vmatpush1.bf16.xpose.msra.mxu0 0
        %1487 = vmatprep.subr.bf16.mxu0 0
        %1488 = vmatpush1.bf16.xpose.msra.mxu0 0
        %1489 = vmatprep.subr.bf16.mxu0 0
        %1490 = vmatpush1.bf16.xpose.msra.mxu0 0
        %1491 = vmatprep.subr.bf16.mxu0 0
        %1492 = vmatpush1.bf16.xpose.msra.mxu0 0
        %1493 = vmatprep.subr.bf16.mxu0 0
        %1494 = vmatpush1.bf16.xpose.msra.mxu0 %v1477
        %1495 = vmatprep.subr.bf16.mxu0 0
        %1496 = vmatpush2.bf16.xpose.msra.mxu0 0
        %1497 = vmatprep.subr.bf16.mxu0 0
        %1498 = vmatpush2.bf16.xpose.msra.mxu0 0
        %1499 = vmatprep.subr.bf16.mxu0 0
        %1500 = vmatpush2.bf16.xpose.msra.mxu0 0
        %1501 = vmatprep.subr.bf16.mxu0 0
        %1502 = vmatpush2.bf16.xpose.msra.mxu0 0
        %1503 = vmatprep.subr.bf16.mxu0 0
        %1504 = vmatpush2.bf16.xpose.msra.mxu0 0
        %1505 = vmatprep.subr.bf16.mxu0 0
        %1506 = vmatpush2.bf16.xpose.msra.mxu0 0
        %1507 = vmatprep.subr.bf16.mxu0 0
        %1508 = vmatpush2.bf16.xpose.msra.mxu0 0
        %1509 = vmatprep.subr.bf16.mxu0 0
        %1510 = vmatpush2.bf16.xpose.msra.mxu0 0
        %1511 = vmatprep.mubr.bf16.mxu0 0
        %1512 = vmatmul.mubr.bf16.gmra.mxu0 %v1474
        %v1513 = vpop.f32.mrf.mxu0
        %v1514 = vadd.f32 0.0, %v1513
        %v1515 = vpop.f32.mrf.mxu0
        %v1516 = vpop.f32.mrf.mxu0
        %v1517 = vpop.f32.mrf.mxu0
        %1518 = vdwg.mxu0
        %1520 = vrot.lane.b32.xlu0 %v862, 96
        %v1521 = vpop.permute.xlu0 %1520
        %v1523 = vsel %vm884, %v862, 0
        %v1526 = vsel %vm884, %v1521, 0
        %1528 = vmatprep.subr.bf16.mxu0 0
        %1529 = vmatpush1.bf16.xpose.msra.mxu0 0
        %1530 = vmatprep.subr.bf16.mxu0 0
        %1531 = vmatpush1.bf16.xpose.msra.mxu0 0
        %1532 = vmatprep.subr.bf16.mxu0 0
        %1533 = vmatpush1.bf16.xpose.msra.mxu0 0
        %1534 = vmatprep.subr.bf16.mxu0 0
        %1535 = vmatpush1.bf16.xpose.msra.mxu0 0
        %1536 = vmatprep.subr.bf16.mxu0 0
        %1537 = vmatpush1.bf16.xpose.msra.mxu0 0
        %1538 = vmatprep.subr.bf16.mxu0 0
        %1539 = vmatpush1.bf16.xpose.msra.mxu0 0
        %1540 = vmatprep.subr.bf16.mxu0 0
        %1541 = vmatpush1.bf16.xpose.msra.mxu0 0
        %1542 = vmatprep.subr.bf16.mxu0 0
        %1543 = vmatpush1.bf16.xpose.msra.mxu0 %v1526
        %1544 = vmatprep.subr.bf16.mxu0 0
        %1545 = vmatpush2.bf16.xpose.msra.mxu0 0
        %1546 = vmatprep.subr.bf16.mxu0 0
        %1547 = vmatpush2.bf16.xpose.msra.mxu0 0
        %1548 = vmatprep.subr.bf16.mxu0 0
        %1549 = vmatpush2.bf16.xpose.msra.mxu0 0
        %1550 = vmatprep.subr.bf16.mxu0 0
        %1551 = vmatpush2.bf16.xpose.msra.mxu0 0
        %1552 = vmatprep.subr.bf16.mxu0 0
        %1553 = vmatpush2.bf16.xpose.msra.mxu0 0
        %1554 = vmatprep.subr.bf16.mxu0 0
        %1555 = vmatpush2.bf16.xpose.msra.mxu0 0
        %1556 = vmatprep.subr.bf16.mxu0 0
        %1557 = vmatpush2.bf16.xpose.msra.mxu0 0
        %1558 = vmatprep.subr.bf16.mxu0 0
        %1559 = vmatpush2.bf16.xpose.msra.mxu0 0
        %1560 = vmatprep.mubr.bf16.mxu0 0
        %1561 = vmatmul.mubr.bf16.gmra.mxu0 %v1523
        %v1562 = vpop.f32.mrf.mxu0
        %v1563 = vadd.f32 0.0, %v1562
        %v1564 = vpop.f32.mrf.mxu0
        %v1565 = vpop.f32.mrf.mxu0
        %v1566 = vpop.f32.mrf.mxu0
        %1567 = vdwg.mxu0
        %1569 = vrot.lane.b32.xlu0 %v863, 96
        %v1570 = vpop.permute.xlu0 %1569
        %v1572 = vsel %vm884, %v863, 0
        %v1575 = vsel %vm884, %v1570, 0
        %1577 = vmatprep.subr.bf16.mxu0 0
        %1578 = vmatpush1.bf16.xpose.msra.mxu0 0
        %1579 = vmatprep.subr.bf16.mxu0 0
        %1580 = vmatpush1.bf16.xpose.msra.mxu0 0
        %1581 = vmatprep.subr.bf16.mxu0 0
        %1582 = vmatpush1.bf16.xpose.msra.mxu0 0
        %1583 = vmatprep.subr.bf16.mxu0 0
        %1584 = vmatpush1.bf16.xpose.msra.mxu0 0
        %1585 = vmatprep.subr.bf16.mxu0 0
        %1586 = vmatpush1.bf16.xpose.msra.mxu0 0
        %1587 = vmatprep.subr.bf16.mxu0 0
        %1588 = vmatpush1.bf16.xpose.msra.mxu0 0
        %1589 = vmatprep.subr.bf16.mxu0 0
        %1590 = vmatpush1.bf16.xpose.msra.mxu0 0
        %1591 = vmatprep.subr.bf16.mxu0 0
        %1592 = vmatpush1.bf16.xpose.msra.mxu0 %v1575
        %1593 = vmatprep.subr.bf16.mxu0 0
        %1594 = vmatpush2.bf16.xpose.msra.mxu0 0
        %1595 = vmatprep.subr.bf16.mxu0 0
        %1596 = vmatpush2.bf16.xpose.msra.mxu0 0
        %1597 = vmatprep.subr.bf16.mxu0 0
        %1598 = vmatpush2.bf16.xpose.msra.mxu0 0
        %1599 = vmatprep.subr.bf16.mxu0 0
        %1600 = vmatpush2.bf16.xpose.msra.mxu0 0
        %1601 = vmatprep.subr.bf16.mxu0 0
        %1602 = vmatpush2.bf16.xpose.msra.mxu0 0
        %1603 = vmatprep.subr.bf16.mxu0 0
        %1604 = vmatpush2.bf16.xpose.msra.mxu0 0
        %1605 = vmatprep.subr.bf16.mxu0 0
        %1606 = vmatpush2.bf16.xpose.msra.mxu0 0
        %1607 = vmatprep.subr.bf16.mxu0 0
        %1608 = vmatpush2.bf16.xpose.msra.mxu0 0
        %1609 = vmatprep.mubr.bf16.mxu0 0
        %1610 = vmatmul.mubr.bf16.gmra.mxu0 %v1572
        %v1611 = vpop.f32.mrf.mxu0
        %v1612 = vadd.f32 0.0, %v1611
        %v1613 = vpop.f32.mrf.mxu0
        %v1614 = vpop.f32.mrf.mxu0
        %v1615 = vpop.f32.mrf.mxu0
        %1616 = vdwg.mxu0
        %1618 = vrot.lane.b32.xlu0 %v864, 96
        %v1619 = vpop.permute.xlu0 %1618
        %v1621 = vsel %vm884, %v864, 0
        %v1624 = vsel %vm884, %v1619, 0
        %1626 = vmatprep.subr.bf16.mxu0 0
        %1627 = vmatpush1.bf16.xpose.msra.mxu0 0
        %1628 = vmatprep.subr.bf16.mxu0 0
        %1629 = vmatpush1.bf16.xpose.msra.mxu0 0
        %1630 = vmatprep.subr.bf16.mxu0 0
        %1631 = vmatpush1.bf16.xpose.msra.mxu0 0
        %1632 = vmatprep.subr.bf16.mxu0 0
        %1633 = vmatpush1.bf16.xpose.msra.mxu0 0
        %1634 = vmatprep.subr.bf16.mxu0 0
        %1635 = vmatpush1.bf16.xpose.msra.mxu0 0
        %1636 = vmatprep.subr.bf16.mxu0 0
        %1637 = vmatpush1.bf16.xpose.msra.mxu0 0
        %1638 = vmatprep.subr.bf16.mxu0 0
        %1639 = vmatpush1.bf16.xpose.msra.mxu0 0
        %1640 = vmatprep.subr.bf16.mxu0 0
        %1641 = vmatpush1.bf16.xpose.msra.mxu0 %v1624
        %1642 = vmatprep.subr.bf16.mxu0 0
        %1643 = vmatpush2.bf16.xpose.msra.mxu0 0
        %1644 = vmatprep.subr.bf16.mxu0 0
        %1645 = vmatpush2.bf16.xpose.msra.mxu0 0
        %1646 = vmatprep.subr.bf16.mxu0 0
        %1647 = vmatpush2.bf16.xpose.msra.mxu0 0
        %1648 = vmatprep.subr.bf16.mxu0 0
        %1649 = vmatpush2.bf16.xpose.msra.mxu0 0
        %1650 = vmatprep.subr.bf16.mxu0 0
        %1651 = vmatpush2.bf16.xpose.msra.mxu0 0
        %1652 = vmatprep.subr.bf16.mxu0 0
        %1653 = vmatpush2.bf16.xpose.msra.mxu0 0
        %1654 = vmatprep.subr.bf16.mxu0 0
        %1655 = vmatpush2.bf16.xpose.msra.mxu0 0
        %1656 = vmatprep.subr.bf16.mxu0 0
        %1657 = vmatpush2.bf16.xpose.msra.mxu0 0
        %1658 = vmatprep.mubr.bf16.mxu0 0
        %1659 = vmatmul.mubr.bf16.gmra.mxu0 %v1621
        %v1660 = vpop.f32.mrf.mxu0
        %v1661 = vadd.f32 0.0, %v1660
        %v1662 = vpop.f32.mrf.mxu0
        %v1663 = vpop.f32.mrf.mxu0
        %v1664 = vpop.f32.mrf.mxu0
        %1665 = vdwg.mxu0
        %1667 = vrot.lane.b32.xlu0 %v865, 96
        %v1668 = vpop.permute.xlu0 %1667
        %v1670 = vsel %vm884, %v865, 0
        %v1673 = vsel %vm884, %v1668, 0
        %1675 = vmatprep.subr.bf16.mxu0 0
        %1676 = vmatpush1.bf16.xpose.msra.mxu0 0
        %1677 = vmatprep.subr.bf16.mxu0 0
        %1678 = vmatpush1.bf16.xpose.msra.mxu0 0
        %1679 = vmatprep.subr.bf16.mxu0 0
        %1680 = vmatpush1.bf16.xpose.msra.mxu0 0
        %1681 = vmatprep.subr.bf16.mxu0 0
        %1682 = vmatpush1.bf16.xpose.msra.mxu0 0
        %1683 = vmatprep.subr.bf16.mxu0 0
        %1684 = vmatpush1.bf16.xpose.msra.mxu0 0
        %1685 = vmatprep.subr.bf16.mxu0 0
        %1686 = vmatpush1.bf16.xpose.msra.mxu0 0
        %1687 = vmatprep.subr.bf16.mxu0 0
        %1688 = vmatpush1.bf16.xpose.msra.mxu0 0
        %1689 = vmatprep.subr.bf16.mxu0 0
        %1690 = vmatpush1.bf16.xpose.msra.mxu0 %v1673
        %1691 = vmatprep.subr.bf16.mxu0 0
        %1692 = vmatpush2.bf16.xpose.msra.mxu0 0
        %1693 = vmatprep.subr.bf16.mxu0 0
        %1694 = vmatpush2.bf16.xpose.msra.mxu0 0
        %1695 = vmatprep.subr.bf16.mxu0 0
        %1696 = vmatpush2.bf16.xpose.msra.mxu0 0
        %1697 = vmatprep.subr.bf16.mxu0 0
        %1698 = vmatpush2.bf16.xpose.msra.mxu0 0
        %1699 = vmatprep.subr.bf16.mxu0 0
        %1700 = vmatpush2.bf16.xpose.msra.mxu0 0
        %1701 = vmatprep.subr.bf16.mxu0 0
        %1702 = vmatpush2.bf16.xpose.msra.mxu0 0
        %1703 = vmatprep.subr.bf16.mxu0 0
        %1704 = vmatpush2.bf16.xpose.msra.mxu0 0
        %1705 = vmatprep.subr.bf16.mxu0 0
        %1706 = vmatpush2.bf16.xpose.msra.mxu0 0
        %1707 = vmatprep.mubr.bf16.mxu0 0
        %1708 = vmatmul.mubr.bf16.gmra.mxu0 %v1670
        %v1709 = vpop.f32.mrf.mxu0
        %v1710 = vadd.f32 0.0, %v1709
        %v1711 = vpop.f32.mrf.mxu0
        %v1712 = vpop.f32.mrf.mxu0
        %v1713 = vpop.f32.mrf.mxu0
        %1714 = vdwg.mxu0
        %1716 = vrot.lane.b32.xlu0 %v866, 96
        %v1717 = vpop.permute.xlu0 %1716
        %v1719 = vsel %vm884, %v866, 0
        %v1722 = vsel %vm884, %v1717, 0
        %1724 = vmatprep.subr.bf16.mxu0 0
        %1725 = vmatpush1.bf16.xpose.msra.mxu0 0
        %1726 = vmatprep.subr.bf16.mxu0 0
        %1727 = vmatpush1.bf16.xpose.msra.mxu0 0
        %1728 = vmatprep.subr.bf16.mxu0 0
        %1729 = vmatpush1.bf16.xpose.msra.mxu0 0
        %1730 = vmatprep.subr.bf16.mxu0 0
        %1731 = vmatpush1.bf16.xpose.msra.mxu0 0
        %1732 = vmatprep.subr.bf16.mxu0 0
        %1733 = vmatpush1.bf16.xpose.msra.mxu0 0
        %1734 = vmatprep.subr.bf16.mxu0 0
        %1735 = vmatpush1.bf16.xpose.msra.mxu0 0
        %1736 = vmatprep.subr.bf16.mxu0 0
        %1737 = vmatpush1.bf16.xpose.msra.mxu0 0
        %1738 = vmatprep.subr.bf16.mxu0 0
        %1739 = vmatpush1.bf16.xpose.msra.mxu0 %v1722
        %1740 = vmatprep.subr.bf16.mxu0 0
        %1741 = vmatpush2.bf16.xpose.msra.mxu0 0
        %1742 = vmatprep.subr.bf16.mxu0 0
        %1743 = vmatpush2.bf16.xpose.msra.mxu0 0
        %1744 = vmatprep.subr.bf16.mxu0 0
        %1745 = vmatpush2.bf16.xpose.msra.mxu0 0
        %1746 = vmatprep.subr.bf16.mxu0 0
        %1747 = vmatpush2.bf16.xpose.msra.mxu0 0
        %1748 = vmatprep.subr.bf16.mxu0 0
        %1749 = vmatpush2.bf16.xpose.msra.mxu0 0
        %1750 = vmatprep.subr.bf16.mxu0 0
        %1751 = vmatpush2.bf16.xpose.msra.mxu0 0
        %1752 = vmatprep.subr.bf16.mxu0 0
        %1753 = vmatpush2.bf16.xpose.msra.mxu0 0
        %1754 = vmatprep.subr.bf16.mxu0 0
        %1755 = vmatpush2.bf16.xpose.msra.mxu0 0
        %1756 = vmatprep.mubr.bf16.mxu0 0
        %1757 = vmatmul.mubr.bf16.gmra.mxu0 %v1719
        %v1758 = vpop.f32.mrf.mxu0
        %v1759 = vadd.f32 0.0, %v1758
        %v1760 = vpop.f32.mrf.mxu0
        %v1761 = vpop.f32.mrf.mxu0
        %v1762 = vpop.f32.mrf.mxu0
        %1763 = vdwg.mxu0
        %1765 = vrot.lane.b32.xlu0 %v867, 96
        %v1766 = vpop.permute.xlu0 %1765
        %v1768 = vsel %vm884, %v867, 0
        %v1771 = vsel %vm884, %v1766, 0
        %1773 = vmatprep.subr.bf16.mxu0 0
        %1774 = vmatpush1.bf16.xpose.msra.mxu0 0
        %1775 = vmatprep.subr.bf16.mxu0 0
        %1776 = vmatpush1.bf16.xpose.msra.mxu0 0
        %1777 = vmatprep.subr.bf16.mxu0 0
        %1778 = vmatpush1.bf16.xpose.msra.mxu0 0
        %1779 = vmatprep.subr.bf16.mxu0 0
        %1780 = vmatpush1.bf16.xpose.msra.mxu0 0
        %1781 = vmatprep.subr.bf16.mxu0 0
        %1782 = vmatpush1.bf16.xpose.msra.mxu0 0
        %1783 = vmatprep.subr.bf16.mxu0 0
        %1784 = vmatpush1.bf16.xpose.msra.mxu0 0
        %1785 = vmatprep.subr.bf16.mxu0 0
        %1786 = vmatpush1.bf16.xpose.msra.mxu0 0
        %1787 = vmatprep.subr.bf16.mxu0 0
        %1788 = vmatpush1.bf16.xpose.msra.mxu0 %v1771
        %1789 = vmatprep.subr.bf16.mxu0 0
        %1790 = vmatpush2.bf16.xpose.msra.mxu0 0
        %1791 = vmatprep.subr.bf16.mxu0 0
        %1792 = vmatpush2.bf16.xpose.msra.mxu0 0
        %1793 = vmatprep.subr.bf16.mxu0 0
        %1794 = vmatpush2.bf16.xpose.msra.mxu0 0
        %1795 = vmatprep.subr.bf16.mxu0 0
        %1796 = vmatpush2.bf16.xpose.msra.mxu0 0
        %1797 = vmatprep.subr.bf16.mxu0 0
        %1798 = vmatpush2.bf16.xpose.msra.mxu0 0
        %1799 = vmatprep.subr.bf16.mxu0 0
        %1800 = vmatpush2.bf16.xpose.msra.mxu0 0
        %1801 = vmatprep.subr.bf16.mxu0 0
        %1802 = vmatpush2.bf16.xpose.msra.mxu0 0
        %1803 = vmatprep.subr.bf16.mxu0 0
        %1804 = vmatpush2.bf16.xpose.msra.mxu0 0
        %1805 = vmatprep.mubr.bf16.mxu0 0
        %1806 = vmatmul.mubr.bf16.gmra.mxu0 %v1768
        %v1807 = vpop.f32.mrf.mxu0
        %v1808 = vadd.f32 0.0, %v1807
        %v1809 = vpop.f32.mrf.mxu0
        %v1810 = vpop.f32.mrf.mxu0
        %v1811 = vpop.f32.mrf.mxu0
        %1812 = vdwg.mxu0
        %1814 = vrot.lane.b32.xlu0 %v868, 96
        %v1815 = vpop.permute.xlu0 %1814
        %v1817 = vsel %vm884, %v868, 0
        %v1820 = vsel %vm884, %v1815, 0
        %1822 = vmatprep.subr.bf16.mxu0 0
        %1823 = vmatpush1.bf16.xpose.msra.mxu0 0
        %1824 = vmatprep.subr.bf16.mxu0 0
        %1825 = vmatpush1.bf16.xpose.msra.mxu0 0
        %1826 = vmatprep.subr.bf16.mxu0 0
        %1827 = vmatpush1.bf16.xpose.msra.mxu0 0
        %1828 = vmatprep.subr.bf16.mxu0 0
        %1829 = vmatpush1.bf16.xpose.msra.mxu0 0
        %1830 = vmatprep.subr.bf16.mxu0 0
        %1831 = vmatpush1.bf16.xpose.msra.mxu0 0
        %1832 = vmatprep.subr.bf16.mxu0 0
        %1833 = vmatpush1.bf16.xpose.msra.mxu0 0
        %1834 = vmatprep.subr.bf16.mxu0 0
        %1835 = vmatpush1.bf16.xpose.msra.mxu0 0
        %1836 = vmatprep.subr.bf16.mxu0 0
        %1837 = vmatpush1.bf16.xpose.msra.mxu0 %v1820
        %1838 = vmatprep.subr.bf16.mxu0 0
        %1839 = vmatpush2.bf16.xpose.msra.mxu0 0
        %1840 = vmatprep.subr.bf16.mxu0 0
        %1841 = vmatpush2.bf16.xpose.msra.mxu0 0
        %1842 = vmatprep.subr.bf16.mxu0 0
        %1843 = vmatpush2.bf16.xpose.msra.mxu0 0
        %1844 = vmatprep.subr.bf16.mxu0 0
        %1845 = vmatpush2.bf16.xpose.msra.mxu0 0
        %1846 = vmatprep.subr.bf16.mxu0 0
        %1847 = vmatpush2.bf16.xpose.msra.mxu0 0
        %1848 = vmatprep.subr.bf16.mxu0 0
        %1849 = vmatpush2.bf16.xpose.msra.mxu0 0
        %1850 = vmatprep.subr.bf16.mxu0 0
        %1851 = vmatpush2.bf16.xpose.msra.mxu0 0
        %1852 = vmatprep.subr.bf16.mxu0 0
        %1853 = vmatpush2.bf16.xpose.msra.mxu0 0
        %1854 = vmatprep.mubr.bf16.mxu0 0
        %1855 = vmatmul.mubr.bf16.gmra.mxu0 %v1817
        %v1856 = vpop.f32.mrf.mxu0
        %v1857 = vadd.f32 0.0, %v1856
        %v1858 = vpop.f32.mrf.mxu0
        %v1859 = vpop.f32.mrf.mxu0
        %v1860 = vpop.f32.mrf.mxu0
        %1861 = vdwg.mxu0
        %1863 = vrot.lane.b32.xlu0 %v869, 96
        %v1864 = vpop.permute.xlu0 %1863
        %v1866 = vsel %vm884, %v869, 0
        %v1869 = vsel %vm884, %v1864, 0
        %1871 = vmatprep.subr.bf16.mxu0 0
        %1872 = vmatpush1.bf16.xpose.msra.mxu0 0
        %1873 = vmatprep.subr.bf16.mxu0 0
        %1874 = vmatpush1.bf16.xpose.msra.mxu0 0
        %1875 = vmatprep.subr.bf16.mxu0 0
        %1876 = vmatpush1.bf16.xpose.msra.mxu0 0
        %1877 = vmatprep.subr.bf16.mxu0 0
        %1878 = vmatpush1.bf16.xpose.msra.mxu0 0
        %1879 = vmatprep.subr.bf16.mxu0 0
        %1880 = vmatpush1.bf16.xpose.msra.mxu0 0
        %1881 = vmatprep.subr.bf16.mxu0 0
        %1882 = vmatpush1.bf16.xpose.msra.mxu0 0
        %1883 = vmatprep.subr.bf16.mxu0 0
        %1884 = vmatpush1.bf16.xpose.msra.mxu0 0
        %1885 = vmatprep.subr.bf16.mxu0 0
        %1886 = vmatpush1.bf16.xpose.msra.mxu0 %v1869
        %1887 = vmatprep.subr.bf16.mxu0 0
        %1888 = vmatpush2.bf16.xpose.msra.mxu0 0
        %1889 = vmatprep.subr.bf16.mxu0 0
        %1890 = vmatpush2.bf16.xpose.msra.mxu0 0
        %1891 = vmatprep.subr.bf16.mxu0 0
        %1892 = vmatpush2.bf16.xpose.msra.mxu0 0
        %1893 = vmatprep.subr.bf16.mxu0 0
        %1894 = vmatpush2.bf16.xpose.msra.mxu0 0
        %1895 = vmatprep.subr.bf16.mxu0 0
        %1896 = vmatpush2.bf16.xpose.msra.mxu0 0
        %1897 = vmatprep.subr.bf16.mxu0 0
        %1898 = vmatpush2.bf16.xpose.msra.mxu0 0
        %1899 = vmatprep.subr.bf16.mxu0 0
        %1900 = vmatpush2.bf16.xpose.msra.mxu0 0
        %1901 = vmatprep.subr.bf16.mxu0 0
        %1902 = vmatpush2.bf16.xpose.msra.mxu0 0
        %1903 = vmatprep.mubr.bf16.mxu0 0
        %1904 = vmatmul.mubr.bf16.gmra.mxu0 %v1866
        %v1905 = vpop.f32.mrf.mxu0
        %v1906 = vadd.f32 0.0, %v1905
        %v1907 = vpop.f32.mrf.mxu0
        %v1908 = vpop.f32.mrf.mxu0
        %v1909 = vpop.f32.mrf.mxu0
        %1910 = vdwg.mxu0
        %1912 = vrot.lane.b32.xlu0 %v870, 96
        %v1913 = vpop.permute.xlu0 %1912
        %v1915 = vsel %vm884, %v870, 0
        %v1918 = vsel %vm884, %v1913, 0
        %1920 = vmatprep.subr.bf16.mxu0 0
        %1921 = vmatpush1.bf16.xpose.msra.mxu0 0
        %1922 = vmatprep.subr.bf16.mxu0 0
        %1923 = vmatpush1.bf16.xpose.msra.mxu0 0
        %1924 = vmatprep.subr.bf16.mxu0 0
        %1925 = vmatpush1.bf16.xpose.msra.mxu0 0
        %1926 = vmatprep.subr.bf16.mxu0 0
        %1927 = vmatpush1.bf16.xpose.msra.mxu0 0
        %1928 = vmatprep.subr.bf16.mxu0 0
        %1929 = vmatpush1.bf16.xpose.msra.mxu0 0
        %1930 = vmatprep.subr.bf16.mxu0 0
        %1931 = vmatpush1.bf16.xpose.msra.mxu0 0
        %1932 = vmatprep.subr.bf16.mxu0 0
        %1933 = vmatpush1.bf16.xpose.msra.mxu0 0
        %1934 = vmatprep.subr.bf16.mxu0 0
        %1935 = vmatpush1.bf16.xpose.msra.mxu0 %v1918
        %1936 = vmatprep.subr.bf16.mxu0 0
        %1937 = vmatpush2.bf16.xpose.msra.mxu0 0
        %1938 = vmatprep.subr.bf16.mxu0 0
        %1939 = vmatpush2.bf16.xpose.msra.mxu0 0
        %1940 = vmatprep.subr.bf16.mxu0 0
        %1941 = vmatpush2.bf16.xpose.msra.mxu0 0
        %1942 = vmatprep.subr.bf16.mxu0 0
        %1943 = vmatpush2.bf16.xpose.msra.mxu0 0
        %1944 = vmatprep.subr.bf16.mxu0 0
        %1945 = vmatpush2.bf16.xpose.msra.mxu0 0
        %1946 = vmatprep.subr.bf16.mxu0 0
        %1947 = vmatpush2.bf16.xpose.msra.mxu0 0
        %1948 = vmatprep.subr.bf16.mxu0 0
        %1949 = vmatpush2.bf16.xpose.msra.mxu0 0
        %1950 = vmatprep.subr.bf16.mxu0 0
        %1951 = vmatpush2.bf16.xpose.msra.mxu0 0
        %1952 = vmatprep.mubr.bf16.mxu0 0
        %1953 = vmatmul.mubr.bf16.gmra.mxu0 %v1915
        %v1954 = vpop.f32.mrf.mxu0
        %v1955 = vadd.f32 0.0, %v1954
        %v1956 = vpop.f32.mrf.mxu0
        %v1957 = vpop.f32.mrf.mxu0
        %v1958 = vpop.f32.mrf.mxu0
        %1959 = vdwg.mxu0
        %1961 = vrot.lane.b32.xlu0 %v871, 96
        %v1962 = vpop.permute.xlu0 %1961
        %v1964 = vsel %vm884, %v871, 0
        %v1967 = vsel %vm884, %v1962, 0
        %1969 = vmatprep.subr.bf16.mxu0 0
        %1970 = vmatpush1.bf16.xpose.msra.mxu0 0
        %1971 = vmatprep.subr.bf16.mxu0 0
        %1972 = vmatpush1.bf16.xpose.msra.mxu0 0
        %1973 = vmatprep.subr.bf16.mxu0 0
        %1974 = vmatpush1.bf16.xpose.msra.mxu0 0
        %1975 = vmatprep.subr.bf16.mxu0 0
        %1976 = vmatpush1.bf16.xpose.msra.mxu0 0
        %1977 = vmatprep.subr.bf16.mxu0 0
        %1978 = vmatpush1.bf16.xpose.msra.mxu0 0
        %1979 = vmatprep.subr.bf16.mxu0 0
        %1980 = vmatpush1.bf16.xpose.msra.mxu0 0
        %1981 = vmatprep.subr.bf16.mxu0 0
        %1982 = vmatpush1.bf16.xpose.msra.mxu0 0
        %1983 = vmatprep.subr.bf16.mxu0 0
        %1984 = vmatpush1.bf16.xpose.msra.mxu0 %v1967
        %1985 = vmatprep.subr.bf16.mxu0 0
        %1986 = vmatpush2.bf16.xpose.msra.mxu0 0
        %1987 = vmatprep.subr.bf16.mxu0 0
        %1988 = vmatpush2.bf16.xpose.msra.mxu0 0
        %1989 = vmatprep.subr.bf16.mxu0 0
        %1990 = vmatpush2.bf16.xpose.msra.mxu0 0
        %1991 = vmatprep.subr.bf16.mxu0 0
        %1992 = vmatpush2.bf16.xpose.msra.mxu0 0
        %1993 = vmatprep.subr.bf16.mxu0 0
        %1994 = vmatpush2.bf16.xpose.msra.mxu0 0
        %1995 = vmatprep.subr.bf16.mxu0 0
        %1996 = vmatpush2.bf16.xpose.msra.mxu0 0
        %1997 = vmatprep.subr.bf16.mxu0 0
        %1998 = vmatpush2.bf16.xpose.msra.mxu0 0
        %1999 = vmatprep.subr.bf16.mxu0 0
        %2000 = vmatpush2.bf16.xpose.msra.mxu0 0
        %2001 = vmatprep.mubr.bf16.mxu0 0
        %2002 = vmatmul.mubr.bf16.gmra.mxu0 %v1964
        %v2003 = vpop.f32.mrf.mxu0
        %v2004 = vadd.f32 0.0, %v2003
        %v2005 = vpop.f32.mrf.mxu0
        %v2006 = vpop.f32.mrf.mxu0
        %v2007 = vpop.f32.mrf.mxu0
        %2008 = vdwg.mxu0
        %2010 = vrot.lane.b32.xlu0 %v872, 96
        %v2011 = vpop.permute.xlu0 %2010
        %v2013 = vsel %vm884, %v872, 0
        %v2016 = vsel %vm884, %v2011, 0
        %2018 = vmatprep.subr.bf16.mxu0 0
        %2019 = vmatpush1.bf16.xpose.msra.mxu0 0
        %2020 = vmatprep.subr.bf16.mxu0 0
        %2021 = vmatpush1.bf16.xpose.msra.mxu0 0
        %2022 = vmatprep.subr.bf16.mxu0 0
        %2023 = vmatpush1.bf16.xpose.msra.mxu0 0
        %2024 = vmatprep.subr.bf16.mxu0 0
        %2025 = vmatpush1.bf16.xpose.msra.mxu0 0
        %2026 = vmatprep.subr.bf16.mxu0 0
        %2027 = vmatpush1.bf16.xpose.msra.mxu0 0
        %2028 = vmatprep.subr.bf16.mxu0 0
        %2029 = vmatpush1.bf16.xpose.msra.mxu0 0
        %2030 = vmatprep.subr.bf16.mxu0 0
        %2031 = vmatpush1.bf16.xpose.msra.mxu0 0
        %2032 = vmatprep.subr.bf16.mxu0 0
        %2033 = vmatpush1.bf16.xpose.msra.mxu0 %v2016
        %2034 = vmatprep.subr.bf16.mxu0 0
        %2035 = vmatpush2.bf16.xpose.msra.mxu0 0
        %2036 = vmatprep.subr.bf16.mxu0 0
        %2037 = vmatpush2.bf16.xpose.msra.mxu0 0
        %2038 = vmatprep.subr.bf16.mxu0 0
        %2039 = vmatpush2.bf16.xpose.msra.mxu0 0
        %2040 = vmatprep.subr.bf16.mxu0 0
        %2041 = vmatpush2.bf16.xpose.msra.mxu0 0
        %2042 = vmatprep.subr.bf16.mxu0 0
        %2043 = vmatpush2.bf16.xpose.msra.mxu0 0
        %2044 = vmatprep.subr.bf16.mxu0 0
        %2045 = vmatpush2.bf16.xpose.msra.mxu0 0
        %2046 = vmatprep.subr.bf16.mxu0 0
        %2047 = vmatpush2.bf16.xpose.msra.mxu0 0
        %2048 = vmatprep.subr.bf16.mxu0 0
        %2049 = vmatpush2.bf16.xpose.msra.mxu0 0
        %2050 = vmatprep.mubr.bf16.mxu0 0
        %2051 = vmatmul.mubr.bf16.gmra.mxu0 %v2013
        %v2052 = vpop.f32.mrf.mxu0
        %v2053 = vadd.f32 0.0, %v2052
        %v2054 = vpop.f32.mrf.mxu0
        %v2055 = vpop.f32.mrf.mxu0
        %v2056 = vpop.f32.mrf.mxu0
        %2057 = vdwg.mxu0
        %2059 = vrot.lane.b32.xlu0 %v873, 96
        %v2060 = vpop.permute.xlu0 %2059
        %v2062 = vsel %vm884, %v873, 0
        %v2065 = vsel %vm884, %v2060, 0
        %2067 = vmatprep.subr.bf16.mxu0 0
        %2068 = vmatpush1.bf16.xpose.msra.mxu0 0
        %2069 = vmatprep.subr.bf16.mxu0 0
        %2070 = vmatpush1.bf16.xpose.msra.mxu0 0
        %2071 = vmatprep.subr.bf16.mxu0 0
        %2072 = vmatpush1.bf16.xpose.msra.mxu0 0
        %2073 = vmatprep.subr.bf16.mxu0 0
        %2074 = vmatpush1.bf16.xpose.msra.mxu0 0
        %2075 = vmatprep.subr.bf16.mxu0 0
        %2076 = vmatpush1.bf16.xpose.msra.mxu0 0
        %2077 = vmatprep.subr.bf16.mxu0 0
        %2078 = vmatpush1.bf16.xpose.msra.mxu0 0
        %2079 = vmatprep.subr.bf16.mxu0 0
        %2080 = vmatpush1.bf16.xpose.msra.mxu0 0
        %2081 = vmatprep.subr.bf16.mxu0 0
        %2082 = vmatpush1.bf16.xpose.msra.mxu0 %v2065
        %2083 = vmatprep.subr.bf16.mxu0 0
        %2084 = vmatpush2.bf16.xpose.msra.mxu0 0
        %2085 = vmatprep.subr.bf16.mxu0 0
        %2086 = vmatpush2.bf16.xpose.msra.mxu0 0
        %2087 = vmatprep.subr.bf16.mxu0 0
        %2088 = vmatpush2.bf16.xpose.msra.mxu0 0
        %2089 = vmatprep.subr.bf16.mxu0 0
        %2090 = vmatpush2.bf16.xpose.msra.mxu0 0
        %2091 = vmatprep.subr.bf16.mxu0 0
        %2092 = vmatpush2.bf16.xpose.msra.mxu0 0
        %2093 = vmatprep.subr.bf16.mxu0 0
        %2094 = vmatpush2.bf16.xpose.msra.mxu0 0
        %2095 = vmatprep.subr.bf16.mxu0 0
        %2096 = vmatpush2.bf16.xpose.msra.mxu0 0
        %2097 = vmatprep.subr.bf16.mxu0 0
        %2098 = vmatpush2.bf16.xpose.msra.mxu0 0
        %2099 = vmatprep.mubr.bf16.mxu0 0
        %2100 = vmatmul.mubr.bf16.gmra.mxu0 %v2062
        %v2101 = vpop.f32.mrf.mxu0
        %v2102 = vadd.f32 0.0, %v2101
        %v2103 = vpop.f32.mrf.mxu0
        %v2104 = vpop.f32.mrf.mxu0
        %v2105 = vpop.f32.mrf.mxu0
        %2106 = vdwg.mxu0
        %2108 = vrot.lane.b32.xlu0 %v874, 96
        %v2109 = vpop.permute.xlu0 %2108
        %v2111 = vsel %vm884, %v874, 0
        %v2114 = vsel %vm884, %v2109, 0
        %2116 = vmatprep.subr.bf16.mxu0 0
        %2117 = vmatpush1.bf16.xpose.msra.mxu0 0
        %2118 = vmatprep.subr.bf16.mxu0 0
        %2119 = vmatpush1.bf16.xpose.msra.mxu0 0
        %2120 = vmatprep.subr.bf16.mxu0 0
        %2121 = vmatpush1.bf16.xpose.msra.mxu0 0
        %2122 = vmatprep.subr.bf16.mxu0 0
        %2123 = vmatpush1.bf16.xpose.msra.mxu0 0
        %2124 = vmatprep.subr.bf16.mxu0 0
        %2125 = vmatpush1.bf16.xpose.msra.mxu0 0
        %2126 = vmatprep.subr.bf16.mxu0 0
        %2127 = vmatpush1.bf16.xpose.msra.mxu0 0
        %2128 = vmatprep.subr.bf16.mxu0 0
        %2129 = vmatpush1.bf16.xpose.msra.mxu0 0
        %2130 = vmatprep.subr.bf16.mxu0 0
        %2131 = vmatpush1.bf16.xpose.msra.mxu0 %v2114
        %2132 = vmatprep.subr.bf16.mxu0 0
        %2133 = vmatpush2.bf16.xpose.msra.mxu0 0
        %2134 = vmatprep.subr.bf16.mxu0 0
        %2135 = vmatpush2.bf16.xpose.msra.mxu0 0
        %2136 = vmatprep.subr.bf16.mxu0 0
        %2137 = vmatpush2.bf16.xpose.msra.mxu0 0
        %2138 = vmatprep.subr.bf16.mxu0 0
        %2139 = vmatpush2.bf16.xpose.msra.mxu0 0
        %2140 = vmatprep.subr.bf16.mxu0 0
        %2141 = vmatpush2.bf16.xpose.msra.mxu0 0
        %2142 = vmatprep.subr.bf16.mxu0 0
        %2143 = vmatpush2.bf16.xpose.msra.mxu0 0
        %2144 = vmatprep.subr.bf16.mxu0 0
        %2145 = vmatpush2.bf16.xpose.msra.mxu0 0
        %2146 = vmatprep.subr.bf16.mxu0 0
        %2147 = vmatpush2.bf16.xpose.msra.mxu0 0
        %2148 = vmatprep.mubr.bf16.mxu0 0
        %2149 = vmatmul.mubr.bf16.gmra.mxu0 %v2111
        %v2150 = vpop.f32.mrf.mxu0
        %v2151 = vadd.f32 0.0, %v2150
        %v2152 = vpop.f32.mrf.mxu0
        %v2153 = vpop.f32.mrf.mxu0
        %v2154 = vpop.f32.mrf.mxu0
        %2155 = vdwg.mxu0
        %2157 = vrot.lane.b32.xlu0 %v875, 96
        %v2158 = vpop.permute.xlu0 %2157
        %v2160 = vsel %vm884, %v875, 0
        %v2163 = vsel %vm884, %v2158, 0
        %2165 = vmatprep.subr.bf16.mxu0 0
        %2166 = vmatpush1.bf16.xpose.msra.mxu0 0
        %2167 = vmatprep.subr.bf16.mxu0 0
        %2168 = vmatpush1.bf16.xpose.msra.mxu0 0
        %2169 = vmatprep.subr.bf16.mxu0 0
        %2170 = vmatpush1.bf16.xpose.msra.mxu0 0
        %2171 = vmatprep.subr.bf16.mxu0 0
        %2172 = vmatpush1.bf16.xpose.msra.mxu0 0
        %2173 = vmatprep.subr.bf16.mxu0 0
        %2174 = vmatpush1.bf16.xpose.msra.mxu0 0
        %2175 = vmatprep.subr.bf16.mxu0 0
        %2176 = vmatpush1.bf16.xpose.msra.mxu0 0
        %2177 = vmatprep.subr.bf16.mxu0 0
        %2178 = vmatpush1.bf16.xpose.msra.mxu0 0
        %2179 = vmatprep.subr.bf16.mxu0 0
        %2180 = vmatpush1.bf16.xpose.msra.mxu0 %v2163
        %2181 = vmatprep.subr.bf16.mxu0 0
        %2182 = vmatpush2.bf16.xpose.msra.mxu0 0
        %2183 = vmatprep.subr.bf16.mxu0 0
        %2184 = vmatpush2.bf16.xpose.msra.mxu0 0
        %2185 = vmatprep.subr.bf16.mxu0 0
        %2186 = vmatpush2.bf16.xpose.msra.mxu0 0
        %2187 = vmatprep.subr.bf16.mxu0 0
        %2188 = vmatpush2.bf16.xpose.msra.mxu0 0
        %2189 = vmatprep.subr.bf16.mxu0 0
        %2190 = vmatpush2.bf16.xpose.msra.mxu0 0
        %2191 = vmatprep.subr.bf16.mxu0 0
        %2192 = vmatpush2.bf16.xpose.msra.mxu0 0
        %2193 = vmatprep.subr.bf16.mxu0 0
        %2194 = vmatpush2.bf16.xpose.msra.mxu0 0
        %2195 = vmatprep.subr.bf16.mxu0 0
        %2196 = vmatpush2.bf16.xpose.msra.mxu0 0
        %2197 = vmatprep.mubr.bf16.mxu0 0
        %2198 = vmatmul.mubr.bf16.gmra.mxu0 %v2160
        %v2199 = vpop.f32.mrf.mxu0
        %v2200 = vadd.f32 0.0, %v2199
        %v2201 = vpop.f32.mrf.mxu0
        %v2202 = vpop.f32.mrf.mxu0
        %v2203 = vpop.f32.mrf.mxu0
        %2204 = vdwg.mxu0
        %2206 = vrot.lane.b32.xlu0 %v876, 96
        %v2207 = vpop.permute.xlu0 %2206
        %v2209 = vsel %vm884, %v876, 0
        %v2212 = vsel %vm884, %v2207, 0
        %2214 = vmatprep.subr.bf16.mxu0 0
        %2215 = vmatpush1.bf16.xpose.msra.mxu0 0
        %2216 = vmatprep.subr.bf16.mxu0 0
        %2217 = vmatpush1.bf16.xpose.msra.mxu0 0
        %2218 = vmatprep.subr.bf16.mxu0 0
        %2219 = vmatpush1.bf16.xpose.msra.mxu0 0
        %2220 = vmatprep.subr.bf16.mxu0 0
        %2221 = vmatpush1.bf16.xpose.msra.mxu0 0
        %2222 = vmatprep.subr.bf16.mxu0 0
        %2223 = vmatpush1.bf16.xpose.msra.mxu0 0
        %2224 = vmatprep.subr.bf16.mxu0 0
        %2225 = vmatpush1.bf16.xpose.msra.mxu0 0
        %2226 = vmatprep.subr.bf16.mxu0 0
        %2227 = vmatpush1.bf16.xpose.msra.mxu0 0
        %2228 = vmatprep.subr.bf16.mxu0 0
        %2229 = vmatpush1.bf16.xpose.msra.mxu0 %v2212
        %2230 = vmatprep.subr.bf16.mxu0 0
        %2231 = vmatpush2.bf16.xpose.msra.mxu0 0
        %2232 = vmatprep.subr.bf16.mxu0 0
        %2233 = vmatpush2.bf16.xpose.msra.mxu0 0
        %2234 = vmatprep.subr.bf16.mxu0 0
        %2235 = vmatpush2.bf16.xpose.msra.mxu0 0
        %2236 = vmatprep.subr.bf16.mxu0 0
        %2237 = vmatpush2.bf16.xpose.msra.mxu0 0
        %2238 = vmatprep.subr.bf16.mxu0 0
        %2239 = vmatpush2.bf16.xpose.msra.mxu0 0
        %2240 = vmatprep.subr.bf16.mxu0 0
        %2241 = vmatpush2.bf16.xpose.msra.mxu0 0
        %2242 = vmatprep.subr.bf16.mxu0 0
        %2243 = vmatpush2.bf16.xpose.msra.mxu0 0
        %2244 = vmatprep.subr.bf16.mxu0 0
        %2245 = vmatpush2.bf16.xpose.msra.mxu0 0
        %2246 = vmatprep.mubr.bf16.mxu0 0
        %2247 = vmatmul.mubr.bf16.gmra.mxu0 %v2209
        %v2248 = vpop.f32.mrf.mxu0
        %v2249 = vadd.f32 0.0, %v2248
        %v2250 = vpop.f32.mrf.mxu0
        %v2251 = vpop.f32.mrf.mxu0
        %v2252 = vpop.f32.mrf.mxu0
        %2253 = vdwg.mxu0
        %2255 = vrot.lane.b32.xlu0 %v877, 96
        %v2256 = vpop.permute.xlu0 %2255
        %v2258 = vsel %vm884, %v877, 0
        %v2261 = vsel %vm884, %v2256, 0
        %2263 = vmatprep.subr.bf16.mxu0 0
        %2264 = vmatpush1.bf16.xpose.msra.mxu0 0
        %2265 = vmatprep.subr.bf16.mxu0 0
        %2266 = vmatpush1.bf16.xpose.msra.mxu0 0
        %2267 = vmatprep.subr.bf16.mxu0 0
        %2268 = vmatpush1.bf16.xpose.msra.mxu0 0
        %2269 = vmatprep.subr.bf16.mxu0 0
        %2270 = vmatpush1.bf16.xpose.msra.mxu0 0
        %2271 = vmatprep.subr.bf16.mxu0 0
        %2272 = vmatpush1.bf16.xpose.msra.mxu0 0
        %2273 = vmatprep.subr.bf16.mxu0 0
        %2274 = vmatpush1.bf16.xpose.msra.mxu0 0
        %2275 = vmatprep.subr.bf16.mxu0 0
        %2276 = vmatpush1.bf16.xpose.msra.mxu0 0
        %2277 = vmatprep.subr.bf16.mxu0 0
        %2278 = vmatpush1.bf16.xpose.msra.mxu0 %v2261
        %2279 = vmatprep.subr.bf16.mxu0 0
        %2280 = vmatpush2.bf16.xpose.msra.mxu0 0
        %2281 = vmatprep.subr.bf16.mxu0 0
        %2282 = vmatpush2.bf16.xpose.msra.mxu0 0
        %2283 = vmatprep.subr.bf16.mxu0 0
        %2284 = vmatpush2.bf16.xpose.msra.mxu0 0
        %2285 = vmatprep.subr.bf16.mxu0 0
        %2286 = vmatpush2.bf16.xpose.msra.mxu0 0
        %2287 = vmatprep.subr.bf16.mxu0 0
        %2288 = vmatpush2.bf16.xpose.msra.mxu0 0
        %2289 = vmatprep.subr.bf16.mxu0 0
        %2290 = vmatpush2.bf16.xpose.msra.mxu0 0
        %2291 = vmatprep.subr.bf16.mxu0 0
        %2292 = vmatpush2.bf16.xpose.msra.mxu0 0
        %2293 = vmatprep.subr.bf16.mxu0 0
        %2294 = vmatpush2.bf16.xpose.msra.mxu0 0
        %2295 = vmatprep.mubr.bf16.mxu0 0
        %2296 = vmatmul.mubr.bf16.gmra.mxu0 %v2258
        %v2297 = vpop.f32.mrf.mxu0
        %v2298 = vadd.f32 0.0, %v2297
        %v2299 = vpop.f32.mrf.mxu0
        %v2300 = vpop.f32.mrf.mxu0
        %v2301 = vpop.f32.mrf.mxu0
        %2302 = vdwg.mxu0
        %2304 = vrot.lane.b32.xlu0 %v878, 96
        %v2305 = vpop.permute.xlu0 %2304
        %v2307 = vsel %vm884, %v878, 0
        %v2310 = vsel %vm884, %v2305, 0
        %2312 = vmatprep.subr.bf16.mxu0 0
        %2313 = vmatpush1.bf16.xpose.msra.mxu0 0
        %2314 = vmatprep.subr.bf16.mxu0 0
        %2315 = vmatpush1.bf16.xpose.msra.mxu0 0
        %2316 = vmatprep.subr.bf16.mxu0 0
        %2317 = vmatpush1.bf16.xpose.msra.mxu0 0
        %2318 = vmatprep.subr.bf16.mxu0 0
        %2319 = vmatpush1.bf16.xpose.msra.mxu0 0
        %2320 = vmatprep.subr.bf16.mxu0 0
        %2321 = vmatpush1.bf16.xpose.msra.mxu0 0
        %2322 = vmatprep.subr.bf16.mxu0 0
        %2323 = vmatpush1.bf16.xpose.msra.mxu0 0
        %2324 = vmatprep.subr.bf16.mxu0 0
        %2325 = vmatpush1.bf16.xpose.msra.mxu0 0
        %2326 = vmatprep.subr.bf16.mxu0 0
        %2327 = vmatpush1.bf16.xpose.msra.mxu0 %v2310
        %2328 = vmatprep.subr.bf16.mxu0 0
        %2329 = vmatpush2.bf16.xpose.msra.mxu0 0
        %2330 = vmatprep.subr.bf16.mxu0 0
        %2331 = vmatpush2.bf16.xpose.msra.mxu0 0
        %2332 = vmatprep.subr.bf16.mxu0 0
        %2333 = vmatpush2.bf16.xpose.msra.mxu0 0
        %2334 = vmatprep.subr.bf16.mxu0 0
        %2335 = vmatpush2.bf16.xpose.msra.mxu0 0
        %2336 = vmatprep.subr.bf16.mxu0 0
        %2337 = vmatpush2.bf16.xpose.msra.mxu0 0
        %2338 = vmatprep.subr.bf16.mxu0 0
        %2339 = vmatpush2.bf16.xpose.msra.mxu0 0
        %2340 = vmatprep.subr.bf16.mxu0 0
        %2341 = vmatpush2.bf16.xpose.msra.mxu0 0
        %2342 = vmatprep.subr.bf16.mxu0 0
        %2343 = vmatpush2.bf16.xpose.msra.mxu0 0
        %2344 = vmatprep.mubr.bf16.mxu0 0
        %2345 = vmatmul.mubr.bf16.gmra.mxu0 %v2307
        %v2346 = vpop.f32.mrf.mxu0
        %v2347 = vadd.f32 0.0, %v2346
        %v2348 = vpop.f32.mrf.mxu0
        %v2349 = vpop.f32.mrf.mxu0
        %v2350 = vpop.f32.mrf.mxu0
        %2351 = vdwg.mxu0
        %2353 = vrot.lane.b32.xlu0 %v879, 96
        %v2354 = vpop.permute.xlu0 %2353
        %v2356 = vsel %vm884, %v879, 0
        %v2359 = vsel %vm884, %v2354, 0
        %2361 = vmatprep.subr.bf16.mxu0 0
        %2362 = vmatpush1.bf16.xpose.msra.mxu0 0
        %2363 = vmatprep.subr.bf16.mxu0 0
        %2364 = vmatpush1.bf16.xpose.msra.mxu0 0
        %2365 = vmatprep.subr.bf16.mxu0 0
        %2366 = vmatpush1.bf16.xpose.msra.mxu0 0
        %2367 = vmatprep.subr.bf16.mxu0 0
        %2368 = vmatpush1.bf16.xpose.msra.mxu0 0
        %2369 = vmatprep.subr.bf16.mxu0 0
        %2370 = vmatpush1.bf16.xpose.msra.mxu0 0
        %2371 = vmatprep.subr.bf16.mxu0 0
        %2372 = vmatpush1.bf16.xpose.msra.mxu0 0
        %2373 = vmatprep.subr.bf16.mxu0 0
        %2374 = vmatpush1.bf16.xpose.msra.mxu0 0
        %2375 = vmatprep.subr.bf16.mxu0 0
        %2376 = vmatpush1.bf16.xpose.msra.mxu0 %v2359
        %2377 = vmatprep.subr.bf16.mxu0 0
        %2378 = vmatpush2.bf16.xpose.msra.mxu0 0
        %2379 = vmatprep.subr.bf16.mxu0 0
        %2380 = vmatpush2.bf16.xpose.msra.mxu0 0
        %2381 = vmatprep.subr.bf16.mxu0 0
        %2382 = vmatpush2.bf16.xpose.msra.mxu0 0
        %2383 = vmatprep.subr.bf16.mxu0 0
        %2384 = vmatpush2.bf16.xpose.msra.mxu0 0
        %2385 = vmatprep.subr.bf16.mxu0 0
        %2386 = vmatpush2.bf16.xpose.msra.mxu0 0
        %2387 = vmatprep.subr.bf16.mxu0 0
        %2388 = vmatpush2.bf16.xpose.msra.mxu0 0
        %2389 = vmatprep.subr.bf16.mxu0 0
        %2390 = vmatpush2.bf16.xpose.msra.mxu0 0
        %2391 = vmatprep.subr.bf16.mxu0 0
        %2392 = vmatpush2.bf16.xpose.msra.mxu0 0
        %2393 = vmatprep.mubr.bf16.mxu0 0
        %2394 = vmatmul.mubr.bf16.gmra.mxu0 %v2356
        %v2395 = vpop.f32.mrf.mxu0
        %v2396 = vadd.f32 0.0, %v2395
        %v2397 = vpop.f32.mrf.mxu0
        %v2398 = vpop.f32.mrf.mxu0
        %v2399 = vpop.f32.mrf.mxu0
        %2400 = vdwg.mxu0
        %2402 = vrot.lane.b32.xlu0 %v880, 96
        %v2403 = vpop.permute.xlu0 %2402
        %v2405 = vsel %vm884, %v880, 0
        %v2408 = vsel %vm884, %v2403, 0
        %2410 = vmatprep.subr.bf16.mxu0 0
        %2411 = vmatpush1.bf16.xpose.msra.mxu0 0
        %2412 = vmatprep.subr.bf16.mxu0 0
        %2413 = vmatpush1.bf16.xpose.msra.mxu0 0
        %2414 = vmatprep.subr.bf16.mxu0 0
        %2415 = vmatpush1.bf16.xpose.msra.mxu0 0
        %2416 = vmatprep.subr.bf16.mxu0 0
        %2417 = vmatpush1.bf16.xpose.msra.mxu0 0
        %2418 = vmatprep.subr.bf16.mxu0 0
        %2419 = vmatpush1.bf16.xpose.msra.mxu0 0
        %2420 = vmatprep.subr.bf16.mxu0 0
        %2421 = vmatpush1.bf16.xpose.msra.mxu0 0
        %2422 = vmatprep.subr.bf16.mxu0 0
        %2423 = vmatpush1.bf16.xpose.msra.mxu0 0
        %2424 = vmatprep.subr.bf16.mxu0 0
        %2425 = vmatpush1.bf16.xpose.msra.mxu0 %v2408
        %2426 = vmatprep.subr.bf16.mxu0 0
        %2427 = vmatpush2.bf16.xpose.msra.mxu0 0
        %2428 = vmatprep.subr.bf16.mxu0 0
        %2429 = vmatpush2.bf16.xpose.msra.mxu0 0
        %2430 = vmatprep.subr.bf16.mxu0 0
        %2431 = vmatpush2.bf16.xpose.msra.mxu0 0
        %2432 = vmatprep.subr.bf16.mxu0 0
        %2433 = vmatpush2.bf16.xpose.msra.mxu0 0
        %2434 = vmatprep.subr.bf16.mxu0 0
        %2435 = vmatpush2.bf16.xpose.msra.mxu0 0
        %2436 = vmatprep.subr.bf16.mxu0 0
        %2437 = vmatpush2.bf16.xpose.msra.mxu0 0
        %2438 = vmatprep.subr.bf16.mxu0 0
        %2439 = vmatpush2.bf16.xpose.msra.mxu0 0
        %2440 = vmatprep.subr.bf16.mxu0 0
        %2441 = vmatpush2.bf16.xpose.msra.mxu0 0
        %2442 = vmatprep.mubr.bf16.mxu0 0
        %2443 = vmatmul.mubr.bf16.gmra.mxu0 %v2405
        %v2444 = vpop.f32.mrf.mxu0
        %v2445 = vadd.f32 0.0, %v2444
        %v2446 = vpop.f32.mrf.mxu0
        %v2447 = vpop.f32.mrf.mxu0
        %v2448 = vpop.f32.mrf.mxu0
        %2449 = vdwg.mxu0
        %v2450 = vmul.f32 %v926, 0.25
        %v2451 = vmul.f32 %v975, 0.25
        %v2452 = vmul.f32 %v1024, 0.25
        %v2453 = vmul.f32 %v1073, 0.25
        %v2454 = vmul.f32 %v1122, 0.25
        %v2455 = vmul.f32 %v1171, 0.25
        %v2456 = vmul.f32 %v1220, 0.25
        %v2457 = vmul.f32 %v1269, 0.25
        %v2458 = vmul.f32 %v1318, 0.25
        %v2459 = vmul.f32 %v1367, 0.25
        %v2460 = vmul.f32 %v1416, 0.25
        %v2461 = vmul.f32 %v1465, 0.25
        %v2462 = vmul.f32 %v1514, 0.25
        %v2463 = vmul.f32 %v1563, 0.25
        %v2464 = vmul.f32 %v1612, 0.25
        %v2465 = vmul.f32 %v1661, 0.25
        %v2466 = vmul.f32 %v1710, 0.25
        %v2467 = vmul.f32 %v1759, 0.25
        %v2468 = vmul.f32 %v1808, 0.25
        %v2469 = vmul.f32 %v1857, 0.25
        %v2470 = vmul.f32 %v1906, 0.25
        %v2471 = vmul.f32 %v1955, 0.25
        %v2472 = vmul.f32 %v2004, 0.25
        %v2473 = vmul.f32 %v2053, 0.25
        %v2474 = vmul.f32 %v2102, 0.25
        %v2475 = vmul.f32 %v2151, 0.25
        %v2476 = vmul.f32 %v2200, 0.25
        %v2477 = vmul.f32 %v2249, 0.25
        %v2478 = vmul.f32 %v2298, 0.25
        %v2479 = vmul.f32 %v2347, 0.25
        %v2480 = vmul.f32 %v2396, 0.25
        %v2481 = vmul.f32 %v2445, 0.25
        %v2482 = vadd.f32 %v2450, %v616
        %v2483 = vadd.f32 %v2451, %v617
        %v2484 = vadd.f32 %v2452, %v618
        %v2485 = vadd.f32 %v2453, %v619
        %v2486 = vadd.f32 %v2454, %v620
        %v2487 = vadd.f32 %v2455, %v621
        %v2488 = vadd.f32 %v2456, %v622
        %v2489 = vadd.f32 %v2457, %v623
        %v2490 = vadd.f32 %v2458, %v624
        %v2491 = vadd.f32 %v2459, %v625
        %v2492 = vadd.f32 %v2460, %v626
        %v2493 = vadd.f32 %v2461, %v627
        %v2494 = vadd.f32 %v2462, %v628
        %v2495 = vadd.f32 %v2463, %v629
        %v2496 = vadd.f32 %v2464, %v630
        %v2497 = vadd.f32 %v2465, %v631
        %v2498 = vadd.f32 %v2466, %v616
        %v2499 = vadd.f32 %v2467, %v617
        %v2500 = vadd.f32 %v2468, %v618
        %v2501 = vadd.f32 %v2469, %v619
        %v2502 = vadd.f32 %v2470, %v620
        %v2503 = vadd.f32 %v2471, %v621
        %v2504 = vadd.f32 %v2472, %v622
        %v2505 = vadd.f32 %v2473, %v623
        %v2506 = vadd.f32 %v2474, %v624
        %v2507 = vadd.f32 %v2475, %v625
        %v2508 = vadd.f32 %v2476, %v626
        %v2509 = vadd.f32 %v2477, %v627
        %v2510 = vadd.f32 %v2478, %v628
        %v2511 = vadd.f32 %v2479, %v629
        %v2512 = vadd.f32 %v2480, %v630
        %v2513 = vadd.f32 %v2481, %v631
        %vm2514 = vcmask 64512
        %v2515 = vsel %vm2514, %v2482, -inf
        %2516 = vmax.xlane.f32.xlu0 %v2515
        %v2517 = vpop.xlane.xlu0 %2516
        %v2518 = vsel %vm2514, %v2483, -inf
        %2519 = vmax.xlane.f32.xlu0 %v2518
        %v2520 = vpop.xlane.xlu0 %2519
        %v2521 = vsel %vm2514, %v2484, -inf
        %2522 = vmax.xlane.f32.xlu0 %v2521
        %v2523 = vpop.xlane.xlu0 %2522
        %v2524 = vsel %vm2514, %v2485, -inf
        %2525 = vmax.xlane.f32.xlu0 %v2524
        %v2526 = vpop.xlane.xlu0 %2525
        %v2527 = vsel %vm2514, %v2486, -inf
        %2528 = vmax.xlane.f32.xlu0 %v2527
        %v2529 = vpop.xlane.xlu0 %2528
        %v2530 = vsel %vm2514, %v2487, -inf
        %2531 = vmax.xlane.f32.xlu0 %v2530
        %v2532 = vpop.xlane.xlu0 %2531
        %v2533 = vsel %vm2514, %v2488, -inf
        %2534 = vmax.xlane.f32.xlu0 %v2533
        %v2535 = vpop.xlane.xlu0 %2534
        %v2536 = vsel %vm2514, %v2489, -inf
        %2537 = vmax.xlane.f32.xlu0 %v2536
        %v2538 = vpop.xlane.xlu0 %2537
        %v2539 = vsel %vm2514, %v2490, -inf
        %2540 = vmax.xlane.f32.xlu0 %v2539
        %v2541 = vpop.xlane.xlu0 %2540
        %v2542 = vsel %vm2514, %v2491, -inf
        %2543 = vmax.xlane.f32.xlu0 %v2542
        %v2544 = vpop.xlane.xlu0 %2543
        %v2545 = vsel %vm2514, %v2492, -inf
        %2546 = vmax.xlane.f32.xlu0 %v2545
        %v2547 = vpop.xlane.xlu0 %2546
        %v2548 = vsel %vm2514, %v2493, -inf
        %2549 = vmax.xlane.f32.xlu0 %v2548
        %v2550 = vpop.xlane.xlu0 %2549
        %v2551 = vsel %vm2514, %v2494, -inf
        %2552 = vmax.xlane.f32.xlu0 %v2551
        %v2553 = vpop.xlane.xlu0 %2552
        %v2554 = vsel %vm2514, %v2495, -inf
        %2555 = vmax.xlane.f32.xlu0 %v2554
        %v2556 = vpop.xlane.xlu0 %2555
        %v2557 = vsel %vm2514, %v2496, -inf
        %2558 = vmax.xlane.f32.xlu0 %v2557
        %v2559 = vpop.xlane.xlu0 %2558
        %v2560 = vsel %vm2514, %v2497, -inf
        %2561 = vmax.xlane.f32.xlu0 %v2560
        %v2562 = vpop.xlane.xlu0 %2561
        %v2563 = vsel %vm2514, %v2498, -inf
        %2564 = vmax.xlane.f32.xlu0 %v2563
        %v2565 = vpop.xlane.xlu0 %2564
        %v2566 = vsel %vm2514, %v2499, -inf
        %2567 = vmax.xlane.f32.xlu0 %v2566
        %v2568 = vpop.xlane.xlu0 %2567
        %v2569 = vsel %vm2514, %v2500, -inf
        %2570 = vmax.xlane.f32.xlu0 %v2569
        %v2571 = vpop.xlane.xlu0 %2570
        %v2572 = vsel %vm2514, %v2501, -inf
        %2573 = vmax.xlane.f32.xlu0 %v2572
        %v2574 = vpop.xlane.xlu0 %2573
        %v2575 = vsel %vm2514, %v2502, -inf
        %2576 = vmax.xlane.f32.xlu0 %v2575
        %v2577 = vpop.xlane.xlu0 %2576
        %v2578 = vsel %vm2514, %v2503, -inf
        %2579 = vmax.xlane.f32.xlu0 %v2578
        %v2580 = vpop.xlane.xlu0 %2579
        %v2581 = vsel %vm2514, %v2504, -inf
        %2582 = vmax.xlane.f32.xlu0 %v2581
        %v2583 = vpop.xlane.xlu0 %2582
        %v2584 = vsel %vm2514, %v2505, -inf
        %2585 = vmax.xlane.f32.xlu0 %v2584
        %v2586 = vpop.xlane.xlu0 %2585
        %v2587 = vsel %vm2514, %v2506, -inf
        %2588 = vmax.xlane.f32.xlu0 %v2587
        %v2589 = vpop.xlane.xlu0 %2588
        %v2590 = vsel %vm2514, %v2507, -inf
        %2591 = vmax.xlane.f32.xlu0 %v2590
        %v2592 = vpop.xlane.xlu0 %2591
        %v2593 = vsel %vm2514, %v2508, -inf
        %2594 = vmax.xlane.f32.xlu0 %v2593
        %v2595 = vpop.xlane.xlu0 %2594
        %v2596 = vsel %vm2514, %v2509, -inf
        %2597 = vmax.xlane.f32.xlu0 %v2596
        %v2598 = vpop.xlane.xlu0 %2597
        %v2599 = vsel %vm2514, %v2510, -inf
        %2600 = vmax.xlane.f32.xlu0 %v2599
        %v2601 = vpop.xlane.xlu0 %2600
        %v2602 = vsel %vm2514, %v2511, -inf
        %2603 = vmax.xlane.f32.xlu0 %v2602
        %v2604 = vpop.xlane.xlu0 %2603
        %v2605 = vsel %vm2514, %v2512, -inf
        %2606 = vmax.xlane.f32.xlu0 %v2605
        %v2607 = vpop.xlane.xlu0 %2606
        %v2608 = vsel %vm2514, %v2513, -inf
        %2609 = vmax.xlane.f32.xlu0 %v2608
        %v2610 = vpop.xlane.xlu0 %2609
        %v2611 = vsub.f32 %v2482, %v2517
        %v2612 = vsub.f32 %v2483, %v2520
        %v2613 = vsub.f32 %v2484, %v2523
        %v2614 = vsub.f32 %v2485, %v2526
        %v2615 = vsub.f32 %v2486, %v2529
        %v2616 = vsub.f32 %v2487, %v2532
        %v2617 = vsub.f32 %v2488, %v2535
        %v2618 = vsub.f32 %v2489, %v2538
        %v2619 = vsub.f32 %v2490, %v2541
        %v2620 = vsub.f32 %v2491, %v2544
        %v2621 = vsub.f32 %v2492, %v2547
        %v2622 = vsub.f32 %v2493, %v2550
        %v2623 = vsub.f32 %v2494, %v2553
        %v2624 = vsub.f32 %v2495, %v2556
        %v2625 = vsub.f32 %v2496, %v2559
        %v2626 = vsub.f32 %v2497, %v2562
        %v2627 = vsub.f32 %v2498, %v2565
        %v2628 = vsub.f32 %v2499, %v2568
        %v2629 = vsub.f32 %v2500, %v2571
        %v2630 = vsub.f32 %v2501, %v2574
        %v2631 = vsub.f32 %v2502, %v2577
        %v2632 = vsub.f32 %v2503, %v2580
        %v2633 = vsub.f32 %v2504, %v2583
        %v2634 = vsub.f32 %v2505, %v2586
        %v2635 = vsub.f32 %v2506, %v2589
        %v2636 = vsub.f32 %v2507, %v2592
        %v2637 = vsub.f32 %v2508, %v2595
        %v2638 = vsub.f32 %v2509, %v2598
        %v2639 = vsub.f32 %v2510, %v2601
        %v2640 = vsub.f32 %v2511, %v2604
        %v2641 = vsub.f32 %v2512, %v2607
        %v2642 = vsub.f32 %v2513, %v2610
        %v2643 = vmul.f32 %v2611, 1.442695
        %v2644 = vpow.pop %v2643
        %v2645 = vmul.f32 %v2612, 1.442695
        %v2646 = vpow.pop %v2645
        %v2647 = vmul.f32 %v2613, 1.442695
        %v2648 = vpow.pop %v2647
        %v2649 = vmul.f32 %v2614, 1.442695
        %v2650 = vpow.pop %v2649
        %v2651 = vmul.f32 %v2615, 1.442695
        %v2652 = vpow.pop %v2651
        %v2653 = vmul.f32 %v2616, 1.442695
        %v2654 = vpow.pop %v2653
        %v2655 = vmul.f32 %v2617, 1.442695
        %v2656 = vpow.pop %v2655
        %v2657 = vmul.f32 %v2618, 1.442695
        %v2658 = vpow.pop %v2657
        %v2659 = vmul.f32 %v2619, 1.442695
        %v2660 = vpow.pop %v2659
        %v2661 = vmul.f32 %v2620, 1.442695
        %v2662 = vpow.pop %v2661
        %v2663 = vmul.f32 %v2621, 1.442695
        %v2664 = vpow.pop %v2663
        %v2665 = vmul.f32 %v2622, 1.442695
        %v2666 = vpow.pop %v2665
        %v2667 = vmul.f32 %v2623, 1.442695
        %v2668 = vpow.pop %v2667
        %v2669 = vmul.f32 %v2624, 1.442695
        %v2670 = vpow.pop %v2669
        %v2671 = vmul.f32 %v2625, 1.442695
        %v2672 = vpow.pop %v2671
        %v2673 = vmul.f32 %v2626, 1.442695
        %v2674 = vpow.pop %v2673
        %v2675 = vmul.f32 %v2627, 1.442695
        %v2676 = vpow.pop %v2675
        %v2677 = vmul.f32 %v2628, 1.442695
        %v2678 = vpow.pop %v2677
        %v2679 = vmul.f32 %v2629, 1.442695
        %v2680 = vpow.pop %v2679
        %v2681 = vmul.f32 %v2630, 1.442695
        %v2682 = vpow.pop %v2681
        %v2683 = vmul.f32 %v2631, 1.442695
        %v2684 = vpow.pop %v2683
        %v2685 = vmul.f32 %v2632, 1.442695
        %v2686 = vpow.pop %v2685
        %v2687 = vmul.f32 %v2633, 1.442695
        %v2688 = vpow.pop %v2687
        %v2689 = vmul.f32 %v2634, 1.442695
        %v2690 = vpow.pop %v2689
        %v2691 = vmul.f32 %v2635, 1.442695
        %v2692 = vpow.pop %v2691
        %v2693 = vmul.f32 %v2636, 1.442695
        %v2694 = vpow.pop %v2693
        %v2695 = vmul.f32 %v2637, 1.442695
        %v2696 = vpow.pop %v2695
        %v2697 = vmul.f32 %v2638, 1.442695
        %v2698 = vpow.pop %v2697
        %v2699 = vmul.f32 %v2639, 1.442695
        %v2700 = vpow.pop %v2699
        %v2701 = vmul.f32 %v2640, 1.442695
        %v2702 = vpow.pop %v2701
        %v2703 = vmul.f32 %v2641, 1.442695
        %v2704 = vpow.pop %v2703
        %v2705 = vmul.f32 %v2642, 1.442695
        %v2706 = vpow.pop %v2705
        %v2707 = vsel %vm2514, %v2644, 0.0
        %2708 = vadd.xlane.f32.xlu0 %v2707
        %v2709 = vpop.xlane.xlu0 %2708
        %v2710 = vsel %vm2514, %v2646, 0.0
        %2711 = vadd.xlane.f32.xlu0 %v2710
        %v2712 = vpop.xlane.xlu0 %2711
        %v2713 = vsel %vm2514, %v2648, 0.0
        %2714 = vadd.xlane.f32.xlu0 %v2713
        %v2715 = vpop.xlane.xlu0 %2714
        %v2716 = vsel %vm2514, %v2650, 0.0
        %2717 = vadd.xlane.f32.xlu0 %v2716
        %v2718 = vpop.xlane.xlu0 %2717
        %v2719 = vsel %vm2514, %v2652, 0.0
        %2720 = vadd.xlane.f32.xlu0 %v2719
        %v2721 = vpop.xlane.xlu0 %2720
        %v2722 = vsel %vm2514, %v2654, 0.0
        %2723 = vadd.xlane.f32.xlu0 %v2722
        %v2724 = vpop.xlane.xlu0 %2723
        %v2725 = vsel %vm2514, %v2656, 0.0
        %2726 = vadd.xlane.f32.xlu0 %v2725
        %v2727 = vpop.xlane.xlu0 %2726
        %v2728 = vsel %vm2514, %v2658, 0.0
        %2729 = vadd.xlane.f32.xlu0 %v2728
        %v2730 = vpop.xlane.xlu0 %2729
        %v2731 = vsel %vm2514, %v2660, 0.0
        %2732 = vadd.xlane.f32.xlu0 %v2731
        %v2733 = vpop.xlane.xlu0 %2732
        %v2734 = vsel %vm2514, %v2662, 0.0
        %2735 = vadd.xlane.f32.xlu0 %v2734
        %v2736 = vpop.xlane.xlu0 %2735
        %v2737 = vsel %vm2514, %v2664, 0.0
        %2738 = vadd.xlane.f32.xlu0 %v2737
        %v2739 = vpop.xlane.xlu0 %2738
        %v2740 = vsel %vm2514, %v2666, 0.0
        %2741 = vadd.xlane.f32.xlu0 %v2740
        %v2742 = vpop.xlane.xlu0 %2741
        %v2743 = vsel %vm2514, %v2668, 0.0
        %2744 = vadd.xlane.f32.xlu0 %v2743
        %v2745 = vpop.xlane.xlu0 %2744
        %v2746 = vsel %vm2514, %v2670, 0.0
        %2747 = vadd.xlane.f32.xlu0 %v2746
        %v2748 = vpop.xlane.xlu0 %2747
        %v2749 = vsel %vm2514, %v2672, 0.0
        %2750 = vadd.xlane.f32.xlu0 %v2749
        %v2751 = vpop.xlane.xlu0 %2750
        %v2752 = vsel %vm2514, %v2674, 0.0
        %2753 = vadd.xlane.f32.xlu0 %v2752
        %v2754 = vpop.xlane.xlu0 %2753
        %v2755 = vsel %vm2514, %v2676, 0.0
        %2756 = vadd.xlane.f32.xlu0 %v2755
        %v2757 = vpop.xlane.xlu0 %2756
        %v2758 = vsel %vm2514, %v2678, 0.0
        %2759 = vadd.xlane.f32.xlu0 %v2758
        %v2760 = vpop.xlane.xlu0 %2759
        %v2761 = vsel %vm2514, %v2680, 0.0
        %2762 = vadd.xlane.f32.xlu0 %v2761
        %v2763 = vpop.xlane.xlu0 %2762
        %v2764 = vsel %vm2514, %v2682, 0.0
        %2765 = vadd.xlane.f32.xlu0 %v2764
        %v2766 = vpop.xlane.xlu0 %2765
        %v2767 = vsel %vm2514, %v2684, 0.0
        %2768 = vadd.xlane.f32.xlu0 %v2767
        %v2769 = vpop.xlane.xlu0 %2768
        %v2770 = vsel %vm2514, %v2686, 0.0
        %2771 = vadd.xlane.f32.xlu0 %v2770
        %v2772 = vpop.xlane.xlu0 %2771
        %v2773 = vsel %vm2514, %v2688, 0.0
        %2774 = vadd.xlane.f32.xlu0 %v2773
        %v2775 = vpop.xlane.xlu0 %2774
        %v2776 = vsel %vm2514, %v2690, 0.0
        %2777 = vadd.xlane.f32.xlu0 %v2776
        %v2778 = vpop.xlane.xlu0 %2777
        %v2779 = vsel %vm2514, %v2692, 0.0
        %2780 = vadd.xlane.f32.xlu0 %v2779
        %v2781 = vpop.xlane.xlu0 %2780
        %v2782 = vsel %vm2514, %v2694, 0.0
        %2783 = vadd.xlane.f32.xlu0 %v2782
        %v2784 = vpop.xlane.xlu0 %2783
        %v2785 = vsel %vm2514, %v2696, 0.0
        %2786 = vadd.xlane.f32.xlu0 %v2785
        %v2787 = vpop.xlane.xlu0 %2786
        %v2788 = vsel %vm2514, %v2698, 0.0
        %2789 = vadd.xlane.f32.xlu0 %v2788
        %v2790 = vpop.xlane.xlu0 %2789
        %v2791 = vsel %vm2514, %v2700, 0.0
        %2792 = vadd.xlane.f32.xlu0 %v2791
        %v2793 = vpop.xlane.xlu0 %2792
        %v2794 = vsel %vm2514, %v2702, 0.0
        %2795 = vadd.xlane.f32.xlu0 %v2794
        %v2796 = vpop.xlane.xlu0 %2795
        %v2797 = vsel %vm2514, %v2704, 0.0
        %2798 = vadd.xlane.f32.xlu0 %v2797
        %v2799 = vpop.xlane.xlu0 %2798
        %v2800 = vsel %vm2514, %v2706, 0.0
        %2801 = vadd.xlane.f32.xlu0 %v2800
        %v2802 = vpop.xlane.xlu0 %2801
        %v2803 = vrcp.pop %v2709
        %v2804 = vrcp.pop %v2712
        %v2805 = vrcp.pop %v2715
        %v2806 = vrcp.pop %v2718
        %v2807 = vrcp.pop %v2721
        %v2808 = vrcp.pop %v2724
        %v2809 = vrcp.pop %v2727
        %v2810 = vrcp.pop %v2730
        %v2811 = vrcp.pop %v2733
        %v2812 = vrcp.pop %v2736
        %v2813 = vrcp.pop %v2739
        %v2814 = vrcp.pop %v2742
        %v2815 = vrcp.pop %v2745
        %v2816 = vrcp.pop %v2748
        %v2817 = vrcp.pop %v2751
        %v2818 = vrcp.pop %v2754
        %v2819 = vrcp.pop %v2757
        %v2820 = vrcp.pop %v2760
        %v2821 = vrcp.pop %v2763
        %v2822 = vrcp.pop %v2766
        %v2823 = vrcp.pop %v2769
        %v2824 = vrcp.pop %v2772
        %v2825 = vrcp.pop %v2775
        %v2826 = vrcp.pop %v2778
        %v2827 = vrcp.pop %v2781
        %v2828 = vrcp.pop %v2784
        %v2829 = vrcp.pop %v2787
        %v2830 = vrcp.pop %v2790
        %v2831 = vrcp.pop %v2793
        %v2832 = vrcp.pop %v2796
        %v2833 = vrcp.pop %v2799
        %v2834 = vrcp.pop %v2802
        %v2835 = vmul.f32 %v2644, %v2803
        %v2836 = vmul.f32 %v2646, %v2804
        %v2837 = vmul.f32 %v2648, %v2805
        %v2838 = vmul.f32 %v2650, %v2806
        %v2839 = vmul.f32 %v2652, %v2807
        %v2840 = vmul.f32 %v2654, %v2808
        %v2841 = vmul.f32 %v2656, %v2809
        %v2842 = vmul.f32 %v2658, %v2810
        %v2843 = vmul.f32 %v2660, %v2811
        %v2844 = vmul.f32 %v2662, %v2812
        %v2845 = vmul.f32 %v2664, %v2813
        %v2846 = vmul.f32 %v2666, %v2814
        %v2847 = vmul.f32 %v2668, %v2815
        %v2848 = vmul.f32 %v2670, %v2816
        %v2849 = vmul.f32 %v2672, %v2817
        %v2850 = vmul.f32 %v2674, %v2818
        %v2851 = vmul.f32 %v2676, %v2819
        %v2852 = vmul.f32 %v2678, %v2820
        %v2853 = vmul.f32 %v2680, %v2821
        %v2854 = vmul.f32 %v2682, %v2822
        %v2855 = vmul.f32 %v2684, %v2823
        %v2856 = vmul.f32 %v2686, %v2824
        %v2857 = vmul.f32 %v2688, %v2825
        %v2858 = vmul.f32 %v2690, %v2826
        %v2859 = vmul.f32 %v2692, %v2827
        %v2860 = vmul.f32 %v2694, %v2828
        %v2861 = vmul.f32 %v2696, %v2829
        %v2862 = vmul.f32 %v2698, %v2830
        %v2863 = vmul.f32 %v2700, %v2831
        %v2864 = vmul.f32 %v2702, %v2832
        %v2865 = vmul.f32 %v2704, %v2833
        %v2866 = vmul.f32 %v2706, %v2834
        %v2867 = vpack.c.bf16 %v2835, %v2835
        %v2868 = vpack.c.bf16 %v2836, %v2836
        %v2869 = vpack.c.bf16 %v2837, %v2837
        %v2870 = vpack.c.bf16 %v2838, %v2838
        %v2871 = vpack.c.bf16 %v2839, %v2839
        %v2872 = vpack.c.bf16 %v2840, %v2840
        %v2873 = vpack.c.bf16 %v2841, %v2841
        %v2874 = vpack.c.bf16 %v2842, %v2842
        %v2875 = vpack.c.bf16 %v2843, %v2843
        %v2876 = vpack.c.bf16 %v2844, %v2844
        %v2877 = vpack.c.bf16 %v2845, %v2845
        %v2878 = vpack.c.bf16 %v2846, %v2846
        %v2879 = vpack.c.bf16 %v2847, %v2847
        %v2880 = vpack.c.bf16 %v2848, %v2848
        %v2881 = vpack.c.bf16 %v2849, %v2849
        %v2882 = vpack.c.bf16 %v2850, %v2850
        %v2883 = vpack.c.bf16 %v2851, %v2851
        %v2884 = vpack.c.bf16 %v2852, %v2852
        %v2885 = vpack.c.bf16 %v2853, %v2853
        %v2886 = vpack.c.bf16 %v2854, %v2854
        %v2887 = vpack.c.bf16 %v2855, %v2855
        %v2888 = vpack.c.bf16 %v2856, %v2856
        %v2889 = vpack.c.bf16 %v2857, %v2857
        %v2890 = vpack.c.bf16 %v2858, %v2858
        %v2891 = vpack.c.bf16 %v2859, %v2859
        %v2892 = vpack.c.bf16 %v2860, %v2860
        %v2893 = vpack.c.bf16 %v2861, %v2861
        %v2894 = vpack.c.bf16 %v2862, %v2862
        %v2895 = vpack.c.bf16 %v2863, %v2863
        %v2896 = vpack.c.bf16 %v2864, %v2864
        %v2897 = vpack.c.bf16 %v2865, %v2865
        %v2898 = vpack.c.bf16 %v2866, %v2866
        %2899 = vrot.lane.b32.xlu0 %v849, 64
        %v2900 = vpop.permute.xlu0 %2899
        %v2902 = vsel %vm2514, %v2867, 0
        %vm2904 = vcmask 1043456
        %v2906 = vsel %vm2904, %v2900, 0
        %2908 = vmatprep.subr.bf16.mxu0 0
        %2909 = vmatpush1.bf16.msra.mxu0 0
        %2910 = vmatprep.subr.bf16.mxu0 0
        %2911 = vmatpush1.bf16.msra.mxu0 0
        %2912 = vmatprep.subr.bf16.mxu0 0
        %2913 = vmatpush1.bf16.msra.mxu0 0
        %2914 = vmatprep.subr.bf16.mxu0 0
        %2915 = vmatpush1.bf16.msra.mxu0 0
        %2916 = vmatprep.subr.bf16.mxu0 0
        %2917 = vmatpush1.bf16.msra.mxu0 0
        %2918 = vmatprep.subr.bf16.mxu0 0
        %2919 = vmatpush1.bf16.msra.mxu0 0
        %2920 = vmatprep.subr.bf16.mxu0 0
        %2921 = vmatpush1.bf16.msra.mxu0 0
        %2922 = vmatprep.subr.bf16.mxu0 0
        %2923 = vmatpush1.bf16.msra.mxu0 %v2906
        %2924 = vmatprep.subr.bf16.mxu0 0
        %2925 = vmatpush2.bf16.msra.mxu0 0
        %2926 = vmatprep.subr.bf16.mxu0 0
        %2927 = vmatpush2.bf16.msra.mxu0 0
        %2928 = vmatprep.subr.bf16.mxu0 0
        %2929 = vmatpush2.bf16.msra.mxu0 0
        %2930 = vmatprep.subr.bf16.mxu0 0
        %2931 = vmatpush2.bf16.msra.mxu0 0
        %2932 = vmatprep.subr.bf16.mxu0 0
        %2933 = vmatpush2.bf16.msra.mxu0 0
        %2934 = vmatprep.subr.bf16.mxu0 0
        %2935 = vmatpush2.bf16.msra.mxu0 0
        %2936 = vmatprep.subr.bf16.mxu0 0
        %2937 = vmatpush2.bf16.msra.mxu0 0
        %2938 = vmatprep.subr.bf16.mxu0 0
        %2939 = vmatpush2.bf16.msra.mxu0 0
        %2940 = vmatprep.mubr.bf16.mxu0 0
        %2941 = vmatmul.mubr.bf16.gmra.mxu0 %v2902
        %v2942 = vpop.f32.mrf.mxu0
        %v2943 = vadd.f32 0.0, %v2942
        %v2944 = vpop.f32.mrf.mxu0
        %v2945 = vpop.f32.mrf.mxu0
        %v2946 = vpop.f32.mrf.mxu0
        %2947 = vdwg.mxu0
        %2948 = vrot.lane.b32.xlu0 %v850, 64
        %v2949 = vpop.permute.xlu0 %2948
        %v2951 = vsel %vm2514, %v2868, 0
        %v2954 = vsel %vm2904, %v2949, 0
        %2956 = vmatprep.subr.bf16.mxu0 0
        %2957 = vmatpush1.bf16.msra.mxu0 0
        %2958 = vmatprep.subr.bf16.mxu0 0
        %2959 = vmatpush1.bf16.msra.mxu0 0
        %2960 = vmatprep.subr.bf16.mxu0 0
        %2961 = vmatpush1.bf16.msra.mxu0 0
        %2962 = vmatprep.subr.bf16.mxu0 0
        %2963 = vmatpush1.bf16.msra.mxu0 0
        %2964 = vmatprep.subr.bf16.mxu0 0
        %2965 = vmatpush1.bf16.msra.mxu0 0
        %2966 = vmatprep.subr.bf16.mxu0 0
        %2967 = vmatpush1.bf16.msra.mxu0 0
        %2968 = vmatprep.subr.bf16.mxu0 0
        %2969 = vmatpush1.bf16.msra.mxu0 0
        %2970 = vmatprep.subr.bf16.mxu0 0
        %2971 = vmatpush1.bf16.msra.mxu0 %v2954
        %2972 = vmatprep.subr.bf16.mxu0 0
        %2973 = vmatpush2.bf16.msra.mxu0 0
        %2974 = vmatprep.subr.bf16.mxu0 0
        %2975 = vmatpush2.bf16.msra.mxu0 0
        %2976 = vmatprep.subr.bf16.mxu0 0
        %2977 = vmatpush2.bf16.msra.mxu0 0
        %2978 = vmatprep.subr.bf16.mxu0 0
        %2979 = vmatpush2.bf16.msra.mxu0 0
        %2980 = vmatprep.subr.bf16.mxu0 0
        %2981 = vmatpush2.bf16.msra.mxu0 0
        %2982 = vmatprep.subr.bf16.mxu0 0
        %2983 = vmatpush2.bf16.msra.mxu0 0
        %2984 = vmatprep.subr.bf16.mxu0 0
        %2985 = vmatpush2.bf16.msra.mxu0 0
        %2986 = vmatprep.subr.bf16.mxu0 0
        %2987 = vmatpush2.bf16.msra.mxu0 0
        %2988 = vmatprep.mubr.bf16.mxu0 0
        %2989 = vmatmul.mubr.bf16.gmra.mxu0 %v2951
        %v2990 = vpop.f32.mrf.mxu0
        %v2991 = vadd.f32 0.0, %v2990
        %v2992 = vpop.f32.mrf.mxu0
        %v2993 = vpop.f32.mrf.mxu0
        %v2994 = vpop.f32.mrf.mxu0
        %2995 = vdwg.mxu0
        %2996 = vrot.lane.b32.xlu0 %v851, 64
        %v2997 = vpop.permute.xlu0 %2996
        %v2999 = vsel %vm2514, %v2869, 0
        %v3002 = vsel %vm2904, %v2997, 0
        %3004 = vmatprep.subr.bf16.mxu0 0
        %3005 = vmatpush1.bf16.msra.mxu0 0
        %3006 = vmatprep.subr.bf16.mxu0 0
        %3007 = vmatpush1.bf16.msra.mxu0 0
        %3008 = vmatprep.subr.bf16.mxu0 0
        %3009 = vmatpush1.bf16.msra.mxu0 0
        %3010 = vmatprep.subr.bf16.mxu0 0
        %3011 = vmatpush1.bf16.msra.mxu0 0
        %3012 = vmatprep.subr.bf16.mxu0 0
        %3013 = vmatpush1.bf16.msra.mxu0 0
        %3014 = vmatprep.subr.bf16.mxu0 0
        %3015 = vmatpush1.bf16.msra.mxu0 0
        %3016 = vmatprep.subr.bf16.mxu0 0
        %3017 = vmatpush1.bf16.msra.mxu0 0
        %3018 = vmatprep.subr.bf16.mxu0 0
        %3019 = vmatpush1.bf16.msra.mxu0 %v3002
        %3020 = vmatprep.subr.bf16.mxu0 0
        %3021 = vmatpush2.bf16.msra.mxu0 0
        %3022 = vmatprep.subr.bf16.mxu0 0
        %3023 = vmatpush2.bf16.msra.mxu0 0
        %3024 = vmatprep.subr.bf16.mxu0 0
        %3025 = vmatpush2.bf16.msra.mxu0 0
        %3026 = vmatprep.subr.bf16.mxu0 0
        %3027 = vmatpush2.bf16.msra.mxu0 0
        %3028 = vmatprep.subr.bf16.mxu0 0
        %3029 = vmatpush2.bf16.msra.mxu0 0
        %3030 = vmatprep.subr.bf16.mxu0 0
        %3031 = vmatpush2.bf16.msra.mxu0 0
        %3032 = vmatprep.subr.bf16.mxu0 0
        %3033 = vmatpush2.bf16.msra.mxu0 0
        %3034 = vmatprep.subr.bf16.mxu0 0
        %3035 = vmatpush2.bf16.msra.mxu0 0
        %3036 = vmatprep.mubr.bf16.mxu0 0
        %3037 = vmatmul.mubr.bf16.gmra.mxu0 %v2999
        %v3038 = vpop.f32.mrf.mxu0
        %v3039 = vadd.f32 0.0, %v3038
        %v3040 = vpop.f32.mrf.mxu0
        %v3041 = vpop.f32.mrf.mxu0
        %v3042 = vpop.f32.mrf.mxu0
        %3043 = vdwg.mxu0
        %3044 = vrot.lane.b32.xlu0 %v852, 64
        %v3045 = vpop.permute.xlu0 %3044
        %v3047 = vsel %vm2514, %v2870, 0
        %v3050 = vsel %vm2904, %v3045, 0
        %3052 = vmatprep.subr.bf16.mxu0 0
        %3053 = vmatpush1.bf16.msra.mxu0 0
        %3054 = vmatprep.subr.bf16.mxu0 0
        %3055 = vmatpush1.bf16.msra.mxu0 0
        %3056 = vmatprep.subr.bf16.mxu0 0
        %3057 = vmatpush1.bf16.msra.mxu0 0
        %3058 = vmatprep.subr.bf16.mxu0 0
        %3059 = vmatpush1.bf16.msra.mxu0 0
        %3060 = vmatprep.subr.bf16.mxu0 0
        %3061 = vmatpush1.bf16.msra.mxu0 0
        %3062 = vmatprep.subr.bf16.mxu0 0
        %3063 = vmatpush1.bf16.msra.mxu0 0
        %3064 = vmatprep.subr.bf16.mxu0 0
        %3065 = vmatpush1.bf16.msra.mxu0 0
        %3066 = vmatprep.subr.bf16.mxu0 0
        %3067 = vmatpush1.bf16.msra.mxu0 %v3050
        %3068 = vmatprep.subr.bf16.mxu0 0
        %3069 = vmatpush2.bf16.msra.mxu0 0
        %3070 = vmatprep.subr.bf16.mxu0 0
        %3071 = vmatpush2.bf16.msra.mxu0 0
        %3072 = vmatprep.subr.bf16.mxu0 0
        %3073 = vmatpush2.bf16.msra.mxu0 0
        %3074 = vmatprep.subr.bf16.mxu0 0
        %3075 = vmatpush2.bf16.msra.mxu0 0
        %3076 = vmatprep.subr.bf16.mxu0 0
        %3077 = vmatpush2.bf16.msra.mxu0 0
        %3078 = vmatprep.subr.bf16.mxu0 0
        %3079 = vmatpush2.bf16.msra.mxu0 0
        %3080 = vmatprep.subr.bf16.mxu0 0
        %3081 = vmatpush2.bf16.msra.mxu0 0
        %3082 = vmatprep.subr.bf16.mxu0 0
        %3083 = vmatpush2.bf16.msra.mxu0 0
        %3084 = vmatprep.mubr.bf16.mxu0 0
        %3085 = vmatmul.mubr.bf16.gmra.mxu0 %v3047
        %v3086 = vpop.f32.mrf.mxu0
        %v3087 = vadd.f32 0.0, %v3086
        %v3088 = vpop.f32.mrf.mxu0
        %v3089 = vpop.f32.mrf.mxu0
        %v3090 = vpop.f32.mrf.mxu0
        %3091 = vdwg.mxu0
        %3092 = vrot.lane.b32.xlu0 %v853, 64
        %v3093 = vpop.permute.xlu0 %3092
        %v3095 = vsel %vm2514, %v2871, 0
        %v3098 = vsel %vm2904, %v3093, 0
        %3100 = vmatprep.subr.bf16.mxu0 0
        %3101 = vmatpush1.bf16.msra.mxu0 0
        %3102 = vmatprep.subr.bf16.mxu0 0
        %3103 = vmatpush1.bf16.msra.mxu0 0
        %3104 = vmatprep.subr.bf16.mxu0 0
        %3105 = vmatpush1.bf16.msra.mxu0 0
        %3106 = vmatprep.subr.bf16.mxu0 0
        %3107 = vmatpush1.bf16.msra.mxu0 0
        %3108 = vmatprep.subr.bf16.mxu0 0
        %3109 = vmatpush1.bf16.msra.mxu0 0
        %3110 = vmatprep.subr.bf16.mxu0 0
        %3111 = vmatpush1.bf16.msra.mxu0 0
        %3112 = vmatprep.subr.bf16.mxu0 0
        %3113 = vmatpush1.bf16.msra.mxu0 0
        %3114 = vmatprep.subr.bf16.mxu0 0
        %3115 = vmatpush1.bf16.msra.mxu0 %v3098
        %3116 = vmatprep.subr.bf16.mxu0 0
        %3117 = vmatpush2.bf16.msra.mxu0 0
        %3118 = vmatprep.subr.bf16.mxu0 0
        %3119 = vmatpush2.bf16.msra.mxu0 0
        %3120 = vmatprep.subr.bf16.mxu0 0
        %3121 = vmatpush2.bf16.msra.mxu0 0
        %3122 = vmatprep.subr.bf16.mxu0 0
        %3123 = vmatpush2.bf16.msra.mxu0 0
        %3124 = vmatprep.subr.bf16.mxu0 0
        %3125 = vmatpush2.bf16.msra.mxu0 0
        %3126 = vmatprep.subr.bf16.mxu0 0
        %3127 = vmatpush2.bf16.msra.mxu0 0
        %3128 = vmatprep.subr.bf16.mxu0 0
        %3129 = vmatpush2.bf16.msra.mxu0 0
        %3130 = vmatprep.subr.bf16.mxu0 0
        %3131 = vmatpush2.bf16.msra.mxu0 0
        %3132 = vmatprep.mubr.bf16.mxu0 0
        %3133 = vmatmul.mubr.bf16.gmra.mxu0 %v3095
        %v3134 = vpop.f32.mrf.mxu0
        %v3135 = vadd.f32 0.0, %v3134
        %v3136 = vpop.f32.mrf.mxu0
        %v3137 = vpop.f32.mrf.mxu0
        %v3138 = vpop.f32.mrf.mxu0
        %3139 = vdwg.mxu0
        %3140 = vrot.lane.b32.xlu0 %v854, 64
        %v3141 = vpop.permute.xlu0 %3140
        %v3143 = vsel %vm2514, %v2872, 0
        %v3146 = vsel %vm2904, %v3141, 0
        %3148 = vmatprep.subr.bf16.mxu0 0
        %3149 = vmatpush1.bf16.msra.mxu0 0
        %3150 = vmatprep.subr.bf16.mxu0 0
        %3151 = vmatpush1.bf16.msra.mxu0 0
        %3152 = vmatprep.subr.bf16.mxu0 0
        %3153 = vmatpush1.bf16.msra.mxu0 0
        %3154 = vmatprep.subr.bf16.mxu0 0
        %3155 = vmatpush1.bf16.msra.mxu0 0
        %3156 = vmatprep.subr.bf16.mxu0 0
        %3157 = vmatpush1.bf16.msra.mxu0 0
        %3158 = vmatprep.subr.bf16.mxu0 0
        %3159 = vmatpush1.bf16.msra.mxu0 0
        %3160 = vmatprep.subr.bf16.mxu0 0
        %3161 = vmatpush1.bf16.msra.mxu0 0
        %3162 = vmatprep.subr.bf16.mxu0 0
        %3163 = vmatpush1.bf16.msra.mxu0 %v3146
        %3164 = vmatprep.subr.bf16.mxu0 0
        %3165 = vmatpush2.bf16.msra.mxu0 0
        %3166 = vmatprep.subr.bf16.mxu0 0
        %3167 = vmatpush2.bf16.msra.mxu0 0
        %3168 = vmatprep.subr.bf16.mxu0 0
        %3169 = vmatpush2.bf16.msra.mxu0 0
        %3170 = vmatprep.subr.bf16.mxu0 0
        %3171 = vmatpush2.bf16.msra.mxu0 0
        %3172 = vmatprep.subr.bf16.mxu0 0
        %3173 = vmatpush2.bf16.msra.mxu0 0
        %3174 = vmatprep.subr.bf16.mxu0 0
        %3175 = vmatpush2.bf16.msra.mxu0 0
        %3176 = vmatprep.subr.bf16.mxu0 0
        %3177 = vmatpush2.bf16.msra.mxu0 0
        %3178 = vmatprep.subr.bf16.mxu0 0
        %3179 = vmatpush2.bf16.msra.mxu0 0
        %3180 = vmatprep.mubr.bf16.mxu0 0
        %3181 = vmatmul.mubr.bf16.gmra.mxu0 %v3143
        %v3182 = vpop.f32.mrf.mxu0
        %v3183 = vadd.f32 0.0, %v3182
        %v3184 = vpop.f32.mrf.mxu0
        %v3185 = vpop.f32.mrf.mxu0
        %v3186 = vpop.f32.mrf.mxu0
        %3187 = vdwg.mxu0
        %3188 = vrot.lane.b32.xlu0 %v855, 64
        %v3189 = vpop.permute.xlu0 %3188
        %v3191 = vsel %vm2514, %v2873, 0
        %v3194 = vsel %vm2904, %v3189, 0
        %3196 = vmatprep.subr.bf16.mxu0 0
        %3197 = vmatpush1.bf16.msra.mxu0 0
        %3198 = vmatprep.subr.bf16.mxu0 0
        %3199 = vmatpush1.bf16.msra.mxu0 0
        %3200 = vmatprep.subr.bf16.mxu0 0
        %3201 = vmatpush1.bf16.msra.mxu0 0
        %3202 = vmatprep.subr.bf16.mxu0 0
        %3203 = vmatpush1.bf16.msra.mxu0 0
        %3204 = vmatprep.subr.bf16.mxu0 0
        %3205 = vmatpush1.bf16.msra.mxu0 0
        %3206 = vmatprep.subr.bf16.mxu0 0
        %3207 = vmatpush1.bf16.msra.mxu0 0
        %3208 = vmatprep.subr.bf16.mxu0 0
        %3209 = vmatpush1.bf16.msra.mxu0 0
        %3210 = vmatprep.subr.bf16.mxu0 0
        %3211 = vmatpush1.bf16.msra.mxu0 %v3194
        %3212 = vmatprep.subr.bf16.mxu0 0
        %3213 = vmatpush2.bf16.msra.mxu0 0
        %3214 = vmatprep.subr.bf16.mxu0 0
        %3215 = vmatpush2.bf16.msra.mxu0 0
        %3216 = vmatprep.subr.bf16.mxu0 0
        %3217 = vmatpush2.bf16.msra.mxu0 0
        %3218 = vmatprep.subr.bf16.mxu0 0
        %3219 = vmatpush2.bf16.msra.mxu0 0
        %3220 = vmatprep.subr.bf16.mxu0 0
        %3221 = vmatpush2.bf16.msra.mxu0 0
        %3222 = vmatprep.subr.bf16.mxu0 0
        %3223 = vmatpush2.bf16.msra.mxu0 0
        %3224 = vmatprep.subr.bf16.mxu0 0
        %3225 = vmatpush2.bf16.msra.mxu0 0
        %3226 = vmatprep.subr.bf16.mxu0 0
        %3227 = vmatpush2.bf16.msra.mxu0 0
        %3228 = vmatprep.mubr.bf16.mxu0 0
        %3229 = vmatmul.mubr.bf16.gmra.mxu0 %v3191
        %v3230 = vpop.f32.mrf.mxu0
        %v3231 = vadd.f32 0.0, %v3230
        %v3232 = vpop.f32.mrf.mxu0
        %v3233 = vpop.f32.mrf.mxu0
        %v3234 = vpop.f32.mrf.mxu0
        %3235 = vdwg.mxu0
        %3236 = vrot.lane.b32.xlu0 %v856, 64
        %v3237 = vpop.permute.xlu0 %3236
        %v3239 = vsel %vm2514, %v2874, 0
        %v3242 = vsel %vm2904, %v3237, 0
        %3244 = vmatprep.subr.bf16.mxu0 0
        %3245 = vmatpush1.bf16.msra.mxu0 0
        %3246 = vmatprep.subr.bf16.mxu0 0
        %3247 = vmatpush1.bf16.msra.mxu0 0
        %3248 = vmatprep.subr.bf16.mxu0 0
        %3249 = vmatpush1.bf16.msra.mxu0 0
        %3250 = vmatprep.subr.bf16.mxu0 0
        %3251 = vmatpush1.bf16.msra.mxu0 0
        %3252 = vmatprep.subr.bf16.mxu0 0
        %3253 = vmatpush1.bf16.msra.mxu0 0
        %3254 = vmatprep.subr.bf16.mxu0 0
        %3255 = vmatpush1.bf16.msra.mxu0 0
        %3256 = vmatprep.subr.bf16.mxu0 0
        %3257 = vmatpush1.bf16.msra.mxu0 0
        %3258 = vmatprep.subr.bf16.mxu0 0
        %3259 = vmatpush1.bf16.msra.mxu0 %v3242
        %3260 = vmatprep.subr.bf16.mxu0 0
        %3261 = vmatpush2.bf16.msra.mxu0 0
        %3262 = vmatprep.subr.bf16.mxu0 0
        %3263 = vmatpush2.bf16.msra.mxu0 0
        %3264 = vmatprep.subr.bf16.mxu0 0
        %3265 = vmatpush2.bf16.msra.mxu0 0
        %3266 = vmatprep.subr.bf16.mxu0 0
        %3267 = vmatpush2.bf16.msra.mxu0 0
        %3268 = vmatprep.subr.bf16.mxu0 0
        %3269 = vmatpush2.bf16.msra.mxu0 0
        %3270 = vmatprep.subr.bf16.mxu0 0
        %3271 = vmatpush2.bf16.msra.mxu0 0
        %3272 = vmatprep.subr.bf16.mxu0 0
        %3273 = vmatpush2.bf16.msra.mxu0 0
        %3274 = vmatprep.subr.bf16.mxu0 0
        %3275 = vmatpush2.bf16.msra.mxu0 0
        %3276 = vmatprep.mubr.bf16.mxu0 0
        %3277 = vmatmul.mubr.bf16.gmra.mxu0 %v3239
        %v3278 = vpop.f32.mrf.mxu0
        %v3279 = vadd.f32 0.0, %v3278
        %v3280 = vpop.f32.mrf.mxu0
        %v3281 = vpop.f32.mrf.mxu0
        %v3282 = vpop.f32.mrf.mxu0
        %3283 = vdwg.mxu0
        %3284 = vrot.lane.b32.xlu0 %v857, 64
        %v3285 = vpop.permute.xlu0 %3284
        %v3287 = vsel %vm2514, %v2875, 0
        %v3290 = vsel %vm2904, %v3285, 0
        %3292 = vmatprep.subr.bf16.mxu0 0
        %3293 = vmatpush1.bf16.msra.mxu0 0
        %3294 = vmatprep.subr.bf16.mxu0 0
        %3295 = vmatpush1.bf16.msra.mxu0 0
        %3296 = vmatprep.subr.bf16.mxu0 0
        %3297 = vmatpush1.bf16.msra.mxu0 0
        %3298 = vmatprep.subr.bf16.mxu0 0
        %3299 = vmatpush1.bf16.msra.mxu0 0
        %3300 = vmatprep.subr.bf16.mxu0 0
        %3301 = vmatpush1.bf16.msra.mxu0 0
        %3302 = vmatprep.subr.bf16.mxu0 0
        %3303 = vmatpush1.bf16.msra.mxu0 0
        %3304 = vmatprep.subr.bf16.mxu0 0
        %3305 = vmatpush1.bf16.msra.mxu0 0
        %3306 = vmatprep.subr.bf16.mxu0 0
        %3307 = vmatpush1.bf16.msra.mxu0 %v3290
        %3308 = vmatprep.subr.bf16.mxu0 0
        %3309 = vmatpush2.bf16.msra.mxu0 0
        %3310 = vmatprep.subr.bf16.mxu0 0
        %3311 = vmatpush2.bf16.msra.mxu0 0
        %3312 = vmatprep.subr.bf16.mxu0 0
        %3313 = vmatpush2.bf16.msra.mxu0 0
        %3314 = vmatprep.subr.bf16.mxu0 0
        %3315 = vmatpush2.bf16.msra.mxu0 0
        %3316 = vmatprep.subr.bf16.mxu0 0
        %3317 = vmatpush2.bf16.msra.mxu0 0
        %3318 = vmatprep.subr.bf16.mxu0 0
        %3319 = vmatpush2.bf16.msra.mxu0 0
        %3320 = vmatprep.subr.bf16.mxu0 0
        %3321 = vmatpush2.bf16.msra.mxu0 0
        %3322 = vmatprep.subr.bf16.mxu0 0
        %3323 = vmatpush2.bf16.msra.mxu0 0
        %3324 = vmatprep.mubr.bf16.mxu0 0
        %3325 = vmatmul.mubr.bf16.gmra.mxu0 %v3287
        %v3326 = vpop.f32.mrf.mxu0
        %v3327 = vadd.f32 0.0, %v3326
        %v3328 = vpop.f32.mrf.mxu0
        %v3329 = vpop.f32.mrf.mxu0
        %v3330 = vpop.f32.mrf.mxu0
        %3331 = vdwg.mxu0
        %3332 = vrot.lane.b32.xlu0 %v858, 64
        %v3333 = vpop.permute.xlu0 %3332
        %v3335 = vsel %vm2514, %v2876, 0
        %v3338 = vsel %vm2904, %v3333, 0
        %3340 = vmatprep.subr.bf16.mxu0 0
        %3341 = vmatpush1.bf16.msra.mxu0 0
        %3342 = vmatprep.subr.bf16.mxu0 0
        %3343 = vmatpush1.bf16.msra.mxu0 0
        %3344 = vmatprep.subr.bf16.mxu0 0
        %3345 = vmatpush1.bf16.msra.mxu0 0
        %3346 = vmatprep.subr.bf16.mxu0 0
        %3347 = vmatpush1.bf16.msra.mxu0 0
        %3348 = vmatprep.subr.bf16.mxu0 0
        %3349 = vmatpush1.bf16.msra.mxu0 0
        %3350 = vmatprep.subr.bf16.mxu0 0
        %3351 = vmatpush1.bf16.msra.mxu0 0
        %3352 = vmatprep.subr.bf16.mxu0 0
        %3353 = vmatpush1.bf16.msra.mxu0 0
        %3354 = vmatprep.subr.bf16.mxu0 0
        %3355 = vmatpush1.bf16.msra.mxu0 %v3338
        %3356 = vmatprep.subr.bf16.mxu0 0
        %3357 = vmatpush2.bf16.msra.mxu0 0
        %3358 = vmatprep.subr.bf16.mxu0 0
        %3359 = vmatpush2.bf16.msra.mxu0 0
        %3360 = vmatprep.subr.bf16.mxu0 0
        %3361 = vmatpush2.bf16.msra.mxu0 0
        %3362 = vmatprep.subr.bf16.mxu0 0
        %3363 = vmatpush2.bf16.msra.mxu0 0
        %3364 = vmatprep.subr.bf16.mxu0 0
        %3365 = vmatpush2.bf16.msra.mxu0 0
        %3366 = vmatprep.subr.bf16.mxu0 0
        %3367 = vmatpush2.bf16.msra.mxu0 0
        %3368 = vmatprep.subr.bf16.mxu0 0
        %3369 = vmatpush2.bf16.msra.mxu0 0
        %3370 = vmatprep.subr.bf16.mxu0 0
        %3371 = vmatpush2.bf16.msra.mxu0 0
        %3372 = vmatprep.mubr.bf16.mxu0 0
        %3373 = vmatmul.mubr.bf16.gmra.mxu0 %v3335
        %v3374 = vpop.f32.mrf.mxu0
        %v3375 = vadd.f32 0.0, %v3374
        %v3376 = vpop.f32.mrf.mxu0
        %v3377 = vpop.f32.mrf.mxu0
        %v3378 = vpop.f32.mrf.mxu0
        %3379 = vdwg.mxu0
        %3380 = vrot.lane.b32.xlu0 %v859, 64
        %v3381 = vpop.permute.xlu0 %3380
        %v3383 = vsel %vm2514, %v2877, 0
        %v3386 = vsel %vm2904, %v3381, 0
        %3388 = vmatprep.subr.bf16.mxu0 0
        %3389 = vmatpush1.bf16.msra.mxu0 0
        %3390 = vmatprep.subr.bf16.mxu0 0
        %3391 = vmatpush1.bf16.msra.mxu0 0
        %3392 = vmatprep.subr.bf16.mxu0 0
        %3393 = vmatpush1.bf16.msra.mxu0 0
        %3394 = vmatprep.subr.bf16.mxu0 0
        %3395 = vmatpush1.bf16.msra.mxu0 0
        %3396 = vmatprep.subr.bf16.mxu0 0
        %3397 = vmatpush1.bf16.msra.mxu0 0
        %3398 = vmatprep.subr.bf16.mxu0 0
        %3399 = vmatpush1.bf16.msra.mxu0 0
        %3400 = vmatprep.subr.bf16.mxu0 0
        %3401 = vmatpush1.bf16.msra.mxu0 0
        %3402 = vmatprep.subr.bf16.mxu0 0
        %3403 = vmatpush1.bf16.msra.mxu0 %v3386
        %3404 = vmatprep.subr.bf16.mxu0 0
        %3405 = vmatpush2.bf16.msra.mxu0 0
        %3406 = vmatprep.subr.bf16.mxu0 0
        %3407 = vmatpush2.bf16.msra.mxu0 0
        %3408 = vmatprep.subr.bf16.mxu0 0
        %3409 = vmatpush2.bf16.msra.mxu0 0
        %3410 = vmatprep.subr.bf16.mxu0 0
        %3411 = vmatpush2.bf16.msra.mxu0 0
        %3412 = vmatprep.subr.bf16.mxu0 0
        %3413 = vmatpush2.bf16.msra.mxu0 0
        %3414 = vmatprep.subr.bf16.mxu0 0
        %3415 = vmatpush2.bf16.msra.mxu0 0
        %3416 = vmatprep.subr.bf16.mxu0 0
        %3417 = vmatpush2.bf16.msra.mxu0 0
        %3418 = vmatprep.subr.bf16.mxu0 0
        %3419 = vmatpush2.bf16.msra.mxu0 0
        %3420 = vmatprep.mubr.bf16.mxu0 0
        %3421 = vmatmul.mubr.bf16.gmra.mxu0 %v3383
        %v3422 = vpop.f32.mrf.mxu0
        %v3423 = vadd.f32 0.0, %v3422
        %v3424 = vpop.f32.mrf.mxu0
        %v3425 = vpop.f32.mrf.mxu0
        %v3426 = vpop.f32.mrf.mxu0
        %3427 = vdwg.mxu0
        %3428 = vrot.lane.b32.xlu0 %v860, 64
        %v3429 = vpop.permute.xlu0 %3428
        %v3431 = vsel %vm2514, %v2878, 0
        %v3434 = vsel %vm2904, %v3429, 0
        %3436 = vmatprep.subr.bf16.mxu0 0
        %3437 = vmatpush1.bf16.msra.mxu0 0
        %3438 = vmatprep.subr.bf16.mxu0 0
        %3439 = vmatpush1.bf16.msra.mxu0 0
        %3440 = vmatprep.subr.bf16.mxu0 0
        %3441 = vmatpush1.bf16.msra.mxu0 0
        %3442 = vmatprep.subr.bf16.mxu0 0
        %3443 = vmatpush1.bf16.msra.mxu0 0
        %3444 = vmatprep.subr.bf16.mxu0 0
        %3445 = vmatpush1.bf16.msra.mxu0 0
        %3446 = vmatprep.subr.bf16.mxu0 0
        %3447 = vmatpush1.bf16.msra.mxu0 0
        %3448 = vmatprep.subr.bf16.mxu0 0
        %3449 = vmatpush1.bf16.msra.mxu0 0
        %3450 = vmatprep.subr.bf16.mxu0 0
        %3451 = vmatpush1.bf16.msra.mxu0 %v3434
        %3452 = vmatprep.subr.bf16.mxu0 0
        %3453 = vmatpush2.bf16.msra.mxu0 0
        %3454 = vmatprep.subr.bf16.mxu0 0
        %3455 = vmatpush2.bf16.msra.mxu0 0
        %3456 = vmatprep.subr.bf16.mxu0 0
        %3457 = vmatpush2.bf16.msra.mxu0 0
        %3458 = vmatprep.subr.bf16.mxu0 0
        %3459 = vmatpush2.bf16.msra.mxu0 0
        %3460 = vmatprep.subr.bf16.mxu0 0
        %3461 = vmatpush2.bf16.msra.mxu0 0
        %3462 = vmatprep.subr.bf16.mxu0 0
        %3463 = vmatpush2.bf16.msra.mxu0 0
        %3464 = vmatprep.subr.bf16.mxu0 0
        %3465 = vmatpush2.bf16.msra.mxu0 0
        %3466 = vmatprep.subr.bf16.mxu0 0
        %3467 = vmatpush2.bf16.msra.mxu0 0
        %3468 = vmatprep.mubr.bf16.mxu0 0
        %3469 = vmatmul.mubr.bf16.gmra.mxu0 %v3431
        %v3470 = vpop.f32.mrf.mxu0
        %v3471 = vadd.f32 0.0, %v3470
        %v3472 = vpop.f32.mrf.mxu0
        %v3473 = vpop.f32.mrf.mxu0
        %v3474 = vpop.f32.mrf.mxu0
        %3475 = vdwg.mxu0
        %3476 = vrot.lane.b32.xlu0 %v861, 64
        %v3477 = vpop.permute.xlu0 %3476
        %v3479 = vsel %vm2514, %v2879, 0
        %v3482 = vsel %vm2904, %v3477, 0
        %3484 = vmatprep.subr.bf16.mxu0 0
        %3485 = vmatpush1.bf16.msra.mxu0 0
        %3486 = vmatprep.subr.bf16.mxu0 0
        %3487 = vmatpush1.bf16.msra.mxu0 0
        %3488 = vmatprep.subr.bf16.mxu0 0
        %3489 = vmatpush1.bf16.msra.mxu0 0
        %3490 = vmatprep.subr.bf16.mxu0 0
        %3491 = vmatpush1.bf16.msra.mxu0 0
        %3492 = vmatprep.subr.bf16.mxu0 0
        %3493 = vmatpush1.bf16.msra.mxu0 0
        %3494 = vmatprep.subr.bf16.mxu0 0
        %3495 = vmatpush1.bf16.msra.mxu0 0
        %3496 = vmatprep.subr.bf16.mxu0 0
        %3497 = vmatpush1.bf16.msra.mxu0 0
        %3498 = vmatprep.subr.bf16.mxu0 0
        %3499 = vmatpush1.bf16.msra.mxu0 %v3482
        %3500 = vmatprep.subr.bf16.mxu0 0
        %3501 = vmatpush2.bf16.msra.mxu0 0
        %3502 = vmatprep.subr.bf16.mxu0 0
        %3503 = vmatpush2.bf16.msra.mxu0 0
        %3504 = vmatprep.subr.bf16.mxu0 0
        %3505 = vmatpush2.bf16.msra.mxu0 0
        %3506 = vmatprep.subr.bf16.mxu0 0
        %3507 = vmatpush2.bf16.msra.mxu0 0
        %3508 = vmatprep.subr.bf16.mxu0 0
        %3509 = vmatpush2.bf16.msra.mxu0 0
        %3510 = vmatprep.subr.bf16.mxu0 0
        %3511 = vmatpush2.bf16.msra.mxu0 0
        %3512 = vmatprep.subr.bf16.mxu0 0
        %3513 = vmatpush2.bf16.msra.mxu0 0
        %3514 = vmatprep.subr.bf16.mxu0 0
        %3515 = vmatpush2.bf16.msra.mxu0 0
        %3516 = vmatprep.mubr.bf16.mxu0 0
        %3517 = vmatmul.mubr.bf16.gmra.mxu0 %v3479
        %v3518 = vpop.f32.mrf.mxu0
        %v3519 = vadd.f32 0.0, %v3518
        %v3520 = vpop.f32.mrf.mxu0
        %v3521 = vpop.f32.mrf.mxu0
        %v3522 = vpop.f32.mrf.mxu0
        %3523 = vdwg.mxu0
        %3524 = vrot.lane.b32.xlu0 %v862, 64
        %v3525 = vpop.permute.xlu0 %3524
        %v3527 = vsel %vm2514, %v2880, 0
        %v3530 = vsel %vm2904, %v3525, 0
        %3532 = vmatprep.subr.bf16.mxu0 0
        %3533 = vmatpush1.bf16.msra.mxu0 0
        %3534 = vmatprep.subr.bf16.mxu0 0
        %3535 = vmatpush1.bf16.msra.mxu0 0
        %3536 = vmatprep.subr.bf16.mxu0 0
        %3537 = vmatpush1.bf16.msra.mxu0 0
        %3538 = vmatprep.subr.bf16.mxu0 0
        %3539 = vmatpush1.bf16.msra.mxu0 0
        %3540 = vmatprep.subr.bf16.mxu0 0
        %3541 = vmatpush1.bf16.msra.mxu0 0
        %3542 = vmatprep.subr.bf16.mxu0 0
        %3543 = vmatpush1.bf16.msra.mxu0 0
        %3544 = vmatprep.subr.bf16.mxu0 0
        %3545 = vmatpush1.bf16.msra.mxu0 0
        %3546 = vmatprep.subr.bf16.mxu0 0
        %3547 = vmatpush1.bf16.msra.mxu0 %v3530
        %3548 = vmatprep.subr.bf16.mxu0 0
        %3549 = vmatpush2.bf16.msra.mxu0 0
        %3550 = vmatprep.subr.bf16.mxu0 0
        %3551 = vmatpush2.bf16.msra.mxu0 0
        %3552 = vmatprep.subr.bf16.mxu0 0
        %3553 = vmatpush2.bf16.msra.mxu0 0
        %3554 = vmatprep.subr.bf16.mxu0 0
        %3555 = vmatpush2.bf16.msra.mxu0 0
        %3556 = vmatprep.subr.bf16.mxu0 0
        %3557 = vmatpush2.bf16.msra.mxu0 0
        %3558 = vmatprep.subr.bf16.mxu0 0
        %3559 = vmatpush2.bf16.msra.mxu0 0
        %3560 = vmatprep.subr.bf16.mxu0 0
        %3561 = vmatpush2.bf16.msra.mxu0 0
        %3562 = vmatprep.subr.bf16.mxu0 0
        %3563 = vmatpush2.bf16.msra.mxu0 0
        %3564 = vmatprep.mubr.bf16.mxu0 0
        %3565 = vmatmul.mubr.bf16.gmra.mxu0 %v3527
        %v3566 = vpop.f32.mrf.mxu0
        %v3567 = vadd.f32 0.0, %v3566
        %v3568 = vpop.f32.mrf.mxu0
        %v3569 = vpop.f32.mrf.mxu0
        %v3570 = vpop.f32.mrf.mxu0
        %3571 = vdwg.mxu0
        %3572 = vrot.lane.b32.xlu0 %v863, 64
        %v3573 = vpop.permute.xlu0 %3572
        %v3575 = vsel %vm2514, %v2881, 0
        %v3578 = vsel %vm2904, %v3573, 0
        %3580 = vmatprep.subr.bf16.mxu0 0
        %3581 = vmatpush1.bf16.msra.mxu0 0
        %3582 = vmatprep.subr.bf16.mxu0 0
        %3583 = vmatpush1.bf16.msra.mxu0 0
        %3584 = vmatprep.subr.bf16.mxu0 0
        %3585 = vmatpush1.bf16.msra.mxu0 0
        %3586 = vmatprep.subr.bf16.mxu0 0
        %3587 = vmatpush1.bf16.msra.mxu0 0
        %3588 = vmatprep.subr.bf16.mxu0 0
        %3589 = vmatpush1.bf16.msra.mxu0 0
        %3590 = vmatprep.subr.bf16.mxu0 0
        %3591 = vmatpush1.bf16.msra.mxu0 0
        %3592 = vmatprep.subr.bf16.mxu0 0
        %3593 = vmatpush1.bf16.msra.mxu0 0
        %3594 = vmatprep.subr.bf16.mxu0 0
        %3595 = vmatpush1.bf16.msra.mxu0 %v3578
        %3596 = vmatprep.subr.bf16.mxu0 0
        %3597 = vmatpush2.bf16.msra.mxu0 0
        %3598 = vmatprep.subr.bf16.mxu0 0
        %3599 = vmatpush2.bf16.msra.mxu0 0
        %3600 = vmatprep.subr.bf16.mxu0 0
        %3601 = vmatpush2.bf16.msra.mxu0 0
        %3602 = vmatprep.subr.bf16.mxu0 0
        %3603 = vmatpush2.bf16.msra.mxu0 0
        %3604 = vmatprep.subr.bf16.mxu0 0
        %3605 = vmatpush2.bf16.msra.mxu0 0
        %3606 = vmatprep.subr.bf16.mxu0 0
        %3607 = vmatpush2.bf16.msra.mxu0 0
        %3608 = vmatprep.subr.bf16.mxu0 0
        %3609 = vmatpush2.bf16.msra.mxu0 0
        %3610 = vmatprep.subr.bf16.mxu0 0
        %3611 = vmatpush2.bf16.msra.mxu0 0
        %3612 = vmatprep.mubr.bf16.mxu0 0
        %3613 = vmatmul.mubr.bf16.gmra.mxu0 %v3575
        %v3614 = vpop.f32.mrf.mxu0
        %v3615 = vadd.f32 0.0, %v3614
        %v3616 = vpop.f32.mrf.mxu0
        %v3617 = vpop.f32.mrf.mxu0
        %v3618 = vpop.f32.mrf.mxu0
        %3619 = vdwg.mxu0
        %3620 = vrot.lane.b32.xlu0 %v864, 64
        %v3621 = vpop.permute.xlu0 %3620
        %v3623 = vsel %vm2514, %v2882, 0
        %v3626 = vsel %vm2904, %v3621, 0
        %3628 = vmatprep.subr.bf16.mxu0 0
        %3629 = vmatpush1.bf16.msra.mxu0 0
        %3630 = vmatprep.subr.bf16.mxu0 0
        %3631 = vmatpush1.bf16.msra.mxu0 0
        %3632 = vmatprep.subr.bf16.mxu0 0
        %3633 = vmatpush1.bf16.msra.mxu0 0
        %3634 = vmatprep.subr.bf16.mxu0 0
        %3635 = vmatpush1.bf16.msra.mxu0 0
        %3636 = vmatprep.subr.bf16.mxu0 0
        %3637 = vmatpush1.bf16.msra.mxu0 0
        %3638 = vmatprep.subr.bf16.mxu0 0
        %3639 = vmatpush1.bf16.msra.mxu0 0
        %3640 = vmatprep.subr.bf16.mxu0 0
        %3641 = vmatpush1.bf16.msra.mxu0 0
        %3642 = vmatprep.subr.bf16.mxu0 0
        %3643 = vmatpush1.bf16.msra.mxu0 %v3626
        %3644 = vmatprep.subr.bf16.mxu0 0
        %3645 = vmatpush2.bf16.msra.mxu0 0
        %3646 = vmatprep.subr.bf16.mxu0 0
        %3647 = vmatpush2.bf16.msra.mxu0 0
        %3648 = vmatprep.subr.bf16.mxu0 0
        %3649 = vmatpush2.bf16.msra.mxu0 0
        %3650 = vmatprep.subr.bf16.mxu0 0
        %3651 = vmatpush2.bf16.msra.mxu0 0
        %3652 = vmatprep.subr.bf16.mxu0 0
        %3653 = vmatpush2.bf16.msra.mxu0 0
        %3654 = vmatprep.subr.bf16.mxu0 0
        %3655 = vmatpush2.bf16.msra.mxu0 0
        %3656 = vmatprep.subr.bf16.mxu0 0
        %3657 = vmatpush2.bf16.msra.mxu0 0
        %3658 = vmatprep.subr.bf16.mxu0 0
        %3659 = vmatpush2.bf16.msra.mxu0 0
        %3660 = vmatprep.mubr.bf16.mxu0 0
        %3661 = vmatmul.mubr.bf16.gmra.mxu0 %v3623
        %v3662 = vpop.f32.mrf.mxu0
        %v3663 = vadd.f32 0.0, %v3662
        %v3664 = vpop.f32.mrf.mxu0
        %v3665 = vpop.f32.mrf.mxu0
        %v3666 = vpop.f32.mrf.mxu0
        %3667 = vdwg.mxu0
        %3668 = vrot.lane.b32.xlu0 %v865, 64
        %v3669 = vpop.permute.xlu0 %3668
        %v3671 = vsel %vm2514, %v2883, 0
        %v3674 = vsel %vm2904, %v3669, 0
        %3676 = vmatprep.subr.bf16.mxu0 0
        %3677 = vmatpush1.bf16.msra.mxu0 0
        %3678 = vmatprep.subr.bf16.mxu0 0
        %3679 = vmatpush1.bf16.msra.mxu0 0
        %3680 = vmatprep.subr.bf16.mxu0 0
        %3681 = vmatpush1.bf16.msra.mxu0 0
        %3682 = vmatprep.subr.bf16.mxu0 0
        %3683 = vmatpush1.bf16.msra.mxu0 0
        %3684 = vmatprep.subr.bf16.mxu0 0
        %3685 = vmatpush1.bf16.msra.mxu0 0
        %3686 = vmatprep.subr.bf16.mxu0 0
        %3687 = vmatpush1.bf16.msra.mxu0 0
        %3688 = vmatprep.subr.bf16.mxu0 0
        %3689 = vmatpush1.bf16.msra.mxu0 0
        %3690 = vmatprep.subr.bf16.mxu0 0
        %3691 = vmatpush1.bf16.msra.mxu0 %v3674
        %3692 = vmatprep.subr.bf16.mxu0 0
        %3693 = vmatpush2.bf16.msra.mxu0 0
        %3694 = vmatprep.subr.bf16.mxu0 0
        %3695 = vmatpush2.bf16.msra.mxu0 0
        %3696 = vmatprep.subr.bf16.mxu0 0
        %3697 = vmatpush2.bf16.msra.mxu0 0
        %3698 = vmatprep.subr.bf16.mxu0 0
        %3699 = vmatpush2.bf16.msra.mxu0 0
        %3700 = vmatprep.subr.bf16.mxu0 0
        %3701 = vmatpush2.bf16.msra.mxu0 0
        %3702 = vmatprep.subr.bf16.mxu0 0
        %3703 = vmatpush2.bf16.msra.mxu0 0
        %3704 = vmatprep.subr.bf16.mxu0 0
        %3705 = vmatpush2.bf16.msra.mxu0 0
        %3706 = vmatprep.subr.bf16.mxu0 0
        %3707 = vmatpush2.bf16.msra.mxu0 0
        %3708 = vmatprep.mubr.bf16.mxu0 0
        %3709 = vmatmul.mubr.bf16.gmra.mxu0 %v3671
        %v3710 = vpop.f32.mrf.mxu0
        %v3711 = vadd.f32 0.0, %v3710
        %v3712 = vpop.f32.mrf.mxu0
        %v3713 = vpop.f32.mrf.mxu0
        %v3714 = vpop.f32.mrf.mxu0
        %3715 = vdwg.mxu0
        %3716 = vrot.lane.b32.xlu0 %v866, 64
        %v3717 = vpop.permute.xlu0 %3716
        %v3719 = vsel %vm2514, %v2884, 0
        %v3722 = vsel %vm2904, %v3717, 0
        %3724 = vmatprep.subr.bf16.mxu0 0
        %3725 = vmatpush1.bf16.msra.mxu0 0
        %3726 = vmatprep.subr.bf16.mxu0 0
        %3727 = vmatpush1.bf16.msra.mxu0 0
        %3728 = vmatprep.subr.bf16.mxu0 0
        %3729 = vmatpush1.bf16.msra.mxu0 0
        %3730 = vmatprep.subr.bf16.mxu0 0
        %3731 = vmatpush1.bf16.msra.mxu0 0
        %3732 = vmatprep.subr.bf16.mxu0 0
        %3733 = vmatpush1.bf16.msra.mxu0 0
        %3734 = vmatprep.subr.bf16.mxu0 0
        %3735 = vmatpush1.bf16.msra.mxu0 0
        %3736 = vmatprep.subr.bf16.mxu0 0
        %3737 = vmatpush1.bf16.msra.mxu0 0
        %3738 = vmatprep.subr.bf16.mxu0 0
        %3739 = vmatpush1.bf16.msra.mxu0 %v3722
        %3740 = vmatprep.subr.bf16.mxu0 0
        %3741 = vmatpush2.bf16.msra.mxu0 0
        %3742 = vmatprep.subr.bf16.mxu0 0
        %3743 = vmatpush2.bf16.msra.mxu0 0
        %3744 = vmatprep.subr.bf16.mxu0 0
        %3745 = vmatpush2.bf16.msra.mxu0 0
        %3746 = vmatprep.subr.bf16.mxu0 0
        %3747 = vmatpush2.bf16.msra.mxu0 0
        %3748 = vmatprep.subr.bf16.mxu0 0
        %3749 = vmatpush2.bf16.msra.mxu0 0
        %3750 = vmatprep.subr.bf16.mxu0 0
        %3751 = vmatpush2.bf16.msra.mxu0 0
        %3752 = vmatprep.subr.bf16.mxu0 0
        %3753 = vmatpush2.bf16.msra.mxu0 0
        %3754 = vmatprep.subr.bf16.mxu0 0
        %3755 = vmatpush2.bf16.msra.mxu0 0
        %3756 = vmatprep.mubr.bf16.mxu0 0
        %3757 = vmatmul.mubr.bf16.gmra.mxu0 %v3719
        %v3758 = vpop.f32.mrf.mxu0
        %v3759 = vadd.f32 0.0, %v3758
        %v3760 = vpop.f32.mrf.mxu0
        %v3761 = vpop.f32.mrf.mxu0
        %v3762 = vpop.f32.mrf.mxu0
        %3763 = vdwg.mxu0
        %3764 = vrot.lane.b32.xlu0 %v867, 64
        %v3765 = vpop.permute.xlu0 %3764
        %v3767 = vsel %vm2514, %v2885, 0
        %v3770 = vsel %vm2904, %v3765, 0
        %3772 = vmatprep.subr.bf16.mxu0 0
        %3773 = vmatpush1.bf16.msra.mxu0 0
        %3774 = vmatprep.subr.bf16.mxu0 0
        %3775 = vmatpush1.bf16.msra.mxu0 0
        %3776 = vmatprep.subr.bf16.mxu0 0
        %3777 = vmatpush1.bf16.msra.mxu0 0
        %3778 = vmatprep.subr.bf16.mxu0 0
        %3779 = vmatpush1.bf16.msra.mxu0 0
        %3780 = vmatprep.subr.bf16.mxu0 0
        %3781 = vmatpush1.bf16.msra.mxu0 0
        %3782 = vmatprep.subr.bf16.mxu0 0
        %3783 = vmatpush1.bf16.msra.mxu0 0
        %3784 = vmatprep.subr.bf16.mxu0 0
        %3785 = vmatpush1.bf16.msra.mxu0 0
        %3786 = vmatprep.subr.bf16.mxu0 0
        %3787 = vmatpush1.bf16.msra.mxu0 %v3770
        %3788 = vmatprep.subr.bf16.mxu0 0
        %3789 = vmatpush2.bf16.msra.mxu0 0
        %3790 = vmatprep.subr.bf16.mxu0 0
        %3791 = vmatpush2.bf16.msra.mxu0 0
        %3792 = vmatprep.subr.bf16.mxu0 0
        %3793 = vmatpush2.bf16.msra.mxu0 0
        %3794 = vmatprep.subr.bf16.mxu0 0
        %3795 = vmatpush2.bf16.msra.mxu0 0
        %3796 = vmatprep.subr.bf16.mxu0 0
        %3797 = vmatpush2.bf16.msra.mxu0 0
        %3798 = vmatprep.subr.bf16.mxu0 0
        %3799 = vmatpush2.bf16.msra.mxu0 0
        %3800 = vmatprep.subr.bf16.mxu0 0
        %3801 = vmatpush2.bf16.msra.mxu0 0
        %3802 = vmatprep.subr.bf16.mxu0 0
        %3803 = vmatpush2.bf16.msra.mxu0 0
        %3804 = vmatprep.mubr.bf16.mxu0 0
        %3805 = vmatmul.mubr.bf16.gmra.mxu0 %v3767
        %v3806 = vpop.f32.mrf.mxu0
        %v3807 = vadd.f32 0.0, %v3806
        %v3808 = vpop.f32.mrf.mxu0
        %v3809 = vpop.f32.mrf.mxu0
        %v3810 = vpop.f32.mrf.mxu0
        %3811 = vdwg.mxu0
        %3812 = vrot.lane.b32.xlu0 %v868, 64
        %v3813 = vpop.permute.xlu0 %3812
        %v3815 = vsel %vm2514, %v2886, 0
        %v3818 = vsel %vm2904, %v3813, 0
        %3820 = vmatprep.subr.bf16.mxu0 0
        %3821 = vmatpush1.bf16.msra.mxu0 0
        %3822 = vmatprep.subr.bf16.mxu0 0
        %3823 = vmatpush1.bf16.msra.mxu0 0
        %3824 = vmatprep.subr.bf16.mxu0 0
        %3825 = vmatpush1.bf16.msra.mxu0 0
        %3826 = vmatprep.subr.bf16.mxu0 0
        %3827 = vmatpush1.bf16.msra.mxu0 0
        %3828 = vmatprep.subr.bf16.mxu0 0
        %3829 = vmatpush1.bf16.msra.mxu0 0
        %3830 = vmatprep.subr.bf16.mxu0 0
        %3831 = vmatpush1.bf16.msra.mxu0 0
        %3832 = vmatprep.subr.bf16.mxu0 0
        %3833 = vmatpush1.bf16.msra.mxu0 0
        %3834 = vmatprep.subr.bf16.mxu0 0
        %3835 = vmatpush1.bf16.msra.mxu0 %v3818
        %3836 = vmatprep.subr.bf16.mxu0 0
        %3837 = vmatpush2.bf16.msra.mxu0 0
        %3838 = vmatprep.subr.bf16.mxu0 0
        %3839 = vmatpush2.bf16.msra.mxu0 0
        %3840 = vmatprep.subr.bf16.mxu0 0
        %3841 = vmatpush2.bf16.msra.mxu0 0
        %3842 = vmatprep.subr.bf16.mxu0 0
        %3843 = vmatpush2.bf16.msra.mxu0 0
        %3844 = vmatprep.subr.bf16.mxu0 0
        %3845 = vmatpush2.bf16.msra.mxu0 0
        %3846 = vmatprep.subr.bf16.mxu0 0
        %3847 = vmatpush2.bf16.msra.mxu0 0
        %3848 = vmatprep.subr.bf16.mxu0 0
        %3849 = vmatpush2.bf16.msra.mxu0 0
        %3850 = vmatprep.subr.bf16.mxu0 0
        %3851 = vmatpush2.bf16.msra.mxu0 0
        %3852 = vmatprep.mubr.bf16.mxu0 0
        %3853 = vmatmul.mubr.bf16.gmra.mxu0 %v3815
        %v3854 = vpop.f32.mrf.mxu0
        %v3855 = vadd.f32 0.0, %v3854
        %v3856 = vpop.f32.mrf.mxu0
        %v3857 = vpop.f32.mrf.mxu0
        %v3858 = vpop.f32.mrf.mxu0
        %3859 = vdwg.mxu0
        %3860 = vrot.lane.b32.xlu0 %v869, 64
        %v3861 = vpop.permute.xlu0 %3860
        %v3863 = vsel %vm2514, %v2887, 0
        %v3866 = vsel %vm2904, %v3861, 0
        %3868 = vmatprep.subr.bf16.mxu0 0
        %3869 = vmatpush1.bf16.msra.mxu0 0
        %3870 = vmatprep.subr.bf16.mxu0 0
        %3871 = vmatpush1.bf16.msra.mxu0 0
        %3872 = vmatprep.subr.bf16.mxu0 0
        %3873 = vmatpush1.bf16.msra.mxu0 0
        %3874 = vmatprep.subr.bf16.mxu0 0
        %3875 = vmatpush1.bf16.msra.mxu0 0
        %3876 = vmatprep.subr.bf16.mxu0 0
        %3877 = vmatpush1.bf16.msra.mxu0 0
        %3878 = vmatprep.subr.bf16.mxu0 0
        %3879 = vmatpush1.bf16.msra.mxu0 0
        %3880 = vmatprep.subr.bf16.mxu0 0
        %3881 = vmatpush1.bf16.msra.mxu0 0
        %3882 = vmatprep.subr.bf16.mxu0 0
        %3883 = vmatpush1.bf16.msra.mxu0 %v3866
        %3884 = vmatprep.subr.bf16.mxu0 0
        %3885 = vmatpush2.bf16.msra.mxu0 0
        %3886 = vmatprep.subr.bf16.mxu0 0
        %3887 = vmatpush2.bf16.msra.mxu0 0
        %3888 = vmatprep.subr.bf16.mxu0 0
        %3889 = vmatpush2.bf16.msra.mxu0 0
        %3890 = vmatprep.subr.bf16.mxu0 0
        %3891 = vmatpush2.bf16.msra.mxu0 0
        %3892 = vmatprep.subr.bf16.mxu0 0
        %3893 = vmatpush2.bf16.msra.mxu0 0
        %3894 = vmatprep.subr.bf16.mxu0 0
        %3895 = vmatpush2.bf16.msra.mxu0 0
        %3896 = vmatprep.subr.bf16.mxu0 0
        %3897 = vmatpush2.bf16.msra.mxu0 0
        %3898 = vmatprep.subr.bf16.mxu0 0
        %3899 = vmatpush2.bf16.msra.mxu0 0
        %3900 = vmatprep.mubr.bf16.mxu0 0
        %3901 = vmatmul.mubr.bf16.gmra.mxu0 %v3863
        %v3902 = vpop.f32.mrf.mxu0
        %v3903 = vadd.f32 0.0, %v3902
        %v3904 = vpop.f32.mrf.mxu0
        %v3905 = vpop.f32.mrf.mxu0
        %v3906 = vpop.f32.mrf.mxu0
        %3907 = vdwg.mxu0
        %3908 = vrot.lane.b32.xlu0 %v870, 64
        %v3909 = vpop.permute.xlu0 %3908
        %v3911 = vsel %vm2514, %v2888, 0
        %v3914 = vsel %vm2904, %v3909, 0
        %3916 = vmatprep.subr.bf16.mxu0 0
        %3917 = vmatpush1.bf16.msra.mxu0 0
        %3918 = vmatprep.subr.bf16.mxu0 0
        %3919 = vmatpush1.bf16.msra.mxu0 0
        %3920 = vmatprep.subr.bf16.mxu0 0
        %3921 = vmatpush1.bf16.msra.mxu0 0
        %3922 = vmatprep.subr.bf16.mxu0 0
        %3923 = vmatpush1.bf16.msra.mxu0 0
        %3924 = vmatprep.subr.bf16.mxu0 0
        %3925 = vmatpush1.bf16.msra.mxu0 0
        %3926 = vmatprep.subr.bf16.mxu0 0
        %3927 = vmatpush1.bf16.msra.mxu0 0
        %3928 = vmatprep.subr.bf16.mxu0 0
        %3929 = vmatpush1.bf16.msra.mxu0 0
        %3930 = vmatprep.subr.bf16.mxu0 0
        %3931 = vmatpush1.bf16.msra.mxu0 %v3914
        %3932 = vmatprep.subr.bf16.mxu0 0
        %3933 = vmatpush2.bf16.msra.mxu0 0
        %3934 = vmatprep.subr.bf16.mxu0 0
        %3935 = vmatpush2.bf16.msra.mxu0 0
        %3936 = vmatprep.subr.bf16.mxu0 0
        %3937 = vmatpush2.bf16.msra.mxu0 0
        %3938 = vmatprep.subr.bf16.mxu0 0
        %3939 = vmatpush2.bf16.msra.mxu0 0
        %3940 = vmatprep.subr.bf16.mxu0 0
        %3941 = vmatpush2.bf16.msra.mxu0 0
        %3942 = vmatprep.subr.bf16.mxu0 0
        %3943 = vmatpush2.bf16.msra.mxu0 0
        %3944 = vmatprep.subr.bf16.mxu0 0
        %3945 = vmatpush2.bf16.msra.mxu0 0
        %3946 = vmatprep.subr.bf16.mxu0 0
        %3947 = vmatpush2.bf16.msra.mxu0 0
        %3948 = vmatprep.mubr.bf16.mxu0 0
        %3949 = vmatmul.mubr.bf16.gmra.mxu0 %v3911
        %v3950 = vpop.f32.mrf.mxu0
        %v3951 = vadd.f32 0.0, %v3950
        %v3952 = vpop.f32.mrf.mxu0
        %v3953 = vpop.f32.mrf.mxu0
        %v3954 = vpop.f32.mrf.mxu0
        %3955 = vdwg.mxu0
        %3956 = vrot.lane.b32.xlu0 %v871, 64
        %v3957 = vpop.permute.xlu0 %3956
        %v3959 = vsel %vm2514, %v2889, 0
        %v3962 = vsel %vm2904, %v3957, 0
        %3964 = vmatprep.subr.bf16.mxu0 0
        %3965 = vmatpush1.bf16.msra.mxu0 0
        %3966 = vmatprep.subr.bf16.mxu0 0
        %3967 = vmatpush1.bf16.msra.mxu0 0
        %3968 = vmatprep.subr.bf16.mxu0 0
        %3969 = vmatpush1.bf16.msra.mxu0 0
        %3970 = vmatprep.subr.bf16.mxu0 0
        %3971 = vmatpush1.bf16.msra.mxu0 0
        %3972 = vmatprep.subr.bf16.mxu0 0
        %3973 = vmatpush1.bf16.msra.mxu0 0
        %3974 = vmatprep.subr.bf16.mxu0 0
        %3975 = vmatpush1.bf16.msra.mxu0 0
        %3976 = vmatprep.subr.bf16.mxu0 0
        %3977 = vmatpush1.bf16.msra.mxu0 0
        %3978 = vmatprep.subr.bf16.mxu0 0
        %3979 = vmatpush1.bf16.msra.mxu0 %v3962
        %3980 = vmatprep.subr.bf16.mxu0 0
        %3981 = vmatpush2.bf16.msra.mxu0 0
        %3982 = vmatprep.subr.bf16.mxu0 0
        %3983 = vmatpush2.bf16.msra.mxu0 0
        %3984 = vmatprep.subr.bf16.mxu0 0
        %3985 = vmatpush2.bf16.msra.mxu0 0
        %3986 = vmatprep.subr.bf16.mxu0 0
        %3987 = vmatpush2.bf16.msra.mxu0 0
        %3988 = vmatprep.subr.bf16.mxu0 0
        %3989 = vmatpush2.bf16.msra.mxu0 0
        %3990 = vmatprep.subr.bf16.mxu0 0
        %3991 = vmatpush2.bf16.msra.mxu0 0
        %3992 = vmatprep.subr.bf16.mxu0 0
        %3993 = vmatpush2.bf16.msra.mxu0 0
        %3994 = vmatprep.subr.bf16.mxu0 0
        %3995 = vmatpush2.bf16.msra.mxu0 0
        %3996 = vmatprep.mubr.bf16.mxu0 0
        %3997 = vmatmul.mubr.bf16.gmra.mxu0 %v3959
        %v3998 = vpop.f32.mrf.mxu0
        %v3999 = vadd.f32 0.0, %v3998
        %v4000 = vpop.f32.mrf.mxu0
        %v4001 = vpop.f32.mrf.mxu0
        %v4002 = vpop.f32.mrf.mxu0
        %4003 = vdwg.mxu0
        %4004 = vrot.lane.b32.xlu0 %v872, 64
        %v4005 = vpop.permute.xlu0 %4004
        %v4007 = vsel %vm2514, %v2890, 0
        %v4010 = vsel %vm2904, %v4005, 0
        %4012 = vmatprep.subr.bf16.mxu0 0
        %4013 = vmatpush1.bf16.msra.mxu0 0
        %4014 = vmatprep.subr.bf16.mxu0 0
        %4015 = vmatpush1.bf16.msra.mxu0 0
        %4016 = vmatprep.subr.bf16.mxu0 0
        %4017 = vmatpush1.bf16.msra.mxu0 0
        %4018 = vmatprep.subr.bf16.mxu0 0
        %4019 = vmatpush1.bf16.msra.mxu0 0
        %4020 = vmatprep.subr.bf16.mxu0 0
        %4021 = vmatpush1.bf16.msra.mxu0 0
        %4022 = vmatprep.subr.bf16.mxu0 0
        %4023 = vmatpush1.bf16.msra.mxu0 0
        %4024 = vmatprep.subr.bf16.mxu0 0
        %4025 = vmatpush1.bf16.msra.mxu0 0
        %4026 = vmatprep.subr.bf16.mxu0 0
        %4027 = vmatpush1.bf16.msra.mxu0 %v4010
        %4028 = vmatprep.subr.bf16.mxu0 0
        %4029 = vmatpush2.bf16.msra.mxu0 0
        %4030 = vmatprep.subr.bf16.mxu0 0
        %4031 = vmatpush2.bf16.msra.mxu0 0
        %4032 = vmatprep.subr.bf16.mxu0 0
        %4033 = vmatpush2.bf16.msra.mxu0 0
        %4034 = vmatprep.subr.bf16.mxu0 0
        %4035 = vmatpush2.bf16.msra.mxu0 0
        %4036 = vmatprep.subr.bf16.mxu0 0
        %4037 = vmatpush2.bf16.msra.mxu0 0
        %4038 = vmatprep.subr.bf16.mxu0 0
        %4039 = vmatpush2.bf16.msra.mxu0 0
        %4040 = vmatprep.subr.bf16.mxu0 0
        %4041 = vmatpush2.bf16.msra.mxu0 0
        %4042 = vmatprep.subr.bf16.mxu0 0
        %4043 = vmatpush2.bf16.msra.mxu0 0
        %4044 = vmatprep.mubr.bf16.mxu0 0
        %4045 = vmatmul.mubr.bf16.gmra.mxu0 %v4007
        %v4046 = vpop.f32.mrf.mxu0
        %v4047 = vadd.f32 0.0, %v4046
        %v4048 = vpop.f32.mrf.mxu0
        %v4049 = vpop.f32.mrf.mxu0
        %v4050 = vpop.f32.mrf.mxu0
        %4051 = vdwg.mxu0
        %4052 = vrot.lane.b32.xlu0 %v873, 64
        %v4053 = vpop.permute.xlu0 %4052
        %v4055 = vsel %vm2514, %v2891, 0
        %v4058 = vsel %vm2904, %v4053, 0
        %4060 = vmatprep.subr.bf16.mxu0 0
        %4061 = vmatpush1.bf16.msra.mxu0 0
        %4062 = vmatprep.subr.bf16.mxu0 0
        %4063 = vmatpush1.bf16.msra.mxu0 0
        %4064 = vmatprep.subr.bf16.mxu0 0
        %4065 = vmatpush1.bf16.msra.mxu0 0
        %4066 = vmatprep.subr.bf16.mxu0 0
        %4067 = vmatpush1.bf16.msra.mxu0 0
        %4068 = vmatprep.subr.bf16.mxu0 0
        %4069 = vmatpush1.bf16.msra.mxu0 0
        %4070 = vmatprep.subr.bf16.mxu0 0
        %4071 = vmatpush1.bf16.msra.mxu0 0
        %4072 = vmatprep.subr.bf16.mxu0 0
        %4073 = vmatpush1.bf16.msra.mxu0 0
        %4074 = vmatprep.subr.bf16.mxu0 0
        %4075 = vmatpush1.bf16.msra.mxu0 %v4058
        %4076 = vmatprep.subr.bf16.mxu0 0
        %4077 = vmatpush2.bf16.msra.mxu0 0
        %4078 = vmatprep.subr.bf16.mxu0 0
        %4079 = vmatpush2.bf16.msra.mxu0 0
        %4080 = vmatprep.subr.bf16.mxu0 0
        %4081 = vmatpush2.bf16.msra.mxu0 0
        %4082 = vmatprep.subr.bf16.mxu0 0
        %4083 = vmatpush2.bf16.msra.mxu0 0
        %4084 = vmatprep.subr.bf16.mxu0 0
        %4085 = vmatpush2.bf16.msra.mxu0 0
        %4086 = vmatprep.subr.bf16.mxu0 0
        %4087 = vmatpush2.bf16.msra.mxu0 0
        %4088 = vmatprep.subr.bf16.mxu0 0
        %4089 = vmatpush2.bf16.msra.mxu0 0
        %4090 = vmatprep.subr.bf16.mxu0 0
        %4091 = vmatpush2.bf16.msra.mxu0 0
        %4092 = vmatprep.mubr.bf16.mxu0 0
        %4093 = vmatmul.mubr.bf16.gmra.mxu0 %v4055
        %v4094 = vpop.f32.mrf.mxu0
        %v4095 = vadd.f32 0.0, %v4094
        %v4096 = vpop.f32.mrf.mxu0
        %v4097 = vpop.f32.mrf.mxu0
        %v4098 = vpop.f32.mrf.mxu0
        %4099 = vdwg.mxu0
        %4100 = vrot.lane.b32.xlu0 %v874, 64
        %v4101 = vpop.permute.xlu0 %4100
        %v4103 = vsel %vm2514, %v2892, 0
        %v4106 = vsel %vm2904, %v4101, 0
        %4108 = vmatprep.subr.bf16.mxu0 0
        %4109 = vmatpush1.bf16.msra.mxu0 0
        %4110 = vmatprep.subr.bf16.mxu0 0
        %4111 = vmatpush1.bf16.msra.mxu0 0
        %4112 = vmatprep.subr.bf16.mxu0 0
        %4113 = vmatpush1.bf16.msra.mxu0 0
        %4114 = vmatprep.subr.bf16.mxu0 0
        %4115 = vmatpush1.bf16.msra.mxu0 0
        %4116 = vmatprep.subr.bf16.mxu0 0
        %4117 = vmatpush1.bf16.msra.mxu0 0
        %4118 = vmatprep.subr.bf16.mxu0 0
        %4119 = vmatpush1.bf16.msra.mxu0 0
        %4120 = vmatprep.subr.bf16.mxu0 0
        %4121 = vmatpush1.bf16.msra.mxu0 0
        %4122 = vmatprep.subr.bf16.mxu0 0
        %4123 = vmatpush1.bf16.msra.mxu0 %v4106
        %4124 = vmatprep.subr.bf16.mxu0 0
        %4125 = vmatpush2.bf16.msra.mxu0 0
        %4126 = vmatprep.subr.bf16.mxu0 0
        %4127 = vmatpush2.bf16.msra.mxu0 0
        %4128 = vmatprep.subr.bf16.mxu0 0
        %4129 = vmatpush2.bf16.msra.mxu0 0
        %4130 = vmatprep.subr.bf16.mxu0 0
        %4131 = vmatpush2.bf16.msra.mxu0 0
        %4132 = vmatprep.subr.bf16.mxu0 0
        %4133 = vmatpush2.bf16.msra.mxu0 0
        %4134 = vmatprep.subr.bf16.mxu0 0
        %4135 = vmatpush2.bf16.msra.mxu0 0
        %4136 = vmatprep.subr.bf16.mxu0 0
        %4137 = vmatpush2.bf16.msra.mxu0 0
        %4138 = vmatprep.subr.bf16.mxu0 0
        %4139 = vmatpush2.bf16.msra.mxu0 0
        %4140 = vmatprep.mubr.bf16.mxu0 0
        %4141 = vmatmul.mubr.bf16.gmra.mxu0 %v4103
        %v4142 = vpop.f32.mrf.mxu0
        %v4143 = vadd.f32 0.0, %v4142
        %v4144 = vpop.f32.mrf.mxu0
        %v4145 = vpop.f32.mrf.mxu0
        %v4146 = vpop.f32.mrf.mxu0
        %4147 = vdwg.mxu0
        %4148 = vrot.lane.b32.xlu0 %v875, 64
        %v4149 = vpop.permute.xlu0 %4148
        %v4151 = vsel %vm2514, %v2893, 0
        %v4154 = vsel %vm2904, %v4149, 0
        %4156 = vmatprep.subr.bf16.mxu0 0
        %4157 = vmatpush1.bf16.msra.mxu0 0
        %4158 = vmatprep.subr.bf16.mxu0 0
        %4159 = vmatpush1.bf16.msra.mxu0 0
        %4160 = vmatprep.subr.bf16.mxu0 0
        %4161 = vmatpush1.bf16.msra.mxu0 0
        %4162 = vmatprep.subr.bf16.mxu0 0
        %4163 = vmatpush1.bf16.msra.mxu0 0
        %4164 = vmatprep.subr.bf16.mxu0 0
        %4165 = vmatpush1.bf16.msra.mxu0 0
        %4166 = vmatprep.subr.bf16.mxu0 0
        %4167 = vmatpush1.bf16.msra.mxu0 0
        %4168 = vmatprep.subr.bf16.mxu0 0
        %4169 = vmatpush1.bf16.msra.mxu0 0
        %4170 = vmatprep.subr.bf16.mxu0 0
        %4171 = vmatpush1.bf16.msra.mxu0 %v4154
        %4172 = vmatprep.subr.bf16.mxu0 0
        %4173 = vmatpush2.bf16.msra.mxu0 0
        %4174 = vmatprep.subr.bf16.mxu0 0
        %4175 = vmatpush2.bf16.msra.mxu0 0
        %4176 = vmatprep.subr.bf16.mxu0 0
        %4177 = vmatpush2.bf16.msra.mxu0 0
        %4178 = vmatprep.subr.bf16.mxu0 0
        %4179 = vmatpush2.bf16.msra.mxu0 0
        %4180 = vmatprep.subr.bf16.mxu0 0
        %4181 = vmatpush2.bf16.msra.mxu0 0
        %4182 = vmatprep.subr.bf16.mxu0 0
        %4183 = vmatpush2.bf16.msra.mxu0 0
        %4184 = vmatprep.subr.bf16.mxu0 0
        %4185 = vmatpush2.bf16.msra.mxu0 0
        %4186 = vmatprep.subr.bf16.mxu0 0
        %4187 = vmatpush2.bf16.msra.mxu0 0
        %4188 = vmatprep.mubr.bf16.mxu0 0
        %4189 = vmatmul.mubr.bf16.gmra.mxu0 %v4151
        %v4190 = vpop.f32.mrf.mxu0
        %v4191 = vadd.f32 0.0, %v4190
        %v4192 = vpop.f32.mrf.mxu0
        %v4193 = vpop.f32.mrf.mxu0
        %v4194 = vpop.f32.mrf.mxu0
        %4195 = vdwg.mxu0
        %4196 = vrot.lane.b32.xlu0 %v876, 64
        %v4197 = vpop.permute.xlu0 %4196
        %v4199 = vsel %vm2514, %v2894, 0
        %v4202 = vsel %vm2904, %v4197, 0
        %4204 = vmatprep.subr.bf16.mxu0 0
        %4205 = vmatpush1.bf16.msra.mxu0 0
        %4206 = vmatprep.subr.bf16.mxu0 0
        %4207 = vmatpush1.bf16.msra.mxu0 0
        %4208 = vmatprep.subr.bf16.mxu0 0
        %4209 = vmatpush1.bf16.msra.mxu0 0
        %4210 = vmatprep.subr.bf16.mxu0 0
        %4211 = vmatpush1.bf16.msra.mxu0 0
        %4212 = vmatprep.subr.bf16.mxu0 0
        %4213 = vmatpush1.bf16.msra.mxu0 0
        %4214 = vmatprep.subr.bf16.mxu0 0
        %4215 = vmatpush1.bf16.msra.mxu0 0
        %4216 = vmatprep.subr.bf16.mxu0 0
        %4217 = vmatpush1.bf16.msra.mxu0 0
        %4218 = vmatprep.subr.bf16.mxu0 0
        %4219 = vmatpush1.bf16.msra.mxu0 %v4202
        %4220 = vmatprep.subr.bf16.mxu0 0
        %4221 = vmatpush2.bf16.msra.mxu0 0
        %4222 = vmatprep.subr.bf16.mxu0 0
        %4223 = vmatpush2.bf16.msra.mxu0 0
        %4224 = vmatprep.subr.bf16.mxu0 0
        %4225 = vmatpush2.bf16.msra.mxu0 0
        %4226 = vmatprep.subr.bf16.mxu0 0
        %4227 = vmatpush2.bf16.msra.mxu0 0
        %4228 = vmatprep.subr.bf16.mxu0 0
        %4229 = vmatpush2.bf16.msra.mxu0 0
        %4230 = vmatprep.subr.bf16.mxu0 0
        %4231 = vmatpush2.bf16.msra.mxu0 0
        %4232 = vmatprep.subr.bf16.mxu0 0
        %4233 = vmatpush2.bf16.msra.mxu0 0
        %4234 = vmatprep.subr.bf16.mxu0 0
        %4235 = vmatpush2.bf16.msra.mxu0 0
        %4236 = vmatprep.mubr.bf16.mxu0 0
        %4237 = vmatmul.mubr.bf16.gmra.mxu0 %v4199
        %v4238 = vpop.f32.mrf.mxu0
        %v4239 = vadd.f32 0.0, %v4238
        %v4240 = vpop.f32.mrf.mxu0
        %v4241 = vpop.f32.mrf.mxu0
        %v4242 = vpop.f32.mrf.mxu0
        %4243 = vdwg.mxu0
        %4244 = vrot.lane.b32.xlu0 %v877, 64
        %v4245 = vpop.permute.xlu0 %4244
        %v4247 = vsel %vm2514, %v2895, 0
        %v4250 = vsel %vm2904, %v4245, 0
        %4252 = vmatprep.subr.bf16.mxu0 0
        %4253 = vmatpush1.bf16.msra.mxu0 0
        %4254 = vmatprep.subr.bf16.mxu0 0
        %4255 = vmatpush1.bf16.msra.mxu0 0
        %4256 = vmatprep.subr.bf16.mxu0 0
        %4257 = vmatpush1.bf16.msra.mxu0 0
        %4258 = vmatprep.subr.bf16.mxu0 0
        %4259 = vmatpush1.bf16.msra.mxu0 0
        %4260 = vmatprep.subr.bf16.mxu0 0
        %4261 = vmatpush1.bf16.msra.mxu0 0
        %4262 = vmatprep.subr.bf16.mxu0 0
        %4263 = vmatpush1.bf16.msra.mxu0 0
        %4264 = vmatprep.subr.bf16.mxu0 0
        %4265 = vmatpush1.bf16.msra.mxu0 0
        %4266 = vmatprep.subr.bf16.mxu0 0
        %4267 = vmatpush1.bf16.msra.mxu0 %v4250
        %4268 = vmatprep.subr.bf16.mxu0 0
        %4269 = vmatpush2.bf16.msra.mxu0 0
        %4270 = vmatprep.subr.bf16.mxu0 0
        %4271 = vmatpush2.bf16.msra.mxu0 0
        %4272 = vmatprep.subr.bf16.mxu0 0
        %4273 = vmatpush2.bf16.msra.mxu0 0
        %4274 = vmatprep.subr.bf16.mxu0 0
        %4275 = vmatpush2.bf16.msra.mxu0 0
        %4276 = vmatprep.subr.bf16.mxu0 0
        %4277 = vmatpush2.bf16.msra.mxu0 0
        %4278 = vmatprep.subr.bf16.mxu0 0
        %4279 = vmatpush2.bf16.msra.mxu0 0
        %4280 = vmatprep.subr.bf16.mxu0 0
        %4281 = vmatpush2.bf16.msra.mxu0 0
        %4282 = vmatprep.subr.bf16.mxu0 0
        %4283 = vmatpush2.bf16.msra.mxu0 0
        %4284 = vmatprep.mubr.bf16.mxu0 0
        %4285 = vmatmul.mubr.bf16.gmra.mxu0 %v4247
        %v4286 = vpop.f32.mrf.mxu0
        %v4287 = vadd.f32 0.0, %v4286
        %v4288 = vpop.f32.mrf.mxu0
        %v4289 = vpop.f32.mrf.mxu0
        %v4290 = vpop.f32.mrf.mxu0
        %4291 = vdwg.mxu0
        %4292 = vrot.lane.b32.xlu0 %v878, 64
        %v4293 = vpop.permute.xlu0 %4292
        %v4295 = vsel %vm2514, %v2896, 0
        %v4298 = vsel %vm2904, %v4293, 0
        %4300 = vmatprep.subr.bf16.mxu0 0
        %4301 = vmatpush1.bf16.msra.mxu0 0
        %4302 = vmatprep.subr.bf16.mxu0 0
        %4303 = vmatpush1.bf16.msra.mxu0 0
        %4304 = vmatprep.subr.bf16.mxu0 0
        %4305 = vmatpush1.bf16.msra.mxu0 0
        %4306 = vmatprep.subr.bf16.mxu0 0
        %4307 = vmatpush1.bf16.msra.mxu0 0
        %4308 = vmatprep.subr.bf16.mxu0 0
        %4309 = vmatpush1.bf16.msra.mxu0 0
        %4310 = vmatprep.subr.bf16.mxu0 0
        %4311 = vmatpush1.bf16.msra.mxu0 0
        %4312 = vmatprep.subr.bf16.mxu0 0
        %4313 = vmatpush1.bf16.msra.mxu0 0
        %4314 = vmatprep.subr.bf16.mxu0 0
        %4315 = vmatpush1.bf16.msra.mxu0 %v4298
        %4316 = vmatprep.subr.bf16.mxu0 0
        %4317 = vmatpush2.bf16.msra.mxu0 0
        %4318 = vmatprep.subr.bf16.mxu0 0
        %4319 = vmatpush2.bf16.msra.mxu0 0
        %4320 = vmatprep.subr.bf16.mxu0 0
        %4321 = vmatpush2.bf16.msra.mxu0 0
        %4322 = vmatprep.subr.bf16.mxu0 0
        %4323 = vmatpush2.bf16.msra.mxu0 0
        %4324 = vmatprep.subr.bf16.mxu0 0
        %4325 = vmatpush2.bf16.msra.mxu0 0
        %4326 = vmatprep.subr.bf16.mxu0 0
        %4327 = vmatpush2.bf16.msra.mxu0 0
        %4328 = vmatprep.subr.bf16.mxu0 0
        %4329 = vmatpush2.bf16.msra.mxu0 0
        %4330 = vmatprep.subr.bf16.mxu0 0
        %4331 = vmatpush2.bf16.msra.mxu0 0
        %4332 = vmatprep.mubr.bf16.mxu0 0
        %4333 = vmatmul.mubr.bf16.gmra.mxu0 %v4295
        %v4334 = vpop.f32.mrf.mxu0
        %v4335 = vadd.f32 0.0, %v4334
        %v4336 = vpop.f32.mrf.mxu0
        %v4337 = vpop.f32.mrf.mxu0
        %v4338 = vpop.f32.mrf.mxu0
        %4339 = vdwg.mxu0
        %4340 = vrot.lane.b32.xlu0 %v879, 64
        %v4341 = vpop.permute.xlu0 %4340
        %v4343 = vsel %vm2514, %v2897, 0
        %v4346 = vsel %vm2904, %v4341, 0
        %4348 = vmatprep.subr.bf16.mxu0 0
        %4349 = vmatpush1.bf16.msra.mxu0 0
        %4350 = vmatprep.subr.bf16.mxu0 0
        %4351 = vmatpush1.bf16.msra.mxu0 0
        %4352 = vmatprep.subr.bf16.mxu0 0
        %4353 = vmatpush1.bf16.msra.mxu0 0
        %4354 = vmatprep.subr.bf16.mxu0 0
        %4355 = vmatpush1.bf16.msra.mxu0 0
        %4356 = vmatprep.subr.bf16.mxu0 0
        %4357 = vmatpush1.bf16.msra.mxu0 0
        %4358 = vmatprep.subr.bf16.mxu0 0
        %4359 = vmatpush1.bf16.msra.mxu0 0
        %4360 = vmatprep.subr.bf16.mxu0 0
        %4361 = vmatpush1.bf16.msra.mxu0 0
        %4362 = vmatprep.subr.bf16.mxu0 0
        %4363 = vmatpush1.bf16.msra.mxu0 %v4346
        %4364 = vmatprep.subr.bf16.mxu0 0
        %4365 = vmatpush2.bf16.msra.mxu0 0
        %4366 = vmatprep.subr.bf16.mxu0 0
        %4367 = vmatpush2.bf16.msra.mxu0 0
        %4368 = vmatprep.subr.bf16.mxu0 0
        %4369 = vmatpush2.bf16.msra.mxu0 0
        %4370 = vmatprep.subr.bf16.mxu0 0
        %4371 = vmatpush2.bf16.msra.mxu0 0
        %4372 = vmatprep.subr.bf16.mxu0 0
        %4373 = vmatpush2.bf16.msra.mxu0 0
        %4374 = vmatprep.subr.bf16.mxu0 0
        %4375 = vmatpush2.bf16.msra.mxu0 0
        %4376 = vmatprep.subr.bf16.mxu0 0
        %4377 = vmatpush2.bf16.msra.mxu0 0
        %4378 = vmatprep.subr.bf16.mxu0 0
        %4379 = vmatpush2.bf16.msra.mxu0 0
        %4380 = vmatprep.mubr.bf16.mxu0 0
        %4381 = vmatmul.mubr.bf16.gmra.mxu0 %v4343
        %v4382 = vpop.f32.mrf.mxu0
        %v4383 = vadd.f32 0.0, %v4382
        %v4384 = vpop.f32.mrf.mxu0
        %v4385 = vpop.f32.mrf.mxu0
        %v4386 = vpop.f32.mrf.mxu0
        %4387 = vdwg.mxu0
        %4388 = vrot.lane.b32.xlu0 %v880, 64
        %v4389 = vpop.permute.xlu0 %4388
        %v4391 = vsel %vm2514, %v2898, 0
        %v4394 = vsel %vm2904, %v4389, 0
        %4396 = vmatprep.subr.bf16.mxu0 0
        %4397 = vmatpush1.bf16.msra.mxu0 0
        %4398 = vmatprep.subr.bf16.mxu0 0
        %4399 = vmatpush1.bf16.msra.mxu0 0
        %4400 = vmatprep.subr.bf16.mxu0 0
        %4401 = vmatpush1.bf16.msra.mxu0 0
        %4402 = vmatprep.subr.bf16.mxu0 0
        %4403 = vmatpush1.bf16.msra.mxu0 0
        %4404 = vmatprep.subr.bf16.mxu0 0
        %4405 = vmatpush1.bf16.msra.mxu0 0
        %4406 = vmatprep.subr.bf16.mxu0 0
        %4407 = vmatpush1.bf16.msra.mxu0 0
        %4408 = vmatprep.subr.bf16.mxu0 0
        %4409 = vmatpush1.bf16.msra.mxu0 0
        %4410 = vmatprep.subr.bf16.mxu0 0
        %4411 = vmatpush1.bf16.msra.mxu0 %v4394
        %4412 = vmatprep.subr.bf16.mxu0 0
        %4413 = vmatpush2.bf16.msra.mxu0 0
        %4414 = vmatprep.subr.bf16.mxu0 0
        %4415 = vmatpush2.bf16.msra.mxu0 0
        %4416 = vmatprep.subr.bf16.mxu0 0
        %4417 = vmatpush2.bf16.msra.mxu0 0
        %4418 = vmatprep.subr.bf16.mxu0 0
        %4419 = vmatpush2.bf16.msra.mxu0 0
        %4420 = vmatprep.subr.bf16.mxu0 0
        %4421 = vmatpush2.bf16.msra.mxu0 0
        %4422 = vmatprep.subr.bf16.mxu0 0
        %4423 = vmatpush2.bf16.msra.mxu0 0
        %4424 = vmatprep.subr.bf16.mxu0 0
        %4425 = vmatpush2.bf16.msra.mxu0 0
        %4426 = vmatprep.subr.bf16.mxu0 0
        %4427 = vmatpush2.bf16.msra.mxu0 0
        %4428 = vmatprep.mubr.bf16.mxu0 0
        %4429 = vmatmul.mubr.bf16.gmra.mxu0 %v4391
        %v4430 = vpop.f32.mrf.mxu0
        %v4431 = vadd.f32 0.0, %v4430
        %v4432 = vpop.f32.mrf.mxu0
        %v4433 = vpop.f32.mrf.mxu0
        %v4434 = vpop.f32.mrf.mxu0
        %4435 = vdwg.mxu0
        %4452 = vrot.lane.b32.xlu0 %v3711, 16
        %v4453 = vpop.permute.xlu0 %4452
        %4454 = vrot.lane.b32.xlu0 %v3759, 16
        %v4455 = vpop.permute.xlu0 %4454
        %4456 = vrot.lane.b32.xlu0 %v3807, 16
        %v4457 = vpop.permute.xlu0 %4456
        %4458 = vrot.lane.b32.xlu0 %v3855, 16
        %v4459 = vpop.permute.xlu0 %4458
        %4460 = vrot.lane.b32.xlu0 %v3903, 16
        %v4461 = vpop.permute.xlu0 %4460
        %4462 = vrot.lane.b32.xlu0 %v3951, 16
        %v4463 = vpop.permute.xlu0 %4462
        %4464 = vrot.lane.b32.xlu0 %v3999, 16
        %v4465 = vpop.permute.xlu0 %4464
        %4466 = vrot.lane.b32.xlu0 %v4047, 16
        %v4467 = vpop.permute.xlu0 %4466
        %4468 = vrot.lane.b32.xlu0 %v4095, 16
        %v4469 = vpop.permute.xlu0 %4468
        %4470 = vrot.lane.b32.xlu0 %v4143, 16
        %v4471 = vpop.permute.xlu0 %4470
        %4472 = vrot.lane.b32.xlu0 %v4191, 16
        %v4473 = vpop.permute.xlu0 %4472
        %4474 = vrot.lane.b32.xlu0 %v4239, 16
        %v4475 = vpop.permute.xlu0 %4474
        %4476 = vrot.lane.b32.xlu0 %v4287, 16
        %v4477 = vpop.permute.xlu0 %4476
        %4478 = vrot.lane.b32.xlu0 %v4335, 16
        %v4479 = vpop.permute.xlu0 %4478
        %4480 = vrot.lane.b32.xlu0 %v4383, 16
        %v4481 = vpop.permute.xlu0 %4480
        %4482 = vrot.lane.b32.xlu0 %v4431, 16
        %v4483 = vpop.permute.xlu0 %4482
        %v4500 = vsel %vm884, %v2943, %v4453
        %v4501 = vsel %vm884, %v2991, %v4455
        %v4502 = vsel %vm884, %v3039, %v4457
        %v4503 = vsel %vm884, %v3087, %v4459
        %v4504 = vsel %vm884, %v3135, %v4461
        %v4505 = vsel %vm884, %v3183, %v4463
        %v4506 = vsel %vm884, %v3231, %v4465
        %v4507 = vsel %vm884, %v3279, %v4467
        %v4508 = vsel %vm884, %v3327, %v4469
        %v4509 = vsel %vm884, %v3375, %v4471
        %v4510 = vsel %vm884, %v3423, %v4473
        %v4511 = vsel %vm884, %v3471, %v4475
        %v4512 = vsel %vm884, %v3519, %v4477
        %v4513 = vsel %vm884, %v3567, %v4479
        %v4514 = vsel %vm884, %v3615, %v4481
        %v4515 = vsel %vm884, %v3663, %v4483
        %v4516 = vpack.c.bf16 %v4501, %v4500
        %v4517 = vpack.c.bf16 %v4503, %v4502
        %v4518 = vpack.c.bf16 %v4505, %v4504
        %v4519 = vpack.c.bf16 %v4507, %v4506
        %v4520 = vpack.c.bf16 %v4509, %v4508
        %v4521 = vpack.c.bf16 %v4511, %v4510
        %v4522 = vpack.c.bf16 %v4513, %v4512
        %v4523 = vpack.c.bf16 %v4515, %v4514
        %v4524 = vld [vmem:[%s4] sm:$0xf]
        %v4525 = vld [vmem:[%s4 + $0x4] sm:$0xf]
        %v4526 = vld [vmem:[%s4 + $0x8] sm:$0xf]
        %v4527 = vld [vmem:[%s4 + $0xc] sm:$0xf]
        %v4528 = vld [vmem:[%s5] sm:$0x1]
        %v4530 = vlaneseq
        %v4531 = vshrl.u32 %v4530, 7
        %v4532 = vsub.s32 0, %v4531
        %v4533 = vrot.slane %v4528, %v4532
        %v4539 = vunpack.c.l.b16 %v4524
        %v4540 = vunpack.c.l.b16 %v4525
        %v4541 = vunpack.c.l.b16 %v4526
        %v4542 = vunpack.c.l.b16 %v4527
        %v4543 = vpack.c.b16 %v4540, %v4539
        %v4544 = vpack.c.b16 %v4542, %v4541
        %v4548 = vsel %vm663, %v4516, 0
        %v4551 = vsel %vm663, %v4517, 0
        %v4554 = vsel %vm663, %v4518, 0
        %v4557 = vsel %vm663, %v4519, 0
        %v4560 = vsel %vm663, %v4520, 0
        %v4563 = vsel %vm663, %v4521, 0
        %v4566 = vsel %vm663, %v4522, 0
        %v4569 = vsel %vm663, %v4523, 0
        %4571 = vmatprep.subr.bf16.mxu0 0
        %4572 = vmatpush1.bf16.msra.mxu0 0
        %4573 = vmatprep.subr.bf16.mxu0 0
        %4574 = vmatpush1.bf16.msra.mxu0 0
        %4575 = vmatprep.subr.bf16.mxu0 0
        %4576 = vmatpush1.bf16.msra.mxu0 0
        %4577 = vmatprep.subr.bf16.mxu0 0
        %4578 = vmatpush1.bf16.msra.mxu0 0
        %4579 = vmatprep.subr.bf16.mxu0 0
        %4580 = vmatpush1.bf16.msra.mxu0 0
        %4581 = vmatprep.subr.bf16.mxu0 0
        %4582 = vmatpush1.bf16.msra.mxu0 0
        %4583 = vmatprep.subr.bf16.mxu0 0
        %4584 = vmatpush1.bf16.msra.mxu0 %v4544
        %4585 = vmatprep.subr.bf16.mxu0 0
        %4586 = vmatpush1.bf16.msra.mxu0 %v4543
        %4587 = vmatprep.subr.bf16.mxu0 0
        %4588 = vmatpush2.bf16.msra.mxu0 0
        %4589 = vmatprep.subr.bf16.mxu0 0
        %4590 = vmatpush2.bf16.msra.mxu0 0
        %4591 = vmatprep.subr.bf16.mxu0 0
        %4592 = vmatpush2.bf16.msra.mxu0 0
        %4593 = vmatprep.subr.bf16.mxu0 0
        %4594 = vmatpush2.bf16.msra.mxu0 0
        %4595 = vmatprep.subr.bf16.mxu0 0
        %4596 = vmatpush2.bf16.msra.mxu0 0
        %4597 = vmatprep.subr.bf16.mxu0 0
        %4598 = vmatpush2.bf16.msra.mxu0 0
        %4599 = vmatprep.subr.bf16.mxu0 0
        %4600 = vmatpush2.bf16.msra.mxu0 0
        %4601 = vmatprep.subr.bf16.mxu0 0
        %4602 = vmatpush2.bf16.msra.mxu0 0
        %4603 = vmatprep.mubr.bf16.mxu0 0
        %4604 = vmatmul.mubr.bf16.gmra.mxu0 %v4548
        %v4605 = vpop.f32.mrf.mxu0
        %v4606 = vadd.f32 %v4533, %v4605
        %v4607 = vpop.f32.mrf.mxu0
        %v4608 = vpop.f32.mrf.mxu0
        %v4609 = vadd.f32 %v4533, %v4608
        %v4610 = vpop.f32.mrf.mxu0
        %4611 = vmatprep.mubr.bf16.mxu0 0
        %4612 = vmatmul.mubr.bf16.gmra.mxu0 %v4551
        %v4613 = vpop.f32.mrf.mxu0
        %v4614 = vadd.f32 %v4533, %v4613
        %v4615 = vpop.f32.mrf.mxu0
        %v4616 = vpop.f32.mrf.mxu0
        %v4617 = vadd.f32 %v4533, %v4616
        %v4618 = vpop.f32.mrf.mxu0
        %4619 = vmatprep.mubr.bf16.mxu0 0
        %4620 = vmatmul.mubr.bf16.gmra.mxu0 %v4554
        %v4621 = vpop.f32.mrf.mxu0
        %v4622 = vadd.f32 %v4533, %v4621
        %v4623 = vpop.f32.mrf.mxu0
        %v4624 = vpop.f32.mrf.mxu0
        %v4625 = vadd.f32 %v4533, %v4624
        %v4626 = vpop.f32.mrf.mxu0
        %4627 = vmatprep.mubr.bf16.mxu0 0
        %4628 = vmatmul.mubr.bf16.gmra.mxu0 %v4557
        %v4629 = vpop.f32.mrf.mxu0
        %v4630 = vadd.f32 %v4533, %v4629
        %v4631 = vpop.f32.mrf.mxu0
        %v4632 = vpop.f32.mrf.mxu0
        %v4633 = vadd.f32 %v4533, %v4632
        %v4634 = vpop.f32.mrf.mxu0
        %4635 = vmatprep.mubr.bf16.mxu0 0
        %4636 = vmatmul.mubr.bf16.gmra.mxu0 %v4560
        %v4637 = vpop.f32.mrf.mxu0
        %v4638 = vadd.f32 %v4533, %v4637
        %v4639 = vpop.f32.mrf.mxu0
        %v4640 = vpop.f32.mrf.mxu0
        %v4641 = vadd.f32 %v4533, %v4640
        %v4642 = vpop.f32.mrf.mxu0
        %4643 = vmatprep.mubr.bf16.mxu0 0
        %4644 = vmatmul.mubr.bf16.gmra.mxu0 %v4563
        %v4645 = vpop.f32.mrf.mxu0
        %v4646 = vadd.f32 %v4533, %v4645
        %v4647 = vpop.f32.mrf.mxu0
        %v4648 = vpop.f32.mrf.mxu0
        %v4649 = vadd.f32 %v4533, %v4648
        %v4650 = vpop.f32.mrf.mxu0
        %4651 = vmatprep.mubr.bf16.mxu0 0
        %4652 = vmatmul.mubr.bf16.gmra.mxu0 %v4566
        %v4653 = vpop.f32.mrf.mxu0
        %v4654 = vadd.f32 %v4533, %v4653
        %v4655 = vpop.f32.mrf.mxu0
        %v4656 = vpop.f32.mrf.mxu0
        %v4657 = vadd.f32 %v4533, %v4656
        %v4658 = vpop.f32.mrf.mxu0
        %4659 = vmatprep.mubr.bf16.mxu0 0
        %4660 = vmatmul.mubr.bf16.gmra.mxu0 %v4569
        %v4661 = vpop.f32.mrf.mxu0
        %v4662 = vadd.f32 %v4533, %v4661
        %v4663 = vpop.f32.mrf.mxu0
        %v4664 = vpop.f32.mrf.mxu0
        %v4665 = vadd.f32 %v4533, %v4664
        %v4666 = vpop.f32.mrf.mxu0
        %4667 = vdwg.mxu0
        %v4668 = vadd.f32 %v600, %v4606
        %v4669 = vadd.f32 %v601, %v4609
        %v4670 = vadd.f32 %v602, %v4614
        %v4671 = vadd.f32 %v603, %v4617
        %v4672 = vadd.f32 %v604, %v4622
        %v4673 = vadd.f32 %v605, %v4625
        %v4674 = vadd.f32 %v606, %v4630
        %v4675 = vadd.f32 %v607, %v4633
        %v4676 = vadd.f32 %v608, %v4638
        %v4677 = vadd.f32 %v609, %v4641
        %v4678 = vadd.f32 %v610, %v4646
        %v4679 = vadd.f32 %v611, %v4649
        %v4680 = vadd.f32 %v612, %v4654
        %v4681 = vadd.f32 %v613, %v4657
        %v4682 = vadd.f32 %v614, %v4662
        %v4683 = vadd.f32 %v615, %v4665
        %v4684 = vld [vmem:[%s6] sm:$0x1]
        %v4685 = vld [vmem:[%s7] sm:$0x1]
        %v4686 = vsel %vm663, %v4668, 0.0
        %4687 = vadd.xlane.f32.xlu0 %v4686
        %v4688 = vpop.xlane.xlu0 %4687
        %v4689 = vsel %vm663, %v4669, 0.0
        %4690 = vadd.xlane.f32.xlu0 %v4689
        %v4691 = vpop.xlane.xlu0 %4690
        %v4692 = vsel %vm663, %v4670, 0.0
        %4693 = vadd.xlane.f32.xlu0 %v4692
        %v4694 = vpop.xlane.xlu0 %4693
        %v4695 = vsel %vm663, %v4671, 0.0
        %4696 = vadd.xlane.f32.xlu0 %v4695
        %v4697 = vpop.xlane.xlu0 %4696
        %v4698 = vsel %vm663, %v4672, 0.0
        %4699 = vadd.xlane.f32.xlu0 %v4698
        %v4700 = vpop.xlane.xlu0 %4699
        %v4701 = vsel %vm663, %v4673, 0.0
        %4702 = vadd.xlane.f32.xlu0 %v4701
        %v4703 = vpop.xlane.xlu0 %4702
        %v4704 = vsel %vm663, %v4674, 0.0
        %4705 = vadd.xlane.f32.xlu0 %v4704
        %v4706 = vpop.xlane.xlu0 %4705
        %v4707 = vsel %vm663, %v4675, 0.0
        %4708 = vadd.xlane.f32.xlu0 %v4707
        %v4709 = vpop.xlane.xlu0 %4708
        %v4710 = vsel %vm663, %v4676, 0.0
        %4711 = vadd.xlane.f32.xlu0 %v4710
        %v4712 = vpop.xlane.xlu0 %4711
        %v4713 = vsel %vm663, %v4677, 0.0
        %4714 = vadd.xlane.f32.xlu0 %v4713
        %v4715 = vpop.xlane.xlu0 %4714
        %v4716 = vsel %vm663, %v4678, 0.0
        %4717 = vadd.xlane.f32.xlu0 %v4716
        %v4718 = vpop.xlane.xlu0 %4717
        %v4719 = vsel %vm663, %v4679, 0.0
        %4720 = vadd.xlane.f32.xlu0 %v4719
        %v4721 = vpop.xlane.xlu0 %4720
        %v4722 = vsel %vm663, %v4680, 0.0
        %4723 = vadd.xlane.f32.xlu0 %v4722
        %v4724 = vpop.xlane.xlu0 %4723
        %v4725 = vsel %vm663, %v4681, 0.0
        %4726 = vadd.xlane.f32.xlu0 %v4725
        %v4727 = vpop.xlane.xlu0 %4726
        %v4728 = vsel %vm663, %v4682, 0.0
        %4729 = vadd.xlane.f32.xlu0 %v4728
        %v4730 = vpop.xlane.xlu0 %4729
        %v4731 = vsel %vm663, %v4683, 0.0
        %4732 = vadd.xlane.f32.xlu0 %v4731
        %v4733 = vpop.xlane.xlu0 %4732
        %v4734 = vrcp.pop 32.0
        %v4735 = vmul.f32 %v4688, %v4734
        %v4736 = vmul.f32 %v4691, %v4734
        %v4737 = vmul.f32 %v4694, %v4734
        %v4738 = vmul.f32 %v4697, %v4734
        %v4739 = vmul.f32 %v4700, %v4734
        %v4740 = vmul.f32 %v4703, %v4734
        %v4741 = vmul.f32 %v4706, %v4734
        %v4742 = vmul.f32 %v4709, %v4734
        %v4743 = vmul.f32 %v4712, %v4734
        %v4744 = vmul.f32 %v4715, %v4734
        %v4745 = vmul.f32 %v4718, %v4734
        %v4746 = vmul.f32 %v4721, %v4734
        %v4747 = vmul.f32 %v4724, %v4734
        %v4748 = vmul.f32 %v4727, %v4734
        %v4749 = vmul.f32 %v4730, %v4734
        %v4750 = vmul.f32 %v4733, %v4734
        %v4751 = vsub.f32 %v4668, %v4735
        %v4752 = vsub.f32 %v4669, %v4736
        %v4753 = vsub.f32 %v4670, %v4737
        %v4754 = vsub.f32 %v4671, %v4738
        %v4755 = vsub.f32 %v4672, %v4739
        %v4756 = vsub.f32 %v4673, %v4740
        %v4757 = vsub.f32 %v4674, %v4741
        %v4758 = vsub.f32 %v4675, %v4742
        %v4759 = vsub.f32 %v4676, %v4743
        %v4760 = vsub.f32 %v4677, %v4744
        %v4761 = vsub.f32 %v4678, %v4745
        %v4762 = vsub.f32 %v4679, %v4746
        %v4763 = vsub.f32 %v4680, %v4747
        %v4764 = vsub.f32 %v4681, %v4748
        %v4765 = vsub.f32 %v4682, %v4749
        %v4766 = vsub.f32 %v4683, %v4750
        %v4767 = vmul.f32 %v4751, %v4751
        %v4768 = vmul.f32 %v4752, %v4752
        %v4769 = vmul.f32 %v4753, %v4753
        %v4770 = vmul.f32 %v4754, %v4754
        %v4771 = vmul.f32 %v4755, %v4755
        %v4772 = vmul.f32 %v4756, %v4756
        %v4773 = vmul.f32 %v4757, %v4757
        %v4774 = vmul.f32 %v4758, %v4758
        %v4775 = vmul.f32 %v4759, %v4759
        %v4776 = vmul.f32 %v4760, %v4760
        %v4777 = vmul.f32 %v4761, %v4761
        %v4778 = vmul.f32 %v4762, %v4762
        %v4779 = vmul.f32 %v4763, %v4763
        %v4780 = vmul.f32 %v4764, %v4764
        %v4781 = vmul.f32 %v4765, %v4765
        %v4782 = vmul.f32 %v4766, %v4766
        %v4783 = vsel %vm663, %v4767, 0.0
        %4784 = vadd.xlane.f32.xlu0 %v4783
        %v4785 = vpop.xlane.xlu0 %4784
        %v4786 = vsel %vm663, %v4768, 0.0
        %4787 = vadd.xlane.f32.xlu0 %v4786
        %v4788 = vpop.xlane.xlu0 %4787
        %v4789 = vsel %vm663, %v4769, 0.0
        %4790 = vadd.xlane.f32.xlu0 %v4789
        %v4791 = vpop.xlane.xlu0 %4790
        %v4792 = vsel %vm663, %v4770, 0.0
        %4793 = vadd.xlane.f32.xlu0 %v4792
        %v4794 = vpop.xlane.xlu0 %4793
        %v4795 = vsel %vm663, %v4771, 0.0
        %4796 = vadd.xlane.f32.xlu0 %v4795
        %v4797 = vpop.xlane.xlu0 %4796
        %v4798 = vsel %vm663, %v4772, 0.0
        %4799 = vadd.xlane.f32.xlu0 %v4798
        %v4800 = vpop.xlane.xlu0 %4799
        %v4801 = vsel %vm663, %v4773, 0.0
        %4802 = vadd.xlane.f32.xlu0 %v4801
        %v4803 = vpop.xlane.xlu0 %4802
        %v4804 = vsel %vm663, %v4774, 0.0
        %4805 = vadd.xlane.f32.xlu0 %v4804
        %v4806 = vpop.xlane.xlu0 %4805
        %v4807 = vsel %vm663, %v4775, 0.0
        %4808 = vadd.xlane.f32.xlu0 %v4807
        %v4809 = vpop.xlane.xlu0 %4808
        %v4810 = vsel %vm663, %v4776, 0.0
        %4811 = vadd.xlane.f32.xlu0 %v4810
        %v4812 = vpop.xlane.xlu0 %4811
        %v4813 = vsel %vm663, %v4777, 0.0
        %4814 = vadd.xlane.f32.xlu0 %v4813
        %v4815 = vpop.xlane.xlu0 %4814
        %v4816 = vsel %vm663, %v4778, 0.0
        %4817 = vadd.xlane.f32.xlu0 %v4816
        %v4818 = vpop.xlane.xlu0 %4817
        %v4819 = vsel %vm663, %v4779, 0.0
        %4820 = vadd.xlane.f32.xlu0 %v4819
        %v4821 = vpop.xlane.xlu0 %4820
        %v4822 = vsel %vm663, %v4780, 0.0
        %4823 = vadd.xlane.f32.xlu0 %v4822
        %v4824 = vpop.xlane.xlu0 %4823
        %v4825 = vsel %vm663, %v4781, 0.0
        %4826 = vadd.xlane.f32.xlu0 %v4825
        %v4827 = vpop.xlane.xlu0 %4826
        %v4828 = vsel %vm663, %v4782, 0.0
        %4829 = vadd.xlane.f32.xlu0 %v4828
        %v4830 = vpop.xlane.xlu0 %4829
        %v4831 = vmul.f32 %v4785, %v4734
        %v4832 = vmul.f32 %v4788, %v4734
        %v4833 = vmul.f32 %v4791, %v4734
        %v4834 = vmul.f32 %v4794, %v4734
        %v4835 = vmul.f32 %v4797, %v4734
        %v4836 = vmul.f32 %v4800, %v4734
        %v4837 = vmul.f32 %v4803, %v4734
        %v4838 = vmul.f32 %v4806, %v4734
        %v4839 = vmul.f32 %v4809, %v4734
        %v4840 = vmul.f32 %v4812, %v4734
        %v4841 = vmul.f32 %v4815, %v4734
        %v4842 = vmul.f32 %v4818, %v4734
        %v4843 = vmul.f32 %v4821, %v4734
        %v4844 = vmul.f32 %v4824, %v4734
        %v4845 = vmul.f32 %v4827, %v4734
        %v4846 = vmul.f32 %v4830, %v4734
        %v4847 = vadd.f32 %v4831, 1e-12
        %v4848 = vadd.f32 %v4832, 1e-12
        %v4849 = vadd.f32 %v4833, 1e-12
        %v4850 = vadd.f32 %v4834, 1e-12
        %v4851 = vadd.f32 %v4835, 1e-12
        %v4852 = vadd.f32 %v4836, 1e-12
        %v4853 = vadd.f32 %v4837, 1e-12
        %v4854 = vadd.f32 %v4838, 1e-12
        %v4855 = vadd.f32 %v4839, 1e-12
        %v4856 = vadd.f32 %v4840, 1e-12
        %v4857 = vadd.f32 %v4841, 1e-12
        %v4858 = vadd.f32 %v4842, 1e-12
        %v4859 = vadd.f32 %v4843, 1e-12
        %v4860 = vadd.f32 %v4844, 1e-12
        %v4861 = vadd.f32 %v4845, 1e-12
        %v4862 = vadd.f32 %v4846, 1e-12
        %v4863 = vrsqrt.pop %v4847
        %v4864 = vrsqrt.pop %v4848
        %v4865 = vrsqrt.pop %v4849
        %v4866 = vrsqrt.pop %v4850
        %v4867 = vrsqrt.pop %v4851
        %v4868 = vrsqrt.pop %v4852
        %v4869 = vrsqrt.pop %v4853
        %v4870 = vrsqrt.pop %v4854
        %v4871 = vrsqrt.pop %v4855
        %v4872 = vrsqrt.pop %v4856
        %v4873 = vrsqrt.pop %v4857
        %v4874 = vrsqrt.pop %v4858
        %v4875 = vrsqrt.pop %v4859
        %v4876 = vrsqrt.pop %v4860
        %v4877 = vrsqrt.pop %v4861
        %v4878 = vrsqrt.pop %v4862
        %v4879 = vmul.f32 %v4751, %v4863
        %v4880 = vmul.f32 %v4752, %v4864
        %v4881 = vmul.f32 %v4753, %v4865
        %v4882 = vmul.f32 %v4754, %v4866
        %v4883 = vmul.f32 %v4755, %v4867
        %v4884 = vmul.f32 %v4756, %v4868
        %v4885 = vmul.f32 %v4757, %v4869
        %v4886 = vmul.f32 %v4758, %v4870
        %v4887 = vmul.f32 %v4759, %v4871
        %v4888 = vmul.f32 %v4760, %v4872
        %v4889 = vmul.f32 %v4761, %v4873
        %v4890 = vmul.f32 %v4762, %v4874
        %v4891 = vmul.f32 %v4763, %v4875
        %v4892 = vmul.f32 %v4764, %v4876
        %v4893 = vmul.f32 %v4765, %v4877
        %v4894 = vmul.f32 %v4766, %v4878
        %v4896 = vlaneseq
        %v4897 = vshrl.u32 %v4896, 7
        %v4898 = vsub.s32 0, %v4897
        %v4899 = vrot.slane %v4684, %v4898
        %v4901 = vmul.f32 %v4879, %v4899
        %v4902 = vmul.f32 %v4880, %v4899
        %v4903 = vmul.f32 %v4881, %v4899
        %v4904 = vmul.f32 %v4882, %v4899
        %v4905 = vmul.f32 %v4883, %v4899
        %v4906 = vmul.f32 %v4884, %v4899
        %v4907 = vmul.f32 %v4885, %v4899
        %v4908 = vmul.f32 %v4886, %v4899
        %v4909 = vmul.f32 %v4887, %v4899
        %v4910 = vmul.f32 %v4888, %v4899
        %v4911 = vmul.f32 %v4889, %v4899
        %v4912 = vmul.f32 %v4890, %v4899
        %v4913 = vmul.f32 %v4891, %v4899
        %v4914 = vmul.f32 %v4892, %v4899
        %v4915 = vmul.f32 %v4893, %v4899
        %v4916 = vmul.f32 %v4894, %v4899
        %v4918 = vlaneseq
        %v4919 = vshrl.u32 %v4918, 7
        %v4920 = vsub.s32 0, %v4919
        %v4921 = vrot.slane %v4685, %v4920
        %v4923 = vadd.f32 %v4901, %v4921
        %v4924 = vadd.f32 %v4902, %v4921
        %v4925 = vadd.f32 %v4903, %v4921
        %v4926 = vadd.f32 %v4904, %v4921
        %v4927 = vadd.f32 %v4905, %v4921
        %v4928 = vadd.f32 %v4906, %v4921
        %v4929 = vadd.f32 %v4907, %v4921
        %v4930 = vadd.f32 %v4908, %v4921
        %v4931 = vadd.f32 %v4909, %v4921
        %v4932 = vadd.f32 %v4910, %v4921
        %v4933 = vadd.f32 %v4911, %v4921
        %v4934 = vadd.f32 %v4912, %v4921
        %v4935 = vadd.f32 %v4913, %v4921
        %v4936 = vadd.f32 %v4914, %v4921
        %v4937 = vadd.f32 %v4915, %v4921
        %v4938 = vadd.f32 %v4916, %v4921
        %v4939 = vpack.c.bf16 %v4924, %v4923
        %v4940 = vpack.c.bf16 %v4926, %v4925
        %v4941 = vpack.c.bf16 %v4928, %v4927
        %v4942 = vpack.c.bf16 %v4930, %v4929
        %v4943 = vpack.c.bf16 %v4932, %v4931
        %v4944 = vpack.c.bf16 %v4934, %v4933
        %v4945 = vpack.c.bf16 %v4936, %v4935
        %v4946 = vpack.c.bf16 %v4938, %v4937
        %v4947 = vld [vmem:[%s8] sm:$0xf]
        %v4948 = vld [vmem:[%s8 + $0x4] sm:$0xf]
        %v4949 = vld [vmem:[%s8 + $0x8] sm:$0xf]
        %v4950 = vld [vmem:[%s8 + $0xc] sm:$0xf]
        %v4951 = vld [vmem:[%s9] sm:$0x1]
        %v4953 = vlaneseq
        %v4954 = vshrl.u32 %v4953, 7
        %v4955 = vsub.s32 0, %v4954
        %v4956 = vrot.slane %v4951, %v4955
        %v4962 = vunpack.c.l.b16 %v4947
        %v4963 = vunpack.c.l.b16 %v4948
        %v4964 = vunpack.c.l.b16 %v4949
        %v4965 = vunpack.c.l.b16 %v4950
        %v4966 = vpack.c.b16 %v4963, %v4962
        %v4967 = vpack.c.b16 %v4965, %v4964
        %v4971 = vsel %vm663, %v4939, 0
        %v4974 = vsel %vm663, %v4940, 0
        %v4977 = vsel %vm663, %v4941, 0
        %v4980 = vsel %vm663, %v4942, 0
        %v4983 = vsel %vm663, %v4943, 0
        %v4986 = vsel %vm663, %v4944, 0
        %v4989 = vsel %vm663, %v4945, 0
        %v4992 = vsel %vm663, %v4946, 0
        %4994 = vmatprep.subr.bf16.mxu0 0
        %4995 = vmatpush1.bf16.msra.mxu0 0
        %4996 = vmatprep.subr.bf16.mxu0 0
        %4997 = vmatpush1.bf16.msra.mxu0 0
        %4998 = vmatprep.subr.bf16.mxu0 0
        %4999 = vmatpush1.bf16.msra.mxu0 0
        %5000 = vmatprep.subr.bf16.mxu0 0
        %5001 = vmatpush1.bf16.msra.mxu0 0
        %5002 = vmatprep.subr.bf16.mxu0 0
        %5003 = vmatpush1.bf16.msra.mxu0 0
        %5004 = vmatprep.subr.bf16.mxu0 0
        %5005 = vmatpush1.bf16.msra.mxu0 0
        %5006 = vmatprep.subr.bf16.mxu0 0
        %5007 = vmatpush1.bf16.msra.mxu0 %v4967
        %5008 = vmatprep.subr.bf16.mxu0 0
        %5009 = vmatpush1.bf16.msra.mxu0 %v4966
        %5010 = vmatprep.subr.bf16.mxu0 0
        %5011 = vmatpush2.bf16.msra.mxu0 0
        %5012 = vmatprep.subr.bf16.mxu0 0
        %5013 = vmatpush2.bf16.msra.mxu0 0
        %5014 = vmatprep.subr.bf16.mxu0 0
        %5015 = vmatpush2.bf16.msra.mxu0 0
        %5016 = vmatprep.subr.bf16.mxu0 0
        %5017 = vmatpush2.bf16.msra.mxu0 0
        %5018 = vmatprep.subr.bf16.mxu0 0
        %5019 = vmatpush2.bf16.msra.mxu0 0
        %5020 = vmatprep.subr.bf16.mxu0 0
        %5021 = vmatpush2.bf16.msra.mxu0 0
        %5022 = vmatprep.subr.bf16.mxu0 0
        %5023 = vmatpush2.bf16.msra.mxu0 0
        %5024 = vmatprep.subr.bf16.mxu0 0
        %5025 = vmatpush2.bf16.msra.mxu0 0
        %5026 = vmatprep.mubr.bf16.mxu0 0
        %5027 = vmatmul.mubr.bf16.gmra.mxu0 %v4971
        %v5028 = vpop.f32.mrf.mxu0
        %v5029 = vadd.f32 %v4956, %v5028
        %v5030 = vpop.f32.mrf.mxu0
        %v5031 = vpop.f32.mrf.mxu0
        %v5032 = vadd.f32 %v4956, %v5031
        %v5033 = vpop.f32.mrf.mxu0
        %5034 = vmatprep.mubr.bf16.mxu0 0
        %5035 = vmatmul.mubr.bf16.gmra.mxu0 %v4974
        %v5036 = vpop.f32.mrf.mxu0
        %v5037 = vadd.f32 %v4956, %v5036
        %v5038 = vpop.f32.mrf.mxu0
        %v5039 = vpop.f32.mrf.mxu0
        %v5040 = vadd.f32 %v4956, %v5039
        %v5041 = vpop.f32.mrf.mxu0
        %5042 = vmatprep.mubr.bf16.mxu0 0
        %5043 = vmatmul.mubr.bf16.gmra.mxu0 %v4977
        %v5044 = vpop.f32.mrf.mxu0
        %v5045 = vadd.f32 %v4956, %v5044
        %v5046 = vpop.f32.mrf.mxu0
        %v5047 = vpop.f32.mrf.mxu0
        %v5048 = vadd.f32 %v4956, %v5047
        %v5049 = vpop.f32.mrf.mxu0
        %5050 = vmatprep.mubr.bf16.mxu0 0
        %5051 = vmatmul.mubr.bf16.gmra.mxu0 %v4980
        %v5052 = vpop.f32.mrf.mxu0
        %v5053 = vadd.f32 %v4956, %v5052
        %v5054 = vpop.f32.mrf.mxu0
        %v5055 = vpop.f32.mrf.mxu0
        %v5056 = vadd.f32 %v4956, %v5055
        %v5057 = vpop.f32.mrf.mxu0
        %5058 = vmatprep.mubr.bf16.mxu0 0
        %5059 = vmatmul.mubr.bf16.gmra.mxu0 %v4983
        %v5060 = vpop.f32.mrf.mxu0
        %v5061 = vadd.f32 %v4956, %v5060
        %v5062 = vpop.f32.mrf.mxu0
        %v5063 = vpop.f32.mrf.mxu0
        %v5064 = vadd.f32 %v4956, %v5063
        %v5065 = vpop.f32.mrf.mxu0
        %5066 = vmatprep.mubr.bf16.mxu0 0
        %5067 = vmatmul.mubr.bf16.gmra.mxu0 %v4986
        %v5068 = vpop.f32.mrf.mxu0
        %v5069 = vadd.f32 %v4956, %v5068
        %v5070 = vpop.f32.mrf.mxu0
        %v5071 = vpop.f32.mrf.mxu0
        %v5072 = vadd.f32 %v4956, %v5071
        %v5073 = vpop.f32.mrf.mxu0
        %5074 = vmatprep.mubr.bf16.mxu0 0
        %5075 = vmatmul.mubr.bf16.gmra.mxu0 %v4989
        %v5076 = vpop.f32.mrf.mxu0
        %v5077 = vadd.f32 %v4956, %v5076
        %v5078 = vpop.f32.mrf.mxu0
        %v5079 = vpop.f32.mrf.mxu0
        %v5080 = vadd.f32 %v4956, %v5079
        %v5081 = vpop.f32.mrf.mxu0
        %5082 = vmatprep.mubr.bf16.mxu0 0
        %5083 = vmatmul.mubr.bf16.gmra.mxu0 %v4992
        %v5084 = vpop.f32.mrf.mxu0
        %v5085 = vadd.f32 %v4956, %v5084
        %v5086 = vpop.f32.mrf.mxu0
        %v5087 = vpop.f32.mrf.mxu0
        %v5088 = vadd.f32 %v4956, %v5087
        %v5089 = vpop.f32.mrf.mxu0
        %5090 = vdwg.mxu0
        %v5091 = vmul.f32 %v5029, %v5029
        %v5092 = vmul.f32 %v5032, %v5032
        %v5093 = vmul.f32 %v5037, %v5037
        %v5094 = vmul.f32 %v5040, %v5040
        %v5095 = vmul.f32 %v5045, %v5045
        %v5096 = vmul.f32 %v5048, %v5048
        %v5097 = vmul.f32 %v5053, %v5053
        %v5098 = vmul.f32 %v5056, %v5056
        %v5099 = vmul.f32 %v5061, %v5061
        %v5100 = vmul.f32 %v5064, %v5064
        %v5101 = vmul.f32 %v5069, %v5069
        %v5102 = vmul.f32 %v5072, %v5072
        %v5103 = vmul.f32 %v5077, %v5077
        %v5104 = vmul.f32 %v5080, %v5080
        %v5105 = vmul.f32 %v5085, %v5085
        %v5106 = vmul.f32 %v5088, %v5088
        %v5107 = vmul.f32 %v5029, %v5091
        %v5108 = vmul.f32 %v5032, %v5092
        %v5109 = vmul.f32 %v5037, %v5093
        %v5110 = vmul.f32 %v5040, %v5094
        %v5111 = vmul.f32 %v5045, %v5095
        %v5112 = vmul.f32 %v5048, %v5096
        %v5113 = vmul.f32 %v5053, %v5097
        %v5114 = vmul.f32 %v5056, %v5098
        %v5115 = vmul.f32 %v5061, %v5099
        %v5116 = vmul.f32 %v5064, %v5100
        %v5117 = vmul.f32 %v5069, %v5101
        %v5118 = vmul.f32 %v5072, %v5102
        %v5119 = vmul.f32 %v5077, %v5103
        %v5120 = vmul.f32 %v5080, %v5104
        %v5121 = vmul.f32 %v5085, %v5105
        %v5122 = vmul.f32 %v5088, %v5106
        %v5123 = vmul.f32 %v5107, 0.044715
        %v5124 = vmul.f32 %v5108, 0.044715
        %v5125 = vmul.f32 %v5109, 0.044715
        %v5126 = vmul.f32 %v5110, 0.044715
        %v5127 = vmul.f32 %v5111, 0.044715
        %v5128 = vmul.f32 %v5112, 0.044715
        %v5129 = vmul.f32 %v5113, 0.044715
        %v5130 = vmul.f32 %v5114, 0.044715
        %v5131 = vmul.f32 %v5115, 0.044715
        %v5132 = vmul.f32 %v5116, 0.044715
        %v5133 = vmul.f32 %v5117, 0.044715
        %v5134 = vmul.f32 %v5118, 0.044715
        %v5135 = vmul.f32 %v5119, 0.044715
        %v5136 = vmul.f32 %v5120, 0.044715
        %v5137 = vmul.f32 %v5121, 0.044715
        %v5138 = vmul.f32 %v5122, 0.044715
        %v5139 = vadd.f32 %v5029, %v5123
        %v5140 = vadd.f32 %v5032, %v5124
        %v5141 = vadd.f32 %v5037, %v5125
        %v5142 = vadd.f32 %v5040, %v5126
        %v5143 = vadd.f32 %v5045, %v5127
        %v5144 = vadd.f32 %v5048, %v5128
        %v5145 = vadd.f32 %v5053, %v5129
        %v5146 = vadd.f32 %v5056, %v5130
        %v5147 = vadd.f32 %v5061, %v5131
        %v5148 = vadd.f32 %v5064, %v5132
        %v5149 = vadd.f32 %v5069, %v5133
        %v5150 = vadd.f32 %v5072, %v5134
        %v5151 = vadd.f32 %v5077, %v5135
        %v5152 = vadd.f32 %v5080, %v5136
        %v5153 = vadd.f32 %v5085, %v5137
        %v5154 = vadd.f32 %v5088, %v5138
        %v5155 = vmul.f32 %v5139, 0.7978846
        %v5156 = vmul.f32 %v5140, 0.7978846
        %v5157 = vmul.f32 %v5141, 0.7978846
        %v5158 = vmul.f32 %v5142, 0.7978846
        %v5159 = vmul.f32 %v5143, 0.7978846
        %v5160 = vmul.f32 %v5144, 0.7978846
        %v5161 = vmul.f32 %v5145, 0.7978846
        %v5162 = vmul.f32 %v5146, 0.7978846
        %v5163 = vmul.f32 %v5147, 0.7978846
        %v5164 = vmul.f32 %v5148, 0.7978846
        %v5165 = vmul.f32 %v5149, 0.7978846
        %v5166 = vmul.f32 %v5150, 0.7978846
        %v5167 = vmul.f32 %v5151, 0.7978846
        %v5168 = vmul.f32 %v5152, 0.7978846
        %v5169 = vmul.f32 %v5153, 0.7978846
        %v5170 = vmul.f32 %v5154, 0.7978846
        %v5171 = vtanh.pop %v5155
        %v5172 = vtanh.pop %v5156
        %v5173 = vtanh.pop %v5157
        %v5174 = vtanh.pop %v5158
        %v5175 = vtanh.pop %v5159
        %v5176 = vtanh.pop %v5160
        %v5177 = vtanh.pop %v5161
        %v5178 = vtanh.pop %v5162
        %v5179 = vtanh.pop %v5163
        %v5180 = vtanh.pop %v5164
        %v5181 = vtanh.pop %v5165
        %v5182 = vtanh.pop %v5166
        %v5183 = vtanh.pop %v5167
        %v5184 = vtanh.pop %v5168
        %v5185 = vtanh.pop %v5169
        %v5186 = vtanh.pop %v5170
        %v5187 = vadd.f32 %v5171, 1.0
        %v5188 = vadd.f32 %v5172, 1.0
        %v5189 = vadd.f32 %v5173, 1.0
        %v5190 = vadd.f32 %v5174, 1.0
        %v5191 = vadd.f32 %v5175, 1.0
        %v5192 = vadd.f32 %v5176, 1.0
        %v5193 = vadd.f32 %v5177, 1.0
        %v5194 = vadd.f32 %v5178, 1.0
        %v5195 = vadd.f32 %v5179, 1.0
        %v5196 = vadd.f32 %v5180, 1.0
        %v5197 = vadd.f32 %v5181, 1.0
        %v5198 = vadd.f32 %v5182, 1.0
        %v5199 = vadd.f32 %v5183, 1.0
        %v5200 = vadd.f32 %v5184, 1.0
        %v5201 = vadd.f32 %v5185, 1.0
        %v5202 = vadd.f32 %v5186, 1.0
        %v5203 = vmul.f32 %v5187, 0.5
        %v5204 = vmul.f32 %v5188, 0.5
        %v5205 = vmul.f32 %v5189, 0.5
        %v5206 = vmul.f32 %v5190, 0.5
        %v5207 = vmul.f32 %v5191, 0.5
        %v5208 = vmul.f32 %v5192, 0.5
        %v5209 = vmul.f32 %v5193, 0.5
        %v5210 = vmul.f32 %v5194, 0.5
        %v5211 = vmul.f32 %v5195, 0.5
        %v5212 = vmul.f32 %v5196, 0.5
        %v5213 = vmul.f32 %v5197, 0.5
        %v5214 = vmul.f32 %v5198, 0.5
        %v5215 = vmul.f32 %v5199, 0.5
        %v5216 = vmul.f32 %v5200, 0.5
        %v5217 = vmul.f32 %v5201, 0.5
        %v5218 = vmul.f32 %v5202, 0.5
        %v5219 = vmul.f32 %v5029, %v5203
        %v5220 = vmul.f32 %v5032, %v5204
        %v5221 = vmul.f32 %v5037, %v5205
        %v5222 = vmul.f32 %v5040, %v5206
        %v5223 = vmul.f32 %v5045, %v5207
        %v5224 = vmul.f32 %v5048, %v5208
        %v5225 = vmul.f32 %v5053, %v5209
        %v5226 = vmul.f32 %v5056, %v5210
        %v5227 = vmul.f32 %v5061, %v5211
        %v5228 = vmul.f32 %v5064, %v5212
        %v5229 = vmul.f32 %v5069, %v5213
        %v5230 = vmul.f32 %v5072, %v5214
        %v5231 = vmul.f32 %v5077, %v5215
        %v5232 = vmul.f32 %v5080, %v5216
        %v5233 = vmul.f32 %v5085, %v5217
        %v5234 = vmul.f32 %v5088, %v5218
        %v5235 = vpack.c.bf16 %v5220, %v5219
        %v5236 = vpack.c.bf16 %v5222, %v5221
        %v5237 = vpack.c.bf16 %v5224, %v5223
        %v5238 = vpack.c.bf16 %v5226, %v5225
        %v5239 = vpack.c.bf16 %v5228, %v5227
        %v5240 = vpack.c.bf16 %v5230, %v5229
        %v5241 = vpack.c.bf16 %v5232, %v5231
        %v5242 = vpack.c.bf16 %v5234, %v5233
        %v5243 = vld [vmem:[%s10] sm:$0xf]
        %v5244 = vld [vmem:[%s10 + $0x4] sm:$0xf]
        %v5245 = vld [vmem:[%s10 + $0x8] sm:$0xf]
        %v5246 = vld [vmem:[%s10 + $0xc] sm:$0xf]
        %v5247 = vld [vmem:[%s10 + $0x10] sm:$0xf]
        %v5248 = vld [vmem:[%s10 + $0x14] sm:$0xf]
        %v5249 = vld [vmem:[%s10 + $0x18] sm:$0xf]
        %v5250 = vld [vmem:[%s10 + $0x1c] sm:$0xf]
        %v5251 = vld [vmem:[%s11] sm:$0x1]
        %v5253 = vlaneseq
        %v5254 = vshrl.u32 %v5253, 7
        %v5255 = vsub.s32 0, %v5254
        %v5256 = vrot.slane %v5251, %v5255
        %v5266 = vunpack.c.l.b16 %v5243
        %v5267 = vunpack.c.l.b16 %v5244
        %v5268 = vunpack.c.l.b16 %v5245
        %v5269 = vunpack.c.l.b16 %v5246
        %v5270 = vunpack.c.l.b16 %v5247
        %v5271 = vunpack.c.l.b16 %v5248
        %v5272 = vunpack.c.l.b16 %v5249
        %v5273 = vunpack.c.l.b16 %v5250
        %v5274 = vpack.c.b16 %v5267, %v5266
        %v5275 = vpack.c.b16 %v5269, %v5268
        %v5276 = vpack.c.b16 %v5271, %v5270
        %v5277 = vpack.c.b16 %v5273, %v5272
        %vm5282 = vcmask 523264
        %v5284 = vsel %vm5282, %v5235, 0
        %v5287 = vsel %vm5282, %v5236, 0
        %v5290 = vsel %vm5282, %v5237, 0
        %v5293 = vsel %vm5282, %v5238, 0
        %v5296 = vsel %vm5282, %v5239, 0
        %v5299 = vsel %vm5282, %v5240, 0
        %v5302 = vsel %vm5282, %v5241, 0
        %v5305 = vsel %vm5282, %v5242, 0
        %5307 = vmatprep.subr.bf16.mxu0 0
        %5308 = vmatpush1.bf16.msra.mxu0 0
        %5309 = vmatprep.subr.bf16.mxu0 0
        %5310 = vmatpush1.bf16.msra.mxu0 0
        %5311 = vmatprep.subr.bf16.mxu0 0
        %5312 = vmatpush1.bf16.msra.mxu0 0
        %5313 = vmatprep.subr.bf16.mxu0 0
        %5314 = vmatpush1.bf16.msra.mxu0 0
        %5315 = vmatprep.subr.bf16.mxu0 0
        %5316 = vmatpush1.bf16.msra.mxu0 %v5277
        %5317 = vmatprep.subr.bf16.mxu0 0
        %5318 = vmatpush1.bf16.msra.mxu0 %v5276
        %5319 = vmatprep.subr.bf16.mxu0 0
        %5320 = vmatpush1.bf16.msra.mxu0 %v5275
        %5321 = vmatprep.subr.bf16.mxu0 0
        %5322 = vmatpush1.bf16.msra.mxu0 %v5274
        %5323 = vmatprep.subr.bf16.mxu0 0
        %5324 = vmatpush2.bf16.msra.mxu0 0
        %5325 = vmatprep.subr.bf16.mxu0 0
        %5326 = vmatpush2.bf16.msra.mxu0 0
        %5327 = vmatprep.subr.bf16.mxu0 0
        %5328 = vmatpush2.bf16.msra.mxu0 0
        %5329 = vmatprep.subr.bf16.mxu0 0
        %5330 = vmatpush2.bf16.msra.mxu0 0
        %5331 = vmatprep.subr.bf16.mxu0 0
        %5332 = vmatpush2.bf16.msra.mxu0 0
        %5333 = vmatprep.subr.bf16.mxu0 0
        %5334 = vmatpush2.bf16.msra.mxu0 0
        %5335 = vmatprep.subr.bf16.mxu0 0
        %5336 = vmatpush2.bf16.msra.mxu0 0
        %5337 = vmatprep.subr.bf16.mxu0 0
        %5338 = vmatpush2.bf16.msra.mxu0 0
        %5339 = vmatprep.mubr.bf16.mxu0 0
        %5340 = vmatmul.mubr.bf16.gmra.mxu0 %v5284
        %v5341 = vpop.f32.mrf.mxu0
        %v5342 = vadd.f32 %v5256, %v5341
        %v5343 = vpop.f32.mrf.mxu0
        %v5344 = vpop.f32.mrf.mxu0
        %v5345 = vadd.f32 %v5256, %v5344
        %v5346 = vpop.f32.mrf.mxu0
        %5347 = vmatprep.mubr.bf16.mxu0 0
        %5348 = vmatmul.mubr.bf16.gmra.mxu0 %v5287
        %v5349 = vpop.f32.mrf.mxu0
        %v5350 = vadd.f32 %v5256, %v5349
        %v5351 = vpop.f32.mrf.mxu0
        %v5352 = vpop.f32.mrf.mxu0
        %v5353 = vadd.f32 %v5256, %v5352
        %v5354 = vpop.f32.mrf.mxu0
        %5355 = vmatprep.mubr.bf16.mxu0 0
        %5356 = vmatmul.mubr.bf16.gmra.mxu0 %v5290
        %v5357 = vpop.f32.mrf.mxu0
        %v5358 = vadd.f32 %v5256, %v5357
        %v5359 = vpop.f32.mrf.mxu0
        %v5360 = vpop.f32.mrf.mxu0
        %v5361 = vadd.f32 %v5256, %v5360
        %v5362 = vpop.f32.mrf.mxu0
        %5363 = vmatprep.mubr.bf16.mxu0 0
        %5364 = vmatmul.mubr.bf16.gmra.mxu0 %v5293
        %v5365 = vpop.f32.mrf.mxu0
        %v5366 = vadd.f32 %v5256, %v5365
        %v5367 = vpop.f32.mrf.mxu0
        %v5368 = vpop.f32.mrf.mxu0
        %v5369 = vadd.f32 %v5256, %v5368
        %v5370 = vpop.f32.mrf.mxu0
        %5371 = vmatprep.mubr.bf16.mxu0 0
        %5372 = vmatmul.mubr.bf16.gmra.mxu0 %v5296
        %v5373 = vpop.f32.mrf.mxu0
        %v5374 = vadd.f32 %v5256, %v5373
        %v5375 = vpop.f32.mrf.mxu0
        %v5376 = vpop.f32.mrf.mxu0
        %v5377 = vadd.f32 %v5256, %v5376
        %v5378 = vpop.f32.mrf.mxu0
        %5379 = vmatprep.mubr.bf16.mxu0 0
        %5380 = vmatmul.mubr.bf16.gmra.mxu0 %v5299
        %v5381 = vpop.f32.mrf.mxu0
        %v5382 = vadd.f32 %v5256, %v5381
        %v5383 = vpop.f32.mrf.mxu0
        %v5384 = vpop.f32.mrf.mxu0
        %v5385 = vadd.f32 %v5256, %v5384
        %v5386 = vpop.f32.mrf.mxu0
        %5387 = vmatprep.mubr.bf16.mxu0 0
        %5388 = vmatmul.mubr.bf16.gmra.mxu0 %v5302
        %v5389 = vpop.f32.mrf.mxu0
        %v5390 = vadd.f32 %v5256, %v5389
        %v5391 = vpop.f32.mrf.mxu0
        %v5392 = vpop.f32.mrf.mxu0
        %v5393 = vadd.f32 %v5256, %v5392
        %v5394 = vpop.f32.mrf.mxu0
        %5395 = vmatprep.mubr.bf16.mxu0 0
        %5396 = vmatmul.mubr.bf16.gmra.mxu0 %v5305
        %v5397 = vpop.f32.mrf.mxu0
        %v5398 = vadd.f32 %v5256, %v5397
        %v5399 = vpop.f32.mrf.mxu0
        %v5400 = vpop.f32.mrf.mxu0
        %v5401 = vadd.f32 %v5256, %v5400
        %v5402 = vpop.f32.mrf.mxu0
        %5403 = vdwg.mxu0
        %v5404 = vadd.f32 %v4923, %v5342
        %v5405 = vadd.f32 %v4924, %v5345
        %v5406 = vadd.f32 %v4925, %v5350
        %v5407 = vadd.f32 %v4926, %v5353
        %v5408 = vadd.f32 %v4927, %v5358
        %v5409 = vadd.f32 %v4928, %v5361
        %v5410 = vadd.f32 %v4929, %v5366
        %v5411 = vadd.f32 %v4930, %v5369
        %v5412 = vadd.f32 %v4931, %v5374
        %v5413 = vadd.f32 %v4932, %v5377
        %v5414 = vadd.f32 %v4933, %v5382
        %v5415 = vadd.f32 %v4934, %v5385
        %v5416 = vadd.f32 %v4935, %v5390
        %v5417 = vadd.f32 %v4936, %v5393
        %v5418 = vadd.f32 %v4937, %v5398
        %v5419 = vadd.f32 %v4938, %v5401
        %v5420 = vld [vmem:[%s12] sm:$0x1]
        %v5421 = vld [vmem:[%s13] sm:$0x1]
        %v5422 = vsel %vm663, %v5404, 0.0
        %5423 = vadd.xlane.f32.xlu0 %v5422
        %v5424 = vpop.xlane.xlu0 %5423
        %v5425 = vsel %vm663, %v5405, 0.0
        %5426 = vadd.xlane.f32.xlu0 %v5425
        %v5427 = vpop.xlane.xlu0 %5426
        %v5428 = vsel %vm663, %v5406, 0.0
        %5429 = vadd.xlane.f32.xlu0 %v5428
        %v5430 = vpop.xlane.xlu0 %5429
        %v5431 = vsel %vm663, %v5407, 0.0
        %5432 = vadd.xlane.f32.xlu0 %v5431
        %v5433 = vpop.xlane.xlu0 %5432
        %v5434 = vsel %vm663, %v5408, 0.0
        %5435 = vadd.xlane.f32.xlu0 %v5434
        %v5436 = vpop.xlane.xlu0 %5435
        %v5437 = vsel %vm663, %v5409, 0.0
        %5438 = vadd.xlane.f32.xlu0 %v5437
        %v5439 = vpop.xlane.xlu0 %5438
        %v5440 = vsel %vm663, %v5410, 0.0
        %5441 = vadd.xlane.f32.xlu0 %v5440
        %v5442 = vpop.xlane.xlu0 %5441
        %v5443 = vsel %vm663, %v5411, 0.0
        %5444 = vadd.xlane.f32.xlu0 %v5443
        %v5445 = vpop.xlane.xlu0 %5444
        %v5446 = vsel %vm663, %v5412, 0.0
        %5447 = vadd.xlane.f32.xlu0 %v5446
        %v5448 = vpop.xlane.xlu0 %5447
        %v5449 = vsel %vm663, %v5413, 0.0
        %5450 = vadd.xlane.f32.xlu0 %v5449
        %v5451 = vpop.xlane.xlu0 %5450
        %v5452 = vsel %vm663, %v5414, 0.0
        %5453 = vadd.xlane.f32.xlu0 %v5452
        %v5454 = vpop.xlane.xlu0 %5453
        %v5455 = vsel %vm663, %v5415, 0.0
        %5456 = vadd.xlane.f32.xlu0 %v5455
        %v5457 = vpop.xlane.xlu0 %5456
        %v5458 = vsel %vm663, %v5416, 0.0
        %5459 = vadd.xlane.f32.xlu0 %v5458
        %v5460 = vpop.xlane.xlu0 %5459
        %v5461 = vsel %vm663, %v5417, 0.0
        %5462 = vadd.xlane.f32.xlu0 %v5461
        %v5463 = vpop.xlane.xlu0 %5462
        %v5464 = vsel %vm663, %v5418, 0.0
        %5465 = vadd.xlane.f32.xlu0 %v5464
        %v5466 = vpop.xlane.xlu0 %5465
        %v5467 = vsel %vm663, %v5419, 0.0
        %5468 = vadd.xlane.f32.xlu0 %v5467
        %v5469 = vpop.xlane.xlu0 %5468
        %v5470 = vmul.f32 %v5424, %v4734
        %v5471 = vmul.f32 %v5427, %v4734
        %v5472 = vmul.f32 %v5430, %v4734
        %v5473 = vmul.f32 %v5433, %v4734
        %v5474 = vmul.f32 %v5436, %v4734
        %v5475 = vmul.f32 %v5439, %v4734
        %v5476 = vmul.f32 %v5442, %v4734
        %v5477 = vmul.f32 %v5445, %v4734
        %v5478 = vmul.f32 %v5448, %v4734
        %v5479 = vmul.f32 %v5451, %v4734
        %v5480 = vmul.f32 %v5454, %v4734
        %v5481 = vmul.f32 %v5457, %v4734
        %v5482 = vmul.f32 %v5460, %v4734
        %v5483 = vmul.f32 %v5463, %v4734
        %v5484 = vmul.f32 %v5466, %v4734
        %v5485 = vmul.f32 %v5469, %v4734
        %v5486 = vsub.f32 %v5404, %v5470
        %v5487 = vsub.f32 %v5405, %v5471
        %v5488 = vsub.f32 %v5406, %v5472
        %v5489 = vsub.f32 %v5407, %v5473
        %v5490 = vsub.f32 %v5408, %v5474
        %v5491 = vsub.f32 %v5409, %v5475
        %v5492 = vsub.f32 %v5410, %v5476
        %v5493 = vsub.f32 %v5411, %v5477
        %v5494 = vsub.f32 %v5412, %v5478
        %v5495 = vsub.f32 %v5413, %v5479
        %v5496 = vsub.f32 %v5414, %v5480
        %v5497 = vsub.f32 %v5415, %v5481
        %v5498 = vsub.f32 %v5416, %v5482
        %v5499 = vsub.f32 %v5417, %v5483
        %v5500 = vsub.f32 %v5418, %v5484
        %v5501 = vsub.f32 %v5419, %v5485
        %v5502 = vmul.f32 %v5486, %v5486
        %v5503 = vmul.f32 %v5487, %v5487
        %v5504 = vmul.f32 %v5488, %v5488
        %v5505 = vmul.f32 %v5489, %v5489
        %v5506 = vmul.f32 %v5490, %v5490
        %v5507 = vmul.f32 %v5491, %v5491
        %v5508 = vmul.f32 %v5492, %v5492
        %v5509 = vmul.f32 %v5493, %v5493
        %v5510 = vmul.f32 %v5494, %v5494
        %v5511 = vmul.f32 %v5495, %v5495
        %v5512 = vmul.f32 %v5496, %v5496
        %v5513 = vmul.f32 %v5497, %v5497
        %v5514 = vmul.f32 %v5498, %v5498
        %v5515 = vmul.f32 %v5499, %v5499
        %v5516 = vmul.f32 %v5500, %v5500
        %v5517 = vmul.f32 %v5501, %v5501
        %v5518 = vsel %vm663, %v5502, 0.0
        %5519 = vadd.xlane.f32.xlu0 %v5518
        %v5520 = vpop.xlane.xlu0 %5519
        %v5521 = vsel %vm663, %v5503, 0.0
        %5522 = vadd.xlane.f32.xlu0 %v5521
        %v5523 = vpop.xlane.xlu0 %5522
        %v5524 = vsel %vm663, %v5504, 0.0
        %5525 = vadd.xlane.f32.xlu0 %v5524
        %v5526 = vpop.xlane.xlu0 %5525
        %v5527 = vsel %vm663, %v5505, 0.0
        %5528 = vadd.xlane.f32.xlu0 %v5527
        %v5529 = vpop.xlane.xlu0 %5528
        %v5530 = vsel %vm663, %v5506, 0.0
        %5531 = vadd.xlane.f32.xlu0 %v5530
        %v5532 = vpop.xlane.xlu0 %5531
        %v5533 = vsel %vm663, %v5507, 0.0
        %5534 = vadd.xlane.f32.xlu0 %v5533
        %v5535 = vpop.xlane.xlu0 %5534
        %v5536 = vsel %vm663, %v5508, 0.0
        %5537 = vadd.xlane.f32.xlu0 %v5536
        %v5538 = vpop.xlane.xlu0 %5537
        %v5539 = vsel %vm663, %v5509, 0.0
        %5540 = vadd.xlane.f32.xlu0 %v5539
        %v5541 = vpop.xlane.xlu0 %5540
        %v5542 = vsel %vm663, %v5510, 0.0
        %5543 = vadd.xlane.f32.xlu0 %v5542
        %v5544 = vpop.xlane.xlu0 %5543
        %v5545 = vsel %vm663, %v5511, 0.0
        %5546 = vadd.xlane.f32.xlu0 %v5545
        %v5547 = vpop.xlane.xlu0 %5546
        %v5548 = vsel %vm663, %v5512, 0.0
        %5549 = vadd.xlane.f32.xlu0 %v5548
        %v5550 = vpop.xlane.xlu0 %5549
        %v5551 = vsel %vm663, %v5513, 0.0
        %5552 = vadd.xlane.f32.xlu0 %v5551
        %v5553 = vpop.xlane.xlu0 %5552
        %v5554 = vsel %vm663, %v5514, 0.0
        %5555 = vadd.xlane.f32.xlu0 %v5554
        %v5556 = vpop.xlane.xlu0 %5555
        %v5557 = vsel %vm663, %v5515, 0.0
        %5558 = vadd.xlane.f32.xlu0 %v5557
        %v5559 = vpop.xlane.xlu0 %5558
        %v5560 = vsel %vm663, %v5516, 0.0
        %5561 = vadd.xlane.f32.xlu0 %v5560
        %v5562 = vpop.xlane.xlu0 %5561
        %v5563 = vsel %vm663, %v5517, 0.0
        %5564 = vadd.xlane.f32.xlu0 %v5563
        %v5565 = vpop.xlane.xlu0 %5564
        %v5566 = vmul.f32 %v5520, %v4734
        %v5567 = vmul.f32 %v5523, %v4734
        %v5568 = vmul.f32 %v5526, %v4734
        %v5569 = vmul.f32 %v5529, %v4734
        %v5570 = vmul.f32 %v5532, %v4734
        %v5571 = vmul.f32 %v5535, %v4734
        %v5572 = vmul.f32 %v5538, %v4734
        %v5573 = vmul.f32 %v5541, %v4734
        %v5574 = vmul.f32 %v5544, %v4734
        %v5575 = vmul.f32 %v5547, %v4734
        %v5576 = vmul.f32 %v5550, %v4734
        %v5577 = vmul.f32 %v5553, %v4734
        %v5578 = vmul.f32 %v5556, %v4734
        %v5579 = vmul.f32 %v5559, %v4734
        %v5580 = vmul.f32 %v5562, %v4734
        %v5581 = vmul.f32 %v5565, %v4734
        %v5582 = vadd.f32 %v5566, 1e-12
        %v5583 = vadd.f32 %v5567, 1e-12
        %v5584 = vadd.f32 %v5568, 1e-12
        %v5585 = vadd.f32 %v5569, 1e-12
        %v5586 = vadd.f32 %v5570, 1e-12
        %v5587 = vadd.f32 %v5571, 1e-12
        %v5588 = vadd.f32 %v5572, 1e-12
        %v5589 = vadd.f32 %v5573, 1e-12
        %v5590 = vadd.f32 %v5574, 1e-12
        %v5591 = vadd.f32 %v5575, 1e-12
        %v5592 = vadd.f32 %v5576, 1e-12
        %v5593 = vadd.f32 %v5577, 1e-12
        %v5594 = vadd.f32 %v5578, 1e-12
        %v5595 = vadd.f32 %v5579, 1e-12
        %v5596 = vadd.f32 %v5580, 1e-12
        %v5597 = vadd.f32 %v5581, 1e-12
        %v5598 = vrsqrt.pop %v5582
        %v5599 = vrsqrt.pop %v5583
        %v5600 = vrsqrt.pop %v5584
        %v5601 = vrsqrt.pop %v5585
        %v5602 = vrsqrt.pop %v5586
        %v5603 = vrsqrt.pop %v5587
        %v5604 = vrsqrt.pop %v5588
        %v5605 = vrsqrt.pop %v5589
        %v5606 = vrsqrt.pop %v5590
        %v5607 = vrsqrt.pop %v5591
        %v5608 = vrsqrt.pop %v5592
        %v5609 = vrsqrt.pop %v5593
        %v5610 = vrsqrt.pop %v5594
        %v5611 = vrsqrt.pop %v5595
        %v5612 = vrsqrt.pop %v5596
        %v5613 = vrsqrt.pop %v5597
        %v5614 = vmul.f32 %v5486, %v5598
        %v5615 = vmul.f32 %v5487, %v5599
        %v5616 = vmul.f32 %v5488, %v5600
        %v5617 = vmul.f32 %v5489, %v5601
        %v5618 = vmul.f32 %v5490, %v5602
        %v5619 = vmul.f32 %v5491, %v5603
        %v5620 = vmul.f32 %v5492, %v5604
        %v5621 = vmul.f32 %v5493, %v5605
        %v5622 = vmul.f32 %v5494, %v5606
        %v5623 = vmul.f32 %v5495, %v5607
        %v5624 = vmul.f32 %v5496, %v5608
        %v5625 = vmul.f32 %v5497, %v5609
        %v5626 = vmul.f32 %v5498, %v5610
        %v5627 = vmul.f32 %v5499, %v5611
        %v5628 = vmul.f32 %v5500, %v5612
        %v5629 = vmul.f32 %v5501, %v5613
        %v5631 = vlaneseq
        %v5632 = vshrl.u32 %v5631, 7
        %v5633 = vsub.s32 0, %v5632
        %v5634 = vrot.slane %v5420, %v5633
        %v5636 = vmul.f32 %v5614, %v5634
        %v5637 = vmul.f32 %v5615, %v5634
        %v5638 = vmul.f32 %v5616, %v5634
        %v5639 = vmul.f32 %v5617, %v5634
        %v5640 = vmul.f32 %v5618, %v5634
        %v5641 = vmul.f32 %v5619, %v5634
        %v5642 = vmul.f32 %v5620, %v5634
        %v5643 = vmul.f32 %v5621, %v5634
        %v5644 = vmul.f32 %v5622, %v5634
        %v5645 = vmul.f32 %v5623, %v5634
        %v5646 = vmul.f32 %v5624, %v5634
        %v5647 = vmul.f32 %v5625, %v5634
        %v5648 = vmul.f32 %v5626, %v5634
        %v5649 = vmul.f32 %v5627, %v5634
        %v5650 = vmul.f32 %v5628, %v5634
        %v5651 = vmul.f32 %v5629, %v5634
        %v5653 = vlaneseq
        %v5654 = vshrl.u32 %v5653, 7
        %v5655 = vsub.s32 0, %v5654
        %v5656 = vrot.slane %v5421, %v5655
        %v5658 = vadd.f32 %v5636, %v5656
        %v5659 = vadd.f32 %v5637, %v5656
        %v5660 = vadd.f32 %v5638, %v5656
        %v5661 = vadd.f32 %v5639, %v5656
        %v5662 = vadd.f32 %v5640, %v5656
        %v5663 = vadd.f32 %v5641, %v5656
        %v5664 = vadd.f32 %v5642, %v5656
        %v5665 = vadd.f32 %v5643, %v5656
        %v5666 = vadd.f32 %v5644, %v5656
        %v5667 = vadd.f32 %v5645, %v5656
        %v5668 = vadd.f32 %v5646, %v5656
        %v5669 = vadd.f32 %v5647, %v5656
        %v5670 = vadd.f32 %v5648, %v5656
        %v5671 = vadd.f32 %v5649, %v5656
        %v5672 = vadd.f32 %v5650, %v5656
        %v5673 = vadd.f32 %v5651, %v5656
        %v5674 = vpack.c.bf16 %v5659, %v5658
        %v5675 = vpack.c.bf16 %v5661, %v5660
        %v5676 = vpack.c.bf16 %v5663, %v5662
        %v5677 = vpack.c.bf16 %v5665, %v5664
        %v5678 = vpack.c.bf16 %v5667, %v5666
        %v5679 = vpack.c.bf16 %v5669, %v5668
        %v5680 = vpack.c.bf16 %v5671, %v5670
        %v5681 = vpack.c.bf16 %v5673, %v5672
        %s5682 = scalar_lea.vmem %s2, 16
        %v5683 = vld [vmem:[%s5682] sm:$0xf]
        %v5684 = vld [vmem:[%s5682 + $0x4] sm:$0xf]
        %v5685 = vld [vmem:[%s5682 + $0x8] sm:$0xf]
        %v5686 = vld [vmem:[%s5682 + $0xc] sm:$0xf]
        %s5687 = scalar_lea.vmem %s3, 1
        %v5688 = vld [vmem:[%s5687] sm:$0x1]
        %v5690 = vlaneseq
        %v5691 = vshrl.u32 %v5690, 7
        %v5692 = vsub.s32 0, %v5691
        %v5693 = vrot.slane %v5688, %v5692
        %v5699 = vunpack.c.l.b16 %v5683
        %v5700 = vunpack.c.l.b16 %v5684
        %v5701 = vunpack.c.l.b16 %v5685
        %v5702 = vunpack.c.l.b16 %v5686
        %v5703 = vpack.c.b16 %v5700, %v5699
        %v5704 = vpack.c.b16 %v5702, %v5701
        %v5708 = vsel %vm663, %v5674, 0
        %v5711 = vsel %vm663, %v5675, 0
        %v5714 = vsel %vm663, %v5676, 0
        %v5717 = vsel %vm663, %v5677, 0
        %v5720 = vsel %vm663, %v5678, 0
        %v5723 = vsel %vm663, %v5679, 0
        %v5726 = vsel %vm663, %v5680, 0
        %v5729 = vsel %vm663, %v5681, 0
        %5731 = vmatprep.subr.bf16.mxu0 0
        %5732 = vmatpush1.bf16.msra.mxu0 0
        %5733 = vmatprep.subr.bf16.mxu0 0
        %5734 = vmatpush1.bf16.msra.mxu0 0
        %5735 = vmatprep.subr.bf16.mxu0 0
        %5736 = vmatpush1.bf16.msra.mxu0 0
        %5737 = vmatprep.subr.bf16.mxu0 0
        %5738 = vmatpush1.bf16.msra.mxu0 0
        %5739 = vmatprep.subr.bf16.mxu0 0
        %5740 = vmatpush1.bf16.msra.mxu0 0
        %5741 = vmatprep.subr.bf16.mxu0 0
        %5742 = vmatpush1.bf16.msra.mxu0 0
        %5743 = vmatprep.subr.bf16.mxu0 0
        %5744 = vmatpush1.bf16.msra.mxu0 %v5704
        %5745 = vmatprep.subr.bf16.mxu0 0
        %5746 = vmatpush1.bf16.msra.mxu0 %v5703
        %5747 = vmatprep.subr.bf16.mxu0 0
        %5748 = vmatpush2.bf16.msra.mxu0 0
        %5749 = vmatprep.subr.bf16.mxu0 0
        %5750 = vmatpush2.bf16.msra.mxu0 0
        %5751 = vmatprep.subr.bf16.mxu0 0
        %5752 = vmatpush2.bf16.msra.mxu0 0
        %5753 = vmatprep.subr.bf16.mxu0 0
        %5754 = vmatpush2.bf16.msra.mxu0 0
        %5755 = vmatprep.subr.bf16.mxu0 0
        %5756 = vmatpush2.bf16.msra.mxu0 0
        %5757 = vmatprep.subr.bf16.mxu0 0
        %5758 = vmatpush2.bf16.msra.mxu0 0
        %5759 = vmatprep.subr.bf16.mxu0 0
        %5760 = vmatpush2.bf16.msra.mxu0 0
        %5761 = vmatprep.subr.bf16.mxu0 0
        %5762 = vmatpush2.bf16.msra.mxu0 0
        %5763 = vmatprep.mubr.bf16.mxu0 0
        %5764 = vmatmul.mubr.bf16.gmra.mxu0 %v5708
        %v5765 = vpop.f32.mrf.mxu0
        %v5766 = vadd.f32 %v5693, %v5765
        %v5767 = vpop.f32.mrf.mxu0
        %v5768 = vpop.f32.mrf.mxu0
        %v5769 = vadd.f32 %v5693, %v5768
        %v5770 = vpop.f32.mrf.mxu0
        %5771 = vmatprep.mubr.bf16.mxu0 0
        %5772 = vmatmul.mubr.bf16.gmra.mxu0 %v5711
        %v5773 = vpop.f32.mrf.mxu0
        %v5774 = vadd.f32 %v5693, %v5773
        %v5775 = vpop.f32.mrf.mxu0
        %v5776 = vpop.f32.mrf.mxu0
        %v5777 = vadd.f32 %v5693, %v5776
        %v5778 = vpop.f32.mrf.mxu0
        %5779 = vmatprep.mubr.bf16.mxu0 0
        %5780 = vmatmul.mubr.bf16.gmra.mxu0 %v5714
        %v5781 = vpop.f32.mrf.mxu0
        %v5782 = vadd.f32 %v5693, %v5781
        %v5783 = vpop.f32.mrf.mxu0
        %v5784 = vpop.f32.mrf.mxu0
        %v5785 = vadd.f32 %v5693, %v5784
        %v5786 = vpop.f32.mrf.mxu0
        %5787 = vmatprep.mubr.bf16.mxu0 0
        %5788 = vmatmul.mubr.bf16.gmra.mxu0 %v5717
        %v5789 = vpop.f32.mrf.mxu0
        %v5790 = vadd.f32 %v5693, %v5789
        %v5791 = vpop.f32.mrf.mxu0
        %v5792 = vpop.f32.mrf.mxu0
        %v5793 = vadd.f32 %v5693, %v5792
        %v5794 = vpop.f32.mrf.mxu0
        %5795 = vmatprep.mubr.bf16.mxu0 0
        %5796 = vmatmul.mubr.bf16.gmra.mxu0 %v5720
        %v5797 = vpop.f32.mrf.mxu0
        %v5798 = vadd.f32 %v5693, %v5797
        %v5799 = vpop.f32.mrf.mxu0
        %v5800 = vpop.f32.mrf.mxu0
        %v5801 = vadd.f32 %v5693, %v5800
        %v5802 = vpop.f32.mrf.mxu0
        %5803 = vmatprep.mubr.bf16.mxu0 0
        %5804 = vmatmul.mubr.bf16.gmra.mxu0 %v5723
        %v5805 = vpop.f32.mrf.mxu0
        %v5806 = vadd.f32 %v5693, %v5805
        %v5807 = vpop.f32.mrf.mxu0
        %v5808 = vpop.f32.mrf.mxu0
        %v5809 = vadd.f32 %v5693, %v5808
        %v5810 = vpop.f32.mrf.mxu0
        %5811 = vmatprep.mubr.bf16.mxu0 0
        %5812 = vmatmul.mubr.bf16.gmra.mxu0 %v5726
        %v5813 = vpop.f32.mrf.mxu0
        %v5814 = vadd.f32 %v5693, %v5813
        %v5815 = vpop.f32.mrf.mxu0
        %v5816 = vpop.f32.mrf.mxu0
        %v5817 = vadd.f32 %v5693, %v5816
        %v5818 = vpop.f32.mrf.mxu0
        %5819 = vmatprep.mubr.bf16.mxu0 0
        %5820 = vmatmul.mubr.bf16.gmra.mxu0 %v5729
        %v5821 = vpop.f32.mrf.mxu0
        %v5822 = vadd.f32 %v5693, %v5821
        %v5823 = vpop.f32.mrf.mxu0
        %v5824 = vpop.f32.mrf.mxu0
        %v5825 = vadd.f32 %v5693, %v5824
        %v5826 = vpop.f32.mrf.mxu0
        %5827 = vdwg.mxu0
        %5844 = vrot.lane.b32.xlu0 %v5766, 112
        %v5845 = vpop.permute.xlu0 %5844
        %5846 = vrot.lane.b32.xlu0 %v5769, 112
        %v5847 = vpop.permute.xlu0 %5846
        %5848 = vrot.lane.b32.xlu0 %v5774, 112
        %v5849 = vpop.permute.xlu0 %5848
        %5850 = vrot.lane.b32.xlu0 %v5777, 112
        %v5851 = vpop.permute.xlu0 %5850
        %5852 = vrot.lane.b32.xlu0 %v5782, 112
        %v5853 = vpop.permute.xlu0 %5852
        %5854 = vrot.lane.b32.xlu0 %v5785, 112
        %v5855 = vpop.permute.xlu0 %5854
        %5856 = vrot.lane.b32.xlu0 %v5790, 112
        %v5857 = vpop.permute.xlu0 %5856
        %5858 = vrot.lane.b32.xlu0 %v5793, 112
        %v5859 = vpop.permute.xlu0 %5858
        %5860 = vrot.lane.b32.xlu0 %v5798, 112
        %v5861 = vpop.permute.xlu0 %5860
        %5862 = vrot.lane.b32.xlu0 %v5801, 112
        %v5863 = vpop.permute.xlu0 %5862
        %5864 = vrot.lane.b32.xlu0 %v5806, 112
        %v5865 = vpop.permute.xlu0 %5864
        %5866 = vrot.lane.b32.xlu0 %v5809, 112
        %v5867 = vpop.permute.xlu0 %5866
        %5868 = vrot.lane.b32.xlu0 %v5814, 112
        %v5869 = vpop.permute.xlu0 %5868
        %5870 = vrot.lane.b32.xlu0 %v5817, 112
        %v5871 = vpop.permute.xlu0 %5870
        %5872 = vrot.lane.b32.xlu0 %v5822, 112
        %v5873 = vpop.permute.xlu0 %5872
        %5874 = vrot.lane.b32.xlu0 %v5825, 112
        %v5875 = vpop.permute.xlu0 %5874
        %v5892 = vpack.c.bf16 %v5766, %v5766
        %v5893 = vpack.c.bf16 %v5769, %v5769
        %v5894 = vpack.c.bf16 %v5774, %v5774
        %v5895 = vpack.c.bf16 %v5777, %v5777
        %v5896 = vpack.c.bf16 %v5782, %v5782
        %v5897 = vpack.c.bf16 %v5785, %v5785
        %v5898 = vpack.c.bf16 %v5790, %v5790
        %v5899 = vpack.c.bf16 %v5793, %v5793
        %v5900 = vpack.c.bf16 %v5798, %v5798
        %v5901 = vpack.c.bf16 %v5801, %v5801
        %v5902 = vpack.c.bf16 %v5806, %v5806
        %v5903 = vpack.c.bf16 %v5809, %v5809
        %v5904 = vpack.c.bf16 %v5814, %v5814
        %v5905 = vpack.c.bf16 %v5817, %v5817
        %v5906 = vpack.c.bf16 %v5822, %v5822
        %v5907 = vpack.c.bf16 %v5825, %v5825
        %v5908 = vpack.c.bf16 %v5845, %v5845
        %v5909 = vpack.c.bf16 %v5847, %v5847
        %v5910 = vpack.c.bf16 %v5849, %v5849
        %v5911 = vpack.c.bf16 %v5851, %v5851
        %v5912 = vpack.c.bf16 %v5853, %v5853
        %v5913 = vpack.c.bf16 %v5855, %v5855
        %v5914 = vpack.c.bf16 %v5857, %v5857
        %v5915 = vpack.c.bf16 %v5859, %v5859
        %v5916 = vpack.c.bf16 %v5861, %v5861
        %v5917 = vpack.c.bf16 %v5863, %v5863
        %v5918 = vpack.c.bf16 %v5865, %v5865
        %v5919 = vpack.c.bf16 %v5867, %v5867
        %v5920 = vpack.c.bf16 %v5869, %v5869
        %v5921 = vpack.c.bf16 %v5871, %v5871
        %v5922 = vpack.c.bf16 %v5873, %v5873
        %v5923 = vpack.c.bf16 %v5875, %v5875
        %5925 = vrot.lane.b32.xlu0 %v5892, 96
        %v5926 = vpop.permute.xlu0 %5925
        %v5928 = vsel %vm884, %v5892, 0
        %v5931 = vsel %vm884, %v5926, 0
        %5933 = vmatprep.subr.bf16.mxu0 0
        %5934 = vmatpush1.bf16.xpose.msra.mxu0 0
        %5935 = vmatprep.subr.bf16.mxu0 0
        %5936 = vmatpush1.bf16.xpose.msra.mxu0 0
        %5937 = vmatprep.subr.bf16.mxu0 0
        %5938 = vmatpush1.bf16.xpose.msra.mxu0 0
        %5939 = vmatprep.subr.bf16.mxu0 0
        %5940 = vmatpush1.bf16.xpose.msra.mxu0 0
        %5941 = vmatprep.subr.bf16.mxu0 0
        %5942 = vmatpush1.bf16.xpose.msra.mxu0 0
        %5943 = vmatprep.subr.bf16.mxu0 0
        %5944 = vmatpush1.bf16.xpose.msra.mxu0 0
        %5945 = vmatprep.subr.bf16.mxu0 0
        %5946 = vmatpush1.bf16.xpose.msra.mxu0 0
        %5947 = vmatprep.subr.bf16.mxu0 0
        %5948 = vmatpush1.bf16.xpose.msra.mxu0 %v5931
        %5949 = vmatprep.subr.bf16.mxu0 0
        %5950 = vmatpush2.bf16.xpose.msra.mxu0 0
        %5951 = vmatprep.subr.bf16.mxu0 0
        %5952 = vmatpush2.bf16.xpose.msra.mxu0 0
        %5953 = vmatprep.subr.bf16.mxu0 0
        %5954 = vmatpush2.bf16.xpose.msra.mxu0 0
        %5955 = vmatprep.subr.bf16.mxu0 0
        %5956 = vmatpush2.bf16.xpose.msra.mxu0 0
        %5957 = vmatprep.subr.bf16.mxu0 0
        %5958 = vmatpush2.bf16.xpose.msra.mxu0 0
        %5959 = vmatprep.subr.bf16.mxu0 0
        %5960 = vmatpush2.bf16.xpose.msra.mxu0 0
        %5961 = vmatprep.subr.bf16.mxu0 0
        %5962 = vmatpush2.bf16.xpose.msra.mxu0 0
        %5963 = vmatprep.subr.bf16.mxu0 0
        %5964 = vmatpush2.bf16.xpose.msra.mxu0 0
        %5965 = vmatprep.mubr.bf16.mxu0 0
        %5966 = vmatmul.mubr.bf16.gmra.mxu0 %v5928
        %v5967 = vpop.f32.mrf.mxu0
        %v5968 = vadd.f32 0.0, %v5967
        %v5969 = vpop.f32.mrf.mxu0
        %v5970 = vpop.f32.mrf.mxu0
        %v5971 = vpop.f32.mrf.mxu0
        %5972 = vdwg.mxu0
        %5974 = vrot.lane.b32.xlu0 %v5893, 96
        %v5975 = vpop.permute.xlu0 %5974
        %v5977 = vsel %vm884, %v5893, 0
        %v5980 = vsel %vm884, %v5975, 0
        %5982 = vmatprep.subr.bf16.mxu0 0
        %5983 = vmatpush1.bf16.xpose.msra.mxu0 0
        %5984 = vmatprep.subr.bf16.mxu0 0
        %5985 = vmatpush1.bf16.xpose.msra.mxu0 0
        %5986 = vmatprep.subr.bf16.mxu0 0
        %5987 = vmatpush1.bf16.xpose.msra.mxu0 0
        %5988 = vmatprep.subr.bf16.mxu0 0
        %5989 = vmatpush1.bf16.xpose.msra.mxu0 0
        %5990 = vmatprep.subr.bf16.mxu0 0
        %5991 = vmatpush1.bf16.xpose.msra.mxu0 0
        %5992 = vmatprep.subr.bf16.mxu0 0
        %5993 = vmatpush1.bf16.xpose.msra.mxu0 0
        %5994 = vmatprep.subr.bf16.mxu0 0
        %5995 = vmatpush1.bf16.xpose.msra.mxu0 0
        %5996 = vmatprep.subr.bf16.mxu0 0
        %5997 = vmatpush1.bf16.xpose.msra.mxu0 %v5980
        %5998 = vmatprep.subr.bf16.mxu0 0
        %5999 = vmatpush2.bf16.xpose.msra.mxu0 0
        %6000 = vmatprep.subr.bf16.mxu0 0
        %6001 = vmatpush2.bf16.xpose.msra.mxu0 0
        %6002 = vmatprep.subr.bf16.mxu0 0
        %6003 = vmatpush2.bf16.xpose.msra.mxu0 0
        %6004 = vmatprep.subr.bf16.mxu0 0
        %6005 = vmatpush2.bf16.xpose.msra.mxu0 0
        %6006 = vmatprep.subr.bf16.mxu0 0
        %6007 = vmatpush2.bf16.xpose.msra.mxu0 0
        %6008 = vmatprep.subr.bf16.mxu0 0
        %6009 = vmatpush2.bf16.xpose.msra.mxu0 0
        %6010 = vmatprep.subr.bf16.mxu0 0
        %6011 = vmatpush2.bf16.xpose.msra.mxu0 0
        %6012 = vmatprep.subr.bf16.mxu0 0
        %6013 = vmatpush2.bf16.xpose.msra.mxu0 0
        %6014 = vmatprep.mubr.bf16.mxu0 0
        %6015 = vmatmul.mubr.bf16.gmra.mxu0 %v5977
        %v6016 = vpop.f32.mrf.mxu0
        %v6017 = vadd.f32 0.0, %v6016
        %v6018 = vpop.f32.mrf.mxu0
        %v6019 = vpop.f32.mrf.mxu0
        %v6020 = vpop.f32.mrf.mxu0
        %6021 = vdwg.mxu0
        %6023 = vrot.lane.b32.xlu0 %v5894, 96
        %v6024 = vpop.permute.xlu0 %6023
        %v6026 = vsel %vm884, %v5894, 0
        %v6029 = vsel %vm884, %v6024, 0
        %6031 = vmatprep.subr.bf16.mxu0 0
        %6032 = vmatpush1.bf16.xpose.msra.mxu0 0
        %6033 = vmatprep.subr.bf16.mxu0 0
        %6034 = vmatpush1.bf16.xpose.msra.mxu0 0
        %6035 = vmatprep.subr.bf16.mxu0 0
        %6036 = vmatpush1.bf16.xpose.msra.mxu0 0
        %6037 = vmatprep.subr.bf16.mxu0 0
        %6038 = vmatpush1.bf16.xpose.msra.mxu0 0
        %6039 = vmatprep.subr.bf16.mxu0 0
        %6040 = vmatpush1.bf16.xpose.msra.mxu0 0
        %6041 = vmatprep.subr.bf16.mxu0 0
        %6042 = vmatpush1.bf16.xpose.msra.mxu0 0
        %6043 = vmatprep.subr.bf16.mxu0 0
        %6044 = vmatpush1.bf16.xpose.msra.mxu0 0
        %6045 = vmatprep.subr.bf16.mxu0 0
        %6046 = vmatpush1.bf16.xpose.msra.mxu0 %v6029
        %6047 = vmatprep.subr.bf16.mxu0 0
        %6048 = vmatpush2.bf16.xpose.msra.mxu0 0
        %6049 = vmatprep.subr.bf16.mxu0 0
        %6050 = vmatpush2.bf16.xpose.msra.mxu0 0
        %6051 = vmatprep.subr.bf16.mxu0 0
        %6052 = vmatpush2.bf16.xpose.msra.mxu0 0
        %6053 = vmatprep.subr.bf16.mxu0 0
        %6054 = vmatpush2.bf16.xpose.msra.mxu0 0
        %6055 = vmatprep.subr.bf16.mxu0 0
        %6056 = vmatpush2.bf16.xpose.msra.mxu0 0
        %6057 = vmatprep.subr.bf16.mxu0 0
        %6058 = vmatpush2.bf16.xpose.msra.mxu0 0
        %6059 = vmatprep.subr.bf16.mxu0 0
        %6060 = vmatpush2.bf16.xpose.msra.mxu0 0
        %6061 = vmatprep.subr.bf16.mxu0 0
        %6062 = vmatpush2.bf16.xpose.msra.mxu0 0
        %6063 = vmatprep.mubr.bf16.mxu0 0
        %6064 = vmatmul.mubr.bf16.gmra.mxu0 %v6026
        %v6065 = vpop.f32.mrf.mxu0
        %v6066 = vadd.f32 0.0, %v6065
        %v6067 = vpop.f32.mrf.mxu0
        %v6068 = vpop.f32.mrf.mxu0
        %v6069 = vpop.f32.mrf.mxu0
        %6070 = vdwg.mxu0
        %6072 = vrot.lane.b32.xlu0 %v5895, 96
        %v6073 = vpop.permute.xlu0 %6072
        %v6075 = vsel %vm884, %v5895, 0
        %v6078 = vsel %vm884, %v6073, 0
        %6080 = vmatprep.subr.bf16.mxu0 0
        %6081 = vmatpush1.bf16.xpose.msra.mxu0 0
        %6082 = vmatprep.subr.bf16.mxu0 0
        %6083 = vmatpush1.bf16.xpose.msra.mxu0 0
        %6084 = vmatprep.subr.bf16.mxu0 0
        %6085 = vmatpush1.bf16.xpose.msra.mxu0 0
        %6086 = vmatprep.subr.bf16.mxu0 0
        %6087 = vmatpush1.bf16.xpose.msra.mxu0 0
        %6088 = vmatprep.subr.bf16.mxu0 0
        %6089 = vmatpush1.bf16.xpose.msra.mxu0 0
        %6090 = vmatprep.subr.bf16.mxu0 0
        %6091 = vmatpush1.bf16.xpose.msra.mxu0 0
        %6092 = vmatprep.subr.bf16.mxu0 0
        %6093 = vmatpush1.bf16.xpose.msra.mxu0 0
        %6094 = vmatprep.subr.bf16.mxu0 0
        %6095 = vmatpush1.bf16.xpose.msra.mxu0 %v6078
        %6096 = vmatprep.subr.bf16.mxu0 0
        %6097 = vmatpush2.bf16.xpose.msra.mxu0 0
        %6098 = vmatprep.subr.bf16.mxu0 0
        %6099 = vmatpush2.bf16.xpose.msra.mxu0 0
        %6100 = vmatprep.subr.bf16.mxu0 0
        %6101 = vmatpush2.bf16.xpose.msra.mxu0 0
        %6102 = vmatprep.subr.bf16.mxu0 0
        %6103 = vmatpush2.bf16.xpose.msra.mxu0 0
        %6104 = vmatprep.subr.bf16.mxu0 0
        %6105 = vmatpush2.bf16.xpose.msra.mxu0 0
        %6106 = vmatprep.subr.bf16.mxu0 0
        %6107 = vmatpush2.bf16.xpose.msra.mxu0 0
        %6108 = vmatprep.subr.bf16.mxu0 0
        %6109 = vmatpush2.bf16.xpose.msra.mxu0 0
        %6110 = vmatprep.subr.bf16.mxu0 0
        %6111 = vmatpush2.bf16.xpose.msra.mxu0 0
        %6112 = vmatprep.mubr.bf16.mxu0 0
        %6113 = vmatmul.mubr.bf16.gmra.mxu0 %v6075
        %v6114 = vpop.f32.mrf.mxu0
        %v6115 = vadd.f32 0.0, %v6114
        %v6116 = vpop.f32.mrf.mxu0
        %v6117 = vpop.f32.mrf.mxu0
        %v6118 = vpop.f32.mrf.mxu0
        %6119 = vdwg.mxu0
        %6121 = vrot.lane.b32.xlu0 %v5896, 96
        %v6122 = vpop.permute.xlu0 %6121
        %v6124 = vsel %vm884, %v5896, 0
        %v6127 = vsel %vm884, %v6122, 0
        %6129 = vmatprep.subr.bf16.mxu0 0
        %6130 = vmatpush1.bf16.xpose.msra.mxu0 0
        %6131 = vmatprep.subr.bf16.mxu0 0
        %6132 = vmatpush1.bf16.xpose.msra.mxu0 0
        %6133 = vmatprep.subr.bf16.mxu0 0
        %6134 = vmatpush1.bf16.xpose.msra.mxu0 0
        %6135 = vmatprep.subr.bf16.mxu0 0
        %6136 = vmatpush1.bf16.xpose.msra.mxu0 0
        %6137 = vmatprep.subr.bf16.mxu0 0
        %6138 = vmatpush1.bf16.xpose.msra.mxu0 0
        %6139 = vmatprep.subr.bf16.mxu0 0
        %6140 = vmatpush1.bf16.xpose.msra.mxu0 0
        %6141 = vmatprep.subr.bf16.mxu0 0
        %6142 = vmatpush1.bf16.xpose.msra.mxu0 0
        %6143 = vmatprep.subr.bf16.mxu0 0
        %6144 = vmatpush1.bf16.xpose.msra.mxu0 %v6127
        %6145 = vmatprep.subr.bf16.mxu0 0
        %6146 = vmatpush2.bf16.xpose.msra.mxu0 0
        %6147 = vmatprep.subr.bf16.mxu0 0
        %6148 = vmatpush2.bf16.xpose.msra.mxu0 0
        %6149 = vmatprep.subr.bf16.mxu0 0
        %6150 = vmatpush2.bf16.xpose.msra.mxu0 0
        %6151 = vmatprep.subr.bf16.mxu0 0
        %6152 = vmatpush2.bf16.xpose.msra.mxu0 0
        %6153 = vmatprep.subr.bf16.mxu0 0
        %6154 = vmatpush2.bf16.xpose.msra.mxu0 0
        %6155 = vmatprep.subr.bf16.mxu0 0
        %6156 = vmatpush2.bf16.xpose.msra.mxu0 0
        %6157 = vmatprep.subr.bf16.mxu0 0
        %6158 = vmatpush2.bf16.xpose.msra.mxu0 0
        %6159 = vmatprep.subr.bf16.mxu0 0
        %6160 = vmatpush2.bf16.xpose.msra.mxu0 0
        %6161 = vmatprep.mubr.bf16.mxu0 0
        %6162 = vmatmul.mubr.bf16.gmra.mxu0 %v6124
        %v6163 = vpop.f32.mrf.mxu0
        %v6164 = vadd.f32 0.0, %v6163
        %v6165 = vpop.f32.mrf.mxu0
        %v6166 = vpop.f32.mrf.mxu0
        %v6167 = vpop.f32.mrf.mxu0
        %6168 = vdwg.mxu0
        %6170 = vrot.lane.b32.xlu0 %v5897, 96
        %v6171 = vpop.permute.xlu0 %6170
        %v6173 = vsel %vm884, %v5897, 0
        %v6176 = vsel %vm884, %v6171, 0
        %6178 = vmatprep.subr.bf16.mxu0 0
        %6179 = vmatpush1.bf16.xpose.msra.mxu0 0
        %6180 = vmatprep.subr.bf16.mxu0 0
        %6181 = vmatpush1.bf16.xpose.msra.mxu0 0
        %6182 = vmatprep.subr.bf16.mxu0 0
        %6183 = vmatpush1.bf16.xpose.msra.mxu0 0
        %6184 = vmatprep.subr.bf16.mxu0 0
        %6185 = vmatpush1.bf16.xpose.msra.mxu0 0
        %6186 = vmatprep.subr.bf16.mxu0 0
        %6187 = vmatpush1.bf16.xpose.msra.mxu0 0
        %6188 = vmatprep.subr.bf16.mxu0 0
        %6189 = vmatpush1.bf16.xpose.msra.mxu0 0
        %6190 = vmatprep.subr.bf16.mxu0 0
        %6191 = vmatpush1.bf16.xpose.msra.mxu0 0
        %6192 = vmatprep.subr.bf16.mxu0 0
        %6193 = vmatpush1.bf16.xpose.msra.mxu0 %v6176
        %6194 = vmatprep.subr.bf16.mxu0 0
        %6195 = vmatpush2.bf16.xpose.msra.mxu0 0
        %6196 = vmatprep.subr.bf16.mxu0 0
        %6197 = vmatpush2.bf16.xpose.msra.mxu0 0
        %6198 = vmatprep.subr.bf16.mxu0 0
        %6199 = vmatpush2.bf16.xpose.msra.mxu0 0
        %6200 = vmatprep.subr.bf16.mxu0 0
        %6201 = vmatpush2.bf16.xpose.msra.mxu0 0
        %6202 = vmatprep.subr.bf16.mxu0 0
        %6203 = vmatpush2.bf16.xpose.msra.mxu0 0
        %6204 = vmatprep.subr.bf16.mxu0 0
        %6205 = vmatpush2.bf16.xpose.msra.mxu0 0
        %6206 = vmatprep.subr.bf16.mxu0 0
        %6207 = vmatpush2.bf16.xpose.msra.mxu0 0
        %6208 = vmatprep.subr.bf16.mxu0 0
        %6209 = vmatpush2.bf16.xpose.msra.mxu0 0
        %6210 = vmatprep.mubr.bf16.mxu0 0
        %6211 = vmatmul.mubr.bf16.gmra.mxu0 %v6173
        %v6212 = vpop.f32.mrf.mxu0
        %v6213 = vadd.f32 0.0, %v6212
        %v6214 = vpop.f32.mrf.mxu0
        %v6215 = vpop.f32.mrf.mxu0
        %v6216 = vpop.f32.mrf.mxu0
        %6217 = vdwg.mxu0
        %6219 = vrot.lane.b32.xlu0 %v5898, 96
        %v6220 = vpop.permute.xlu0 %6219
        %v6222 = vsel %vm884, %v5898, 0
        %v6225 = vsel %vm884, %v6220, 0
        %6227 = vmatprep.subr.bf16.mxu0 0
        %6228 = vmatpush1.bf16.xpose.msra.mxu0 0
        %6229 = vmatprep.subr.bf16.mxu0 0
        %6230 = vmatpush1.bf16.xpose.msra.mxu0 0
        %6231 = vmatprep.subr.bf16.mxu0 0
        %6232 = vmatpush1.bf16.xpose.msra.mxu0 0
        %6233 = vmatprep.subr.bf16.mxu0 0
        %6234 = vmatpush1.bf16.xpose.msra.mxu0 0
        %6235 = vmatprep.subr.bf16.mxu0 0
        %6236 = vmatpush1.bf16.xpose.msra.mxu0 0
        %6237 = vmatprep.subr.bf16.mxu0 0
        %6238 = vmatpush1.bf16.xpose.msra.mxu0 0
        %6239 = vmatprep.subr.bf16.mxu0 0
        %6240 = vmatpush1.bf16.xpose.msra.mxu0 0
        %6241 = vmatprep.subr.bf16.mxu0 0
        %6242 = vmatpush1.bf16.xpose.msra.mxu0 %v6225
        %6243 = vmatprep.subr.bf16.mxu0 0
        %6244 = vmatpush2.bf16.xpose.msra.mxu0 0
        %6245 = vmatprep.subr.bf16.mxu0 0
        %6246 = vmatpush2.bf16.xpose.msra.mxu0 0
        %6247 = vmatprep.subr.bf16.mxu0 0
        %6248 = vmatpush2.bf16.xpose.msra.mxu0 0
        %6249 = vmatprep.subr.bf16.mxu0 0
        %6250 = vmatpush2.bf16.xpose.msra.mxu0 0
        %6251 = vmatprep.subr.bf16.mxu0 0
        %6252 = vmatpush2.bf16.xpose.msra.mxu0 0
        %6253 = vmatprep.subr.bf16.mxu0 0
        %6254 = vmatpush2.bf16.xpose.msra.mxu0 0
        %6255 = vmatprep.subr.bf16.mxu0 0
        %6256 = vmatpush2.bf16.xpose.msra.mxu0 0
        %6257 = vmatprep.subr.bf16.mxu0 0
        %6258 = vmatpush2.bf16.xpose.msra.mxu0 0
        %6259 = vmatprep.mubr.bf16.mxu0 0
        %6260 = vmatmul.mubr.bf16.gmra.mxu0 %v6222
        %v6261 = vpop.f32.mrf.mxu0
        %v6262 = vadd.f32 0.0, %v6261
        %v6263 = vpop.f32.mrf.mxu0
        %v6264 = vpop.f32.mrf.mxu0
        %v6265 = vpop.f32.mrf.mxu0
        %6266 = vdwg.mxu0
        %6268 = vrot.lane.b32.xlu0 %v5899, 96
        %v6269 = vpop.permute.xlu0 %6268
        %v6271 = vsel %vm884, %v5899, 0
        %v6274 = vsel %vm884, %v6269, 0
        %6276 = vmatprep.subr.bf16.mxu0 0
        %6277 = vmatpush1.bf16.xpose.msra.mxu0 0
        %6278 = vmatprep.subr.bf16.mxu0 0
        %6279 = vmatpush1.bf16.xpose.msra.mxu0 0
        %6280 = vmatprep.subr.bf16.mxu0 0
        %6281 = vmatpush1.bf16.xpose.msra.mxu0 0
        %6282 = vmatprep.subr.bf16.mxu0 0
        %6283 = vmatpush1.bf16.xpose.msra.mxu0 0
        %6284 = vmatprep.subr.bf16.mxu0 0
        %6285 = vmatpush1.bf16.xpose.msra.mxu0 0
        %6286 = vmatprep.subr.bf16.mxu0 0
        %6287 = vmatpush1.bf16.xpose.msra.mxu0 0
        %6288 = vmatprep.subr.bf16.mxu0 0
        %6289 = vmatpush1.bf16.xpose.msra.mxu0 0
        %6290 = vmatprep.subr.bf16.mxu0 0
        %6291 = vmatpush1.bf16.xpose.msra.mxu0 %v6274
        %6292 = vmatprep.subr.bf16.mxu0 0
        %6293 = vmatpush2.bf16.xpose.msra.mxu0 0
        %6294 = vmatprep.subr.bf16.mxu0 0
        %6295 = vmatpush2.bf16.xpose.msra.mxu0 0
        %6296 = vmatprep.subr.bf16.mxu0 0
        %6297 = vmatpush2.bf16.xpose.msra.mxu0 0
        %6298 = vmatprep.subr.bf16.mxu0 0
        %6299 = vmatpush2.bf16.xpose.msra.mxu0 0
        %6300 = vmatprep.subr.bf16.mxu0 0
        %6301 = vmatpush2.bf16.xpose.msra.mxu0 0
        %6302 = vmatprep.subr.bf16.mxu0 0
        %6303 = vmatpush2.bf16.xpose.msra.mxu0 0
        %6304 = vmatprep.subr.bf16.mxu0 0
        %6305 = vmatpush2.bf16.xpose.msra.mxu0 0
        %6306 = vmatprep.subr.bf16.mxu0 0
        %6307 = vmatpush2.bf16.xpose.msra.mxu0 0
        %6308 = vmatprep.mubr.bf16.mxu0 0
        %6309 = vmatmul.mubr.bf16.gmra.mxu0 %v6271
        %v6310 = vpop.f32.mrf.mxu0
        %v6311 = vadd.f32 0.0, %v6310
        %v6312 = vpop.f32.mrf.mxu0
        %v6313 = vpop.f32.mrf.mxu0
        %v6314 = vpop.f32.mrf.mxu0
        %6315 = vdwg.mxu0
        %6317 = vrot.lane.b32.xlu0 %v5900, 96
        %v6318 = vpop.permute.xlu0 %6317
        %v6320 = vsel %vm884, %v5900, 0
        %v6323 = vsel %vm884, %v6318, 0
        %6325 = vmatprep.subr.bf16.mxu0 0
        %6326 = vmatpush1.bf16.xpose.msra.mxu0 0
        %6327 = vmatprep.subr.bf16.mxu0 0
        %6328 = vmatpush1.bf16.xpose.msra.mxu0 0
        %6329 = vmatprep.subr.bf16.mxu0 0
        %6330 = vmatpush1.bf16.xpose.msra.mxu0 0
        %6331 = vmatprep.subr.bf16.mxu0 0
        %6332 = vmatpush1.bf16.xpose.msra.mxu0 0
        %6333 = vmatprep.subr.bf16.mxu0 0
        %6334 = vmatpush1.bf16.xpose.msra.mxu0 0
        %6335 = vmatprep.subr.bf16.mxu0 0
        %6336 = vmatpush1.bf16.xpose.msra.mxu0 0
        %6337 = vmatprep.subr.bf16.mxu0 0
        %6338 = vmatpush1.bf16.xpose.msra.mxu0 0
        %6339 = vmatprep.subr.bf16.mxu0 0
        %6340 = vmatpush1.bf16.xpose.msra.mxu0 %v6323
        %6341 = vmatprep.subr.bf16.mxu0 0
        %6342 = vmatpush2.bf16.xpose.msra.mxu0 0
        %6343 = vmatprep.subr.bf16.mxu0 0
        %6344 = vmatpush2.bf16.xpose.msra.mxu0 0
        %6345 = vmatprep.subr.bf16.mxu0 0
        %6346 = vmatpush2.bf16.xpose.msra.mxu0 0
        %6347 = vmatprep.subr.bf16.mxu0 0
        %6348 = vmatpush2.bf16.xpose.msra.mxu0 0
        %6349 = vmatprep.subr.bf16.mxu0 0
        %6350 = vmatpush2.bf16.xpose.msra.mxu0 0
        %6351 = vmatprep.subr.bf16.mxu0 0
        %6352 = vmatpush2.bf16.xpose.msra.mxu0 0
        %6353 = vmatprep.subr.bf16.mxu0 0
        %6354 = vmatpush2.bf16.xpose.msra.mxu0 0
        %6355 = vmatprep.subr.bf16.mxu0 0
        %6356 = vmatpush2.bf16.xpose.msra.mxu0 0
        %6357 = vmatprep.mubr.bf16.mxu0 0
        %6358 = vmatmul.mubr.bf16.gmra.mxu0 %v6320
        %v6359 = vpop.f32.mrf.mxu0
        %v6360 = vadd.f32 0.0, %v6359
        %v6361 = vpop.f32.mrf.mxu0
        %v6362 = vpop.f32.mrf.mxu0
        %v6363 = vpop.f32.mrf.mxu0
        %6364 = vdwg.mxu0
        %6366 = vrot.lane.b32.xlu0 %v5901, 96
        %v6367 = vpop.permute.xlu0 %6366
        %v6369 = vsel %vm884, %v5901, 0
        %v6372 = vsel %vm884, %v6367, 0
        %6374 = vmatprep.subr.bf16.mxu0 0
        %6375 = vmatpush1.bf16.xpose.msra.mxu0 0
        %6376 = vmatprep.subr.bf16.mxu0 0
        %6377 = vmatpush1.bf16.xpose.msra.mxu0 0
        %6378 = vmatprep.subr.bf16.mxu0 0
        %6379 = vmatpush1.bf16.xpose.msra.mxu0 0
        %6380 = vmatprep.subr.bf16.mxu0 0
        %6381 = vmatpush1.bf16.xpose.msra.mxu0 0
        %6382 = vmatprep.subr.bf16.mxu0 0
        %6383 = vmatpush1.bf16.xpose.msra.mxu0 0
        %6384 = vmatprep.subr.bf16.mxu0 0
        %6385 = vmatpush1.bf16.xpose.msra.mxu0 0
        %6386 = vmatprep.subr.bf16.mxu0 0
        %6387 = vmatpush1.bf16.xpose.msra.mxu0 0
        %6388 = vmatprep.subr.bf16.mxu0 0
        %6389 = vmatpush1.bf16.xpose.msra.mxu0 %v6372
        %6390 = vmatprep.subr.bf16.mxu0 0
        %6391 = vmatpush2.bf16.xpose.msra.mxu0 0
        %6392 = vmatprep.subr.bf16.mxu0 0
        %6393 = vmatpush2.bf16.xpose.msra.mxu0 0
        %6394 = vmatprep.subr.bf16.mxu0 0
        %6395 = vmatpush2.bf16.xpose.msra.mxu0 0
        %6396 = vmatprep.subr.bf16.mxu0 0
        %6397 = vmatpush2.bf16.xpose.msra.mxu0 0
        %6398 = vmatprep.subr.bf16.mxu0 0
        %6399 = vmatpush2.bf16.xpose.msra.mxu0 0
        %6400 = vmatprep.subr.bf16.mxu0 0
        %6401 = vmatpush2.bf16.xpose.msra.mxu0 0
        %6402 = vmatprep.subr.bf16.mxu0 0
        %6403 = vmatpush2.bf16.xpose.msra.mxu0 0
        %6404 = vmatprep.subr.bf16.mxu0 0
        %6405 = vmatpush2.bf16.xpose.msra.mxu0 0
        %6406 = vmatprep.mubr.bf16.mxu0 0
        %6407 = vmatmul.mubr.bf16.gmra.mxu0 %v6369
        %v6408 = vpop.f32.mrf.mxu0
        %v6409 = vadd.f32 0.0, %v6408
        %v6410 = vpop.f32.mrf.mxu0
        %v6411 = vpop.f32.mrf.mxu0
        %v6412 = vpop.f32.mrf.mxu0
        %6413 = vdwg.mxu0
        %6415 = vrot.lane.b32.xlu0 %v5902, 96
        %v6416 = vpop.permute.xlu0 %6415
        %v6418 = vsel %vm884, %v5902, 0
        %v6421 = vsel %vm884, %v6416, 0
        %6423 = vmatprep.subr.bf16.mxu0 0
        %6424 = vmatpush1.bf16.xpose.msra.mxu0 0
        %6425 = vmatprep.subr.bf16.mxu0 0
        %6426 = vmatpush1.bf16.xpose.msra.mxu0 0
        %6427 = vmatprep.subr.bf16.mxu0 0
        %6428 = vmatpush1.bf16.xpose.msra.mxu0 0
        %6429 = vmatprep.subr.bf16.mxu0 0
        %6430 = vmatpush1.bf16.xpose.msra.mxu0 0
        %6431 = vmatprep.subr.bf16.mxu0 0
        %6432 = vmatpush1.bf16.xpose.msra.mxu0 0
        %6433 = vmatprep.subr.bf16.mxu0 0
        %6434 = vmatpush1.bf16.xpose.msra.mxu0 0
        %6435 = vmatprep.subr.bf16.mxu0 0
        %6436 = vmatpush1.bf16.xpose.msra.mxu0 0
        %6437 = vmatprep.subr.bf16.mxu0 0
        %6438 = vmatpush1.bf16.xpose.msra.mxu0 %v6421
        %6439 = vmatprep.subr.bf16.mxu0 0
        %6440 = vmatpush2.bf16.xpose.msra.mxu0 0
        %6441 = vmatprep.subr.bf16.mxu0 0
        %6442 = vmatpush2.bf16.xpose.msra.mxu0 0
        %6443 = vmatprep.subr.bf16.mxu0 0
        %6444 = vmatpush2.bf16.xpose.msra.mxu0 0
        %6445 = vmatprep.subr.bf16.mxu0 0
        %6446 = vmatpush2.bf16.xpose.msra.mxu0 0
        %6447 = vmatprep.subr.bf16.mxu0 0
        %6448 = vmatpush2.bf16.xpose.msra.mxu0 0
        %6449 = vmatprep.subr.bf16.mxu0 0
        %6450 = vmatpush2.bf16.xpose.msra.mxu0 0
        %6451 = vmatprep.subr.bf16.mxu0 0
        %6452 = vmatpush2.bf16.xpose.msra.mxu0 0
        %6453 = vmatprep.subr.bf16.mxu0 0
        %6454 = vmatpush2.bf16.xpose.msra.mxu0 0
        %6455 = vmatprep.mubr.bf16.mxu0 0
        %6456 = vmatmul.mubr.bf16.gmra.mxu0 %v6418
        %v6457 = vpop.f32.mrf.mxu0
        %v6458 = vadd.f32 0.0, %v6457
        %v6459 = vpop.f32.mrf.mxu0
        %v6460 = vpop.f32.mrf.mxu0
        %v6461 = vpop.f32.mrf.mxu0
        %6462 = vdwg.mxu0
        %6464 = vrot.lane.b32.xlu0 %v5903, 96
        %v6465 = vpop.permute.xlu0 %6464
        %v6467 = vsel %vm884, %v5903, 0
        %v6470 = vsel %vm884, %v6465, 0
        %6472 = vmatprep.subr.bf16.mxu0 0
        %6473 = vmatpush1.bf16.xpose.msra.mxu0 0
        %6474 = vmatprep.subr.bf16.mxu0 0
        %6475 = vmatpush1.bf16.xpose.msra.mxu0 0
        %6476 = vmatprep.subr.bf16.mxu0 0
        %6477 = vmatpush1.bf16.xpose.msra.mxu0 0
        %6478 = vmatprep.subr.bf16.mxu0 0
        %6479 = vmatpush1.bf16.xpose.msra.mxu0 0
        %6480 = vmatprep.subr.bf16.mxu0 0
        %6481 = vmatpush1.bf16.xpose.msra.mxu0 0
        %6482 = vmatprep.subr.bf16.mxu0 0
        %6483 = vmatpush1.bf16.xpose.msra.mxu0 0
        %6484 = vmatprep.subr.bf16.mxu0 0
        %6485 = vmatpush1.bf16.xpose.msra.mxu0 0
        %6486 = vmatprep.subr.bf16.mxu0 0
        %6487 = vmatpush1.bf16.xpose.msra.mxu0 %v6470
        %6488 = vmatprep.subr.bf16.mxu0 0
        %6489 = vmatpush2.bf16.xpose.msra.mxu0 0
        %6490 = vmatprep.subr.bf16.mxu0 0
        %6491 = vmatpush2.bf16.xpose.msra.mxu0 0
        %6492 = vmatprep.subr.bf16.mxu0 0
        %6493 = vmatpush2.bf16.xpose.msra.mxu0 0
        %6494 = vmatprep.subr.bf16.mxu0 0
        %6495 = vmatpush2.bf16.xpose.msra.mxu0 0
        %6496 = vmatprep.subr.bf16.mxu0 0
        %6497 = vmatpush2.bf16.xpose.msra.mxu0 0
        %6498 = vmatprep.subr.bf16.mxu0 0
        %6499 = vmatpush2.bf16.xpose.msra.mxu0 0
        %6500 = vmatprep.subr.bf16.mxu0 0
        %6501 = vmatpush2.bf16.xpose.msra.mxu0 0
        %6502 = vmatprep.subr.bf16.mxu0 0
        %6503 = vmatpush2.bf16.xpose.msra.mxu0 0
        %6504 = vmatprep.mubr.bf16.mxu0 0
        %6505 = vmatmul.mubr.bf16.gmra.mxu0 %v6467
        %v6506 = vpop.f32.mrf.mxu0
        %v6507 = vadd.f32 0.0, %v6506
        %v6508 = vpop.f32.mrf.mxu0
        %v6509 = vpop.f32.mrf.mxu0
        %v6510 = vpop.f32.mrf.mxu0
        %6511 = vdwg.mxu0
        %6513 = vrot.lane.b32.xlu0 %v5904, 96
        %v6514 = vpop.permute.xlu0 %6513
        %v6516 = vsel %vm884, %v5904, 0
        %v6519 = vsel %vm884, %v6514, 0
        %6521 = vmatprep.subr.bf16.mxu0 0
        %6522 = vmatpush1.bf16.xpose.msra.mxu0 0
        %6523 = vmatprep.subr.bf16.mxu0 0
        %6524 = vmatpush1.bf16.xpose.msra.mxu0 0
        %6525 = vmatprep.subr.bf16.mxu0 0
        %6526 = vmatpush1.bf16.xpose.msra.mxu0 0
        %6527 = vmatprep.subr.bf16.mxu0 0
        %6528 = vmatpush1.bf16.xpose.msra.mxu0 0
        %6529 = vmatprep.subr.bf16.mxu0 0
        %6530 = vmatpush1.bf16.xpose.msra.mxu0 0
        %6531 = vmatprep.subr.bf16.mxu0 0
        %6532 = vmatpush1.bf16.xpose.msra.mxu0 0
        %6533 = vmatprep.subr.bf16.mxu0 0
        %6534 = vmatpush1.bf16.xpose.msra.mxu0 0
        %6535 = vmatprep.subr.bf16.mxu0 0
        %6536 = vmatpush1.bf16.xpose.msra.mxu0 %v6519
        %6537 = vmatprep.subr.bf16.mxu0 0
        %6538 = vmatpush2.bf16.xpose.msra.mxu0 0
        %6539 = vmatprep.subr.bf16.mxu0 0
        %6540 = vmatpush2.bf16.xpose.msra.mxu0 0
        %6541 = vmatprep.subr.bf16.mxu0 0
        %6542 = vmatpush2.bf16.xpose.msra.mxu0 0
        %6543 = vmatprep.subr.bf16.mxu0 0
        %6544 = vmatpush2.bf16.xpose.msra.mxu0 0
        %6545 = vmatprep.subr.bf16.mxu0 0
        %6546 = vmatpush2.bf16.xpose.msra.mxu0 0
        %6547 = vmatprep.subr.bf16.mxu0 0
        %6548 = vmatpush2.bf16.xpose.msra.mxu0 0
        %6549 = vmatprep.subr.bf16.mxu0 0
        %6550 = vmatpush2.bf16.xpose.msra.mxu0 0
        %6551 = vmatprep.subr.bf16.mxu0 0
        %6552 = vmatpush2.bf16.xpose.msra.mxu0 0
        %6553 = vmatprep.mubr.bf16.mxu0 0
        %6554 = vmatmul.mubr.bf16.gmra.mxu0 %v6516
        %v6555 = vpop.f32.mrf.mxu0
        %v6556 = vadd.f32 0.0, %v6555
        %v6557 = vpop.f32.mrf.mxu0
        %v6558 = vpop.f32.mrf.mxu0
        %v6559 = vpop.f32.mrf.mxu0
        %6560 = vdwg.mxu0
        %6562 = vrot.lane.b32.xlu0 %v5905, 96
        %v6563 = vpop.permute.xlu0 %6562
        %v6565 = vsel %vm884, %v5905, 0
        %v6568 = vsel %vm884, %v6563, 0
        %6570 = vmatprep.subr.bf16.mxu0 0
        %6571 = vmatpush1.bf16.xpose.msra.mxu0 0
        %6572 = vmatprep.subr.bf16.mxu0 0
        %6573 = vmatpush1.bf16.xpose.msra.mxu0 0
        %6574 = vmatprep.subr.bf16.mxu0 0
        %6575 = vmatpush1.bf16.xpose.msra.mxu0 0
        %6576 = vmatprep.subr.bf16.mxu0 0
        %6577 = vmatpush1.bf16.xpose.msra.mxu0 0
        %6578 = vmatprep.subr.bf16.mxu0 0
        %6579 = vmatpush1.bf16.xpose.msra.mxu0 0
        %6580 = vmatprep.subr.bf16.mxu0 0
        %6581 = vmatpush1.bf16.xpose.msra.mxu0 0
        %6582 = vmatprep.subr.bf16.mxu0 0
        %6583 = vmatpush1.bf16.xpose.msra.mxu0 0
        %6584 = vmatprep.subr.bf16.mxu0 0
        %6585 = vmatpush1.bf16.xpose.msra.mxu0 %v6568
        %6586 = vmatprep.subr.bf16.mxu0 0
        %6587 = vmatpush2.bf16.xpose.msra.mxu0 0
        %6588 = vmatprep.subr.bf16.mxu0 0
        %6589 = vmatpush2.bf16.xpose.msra.mxu0 0
        %6590 = vmatprep.subr.bf16.mxu0 0
        %6591 = vmatpush2.bf16.xpose.msra.mxu0 0
        %6592 = vmatprep.subr.bf16.mxu0 0
        %6593 = vmatpush2.bf16.xpose.msra.mxu0 0
        %6594 = vmatprep.subr.bf16.mxu0 0
        %6595 = vmatpush2.bf16.xpose.msra.mxu0 0
        %6596 = vmatprep.subr.bf16.mxu0 0
        %6597 = vmatpush2.bf16.xpose.msra.mxu0 0
        %6598 = vmatprep.subr.bf16.mxu0 0
        %6599 = vmatpush2.bf16.xpose.msra.mxu0 0
        %6600 = vmatprep.subr.bf16.mxu0 0
        %6601 = vmatpush2.bf16.xpose.msra.mxu0 0
        %6602 = vmatprep.mubr.bf16.mxu0 0
        %6603 = vmatmul.mubr.bf16.gmra.mxu0 %v6565
        %v6604 = vpop.f32.mrf.mxu0
        %v6605 = vadd.f32 0.0, %v6604
        %v6606 = vpop.f32.mrf.mxu0
        %v6607 = vpop.f32.mrf.mxu0
        %v6608 = vpop.f32.mrf.mxu0
        %6609 = vdwg.mxu0
        %6611 = vrot.lane.b32.xlu0 %v5906, 96
        %v6612 = vpop.permute.xlu0 %6611
        %v6614 = vsel %vm884, %v5906, 0
        %v6617 = vsel %vm884, %v6612, 0
        %6619 = vmatprep.subr.bf16.mxu0 0
        %6620 = vmatpush1.bf16.xpose.msra.mxu0 0
        %6621 = vmatprep.subr.bf16.mxu0 0
        %6622 = vmatpush1.bf16.xpose.msra.mxu0 0
        %6623 = vmatprep.subr.bf16.mxu0 0
        %6624 = vmatpush1.bf16.xpose.msra.mxu0 0
        %6625 = vmatprep.subr.bf16.mxu0 0
        %6626 = vmatpush1.bf16.xpose.msra.mxu0 0
        %6627 = vmatprep.subr.bf16.mxu0 0
        %6628 = vmatpush1.bf16.xpose.msra.mxu0 0
        %6629 = vmatprep.subr.bf16.mxu0 0
        %6630 = vmatpush1.bf16.xpose.msra.mxu0 0
        %6631 = vmatprep.subr.bf16.mxu0 0
        %6632 = vmatpush1.bf16.xpose.msra.mxu0 0
        %6633 = vmatprep.subr.bf16.mxu0 0
        %6634 = vmatpush1.bf16.xpose.msra.mxu0 %v6617
        %6635 = vmatprep.subr.bf16.mxu0 0
        %6636 = vmatpush2.bf16.xpose.msra.mxu0 0
        %6637 = vmatprep.subr.bf16.mxu0 0
        %6638 = vmatpush2.bf16.xpose.msra.mxu0 0
        %6639 = vmatprep.subr.bf16.mxu0 0
        %6640 = vmatpush2.bf16.xpose.msra.mxu0 0
        %6641 = vmatprep.subr.bf16.mxu0 0
        %6642 = vmatpush2.bf16.xpose.msra.mxu0 0
        %6643 = vmatprep.subr.bf16.mxu0 0
        %6644 = vmatpush2.bf16.xpose.msra.mxu0 0
        %6645 = vmatprep.subr.bf16.mxu0 0
        %6646 = vmatpush2.bf16.xpose.msra.mxu0 0
        %6647 = vmatprep.subr.bf16.mxu0 0
        %6648 = vmatpush2.bf16.xpose.msra.mxu0 0
        %6649 = vmatprep.subr.bf16.mxu0 0
        %6650 = vmatpush2.bf16.xpose.msra.mxu0 0
        %6651 = vmatprep.mubr.bf16.mxu0 0
        %6652 = vmatmul.mubr.bf16.gmra.mxu0 %v6614
        %v6653 = vpop.f32.mrf.mxu0
        %v6654 = vadd.f32 0.0, %v6653
        %v6655 = vpop.f32.mrf.mxu0
        %v6656 = vpop.f32.mrf.mxu0
        %v6657 = vpop.f32.mrf.mxu0
        %6658 = vdwg.mxu0
        %6660 = vrot.lane.b32.xlu0 %v5907, 96
        %v6661 = vpop.permute.xlu0 %6660
        %v6663 = vsel %vm884, %v5907, 0
        %v6666 = vsel %vm884, %v6661, 0
        %6668 = vmatprep.subr.bf16.mxu0 0
        %6669 = vmatpush1.bf16.xpose.msra.mxu0 0
        %6670 = vmatprep.subr.bf16.mxu0 0
        %6671 = vmatpush1.bf16.xpose.msra.mxu0 0
        %6672 = vmatprep.subr.bf16.mxu0 0
        %6673 = vmatpush1.bf16.xpose.msra.mxu0 0
        %6674 = vmatprep.subr.bf16.mxu0 0
        %6675 = vmatpush1.bf16.xpose.msra.mxu0 0
        %6676 = vmatprep.subr.bf16.mxu0 0
        %6677 = vmatpush1.bf16.xpose.msra.mxu0 0
        %6678 = vmatprep.subr.bf16.mxu0 0
        %6679 = vmatpush1.bf16.xpose.msra.mxu0 0
        %6680 = vmatprep.subr.bf16.mxu0 0
        %6681 = vmatpush1.bf16.xpose.msra.mxu0 0
        %6682 = vmatprep.subr.bf16.mxu0 0
        %6683 = vmatpush1.bf16.xpose.msra.mxu0 %v6666
        %6684 = vmatprep.subr.bf16.mxu0 0
        %6685 = vmatpush2.bf16.xpose.msra.mxu0 0
        %6686 = vmatprep.subr.bf16.mxu0 0
        %6687 = vmatpush2.bf16.xpose.msra.mxu0 0
        %6688 = vmatprep.subr.bf16.mxu0 0
        %6689 = vmatpush2.bf16.xpose.msra.mxu0 0
        %6690 = vmatprep.subr.bf16.mxu0 0
        %6691 = vmatpush2.bf16.xpose.msra.mxu0 0
        %6692 = vmatprep.subr.bf16.mxu0 0
        %6693 = vmatpush2.bf16.xpose.msra.mxu0 0
        %6694 = vmatprep.subr.bf16.mxu0 0
        %6695 = vmatpush2.bf16.xpose.msra.mxu0 0
        %6696 = vmatprep.subr.bf16.mxu0 0
        %6697 = vmatpush2.bf16.xpose.msra.mxu0 0
        %6698 = vmatprep.subr.bf16.mxu0 0
        %6699 = vmatpush2.bf16.xpose.msra.mxu0 0
        %6700 = vmatprep.mubr.bf16.mxu0 0
        %6701 = vmatmul.mubr.bf16.gmra.mxu0 %v6663
        %v6702 = vpop.f32.mrf.mxu0
        %v6703 = vadd.f32 0.0, %v6702
        %v6704 = vpop.f32.mrf.mxu0
        %v6705 = vpop.f32.mrf.mxu0
        %v6706 = vpop.f32.mrf.mxu0
        %6707 = vdwg.mxu0
        %6709 = vrot.lane.b32.xlu0 %v5908, 96
        %v6710 = vpop.permute.xlu0 %6709
        %v6712 = vsel %vm884, %v5908, 0
        %v6715 = vsel %vm884, %v6710, 0
        %6717 = vmatprep.subr.bf16.mxu0 0
        %6718 = vmatpush1.bf16.xpose.msra.mxu0 0
        %6719 = vmatprep.subr.bf16.mxu0 0
        %6720 = vmatpush1.bf16.xpose.msra.mxu0 0
        %6721 = vmatprep.subr.bf16.mxu0 0
        %6722 = vmatpush1.bf16.xpose.msra.mxu0 0
        %6723 = vmatprep.subr.bf16.mxu0 0
        %6724 = vmatpush1.bf16.xpose.msra.mxu0 0
        %6725 = vmatprep.subr.bf16.mxu0 0
        %6726 = vmatpush1.bf16.xpose.msra.mxu0 0
        %6727 = vmatprep.subr.bf16.mxu0 0
        %6728 = vmatpush1.bf16.xpose.msra.mxu0 0
        %6729 = vmatprep.subr.bf16.mxu0 0
        %6730 = vmatpush1.bf16.xpose.msra.mxu0 0
        %6731 = vmatprep.subr.bf16.mxu0 0
        %6732 = vmatpush1.bf16.xpose.msra.mxu0 %v6715
        %6733 = vmatprep.subr.bf16.mxu0 0
        %6734 = vmatpush2.bf16.xpose.msra.mxu0 0
        %6735 = vmatprep.subr.bf16.mxu0 0
        %6736 = vmatpush2.bf16.xpose.msra.mxu0 0
        %6737 = vmatprep.subr.bf16.mxu0 0
        %6738 = vmatpush2.bf16.xpose.msra.mxu0 0
        %6739 = vmatprep.subr.bf16.mxu0 0
        %6740 = vmatpush2.bf16.xpose.msra.mxu0 0
        %6741 = vmatprep.subr.bf16.mxu0 0
        %6742 = vmatpush2.bf16.xpose.msra.mxu0 0
        %6743 = vmatprep.subr.bf16.mxu0 0
        %6744 = vmatpush2.bf16.xpose.msra.mxu0 0
        %6745 = vmatprep.subr.bf16.mxu0 0
        %6746 = vmatpush2.bf16.xpose.msra.mxu0 0
        %6747 = vmatprep.subr.bf16.mxu0 0
        %6748 = vmatpush2.bf16.xpose.msra.mxu0 0
        %6749 = vmatprep.mubr.bf16.mxu0 0
        %6750 = vmatmul.mubr.bf16.gmra.mxu0 %v6712
        %v6751 = vpop.f32.mrf.mxu0
        %v6752 = vadd.f32 0.0, %v6751
        %v6753 = vpop.f32.mrf.mxu0
        %v6754 = vpop.f32.mrf.mxu0
        %v6755 = vpop.f32.mrf.mxu0
        %6756 = vdwg.mxu0
        %6758 = vrot.lane.b32.xlu0 %v5909, 96
        %v6759 = vpop.permute.xlu0 %6758
        %v6761 = vsel %vm884, %v5909, 0
        %v6764 = vsel %vm884, %v6759, 0
        %6766 = vmatprep.subr.bf16.mxu0 0
        %6767 = vmatpush1.bf16.xpose.msra.mxu0 0
        %6768 = vmatprep.subr.bf16.mxu0 0
        %6769 = vmatpush1.bf16.xpose.msra.mxu0 0
        %6770 = vmatprep.subr.bf16.mxu0 0
        %6771 = vmatpush1.bf16.xpose.msra.mxu0 0
        %6772 = vmatprep.subr.bf16.mxu0 0
        %6773 = vmatpush1.bf16.xpose.msra.mxu0 0
        %6774 = vmatprep.subr.bf16.mxu0 0
        %6775 = vmatpush1.bf16.xpose.msra.mxu0 0
        %6776 = vmatprep.subr.bf16.mxu0 0
        %6777 = vmatpush1.bf16.xpose.msra.mxu0 0
        %6778 = vmatprep.subr.bf16.mxu0 0
        %6779 = vmatpush1.bf16.xpose.msra.mxu0 0
        %6780 = vmatprep.subr.bf16.mxu0 0
        %6781 = vmatpush1.bf16.xpose.msra.mxu0 %v6764
        %6782 = vmatprep.subr.bf16.mxu0 0
        %6783 = vmatpush2.bf16.xpose.msra.mxu0 0
        %6784 = vmatprep.subr.bf16.mxu0 0
        %6785 = vmatpush2.bf16.xpose.msra.mxu0 0
        %6786 = vmatprep.subr.bf16.mxu0 0
        %6787 = vmatpush2.bf16.xpose.msra.mxu0 0
        %6788 = vmatprep.subr.bf16.mxu0 0
        %6789 = vmatpush2.bf16.xpose.msra.mxu0 0
        %6790 = vmatprep.subr.bf16.mxu0 0
        %6791 = vmatpush2.bf16.xpose.msra.mxu0 0
        %6792 = vmatprep.subr.bf16.mxu0 0
        %6793 = vmatpush2.bf16.xpose.msra.mxu0 0
        %6794 = vmatprep.subr.bf16.mxu0 0
        %6795 = vmatpush2.bf16.xpose.msra.mxu0 0
        %6796 = vmatprep.subr.bf16.mxu0 0
        %6797 = vmatpush2.bf16.xpose.msra.mxu0 0
        %6798 = vmatprep.mubr.bf16.mxu0 0
        %6799 = vmatmul.mubr.bf16.gmra.mxu0 %v6761
        %v6800 = vpop.f32.mrf.mxu0
        %v6801 = vadd.f32 0.0, %v6800
        %v6802 = vpop.f32.mrf.mxu0
        %v6803 = vpop.f32.mrf.mxu0
        %v6804 = vpop.f32.mrf.mxu0
        %6805 = vdwg.mxu0
        %6807 = vrot.lane.b32.xlu0 %v5910, 96
        %v6808 = vpop.permute.xlu0 %6807
        %v6810 = vsel %vm884, %v5910, 0
        %v6813 = vsel %vm884, %v6808, 0
        %6815 = vmatprep.subr.bf16.mxu0 0
        %6816 = vmatpush1.bf16.xpose.msra.mxu0 0
        %6817 = vmatprep.subr.bf16.mxu0 0
        %6818 = vmatpush1.bf16.xpose.msra.mxu0 0
        %6819 = vmatprep.subr.bf16.mxu0 0
        %6820 = vmatpush1.bf16.xpose.msra.mxu0 0
        %6821 = vmatprep.subr.bf16.mxu0 0
        %6822 = vmatpush1.bf16.xpose.msra.mxu0 0
        %6823 = vmatprep.subr.bf16.mxu0 0
        %6824 = vmatpush1.bf16.xpose.msra.mxu0 0
        %6825 = vmatprep.subr.bf16.mxu0 0
        %6826 = vmatpush1.bf16.xpose.msra.mxu0 0
        %6827 = vmatprep.subr.bf16.mxu0 0
        %6828 = vmatpush1.bf16.xpose.msra.mxu0 0
        %6829 = vmatprep.subr.bf16.mxu0 0
        %6830 = vmatpush1.bf16.xpose.msra.mxu0 %v6813
        %6831 = vmatprep.subr.bf16.mxu0 0
        %6832 = vmatpush2.bf16.xpose.msra.mxu0 0
        %6833 = vmatprep.subr.bf16.mxu0 0
        %6834 = vmatpush2.bf16.xpose.msra.mxu0 0
        %6835 = vmatprep.subr.bf16.mxu0 0
        %6836 = vmatpush2.bf16.xpose.msra.mxu0 0
        %6837 = vmatprep.subr.bf16.mxu0 0
        %6838 = vmatpush2.bf16.xpose.msra.mxu0 0
        %6839 = vmatprep.subr.bf16.mxu0 0
        %6840 = vmatpush2.bf16.xpose.msra.mxu0 0
        %6841 = vmatprep.subr.bf16.mxu0 0
        %6842 = vmatpush2.bf16.xpose.msra.mxu0 0
        %6843 = vmatprep.subr.bf16.mxu0 0
        %6844 = vmatpush2.bf16.xpose.msra.mxu0 0
        %6845 = vmatprep.subr.bf16.mxu0 0
        %6846 = vmatpush2.bf16.xpose.msra.mxu0 0
        %6847 = vmatprep.mubr.bf16.mxu0 0
        %6848 = vmatmul.mubr.bf16.gmra.mxu0 %v6810
        %v6849 = vpop.f32.mrf.mxu0
        %v6850 = vadd.f32 0.0, %v6849
        %v6851 = vpop.f32.mrf.mxu0
        %v6852 = vpop.f32.mrf.mxu0
        %v6853 = vpop.f32.mrf.mxu0
        %6854 = vdwg.mxu0
        %6856 = vrot.lane.b32.xlu0 %v5911, 96
        %v6857 = vpop.permute.xlu0 %6856
        %v6859 = vsel %vm884, %v5911, 0
        %v6862 = vsel %vm884, %v6857, 0
        %6864 = vmatprep.subr.bf16.mxu0 0
        %6865 = vmatpush1.bf16.xpose.msra.mxu0 0
        %6866 = vmatprep.subr.bf16.mxu0 0
        %6867 = vmatpush1.bf16.xpose.msra.mxu0 0
        %6868 = vmatprep.subr.bf16.mxu0 0
        %6869 = vmatpush1.bf16.xpose.msra.mxu0 0
        %6870 = vmatprep.subr.bf16.mxu0 0
        %6871 = vmatpush1.bf16.xpose.msra.mxu0 0
        %6872 = vmatprep.subr.bf16.mxu0 0
        %6873 = vmatpush1.bf16.xpose.msra.mxu0 0
        %6874 = vmatprep.subr.bf16.mxu0 0
        %6875 = vmatpush1.bf16.xpose.msra.mxu0 0
        %6876 = vmatprep.subr.bf16.mxu0 0
        %6877 = vmatpush1.bf16.xpose.msra.mxu0 0
        %6878 = vmatprep.subr.bf16.mxu0 0
        %6879 = vmatpush1.bf16.xpose.msra.mxu0 %v6862
        %6880 = vmatprep.subr.bf16.mxu0 0
        %6881 = vmatpush2.bf16.xpose.msra.mxu0 0
        %6882 = vmatprep.subr.bf16.mxu0 0
        %6883 = vmatpush2.bf16.xpose.msra.mxu0 0
        %6884 = vmatprep.subr.bf16.mxu0 0
        %6885 = vmatpush2.bf16.xpose.msra.mxu0 0
        %6886 = vmatprep.subr.bf16.mxu0 0
        %6887 = vmatpush2.bf16.xpose.msra.mxu0 0
        %6888 = vmatprep.subr.bf16.mxu0 0
        %6889 = vmatpush2.bf16.xpose.msra.mxu0 0
        %6890 = vmatprep.subr.bf16.mxu0 0
        %6891 = vmatpush2.bf16.xpose.msra.mxu0 0
        %6892 = vmatprep.subr.bf16.mxu0 0
        %6893 = vmatpush2.bf16.xpose.msra.mxu0 0
        %6894 = vmatprep.subr.bf16.mxu0 0
        %6895 = vmatpush2.bf16.xpose.msra.mxu0 0
        %6896 = vmatprep.mubr.bf16.mxu0 0
        %6897 = vmatmul.mubr.bf16.gmra.mxu0 %v6859
        %v6898 = vpop.f32.mrf.mxu0
        %v6899 = vadd.f32 0.0, %v6898
        %v6900 = vpop.f32.mrf.mxu0
        %v6901 = vpop.f32.mrf.mxu0
        %v6902 = vpop.f32.mrf.mxu0
        %6903 = vdwg.mxu0
        %6905 = vrot.lane.b32.xlu0 %v5912, 96
        %v6906 = vpop.permute.xlu0 %6905
        %v6908 = vsel %vm884, %v5912, 0
        %v6911 = vsel %vm884, %v6906, 0
        %6913 = vmatprep.subr.bf16.mxu0 0
        %6914 = vmatpush1.bf16.xpose.msra.mxu0 0
        %6915 = vmatprep.subr.bf16.mxu0 0
        %6916 = vmatpush1.bf16.xpose.msra.mxu0 0
        %6917 = vmatprep.subr.bf16.mxu0 0
        %6918 = vmatpush1.bf16.xpose.msra.mxu0 0
        %6919 = vmatprep.subr.bf16.mxu0 0
        %6920 = vmatpush1.bf16.xpose.msra.mxu0 0
        %6921 = vmatprep.subr.bf16.mxu0 0
        %6922 = vmatpush1.bf16.xpose.msra.mxu0 0
        %6923 = vmatprep.subr.bf16.mxu0 0
        %6924 = vmatpush1.bf16.xpose.msra.mxu0 0
        %6925 = vmatprep.subr.bf16.mxu0 0
        %6926 = vmatpush1.bf16.xpose.msra.mxu0 0
        %6927 = vmatprep.subr.bf16.mxu0 0
        %6928 = vmatpush1.bf16.xpose.msra.mxu0 %v6911
        %6929 = vmatprep.subr.bf16.mxu0 0
        %6930 = vmatpush2.bf16.xpose.msra.mxu0 0
        %6931 = vmatprep.subr.bf16.mxu0 0
        %6932 = vmatpush2.bf16.xpose.msra.mxu0 0
        %6933 = vmatprep.subr.bf16.mxu0 0
        %6934 = vmatpush2.bf16.xpose.msra.mxu0 0
        %6935 = vmatprep.subr.bf16.mxu0 0
        %6936 = vmatpush2.bf16.xpose.msra.mxu0 0
        %6937 = vmatprep.subr.bf16.mxu0 0
        %6938 = vmatpush2.bf16.xpose.msra.mxu0 0
        %6939 = vmatprep.subr.bf16.mxu0 0
        %6940 = vmatpush2.bf16.xpose.msra.mxu0 0
        %6941 = vmatprep.subr.bf16.mxu0 0
        %6942 = vmatpush2.bf16.xpose.msra.mxu0 0
        %6943 = vmatprep.subr.bf16.mxu0 0
        %6944 = vmatpush2.bf16.xpose.msra.mxu0 0
        %6945 = vmatprep.mubr.bf16.mxu0 0
        %6946 = vmatmul.mubr.bf16.gmra.mxu0 %v6908
        %v6947 = vpop.f32.mrf.mxu0
        %v6948 = vadd.f32 0.0, %v6947
        %v6949 = vpop.f32.mrf.mxu0
        %v6950 = vpop.f32.mrf.mxu0
        %v6951 = vpop.f32.mrf.mxu0
        %6952 = vdwg.mxu0
        %6954 = vrot.lane.b32.xlu0 %v5913, 96
        %v6955 = vpop.permute.xlu0 %6954
        %v6957 = vsel %vm884, %v5913, 0
        %v6960 = vsel %vm884, %v6955, 0
        %6962 = vmatprep.subr.bf16.mxu0 0
        %6963 = vmatpush1.bf16.xpose.msra.mxu0 0
        %6964 = vmatprep.subr.bf16.mxu0 0
        %6965 = vmatpush1.bf16.xpose.msra.mxu0 0
        %6966 = vmatprep.subr.bf16.mxu0 0
        %6967 = vmatpush1.bf16.xpose.msra.mxu0 0
        %6968 = vmatprep.subr.bf16.mxu0 0
        %6969 = vmatpush1.bf16.xpose.msra.mxu0 0
        %6970 = vmatprep.subr.bf16.mxu0 0
        %6971 = vmatpush1.bf16.xpose.msra.mxu0 0
        %6972 = vmatprep.subr.bf16.mxu0 0
        %6973 = vmatpush1.bf16.xpose.msra.mxu0 0
        %6974 = vmatprep.subr.bf16.mxu0 0
        %6975 = vmatpush1.bf16.xpose.msra.mxu0 0
        %6976 = vmatprep.subr.bf16.mxu0 0
        %6977 = vmatpush1.bf16.xpose.msra.mxu0 %v6960
        %6978 = vmatprep.subr.bf16.mxu0 0
        %6979 = vmatpush2.bf16.xpose.msra.mxu0 0
        %6980 = vmatprep.subr.bf16.mxu0 0
        %6981 = vmatpush2.bf16.xpose.msra.mxu0 0
        %6982 = vmatprep.subr.bf16.mxu0 0
        %6983 = vmatpush2.bf16.xpose.msra.mxu0 0
        %6984 = vmatprep.subr.bf16.mxu0 0
        %6985 = vmatpush2.bf16.xpose.msra.mxu0 0
        %6986 = vmatprep.subr.bf16.mxu0 0
        %6987 = vmatpush2.bf16.xpose.msra.mxu0 0
        %6988 = vmatprep.subr.bf16.mxu0 0
        %6989 = vmatpush2.bf16.xpose.msra.mxu0 0
        %6990 = vmatprep.subr.bf16.mxu0 0
        %6991 = vmatpush2.bf16.xpose.msra.mxu0 0
        %6992 = vmatprep.subr.bf16.mxu0 0
        %6993 = vmatpush2.bf16.xpose.msra.mxu0 0
        %6994 = vmatprep.mubr.bf16.mxu0 0
        %6995 = vmatmul.mubr.bf16.gmra.mxu0 %v6957
        %v6996 = vpop.f32.mrf.mxu0
        %v6997 = vadd.f32 0.0, %v6996
        %v6998 = vpop.f32.mrf.mxu0
        %v6999 = vpop.f32.mrf.mxu0
        %v7000 = vpop.f32.mrf.mxu0
        %7001 = vdwg.mxu0
        %7003 = vrot.lane.b32.xlu0 %v5914, 96
        %v7004 = vpop.permute.xlu0 %7003
        %v7006 = vsel %vm884, %v5914, 0
        %v7009 = vsel %vm884, %v7004, 0
        %7011 = vmatprep.subr.bf16.mxu0 0
        %7012 = vmatpush1.bf16.xpose.msra.mxu0 0
        %7013 = vmatprep.subr.bf16.mxu0 0
        %7014 = vmatpush1.bf16.xpose.msra.mxu0 0
        %7015 = vmatprep.subr.bf16.mxu0 0
        %7016 = vmatpush1.bf16.xpose.msra.mxu0 0
        %7017 = vmatprep.subr.bf16.mxu0 0
        %7018 = vmatpush1.bf16.xpose.msra.mxu0 0
        %7019 = vmatprep.subr.bf16.mxu0 0
        %7020 = vmatpush1.bf16.xpose.msra.mxu0 0
        %7021 = vmatprep.subr.bf16.mxu0 0
        %7022 = vmatpush1.bf16.xpose.msra.mxu0 0
        %7023 = vmatprep.subr.bf16.mxu0 0
        %7024 = vmatpush1.bf16.xpose.msra.mxu0 0
        %7025 = vmatprep.subr.bf16.mxu0 0
        %7026 = vmatpush1.bf16.xpose.msra.mxu0 %v7009
        %7027 = vmatprep.subr.bf16.mxu0 0
        %7028 = vmatpush2.bf16.xpose.msra.mxu0 0
        %7029 = vmatprep.subr.bf16.mxu0 0
        %7030 = vmatpush2.bf16.xpose.msra.mxu0 0
        %7031 = vmatprep.subr.bf16.mxu0 0
        %7032 = vmatpush2.bf16.xpose.msra.mxu0 0
        %7033 = vmatprep.subr.bf16.mxu0 0
        %7034 = vmatpush2.bf16.xpose.msra.mxu0 0
        %7035 = vmatprep.subr.bf16.mxu0 0
        %7036 = vmatpush2.bf16.xpose.msra.mxu0 0
        %7037 = vmatprep.subr.bf16.mxu0 0
        %7038 = vmatpush2.bf16.xpose.msra.mxu0 0
        %7039 = vmatprep.subr.bf16.mxu0 0
        %7040 = vmatpush2.bf16.xpose.msra.mxu0 0
        %7041 = vmatprep.subr.bf16.mxu0 0
        %7042 = vmatpush2.bf16.xpose.msra.mxu0 0
        %7043 = vmatprep.mubr.bf16.mxu0 0
        %7044 = vmatmul.mubr.bf16.gmra.mxu0 %v7006
        %v7045 = vpop.f32.mrf.mxu0
        %v7046 = vadd.f32 0.0, %v7045
        %v7047 = vpop.f32.mrf.mxu0
        %v7048 = vpop.f32.mrf.mxu0
        %v7049 = vpop.f32.mrf.mxu0
        %7050 = vdwg.mxu0
        %7052 = vrot.lane.b32.xlu0 %v5915, 96
        %v7053 = vpop.permute.xlu0 %7052
        %v7055 = vsel %vm884, %v5915, 0
        %v7058 = vsel %vm884, %v7053, 0
        %7060 = vmatprep.subr.bf16.mxu0 0
        %7061 = vmatpush1.bf16.xpose.msra.mxu0 0
        %7062 = vmatprep.subr.bf16.mxu0 0
        %7063 = vmatpush1.bf16.xpose.msra.mxu0 0
        %7064 = vmatprep.subr.bf16.mxu0 0
        %7065 = vmatpush1.bf16.xpose.msra.mxu0 0
        %7066 = vmatprep.subr.bf16.mxu0 0
        %7067 = vmatpush1.bf16.xpose.msra.mxu0 0
        %7068 = vmatprep.subr.bf16.mxu0 0
        %7069 = vmatpush1.bf16.xpose.msra.mxu0 0
        %7070 = vmatprep.subr.bf16.mxu0 0
        %7071 = vmatpush1.bf16.xpose.msra.mxu0 0
        %7072 = vmatprep.subr.bf16.mxu0 0
        %7073 = vmatpush1.bf16.xpose.msra.mxu0 0
        %7074 = vmatprep.subr.bf16.mxu0 0
        %7075 = vmatpush1.bf16.xpose.msra.mxu0 %v7058
        %7076 = vmatprep.subr.bf16.mxu0 0
        %7077 = vmatpush2.bf16.xpose.msra.mxu0 0
        %7078 = vmatprep.subr.bf16.mxu0 0
        %7079 = vmatpush2.bf16.xpose.msra.mxu0 0
        %7080 = vmatprep.subr.bf16.mxu0 0
        %7081 = vmatpush2.bf16.xpose.msra.mxu0 0
        %7082 = vmatprep.subr.bf16.mxu0 0
        %7083 = vmatpush2.bf16.xpose.msra.mxu0 0
        %7084 = vmatprep.subr.bf16.mxu0 0
        %7085 = vmatpush2.bf16.xpose.msra.mxu0 0
        %7086 = vmatprep.subr.bf16.mxu0 0
        %7087 = vmatpush2.bf16.xpose.msra.mxu0 0
        %7088 = vmatprep.subr.bf16.mxu0 0
        %7089 = vmatpush2.bf16.xpose.msra.mxu0 0
        %7090 = vmatprep.subr.bf16.mxu0 0
        %7091 = vmatpush2.bf16.xpose.msra.mxu0 0
        %7092 = vmatprep.mubr.bf16.mxu0 0
        %7093 = vmatmul.mubr.bf16.gmra.mxu0 %v7055
        %v7094 = vpop.f32.mrf.mxu0
        %v7095 = vadd.f32 0.0, %v7094
        %v7096 = vpop.f32.mrf.mxu0
        %v7097 = vpop.f32.mrf.mxu0
        %v7098 = vpop.f32.mrf.mxu0
        %7099 = vdwg.mxu0
        %7101 = vrot.lane.b32.xlu0 %v5916, 96
        %v7102 = vpop.permute.xlu0 %7101
        %v7104 = vsel %vm884, %v5916, 0
        %v7107 = vsel %vm884, %v7102, 0
        %7109 = vmatprep.subr.bf16.mxu0 0
        %7110 = vmatpush1.bf16.xpose.msra.mxu0 0
        %7111 = vmatprep.subr.bf16.mxu0 0
        %7112 = vmatpush1.bf16.xpose.msra.mxu0 0
        %7113 = vmatprep.subr.bf16.mxu0 0
        %7114 = vmatpush1.bf16.xpose.msra.mxu0 0
        %7115 = vmatprep.subr.bf16.mxu0 0
        %7116 = vmatpush1.bf16.xpose.msra.mxu0 0
        %7117 = vmatprep.subr.bf16.mxu0 0
        %7118 = vmatpush1.bf16.xpose.msra.mxu0 0
        %7119 = vmatprep.subr.bf16.mxu0 0
        %7120 = vmatpush1.bf16.xpose.msra.mxu0 0
        %7121 = vmatprep.subr.bf16.mxu0 0
        %7122 = vmatpush1.bf16.xpose.msra.mxu0 0
        %7123 = vmatprep.subr.bf16.mxu0 0
        %7124 = vmatpush1.bf16.xpose.msra.mxu0 %v7107
        %7125 = vmatprep.subr.bf16.mxu0 0
        %7126 = vmatpush2.bf16.xpose.msra.mxu0 0
        %7127 = vmatprep.subr.bf16.mxu0 0
        %7128 = vmatpush2.bf16.xpose.msra.mxu0 0
        %7129 = vmatprep.subr.bf16.mxu0 0
        %7130 = vmatpush2.bf16.xpose.msra.mxu0 0
        %7131 = vmatprep.subr.bf16.mxu0 0
        %7132 = vmatpush2.bf16.xpose.msra.mxu0 0
        %7133 = vmatprep.subr.bf16.mxu0 0
        %7134 = vmatpush2.bf16.xpose.msra.mxu0 0
        %7135 = vmatprep.subr.bf16.mxu0 0
        %7136 = vmatpush2.bf16.xpose.msra.mxu0 0
        %7137 = vmatprep.subr.bf16.mxu0 0
        %7138 = vmatpush2.bf16.xpose.msra.mxu0 0
        %7139 = vmatprep.subr.bf16.mxu0 0
        %7140 = vmatpush2.bf16.xpose.msra.mxu0 0
        %7141 = vmatprep.mubr.bf16.mxu0 0
        %7142 = vmatmul.mubr.bf16.gmra.mxu0 %v7104
        %v7143 = vpop.f32.mrf.mxu0
        %v7144 = vadd.f32 0.0, %v7143
        %v7145 = vpop.f32.mrf.mxu0
        %v7146 = vpop.f32.mrf.mxu0
        %v7147 = vpop.f32.mrf.mxu0
        %7148 = vdwg.mxu0
        %7150 = vrot.lane.b32.xlu0 %v5917, 96
        %v7151 = vpop.permute.xlu0 %7150
        %v7153 = vsel %vm884, %v5917, 0
        %v7156 = vsel %vm884, %v7151, 0
        %7158 = vmatprep.subr.bf16.mxu0 0
        %7159 = vmatpush1.bf16.xpose.msra.mxu0 0
        %7160 = vmatprep.subr.bf16.mxu0 0
        %7161 = vmatpush1.bf16.xpose.msra.mxu0 0
        %7162 = vmatprep.subr.bf16.mxu0 0
        %7163 = vmatpush1.bf16.xpose.msra.mxu0 0
        %7164 = vmatprep.subr.bf16.mxu0 0
        %7165 = vmatpush1.bf16.xpose.msra.mxu0 0
        %7166 = vmatprep.subr.bf16.mxu0 0
        %7167 = vmatpush1.bf16.xpose.msra.mxu0 0
        %7168 = vmatprep.subr.bf16.mxu0 0
        %7169 = vmatpush1.bf16.xpose.msra.mxu0 0
        %7170 = vmatprep.subr.bf16.mxu0 0
        %7171 = vmatpush1.bf16.xpose.msra.mxu0 0
        %7172 = vmatprep.subr.bf16.mxu0 0
        %7173 = vmatpush1.bf16.xpose.msra.mxu0 %v7156
        %7174 = vmatprep.subr.bf16.mxu0 0
        %7175 = vmatpush2.bf16.xpose.msra.mxu0 0
        %7176 = vmatprep.subr.bf16.mxu0 0
        %7177 = vmatpush2.bf16.xpose.msra.mxu0 0
        %7178 = vmatprep.subr.bf16.mxu0 0
        %7179 = vmatpush2.bf16.xpose.msra.mxu0 0
        %7180 = vmatprep.subr.bf16.mxu0 0
        %7181 = vmatpush2.bf16.xpose.msra.mxu0 0
        %7182 = vmatprep.subr.bf16.mxu0 0
        %7183 = vmatpush2.bf16.xpose.msra.mxu0 0
        %7184 = vmatprep.subr.bf16.mxu0 0
        %7185 = vmatpush2.bf16.xpose.msra.mxu0 0
        %7186 = vmatprep.subr.bf16.mxu0 0
        %7187 = vmatpush2.bf16.xpose.msra.mxu0 0
        %7188 = vmatprep.subr.bf16.mxu0 0
        %7189 = vmatpush2.bf16.xpose.msra.mxu0 0
        %7190 = vmatprep.mubr.bf16.mxu0 0
        %7191 = vmatmul.mubr.bf16.gmra.mxu0 %v7153
        %v7192 = vpop.f32.mrf.mxu0
        %v7193 = vadd.f32 0.0, %v7192
        %v7194 = vpop.f32.mrf.mxu0
        %v7195 = vpop.f32.mrf.mxu0
        %v7196 = vpop.f32.mrf.mxu0
        %7197 = vdwg.mxu0
        %7199 = vrot.lane.b32.xlu0 %v5918, 96
        %v7200 = vpop.permute.xlu0 %7199
        %v7202 = vsel %vm884, %v5918, 0
        %v7205 = vsel %vm884, %v7200, 0
        %7207 = vmatprep.subr.bf16.mxu0 0
        %7208 = vmatpush1.bf16.xpose.msra.mxu0 0
        %7209 = vmatprep.subr.bf16.mxu0 0
        %7210 = vmatpush1.bf16.xpose.msra.mxu0 0
        %7211 = vmatprep.subr.bf16.mxu0 0
        %7212 = vmatpush1.bf16.xpose.msra.mxu0 0
        %7213 = vmatprep.subr.bf16.mxu0 0
        %7214 = vmatpush1.bf16.xpose.msra.mxu0 0
        %7215 = vmatprep.subr.bf16.mxu0 0
        %7216 = vmatpush1.bf16.xpose.msra.mxu0 0
        %7217 = vmatprep.subr.bf16.mxu0 0
        %7218 = vmatpush1.bf16.xpose.msra.mxu0 0
        %7219 = vmatprep.subr.bf16.mxu0 0
        %7220 = vmatpush1.bf16.xpose.msra.mxu0 0
        %7221 = vmatprep.subr.bf16.mxu0 0
        %7222 = vmatpush1.bf16.xpose.msra.mxu0 %v7205
        %7223 = vmatprep.subr.bf16.mxu0 0
        %7224 = vmatpush2.bf16.xpose.msra.mxu0 0
        %7225 = vmatprep.subr.bf16.mxu0 0
        %7226 = vmatpush2.bf16.xpose.msra.mxu0 0
        %7227 = vmatprep.subr.bf16.mxu0 0
        %7228 = vmatpush2.bf16.xpose.msra.mxu0 0
        %7229 = vmatprep.subr.bf16.mxu0 0
        %7230 = vmatpush2.bf16.xpose.msra.mxu0 0
        %7231 = vmatprep.subr.bf16.mxu0 0
        %7232 = vmatpush2.bf16.xpose.msra.mxu0 0
        %7233 = vmatprep.subr.bf16.mxu0 0
        %7234 = vmatpush2.bf16.xpose.msra.mxu0 0
        %7235 = vmatprep.subr.bf16.mxu0 0
        %7236 = vmatpush2.bf16.xpose.msra.mxu0 0
        %7237 = vmatprep.subr.bf16.mxu0 0
        %7238 = vmatpush2.bf16.xpose.msra.mxu0 0
        %7239 = vmatprep.mubr.bf16.mxu0 0
        %7240 = vmatmul.mubr.bf16.gmra.mxu0 %v7202
        %v7241 = vpop.f32.mrf.mxu0
        %v7242 = vadd.f32 0.0, %v7241
        %v7243 = vpop.f32.mrf.mxu0
        %v7244 = vpop.f32.mrf.mxu0
        %v7245 = vpop.f32.mrf.mxu0
        %7246 = vdwg.mxu0
        %7248 = vrot.lane.b32.xlu0 %v5919, 96
        %v7249 = vpop.permute.xlu0 %7248
        %v7251 = vsel %vm884, %v5919, 0
        %v7254 = vsel %vm884, %v7249, 0
        %7256 = vmatprep.subr.bf16.mxu0 0
        %7257 = vmatpush1.bf16.xpose.msra.mxu0 0
        %7258 = vmatprep.subr.bf16.mxu0 0
        %7259 = vmatpush1.bf16.xpose.msra.mxu0 0
        %7260 = vmatprep.subr.bf16.mxu0 0
        %7261 = vmatpush1.bf16.xpose.msra.mxu0 0
        %7262 = vmatprep.subr.bf16.mxu0 0
        %7263 = vmatpush1.bf16.xpose.msra.mxu0 0
        %7264 = vmatprep.subr.bf16.mxu0 0
        %7265 = vmatpush1.bf16.xpose.msra.mxu0 0
        %7266 = vmatprep.subr.bf16.mxu0 0
        %7267 = vmatpush1.bf16.xpose.msra.mxu0 0
        %7268 = vmatprep.subr.bf16.mxu0 0
        %7269 = vmatpush1.bf16.xpose.msra.mxu0 0
        %7270 = vmatprep.subr.bf16.mxu0 0
        %7271 = vmatpush1.bf16.xpose.msra.mxu0 %v7254
        %7272 = vmatprep.subr.bf16.mxu0 0
        %7273 = vmatpush2.bf16.xpose.msra.mxu0 0
        %7274 = vmatprep.subr.bf16.mxu0 0
        %7275 = vmatpush2.bf16.xpose.msra.mxu0 0
        %7276 = vmatprep.subr.bf16.mxu0 0
        %7277 = vmatpush2.bf16.xpose.msra.mxu0 0
        %7278 = vmatprep.subr.bf16.mxu0 0
        %7279 = vmatpush2.bf16.xpose.msra.mxu0 0
        %7280 = vmatprep.subr.bf16.mxu0 0
        %7281 = vmatpush2.bf16.xpose.msra.mxu0 0
        %7282 = vmatprep.subr.bf16.mxu0 0
        %7283 = vmatpush2.bf16.xpose.msra.mxu0 0
        %7284 = vmatprep.subr.bf16.mxu0 0
        %7285 = vmatpush2.bf16.xpose.msra.mxu0 0
        %7286 = vmatprep.subr.bf16.mxu0 0
        %7287 = vmatpush2.bf16.xpose.msra.mxu0 0
        %7288 = vmatprep.mubr.bf16.mxu0 0
        %7289 = vmatmul.mubr.bf16.gmra.mxu0 %v7251
        %v7290 = vpop.f32.mrf.mxu0
        %v7291 = vadd.f32 0.0, %v7290
        %v7292 = vpop.f32.mrf.mxu0
        %v7293 = vpop.f32.mrf.mxu0
        %v7294 = vpop.f32.mrf.mxu0
        %7295 = vdwg.mxu0
        %7297 = vrot.lane.b32.xlu0 %v5920, 96
        %v7298 = vpop.permute.xlu0 %7297
        %v7300 = vsel %vm884, %v5920, 0
        %v7303 = vsel %vm884, %v7298, 0
        %7305 = vmatprep.subr.bf16.mxu0 0
        %7306 = vmatpush1.bf16.xpose.msra.mxu0 0
        %7307 = vmatprep.subr.bf16.mxu0 0
        %7308 = vmatpush1.bf16.xpose.msra.mxu0 0
        %7309 = vmatprep.subr.bf16.mxu0 0
        %7310 = vmatpush1.bf16.xpose.msra.mxu0 0
        %7311 = vmatprep.subr.bf16.mxu0 0
        %7312 = vmatpush1.bf16.xpose.msra.mxu0 0
        %7313 = vmatprep.subr.bf16.mxu0 0
        %7314 = vmatpush1.bf16.xpose.msra.mxu0 0
        %7315 = vmatprep.subr.bf16.mxu0 0
        %7316 = vmatpush1.bf16.xpose.msra.mxu0 0
        %7317 = vmatprep.subr.bf16.mxu0 0
        %7318 = vmatpush1.bf16.xpose.msra.mxu0 0
        %7319 = vmatprep.subr.bf16.mxu0 0
        %7320 = vmatpush1.bf16.xpose.msra.mxu0 %v7303
        %7321 = vmatprep.subr.bf16.mxu0 0
        %7322 = vmatpush2.bf16.xpose.msra.mxu0 0
        %7323 = vmatprep.subr.bf16.mxu0 0
        %7324 = vmatpush2.bf16.xpose.msra.mxu0 0
        %7325 = vmatprep.subr.bf16.mxu0 0
        %7326 = vmatpush2.bf16.xpose.msra.mxu0 0
        %7327 = vmatprep.subr.bf16.mxu0 0
        %7328 = vmatpush2.bf16.xpose.msra.mxu0 0
        %7329 = vmatprep.subr.bf16.mxu0 0
        %7330 = vmatpush2.bf16.xpose.msra.mxu0 0
        %7331 = vmatprep.subr.bf16.mxu0 0
        %7332 = vmatpush2.bf16.xpose.msra.mxu0 0
        %7333 = vmatprep.subr.bf16.mxu0 0
        %7334 = vmatpush2.bf16.xpose.msra.mxu0 0
        %7335 = vmatprep.subr.bf16.mxu0 0
        %7336 = vmatpush2.bf16.xpose.msra.mxu0 0
        %7337 = vmatprep.mubr.bf16.mxu0 0
        %7338 = vmatmul.mubr.bf16.gmra.mxu0 %v7300
        %v7339 = vpop.f32.mrf.mxu0
        %v7340 = vadd.f32 0.0, %v7339
        %v7341 = vpop.f32.mrf.mxu0
        %v7342 = vpop.f32.mrf.mxu0
        %v7343 = vpop.f32.mrf.mxu0
        %7344 = vdwg.mxu0
        %7346 = vrot.lane.b32.xlu0 %v5921, 96
        %v7347 = vpop.permute.xlu0 %7346
        %v7349 = vsel %vm884, %v5921, 0
        %v7352 = vsel %vm884, %v7347, 0
        %7354 = vmatprep.subr.bf16.mxu0 0
        %7355 = vmatpush1.bf16.xpose.msra.mxu0 0
        %7356 = vmatprep.subr.bf16.mxu0 0
        %7357 = vmatpush1.bf16.xpose.msra.mxu0 0
        %7358 = vmatprep.subr.bf16.mxu0 0
        %7359 = vmatpush1.bf16.xpose.msra.mxu0 0
        %7360 = vmatprep.subr.bf16.mxu0 0
        %7361 = vmatpush1.bf16.xpose.msra.mxu0 0
        %7362 = vmatprep.subr.bf16.mxu0 0
        %7363 = vmatpush1.bf16.xpose.msra.mxu0 0
        %7364 = vmatprep.subr.bf16.mxu0 0
        %7365 = vmatpush1.bf16.xpose.msra.mxu0 0
        %7366 = vmatprep.subr.bf16.mxu0 0
        %7367 = vmatpush1.bf16.xpose.msra.mxu0 0
        %7368 = vmatprep.subr.bf16.mxu0 0
        %7369 = vmatpush1.bf16.xpose.msra.mxu0 %v7352
        %7370 = vmatprep.subr.bf16.mxu0 0
        %7371 = vmatpush2.bf16.xpose.msra.mxu0 0
        %7372 = vmatprep.subr.bf16.mxu0 0
        %7373 = vmatpush2.bf16.xpose.msra.mxu0 0
        %7374 = vmatprep.subr.bf16.mxu0 0
        %7375 = vmatpush2.bf16.xpose.msra.mxu0 0
        %7376 = vmatprep.subr.bf16.mxu0 0
        %7377 = vmatpush2.bf16.xpose.msra.mxu0 0
        %7378 = vmatprep.subr.bf16.mxu0 0
        %7379 = vmatpush2.bf16.xpose.msra.mxu0 0
        %7380 = vmatprep.subr.bf16.mxu0 0
        %7381 = vmatpush2.bf16.xpose.msra.mxu0 0
        %7382 = vmatprep.subr.bf16.mxu0 0
        %7383 = vmatpush2.bf16.xpose.msra.mxu0 0
        %7384 = vmatprep.subr.bf16.mxu0 0
        %7385 = vmatpush2.bf16.xpose.msra.mxu0 0
        %7386 = vmatprep.mubr.bf16.mxu0 0
        %7387 = vmatmul.mubr.bf16.gmra.mxu0 %v7349
        %v7388 = vpop.f32.mrf.mxu0
        %v7389 = vadd.f32 0.0, %v7388
        %v7390 = vpop.f32.mrf.mxu0
        %v7391 = vpop.f32.mrf.mxu0
        %v7392 = vpop.f32.mrf.mxu0
        %7393 = vdwg.mxu0
        %7395 = vrot.lane.b32.xlu0 %v5922, 96
        %v7396 = vpop.permute.xlu0 %7395
        %v7398 = vsel %vm884, %v5922, 0
        %v7401 = vsel %vm884, %v7396, 0
        %7403 = vmatprep.subr.bf16.mxu0 0
        %7404 = vmatpush1.bf16.xpose.msra.mxu0 0
        %7405 = vmatprep.subr.bf16.mxu0 0
        %7406 = vmatpush1.bf16.xpose.msra.mxu0 0
        %7407 = vmatprep.subr.bf16.mxu0 0
        %7408 = vmatpush1.bf16.xpose.msra.mxu0 0
        %7409 = vmatprep.subr.bf16.mxu0 0
        %7410 = vmatpush1.bf16.xpose.msra.mxu0 0
        %7411 = vmatprep.subr.bf16.mxu0 0
        %7412 = vmatpush1.bf16.xpose.msra.mxu0 0
        %7413 = vmatprep.subr.bf16.mxu0 0
        %7414 = vmatpush1.bf16.xpose.msra.mxu0 0
        %7415 = vmatprep.subr.bf16.mxu0 0
        %7416 = vmatpush1.bf16.xpose.msra.mxu0 0
        %7417 = vmatprep.subr.bf16.mxu0 0
        %7418 = vmatpush1.bf16.xpose.msra.mxu0 %v7401
        %7419 = vmatprep.subr.bf16.mxu0 0
        %7420 = vmatpush2.bf16.xpose.msra.mxu0 0
        %7421 = vmatprep.subr.bf16.mxu0 0
        %7422 = vmatpush2.bf16.xpose.msra.mxu0 0
        %7423 = vmatprep.subr.bf16.mxu0 0
        %7424 = vmatpush2.bf16.xpose.msra.mxu0 0
        %7425 = vmatprep.subr.bf16.mxu0 0
        %7426 = vmatpush2.bf16.xpose.msra.mxu0 0
        %7427 = vmatprep.subr.bf16.mxu0 0
        %7428 = vmatpush2.bf16.xpose.msra.mxu0 0
        %7429 = vmatprep.subr.bf16.mxu0 0
        %7430 = vmatpush2.bf16.xpose.msra.mxu0 0
        %7431 = vmatprep.subr.bf16.mxu0 0
        %7432 = vmatpush2.bf16.xpose.msra.mxu0 0
        %7433 = vmatprep.subr.bf16.mxu0 0
        %7434 = vmatpush2.bf16.xpose.msra.mxu0 0
        %7435 = vmatprep.mubr.bf16.mxu0 0
        %7436 = vmatmul.mubr.bf16.gmra.mxu0 %v7398
        %v7437 = vpop.f32.mrf.mxu0
        %v7438 = vadd.f32 0.0, %v7437
        %v7439 = vpop.f32.mrf.mxu0
        %v7440 = vpop.f32.mrf.mxu0
        %v7441 = vpop.f32.mrf.mxu0
        %7442 = vdwg.mxu0
        %7444 = vrot.lane.b32.xlu0 %v5923, 96
        %v7445 = vpop.permute.xlu0 %7444
        %v7447 = vsel %vm884, %v5923, 0
        %v7450 = vsel %vm884, %v7445, 0
        %7452 = vmatprep.subr.bf16.mxu0 0
        %7453 = vmatpush1.bf16.xpose.msra.mxu0 0
        %7454 = vmatprep.subr.bf16.mxu0 0
        %7455 = vmatpush1.bf16.xpose.msra.mxu0 0
        %7456 = vmatprep.subr.bf16.mxu0 0
        %7457 = vmatpush1.bf16.xpose.msra.mxu0 0
        %7458 = vmatprep.subr.bf16.mxu0 0
        %7459 = vmatpush1.bf16.xpose.msra.mxu0 0
        %7460 = vmatprep.subr.bf16.mxu0 0
        %7461 = vmatpush1.bf16.xpose.msra.mxu0 0
        %7462 = vmatprep.subr.bf16.mxu0 0
        %7463 = vmatpush1.bf16.xpose.msra.mxu0 0
        %7464 = vmatprep.subr.bf16.mxu0 0
        %7465 = vmatpush1.bf16.xpose.msra.mxu0 0
        %7466 = vmatprep.subr.bf16.mxu0 0
        %7467 = vmatpush1.bf16.xpose.msra.mxu0 %v7450
        %7468 = vmatprep.subr.bf16.mxu0 0
        %7469 = vmatpush2.bf16.xpose.msra.mxu0 0
        %7470 = vmatprep.subr.bf16.mxu0 0
        %7471 = vmatpush2.bf16.xpose.msra.mxu0 0
        %7472 = vmatprep.subr.bf16.mxu0 0
        %7473 = vmatpush2.bf16.xpose.msra.mxu0 0
        %7474 = vmatprep.subr.bf16.mxu0 0
        %7475 = vmatpush2.bf16.xpose.msra.mxu0 0
        %7476 = vmatprep.subr.bf16.mxu0 0
        %7477 = vmatpush2.bf16.xpose.msra.mxu0 0
        %7478 = vmatprep.subr.bf16.mxu0 0
        %7479 = vmatpush2.bf16.xpose.msra.mxu0 0
        %7480 = vmatprep.subr.bf16.mxu0 0
        %7481 = vmatpush2.bf16.xpose.msra.mxu0 0
        %7482 = vmatprep.subr.bf16.mxu0 0
        %7483 = vmatpush2.bf16.xpose.msra.mxu0 0
        %7484 = vmatprep.mubr.bf16.mxu0 0
        %7485 = vmatmul.mubr.bf16.gmra.mxu0 %v7447
        %v7486 = vpop.f32.mrf.mxu0
        %v7487 = vadd.f32 0.0, %v7486
        %v7488 = vpop.f32.mrf.mxu0
        %v7489 = vpop.f32.mrf.mxu0
        %v7490 = vpop.f32.mrf.mxu0
        %7491 = vdwg.mxu0
        %v7492 = vmul.f32 %v5968, 0.25
        %v7493 = vmul.f32 %v6017, 0.25
        %v7494 = vmul.f32 %v6066, 0.25
        %v7495 = vmul.f32 %v6115, 0.25
        %v7496 = vmul.f32 %v6164, 0.25
        %v7497 = vmul.f32 %v6213, 0.25
        %v7498 = vmul.f32 %v6262, 0.25
        %v7499 = vmul.f32 %v6311, 0.25
        %v7500 = vmul.f32 %v6360, 0.25
        %v7501 = vmul.f32 %v6409, 0.25
        %v7502 = vmul.f32 %v6458, 0.25
        %v7503 = vmul.f32 %v6507, 0.25
        %v7504 = vmul.f32 %v6556, 0.25
        %v7505 = vmul.f32 %v6605, 0.25
        %v7506 = vmul.f32 %v6654, 0.25
        %v7507 = vmul.f32 %v6703, 0.25
        %v7508 = vmul.f32 %v6752, 0.25
        %v7509 = vmul.f32 %v6801, 0.25
        %v7510 = vmul.f32 %v6850, 0.25
        %v7511 = vmul.f32 %v6899, 0.25
        %v7512 = vmul.f32 %v6948, 0.25
        %v7513 = vmul.f32 %v6997, 0.25
        %v7514 = vmul.f32 %v7046, 0.25
        %v7515 = vmul.f32 %v7095, 0.25
        %v7516 = vmul.f32 %v7144, 0.25
        %v7517 = vmul.f32 %v7193, 0.25
        %v7518 = vmul.f32 %v7242, 0.25
        %v7519 = vmul.f32 %v7291, 0.25
        %v7520 = vmul.f32 %v7340, 0.25
        %v7521 = vmul.f32 %v7389, 0.25
        %v7522 = vmul.f32 %v7438, 0.25
        %v7523 = vmul.f32 %v7487, 0.25
        %v7524 = vadd.f32 %v7492, %v616
        %v7525 = vadd.f32 %v7493, %v617
        %v7526 = vadd.f32 %v7494, %v618
        %v7527 = vadd.f32 %v7495, %v619
        %v7528 = vadd.f32 %v7496, %v620
        %v7529 = vadd.f32 %v7497, %v621
        %v7530 = vadd.f32 %v7498, %v622
        %v7531 = vadd.f32 %v7499, %v623
        %v7532 = vadd.f32 %v7500, %v624
        %v7533 = vadd.f32 %v7501, %v625
        %v7534 = vadd.f32 %v7502, %v626
        %v7535 = vadd.f32 %v7503, %v627
        %v7536 = vadd.f32 %v7504, %v628
        %v7537 = vadd.f32 %v7505, %v629
        %v7538 = vadd.f32 %v7506, %v630
        %v7539 = vadd.f32 %v7507, %v631
        %v7540 = vadd.f32 %v7508, %v616
        %v7541 = vadd.f32 %v7509, %v617
        %v7542 = vadd.f32 %v7510, %v618
        %v7543 = vadd.f32 %v7511, %v619
        %v7544 = vadd.f32 %v7512, %v620
        %v7545 = vadd.f32 %v7513, %v621
        %v7546 = vadd.f32 %v7514, %v622
        %v7547 = vadd.f32 %v7515, %v623
        %v7548 = vadd.f32 %v7516, %v624
        %v7549 = vadd.f32 %v7517, %v625
        %v7550 = vadd.f32 %v7518, %v626
        %v7551 = vadd.f32 %v7519, %v627
        %v7552 = vadd.f32 %v7520, %v628
        %v7553 = vadd.f32 %v7521, %v629
        %v7554 = vadd.f32 %v7522, %v630
        %v7555 = vadd.f32 %v7523, %v631
        %v7556 = vsel %vm2514, %v7524, -inf
        %7557 = vmax.xlane.f32.xlu0 %v7556
        %v7558 = vpop.xlane.xlu0 %7557
        %v7559 = vsel %vm2514, %v7525, -inf
        %7560 = vmax.xlane.f32.xlu0 %v7559
        %v7561 = vpop.xlane.xlu0 %7560
        %v7562 = vsel %vm2514, %v7526, -inf
        %7563 = vmax.xlane.f32.xlu0 %v7562
        %v7564 = vpop.xlane.xlu0 %7563
        %v7565 = vsel %vm2514, %v7527, -inf
        %7566 = vmax.xlane.f32.xlu0 %v7565
        %v7567 = vpop.xlane.xlu0 %7566
        %v7568 = vsel %vm2514, %v7528, -inf
        %7569 = vmax.xlane.f32.xlu0 %v7568
        %v7570 = vpop.xlane.xlu0 %7569
        %v7571 = vsel %vm2514, %v7529, -inf
        %7572 = vmax.xlane.f32.xlu0 %v7571
        %v7573 = vpop.xlane.xlu0 %7572
        %v7574 = vsel %vm2514, %v7530, -inf
        %7575 = vmax.xlane.f32.xlu0 %v7574
        %v7576 = vpop.xlane.xlu0 %7575
        %v7577 = vsel %vm2514, %v7531, -inf
        %7578 = vmax.xlane.f32.xlu0 %v7577
        %v7579 = vpop.xlane.xlu0 %7578
        %v7580 = vsel %vm2514, %v7532, -inf
        %7581 = vmax.xlane.f32.xlu0 %v7580
        %v7582 = vpop.xlane.xlu0 %7581
        %v7583 = vsel %vm2514, %v7533, -inf
        %7584 = vmax.xlane.f32.xlu0 %v7583
        %v7585 = vpop.xlane.xlu0 %7584
        %v7586 = vsel %vm2514, %v7534, -inf
        %7587 = vmax.xlane.f32.xlu0 %v7586
        %v7588 = vpop.xlane.xlu0 %7587
        %v7589 = vsel %vm2514, %v7535, -inf
        %7590 = vmax.xlane.f32.xlu0 %v7589
        %v7591 = vpop.xlane.xlu0 %7590
        %v7592 = vsel %vm2514, %v7536, -inf
        %7593 = vmax.xlane.f32.xlu0 %v7592
        %v7594 = vpop.xlane.xlu0 %7593
        %v7595 = vsel %vm2514, %v7537, -inf
        %7596 = vmax.xlane.f32.xlu0 %v7595
        %v7597 = vpop.xlane.xlu0 %7596
        %v7598 = vsel %vm2514, %v7538, -inf
        %7599 = vmax.xlane.f32.xlu0 %v7598
        %v7600 = vpop.xlane.xlu0 %7599
        %v7601 = vsel %vm2514, %v7539, -inf
        %7602 = vmax.xlane.f32.xlu0 %v7601
        %v7603 = vpop.xlane.xlu0 %7602
        %v7604 = vsel %vm2514, %v7540, -inf
        %7605 = vmax.xlane.f32.xlu0 %v7604
        %v7606 = vpop.xlane.xlu0 %7605
        %v7607 = vsel %vm2514, %v7541, -inf
        %7608 = vmax.xlane.f32.xlu0 %v7607
        %v7609 = vpop.xlane.xlu0 %7608
        %v7610 = vsel %vm2514, %v7542, -inf
        %7611 = vmax.xlane.f32.xlu0 %v7610
        %v7612 = vpop.xlane.xlu0 %7611
        %v7613 = vsel %vm2514, %v7543, -inf
        %7614 = vmax.xlane.f32.xlu0 %v7613
        %v7615 = vpop.xlane.xlu0 %7614
        %v7616 = vsel %vm2514, %v7544, -inf
        %7617 = vmax.xlane.f32.xlu0 %v7616
        %v7618 = vpop.xlane.xlu0 %7617
        %v7619 = vsel %vm2514, %v7545, -inf
        %7620 = vmax.xlane.f32.xlu0 %v7619
        %v7621 = vpop.xlane.xlu0 %7620
        %v7622 = vsel %vm2514, %v7546, -inf
        %7623 = vmax.xlane.f32.xlu0 %v7622
        %v7624 = vpop.xlane.xlu0 %7623
        %v7625 = vsel %vm2514, %v7547, -inf
        %7626 = vmax.xlane.f32.xlu0 %v7625
        %v7627 = vpop.xlane.xlu0 %7626
        %v7628 = vsel %vm2514, %v7548, -inf
        %7629 = vmax.xlane.f32.xlu0 %v7628
        %v7630 = vpop.xlane.xlu0 %7629
        %v7631 = vsel %vm2514, %v7549, -inf
        %7632 = vmax.xlane.f32.xlu0 %v7631
        %v7633 = vpop.xlane.xlu0 %7632
        %v7634 = vsel %vm2514, %v7550, -inf
        %7635 = vmax.xlane.f32.xlu0 %v7634
        %v7636 = vpop.xlane.xlu0 %7635
        %v7637 = vsel %vm2514, %v7551, -inf
        %7638 = vmax.xlane.f32.xlu0 %v7637
        %v7639 = vpop.xlane.xlu0 %7638
        %v7640 = vsel %vm2514, %v7552, -inf
        %7641 = vmax.xlane.f32.xlu0 %v7640
        %v7642 = vpop.xlane.xlu0 %7641
        %v7643 = vsel %vm2514, %v7553, -inf
        %7644 = vmax.xlane.f32.xlu0 %v7643
        %v7645 = vpop.xlane.xlu0 %7644
        %v7646 = vsel %vm2514, %v7554, -inf
        %7647 = vmax.xlane.f32.xlu0 %v7646
        %v7648 = vpop.xlane.xlu0 %7647
        %v7649 = vsel %vm2514, %v7555, -inf
        %7650 = vmax.xlane.f32.xlu0 %v7649
        %v7651 = vpop.xlane.xlu0 %7650
        %v7652 = vsub.f32 %v7524, %v7558
        %v7653 = vsub.f32 %v7525, %v7561
        %v7654 = vsub.f32 %v7526, %v7564
        %v7655 = vsub.f32 %v7527, %v7567
        %v7656 = vsub.f32 %v7528, %v7570
        %v7657 = vsub.f32 %v7529, %v7573
        %v7658 = vsub.f32 %v7530, %v7576
        %v7659 = vsub.f32 %v7531, %v7579
        %v7660 = vsub.f32 %v7532, %v7582
        %v7661 = vsub.f32 %v7533, %v7585
        %v7662 = vsub.f32 %v7534, %v7588
        %v7663 = vsub.f32 %v7535, %v7591
        %v7664 = vsub.f32 %v7536, %v7594
        %v7665 = vsub.f32 %v7537, %v7597
        %v7666 = vsub.f32 %v7538, %v7600
        %v7667 = vsub.f32 %v7539, %v7603
        %v7668 = vsub.f32 %v7540, %v7606
        %v7669 = vsub.f32 %v7541, %v7609
        %v7670 = vsub.f32 %v7542, %v7612
        %v7671 = vsub.f32 %v7543, %v7615
        %v7672 = vsub.f32 %v7544, %v7618
        %v7673 = vsub.f32 %v7545, %v7621
        %v7674 = vsub.f32 %v7546, %v7624
        %v7675 = vsub.f32 %v7547, %v7627
        %v7676 = vsub.f32 %v7548, %v7630
        %v7677 = vsub.f32 %v7549, %v7633
        %v7678 = vsub.f32 %v7550, %v7636
        %v7679 = vsub.f32 %v7551, %v7639
        %v7680 = vsub.f32 %v7552, %v7642
        %v7681 = vsub.f32 %v7553, %v7645
        %v7682 = vsub.f32 %v7554, %v7648
        %v7683 = vsub.f32 %v7555, %v7651
        %v7684 = vmul.f32 %v7652, 1.442695
        %v7685 = vpow.pop %v7684
        %v7686 = vmul.f32 %v7653, 1.442695
        %v7687 = vpow.pop %v7686
        %v7688 = vmul.f32 %v7654, 1.442695
        %v7689 = vpow.pop %v7688
        %v7690 = vmul.f32 %v7655, 1.442695
        %v7691 = vpow.pop %v7690
        %v7692 = vmul.f32 %v7656, 1.442695
        %v7693 = vpow.pop %v7692
        %v7694 = vmul.f32 %v7657, 1.442695
        %v7695 = vpow.pop %v7694
        %v7696 = vmul.f32 %v7658, 1.442695
        %v7697 = vpow.pop %v7696
        %v7698 = vmul.f32 %v7659, 1.442695
        %v7699 = vpow.pop %v7698
        %v7700 = vmul.f32 %v7660, 1.442695
        %v7701 = vpow.pop %v7700
        %v7702 = vmul.f32 %v7661, 1.442695
        %v7703 = vpow.pop %v7702
        %v7704 = vmul.f32 %v7662, 1.442695
        %v7705 = vpow.pop %v7704
        %v7706 = vmul.f32 %v7663, 1.442695
        %v7707 = vpow.pop %v7706
        %v7708 = vmul.f32 %v7664, 1.442695
        %v7709 = vpow.pop %v7708
        %v7710 = vmul.f32 %v7665, 1.442695
        %v7711 = vpow.pop %v7710
        %v7712 = vmul.f32 %v7666, 1.442695
        %v7713 = vpow.pop %v7712
        %v7714 = vmul.f32 %v7667, 1.442695
        %v7715 = vpow.pop %v7714
        %v7716 = vmul.f32 %v7668, 1.442695
        %v7717 = vpow.pop %v7716
        %v7718 = vmul.f32 %v7669, 1.442695
        %v7719 = vpow.pop %v7718
        %v7720 = vmul.f32 %v7670, 1.442695
        %v7721 = vpow.pop %v7720
        %v7722 = vmul.f32 %v7671, 1.442695
        %v7723 = vpow.pop %v7722
        %v7724 = vmul.f32 %v7672, 1.442695
        %v7725 = vpow.pop %v7724
        %v7726 = vmul.f32 %v7673, 1.442695
        %v7727 = vpow.pop %v7726
        %v7728 = vmul.f32 %v7674, 1.442695
        %v7729 = vpow.pop %v7728
        %v7730 = vmul.f32 %v7675, 1.442695
        %v7731 = vpow.pop %v7730
        %v7732 = vmul.f32 %v7676, 1.442695
        %v7733 = vpow.pop %v7732
        %v7734 = vmul.f32 %v7677, 1.442695
        %v7735 = vpow.pop %v7734
        %v7736 = vmul.f32 %v7678, 1.442695
        %v7737 = vpow.pop %v7736
        %v7738 = vmul.f32 %v7679, 1.442695
        %v7739 = vpow.pop %v7738
        %v7740 = vmul.f32 %v7680, 1.442695
        %v7741 = vpow.pop %v7740
        %v7742 = vmul.f32 %v7681, 1.442695
        %v7743 = vpow.pop %v7742
        %v7744 = vmul.f32 %v7682, 1.442695
        %v7745 = vpow.pop %v7744
        %v7746 = vmul.f32 %v7683, 1.442695
        %v7747 = vpow.pop %v7746
        %v7748 = vsel %vm2514, %v7685, 0.0
        %7749 = vadd.xlane.f32.xlu0 %v7748
        %v7750 = vpop.xlane.xlu0 %7749
        %v7751 = vsel %vm2514, %v7687, 0.0
        %7752 = vadd.xlane.f32.xlu0 %v7751
        %v7753 = vpop.xlane.xlu0 %7752
        %v7754 = vsel %vm2514, %v7689, 0.0
        %7755 = vadd.xlane.f32.xlu0 %v7754
        %v7756 = vpop.xlane.xlu0 %7755
        %v7757 = vsel %vm2514, %v7691, 0.0
        %7758 = vadd.xlane.f32.xlu0 %v7757
        %v7759 = vpop.xlane.xlu0 %7758
        %v7760 = vsel %vm2514, %v7693, 0.0
        %7761 = vadd.xlane.f32.xlu0 %v7760
        %v7762 = vpop.xlane.xlu0 %7761
        %v7763 = vsel %vm2514, %v7695, 0.0
        %7764 = vadd.xlane.f32.xlu0 %v7763
        %v7765 = vpop.xlane.xlu0 %7764
        %v7766 = vsel %vm2514, %v7697, 0.0
        %7767 = vadd.xlane.f32.xlu0 %v7766
        %v7768 = vpop.xlane.xlu0 %7767
        %v7769 = vsel %vm2514, %v7699, 0.0
        %7770 = vadd.xlane.f32.xlu0 %v7769
        %v7771 = vpop.xlane.xlu0 %7770
        %v7772 = vsel %vm2514, %v7701, 0.0
        %7773 = vadd.xlane.f32.xlu0 %v7772
        %v7774 = vpop.xlane.xlu0 %7773
        %v7775 = vsel %vm2514, %v7703, 0.0
        %7776 = vadd.xlane.f32.xlu0 %v7775
        %v7777 = vpop.xlane.xlu0 %7776
        %v7778 = vsel %vm2514, %v7705, 0.0
        %7779 = vadd.xlane.f32.xlu0 %v7778
        %v7780 = vpop.xlane.xlu0 %7779
        %v7781 = vsel %vm2514, %v7707, 0.0
        %7782 = vadd.xlane.f32.xlu0 %v7781
        %v7783 = vpop.xlane.xlu0 %7782
        %v7784 = vsel %vm2514, %v7709, 0.0
        %7785 = vadd.xlane.f32.xlu0 %v7784
        %v7786 = vpop.xlane.xlu0 %7785
        %v7787 = vsel %vm2514, %v7711, 0.0
        %7788 = vadd.xlane.f32.xlu0 %v7787
        %v7789 = vpop.xlane.xlu0 %7788
        %v7790 = vsel %vm2514, %v7713, 0.0
        %7791 = vadd.xlane.f32.xlu0 %v7790
        %v7792 = vpop.xlane.xlu0 %7791
        %v7793 = vsel %vm2514, %v7715, 0.0
        %7794 = vadd.xlane.f32.xlu0 %v7793
        %v7795 = vpop.xlane.xlu0 %7794
        %v7796 = vsel %vm2514, %v7717, 0.0
        %7797 = vadd.xlane.f32.xlu0 %v7796
        %v7798 = vpop.xlane.xlu0 %7797
        %v7799 = vsel %vm2514, %v7719, 0.0
        %7800 = vadd.xlane.f32.xlu0 %v7799
        %v7801 = vpop.xlane.xlu0 %7800
        %v7802 = vsel %vm2514, %v7721, 0.0
        %7803 = vadd.xlane.f32.xlu0 %v7802
        %v7804 = vpop.xlane.xlu0 %7803
        %v7805 = vsel %vm2514, %v7723, 0.0
        %7806 = vadd.xlane.f32.xlu0 %v7805
        %v7807 = vpop.xlane.xlu0 %7806
        %v7808 = vsel %vm2514, %v7725, 0.0
        %7809 = vadd.xlane.f32.xlu0 %v7808
        %v7810 = vpop.xlane.xlu0 %7809
        %v7811 = vsel %vm2514, %v7727, 0.0
        %7812 = vadd.xlane.f32.xlu0 %v7811
        %v7813 = vpop.xlane.xlu0 %7812
        %v7814 = vsel %vm2514, %v7729, 0.0
        %7815 = vadd.xlane.f32.xlu0 %v7814
        %v7816 = vpop.xlane.xlu0 %7815
        %v7817 = vsel %vm2514, %v7731, 0.0
        %7818 = vadd.xlane.f32.xlu0 %v7817
        %v7819 = vpop.xlane.xlu0 %7818
        %v7820 = vsel %vm2514, %v7733, 0.0
        %7821 = vadd.xlane.f32.xlu0 %v7820
        %v7822 = vpop.xlane.xlu0 %7821
        %v7823 = vsel %vm2514, %v7735, 0.0
        %7824 = vadd.xlane.f32.xlu0 %v7823
        %v7825 = vpop.xlane.xlu0 %7824
        %v7826 = vsel %vm2514, %v7737, 0.0
        %7827 = vadd.xlane.f32.xlu0 %v7826
        %v7828 = vpop.xlane.xlu0 %7827
        %v7829 = vsel %vm2514, %v7739, 0.0
        %7830 = vadd.xlane.f32.xlu0 %v7829
        %v7831 = vpop.xlane.xlu0 %7830
        %v7832 = vsel %vm2514, %v7741, 0.0
        %7833 = vadd.xlane.f32.xlu0 %v7832
        %v7834 = vpop.xlane.xlu0 %7833
        %v7835 = vsel %vm2514, %v7743, 0.0
        %7836 = vadd.xlane.f32.xlu0 %v7835
        %v7837 = vpop.xlane.xlu0 %7836
        %v7838 = vsel %vm2514, %v7745, 0.0
        %7839 = vadd.xlane.f32.xlu0 %v7838
        %v7840 = vpop.xlane.xlu0 %7839
        %v7841 = vsel %vm2514, %v7747, 0.0
        %7842 = vadd.xlane.f32.xlu0 %v7841
        %v7843 = vpop.xlane.xlu0 %7842
        %v7844 = vrcp.pop %v7750
        %v7845 = vrcp.pop %v7753
        %v7846 = vrcp.pop %v7756
        %v7847 = vrcp.pop %v7759
        %v7848 = vrcp.pop %v7762
        %v7849 = vrcp.pop %v7765
        %v7850 = vrcp.pop %v7768
        %v7851 = vrcp.pop %v7771
        %v7852 = vrcp.pop %v7774
        %v7853 = vrcp.pop %v7777
        %v7854 = vrcp.pop %v7780
        %v7855 = vrcp.pop %v7783
        %v7856 = vrcp.pop %v7786
        %v7857 = vrcp.pop %v7789
        %v7858 = vrcp.pop %v7792
        %v7859 = vrcp.pop %v7795
        %v7860 = vrcp.pop %v7798
        %v7861 = vrcp.pop %v7801
        %v7862 = vrcp.pop %v7804
        %v7863 = vrcp.pop %v7807
        %v7864 = vrcp.pop %v7810
        %v7865 = vrcp.pop %v7813
        %v7866 = vrcp.pop %v7816
        %v7867 = vrcp.pop %v7819
        %v7868 = vrcp.pop %v7822
        %v7869 = vrcp.pop %v7825
        %v7870 = vrcp.pop %v7828
        %v7871 = vrcp.pop %v7831
        %v7872 = vrcp.pop %v7834
        %v7873 = vrcp.pop %v7837
        %v7874 = vrcp.pop %v7840
        %v7875 = vrcp.pop %v7843
        %v7876 = vmul.f32 %v7685, %v7844
        %v7877 = vmul.f32 %v7687, %v7845
        %v7878 = vmul.f32 %v7689, %v7846
        %v7879 = vmul.f32 %v7691, %v7847
        %v7880 = vmul.f32 %v7693, %v7848
        %v7881 = vmul.f32 %v7695, %v7849
        %v7882 = vmul.f32 %v7697, %v7850
        %v7883 = vmul.f32 %v7699, %v7851
        %v7884 = vmul.f32 %v7701, %v7852
        %v7885 = vmul.f32 %v7703, %v7853
        %v7886 = vmul.f32 %v7705, %v7854
        %v7887 = vmul.f32 %v7707, %v7855
        %v7888 = vmul.f32 %v7709, %v7856
        %v7889 = vmul.f32 %v7711, %v7857
        %v7890 = vmul.f32 %v7713, %v7858
        %v7891 = vmul.f32 %v7715, %v7859
        %v7892 = vmul.f32 %v7717, %v7860
        %v7893 = vmul.f32 %v7719, %v7861
        %v7894 = vmul.f32 %v7721, %v7862
        %v7895 = vmul.f32 %v7723, %v7863
        %v7896 = vmul.f32 %v7725, %v7864
        %v7897 = vmul.f32 %v7727, %v7865
        %v7898 = vmul.f32 %v7729, %v7866
        %v7899 = vmul.f32 %v7731, %v7867
        %v7900 = vmul.f32 %v7733, %v7868
        %v7901 = vmul.f32 %v7735, %v7869
        %v7902 = vmul.f32 %v7737, %v7870
        %v7903 = vmul.f32 %v7739, %v7871
        %v7904 = vmul.f32 %v7741, %v7872
        %v7905 = vmul.f32 %v7743, %v7873
        %v7906 = vmul.f32 %v7745, %v7874
        %v7907 = vmul.f32 %v7747, %v7875
        %v7908 = vpack.c.bf16 %v7876, %v7876
        %v7909 = vpack.c.bf16 %v7877, %v7877
        %v7910 = vpack.c.bf16 %v7878, %v7878
        %v7911 = vpack.c.bf16 %v7879, %v7879
        %v7912 = vpack.c.bf16 %v7880, %v7880
        %v7913 = vpack.c.bf16 %v7881, %v7881
        %v7914 = vpack.c.bf16 %v7882, %v7882
        %v7915 = vpack.c.bf16 %v7883, %v7883
        %v7916 = vpack.c.bf16 %v7884, %v7884
        %v7917 = vpack.c.bf16 %v7885, %v7885
        %v7918 = vpack.c.bf16 %v7886, %v7886
        %v7919 = vpack.c.bf16 %v7887, %v7887
        %v7920 = vpack.c.bf16 %v7888, %v7888
        %v7921 = vpack.c.bf16 %v7889, %v7889
        %v7922 = vpack.c.bf16 %v7890, %v7890
        %v7923 = vpack.c.bf16 %v7891, %v7891
        %v7924 = vpack.c.bf16 %v7892, %v7892
        %v7925 = vpack.c.bf16 %v7893, %v7893
        %v7926 = vpack.c.bf16 %v7894, %v7894
        %v7927 = vpack.c.bf16 %v7895, %v7895
        %v7928 = vpack.c.bf16 %v7896, %v7896
        %v7929 = vpack.c.bf16 %v7897, %v7897
        %v7930 = vpack.c.bf16 %v7898, %v7898
        %v7931 = vpack.c.bf16 %v7899, %v7899
        %v7932 = vpack.c.bf16 %v7900, %v7900
        %v7933 = vpack.c.bf16 %v7901, %v7901
        %v7934 = vpack.c.bf16 %v7902, %v7902
        %v7935 = vpack.c.bf16 %v7903, %v7903
        %v7936 = vpack.c.bf16 %v7904, %v7904
        %v7937 = vpack.c.bf16 %v7905, %v7905
        %v7938 = vpack.c.bf16 %v7906, %v7906
        %v7939 = vpack.c.bf16 %v7907, %v7907
        %7940 = vrot.lane.b32.xlu0 %v5892, 64
        %v7941 = vpop.permute.xlu0 %7940
        %v7943 = vsel %vm2514, %v7908, 0
        %v7946 = vsel %vm2904, %v7941, 0
        %7948 = vmatprep.subr.bf16.mxu0 0
        %7949 = vmatpush1.bf16.msra.mxu0 0
        %7950 = vmatprep.subr.bf16.mxu0 0
        %7951 = vmatpush1.bf16.msra.mxu0 0
        %7952 = vmatprep.subr.bf16.mxu0 0
        %7953 = vmatpush1.bf16.msra.mxu0 0
        %7954 = vmatprep.subr.bf16.mxu0 0
        %7955 = vmatpush1.bf16.msra.mxu0 0
        %7956 = vmatprep.subr.bf16.mxu0 0
        %7957 = vmatpush1.bf16.msra.mxu0 0
        %7958 = vmatprep.subr.bf16.mxu0 0
        %7959 = vmatpush1.bf16.msra.mxu0 0
        %7960 = vmatprep.subr.bf16.mxu0 0
        %7961 = vmatpush1.bf16.msra.mxu0 0
        %7962 = vmatprep.subr.bf16.mxu0 0
        %7963 = vmatpush1.bf16.msra.mxu0 %v7946
        %7964 = vmatprep.subr.bf16.mxu0 0
        %7965 = vmatpush2.bf16.msra.mxu0 0
        %7966 = vmatprep.subr.bf16.mxu0 0
        %7967 = vmatpush2.bf16.msra.mxu0 0
        %7968 = vmatprep.subr.bf16.mxu0 0
        %7969 = vmatpush2.bf16.msra.mxu0 0
        %7970 = vmatprep.subr.bf16.mxu0 0
        %7971 = vmatpush2.bf16.msra.mxu0 0
        %7972 = vmatprep.subr.bf16.mxu0 0
        %7973 = vmatpush2.bf16.msra.mxu0 0
        %7974 = vmatprep.subr.bf16.mxu0 0
        %7975 = vmatpush2.bf16.msra.mxu0 0
        %7976 = vmatprep.subr.bf16.mxu0 0
        %7977 = vmatpush2.bf16.msra.mxu0 0
        %7978 = vmatprep.subr.bf16.mxu0 0
        %7979 = vmatpush2.bf16.msra.mxu0 0
        %7980 = vmatprep.mubr.bf16.mxu0 0
        %7981 = vmatmul.mubr.bf16.gmra.mxu0 %v7943
        %v7982 = vpop.f32.mrf.mxu0
        %v7983 = vadd.f32 0.0, %v7982
        %v7984 = vpop.f32.mrf.mxu0
        %v7985 = vpop.f32.mrf.mxu0
        %v7986 = vpop.f32.mrf.mxu0
        %7987 = vdwg.mxu0
        %7988 = vrot.lane.b32.xlu0 %v5893, 64
        %v7989 = vpop.permute.xlu0 %7988
        %v7991 = vsel %vm2514, %v7909, 0
        %v7994 = vsel %vm2904, %v7989, 0
        %7996 = vmatprep.subr.bf16.mxu0 0
        %7997 = vmatpush1.bf16.msra.mxu0 0
        %7998 = vmatprep.subr.bf16.mxu0 0
        %7999 = vmatpush1.bf16.msra.mxu0 0
        %8000 = vmatprep.subr.bf16.mxu0 0
        %8001 = vmatpush1.bf16.msra.mxu0 0
        %8002 = vmatprep.subr.bf16.mxu0 0
        %8003 = vmatpush1.bf16.msra.mxu0 0
        %8004 = vmatprep.subr.bf16.mxu0 0
        %8005 = vmatpush1.bf16.msra.mxu0 0
        %8006 = vmatprep.subr.bf16.mxu0 0
        %8007 = vmatpush1.bf16.msra.mxu0 0
        %8008 = vmatprep.subr.bf16.mxu0 0
        %8009 = vmatpush1.bf16.msra.mxu0 0
        %8010 = vmatprep.subr.bf16.mxu0 0
        %8011 = vmatpush1.bf16.msra.mxu0 %v7994
        %8012 = vmatprep.subr.bf16.mxu0 0
        %8013 = vmatpush2.bf16.msra.mxu0 0
        %8014 = vmatprep.subr.bf16.mxu0 0
        %8015 = vmatpush2.bf16.msra.mxu0 0
        %8016 = vmatprep.subr.bf16.mxu0 0
        %8017 = vmatpush2.bf16.msra.mxu0 0
        %8018 = vmatprep.subr.bf16.mxu0 0
        %8019 = vmatpush2.bf16.msra.mxu0 0
        %8020 = vmatprep.subr.bf16.mxu0 0
        %8021 = vmatpush2.bf16.msra.mxu0 0
        %8022 = vmatprep.subr.bf16.mxu0 0
        %8023 = vmatpush2.bf16.msra.mxu0 0
        %8024 = vmatprep.subr.bf16.mxu0 0
        %8025 = vmatpush2.bf16.msra.mxu0 0
        %8026 = vmatprep.subr.bf16.mxu0 0
        %8027 = vmatpush2.bf16.msra.mxu0 0
        %8028 = vmatprep.mubr.bf16.mxu0 0
        %8029 = vmatmul.mubr.bf16.gmra.mxu0 %v7991
        %v8030 = vpop.f32.mrf.mxu0
        %v8031 = vadd.f32 0.0, %v8030
        %v8032 = vpop.f32.mrf.mxu0
        %v8033 = vpop.f32.mrf.mxu0
        %v8034 = vpop.f32.mrf.mxu0
        %8035 = vdwg.mxu0
        %8036 = vrot.lane.b32.xlu0 %v5894, 64
        %v8037 = vpop.permute.xlu0 %8036
        %v8039 = vsel %vm2514, %v7910, 0
        %v8042 = vsel %vm2904, %v8037, 0
        %8044 = vmatprep.subr.bf16.mxu0 0
        %8045 = vmatpush1.bf16.msra.mxu0 0
        %8046 = vmatprep.subr.bf16.mxu0 0
        %8047 = vmatpush1.bf16.msra.mxu0 0
        %8048 = vmatprep.subr.bf16.mxu0 0
        %8049 = vmatpush1.bf16.msra.mxu0 0
        %8050 = vmatprep.subr.bf16.mxu0 0
        %8051 = vmatpush1.bf16.msra.mxu0 0
        %8052 = vmatprep.subr.bf16.mxu0 0
        %8053 = vmatpush1.bf16.msra.mxu0 0
        %8054 = vmatprep.subr.bf16.mxu0 0
        %8055 = vmatpush1.bf16.msra.mxu0 0
        %8056 = vmatprep.subr.bf16.mxu0 0
        %8057 = vmatpush1.bf16.msra.mxu0 0
        %8058 = vmatprep.subr.bf16.mxu0 0
        %8059 = vmatpush1.bf16.msra.mxu0 %v8042
        %8060 = vmatprep.subr.bf16.mxu0 0
        %8061 = vmatpush2.bf16.msra.mxu0 0
        %8062 = vmatprep.subr.bf16.mxu0 0
        %8063 = vmatpush2.bf16.msra.mxu0 0
        %8064 = vmatprep.subr.bf16.mxu0 0
        %8065 = vmatpush2.bf16.msra.mxu0 0
        %8066 = vmatprep.subr.bf16.mxu0 0
        %8067 = vmatpush2.bf16.msra.mxu0 0
        %8068 = vmatprep.subr.bf16.mxu0 0
        %8069 = vmatpush2.bf16.msra.mxu0 0
        %8070 = vmatprep.subr.bf16.mxu0 0
        %8071 = vmatpush2.bf16.msra.mxu0 0
        %8072 = vmatprep.subr.bf16.mxu0 0
        %8073 = vmatpush2.bf16.msra.mxu0 0
        %8074 = vmatprep.subr.bf16.mxu0 0
        %8075 = vmatpush2.bf16.msra.mxu0 0
        %8076 = vmatprep.mubr.bf16.mxu0 0
        %8077 = vmatmul.mubr.bf16.gmra.mxu0 %v8039
        %v8078 = vpop.f32.mrf.mxu0
        %v8079 = vadd.f32 0.0, %v8078
        %v8080 = vpop.f32.mrf.mxu0
        %v8081 = vpop.f32.mrf.mxu0
        %v8082 = vpop.f32.mrf.mxu0
        %8083 = vdwg.mxu0
        %8084 = vrot.lane.b32.xlu0 %v5895, 64
        %v8085 = vpop.permute.xlu0 %8084
        %v8087 = vsel %vm2514, %v7911, 0
        %v8090 = vsel %vm2904, %v8085, 0
        %8092 = vmatprep.subr.bf16.mxu0 0
        %8093 = vmatpush1.bf16.msra.mxu0 0
        %8094 = vmatprep.subr.bf16.mxu0 0
        %8095 = vmatpush1.bf16.msra.mxu0 0
        %8096 = vmatprep.subr.bf16.mxu0 0
        %8097 = vmatpush1.bf16.msra.mxu0 0
        %8098 = vmatprep.subr.bf16.mxu0 0
        %8099 = vmatpush1.bf16.msra.mxu0 0
        %8100 = vmatprep.subr.bf16.mxu0 0
        %8101 = vmatpush1.bf16.msra.mxu0 0
        %8102 = vmatprep.subr.bf16.mxu0 0
        %8103 = vmatpush1.bf16.msra.mxu0 0
        %8104 = vmatprep.subr.bf16.mxu0 0
        %8105 = vmatpush1.bf16.msra.mxu0 0
        %8106 = vmatprep.subr.bf16.mxu0 0
        %8107 = vmatpush1.bf16.msra.mxu0 %v8090
        %8108 = vmatprep.subr.bf16.mxu0 0
        %8109 = vmatpush2.bf16.msra.mxu0 0
        %8110 = vmatprep.subr.bf16.mxu0 0
        %8111 = vmatpush2.bf16.msra.mxu0 0
        %8112 = vmatprep.subr.bf16.mxu0 0
        %8113 = vmatpush2.bf16.msra.mxu0 0
        %8114 = vmatprep.subr.bf16.mxu0 0
        %8115 = vmatpush2.bf16.msra.mxu0 0
        %8116 = vmatprep.subr.bf16.mxu0 0
        %8117 = vmatpush2.bf16.msra.mxu0 0
        %8118 = vmatprep.subr.bf16.mxu0 0
        %8119 = vmatpush2.bf16.msra.mxu0 0
        %8120 = vmatprep.subr.bf16.mxu0 0
        %8121 = vmatpush2.bf16.msra.mxu0 0
        %8122 = vmatprep.subr.bf16.mxu0 0
        %8123 = vmatpush2.bf16.msra.mxu0 0
        %8124 = vmatprep.mubr.bf16.mxu0 0
        %8125 = vmatmul.mubr.bf16.gmra.mxu0 %v8087
        %v8126 = vpop.f32.mrf.mxu0
        %v8127 = vadd.f32 0.0, %v8126
        %v8128 = vpop.f32.mrf.mxu0
        %v8129 = vpop.f32.mrf.mxu0
        %v8130 = vpop.f32.mrf.mxu0
        %8131 = vdwg.mxu0
        %8132 = vrot.lane.b32.xlu0 %v5896, 64
        %v8133 = vpop.permute.xlu0 %8132
        %v8135 = vsel %vm2514, %v7912, 0
        %v8138 = vsel %vm2904, %v8133, 0
        %8140 = vmatprep.subr.bf16.mxu0 0
        %8141 = vmatpush1.bf16.msra.mxu0 0
        %8142 = vmatprep.subr.bf16.mxu0 0
        %8143 = vmatpush1.bf16.msra.mxu0 0
        %8144 = vmatprep.subr.bf16.mxu0 0
        %8145 = vmatpush1.bf16.msra.mxu0 0
        %8146 = vmatprep.subr.bf16.mxu0 0
        %8147 = vmatpush1.bf16.msra.mxu0 0
        %8148 = vmatprep.subr.bf16.mxu0 0
        %8149 = vmatpush1.bf16.msra.mxu0 0
        %8150 = vmatprep.subr.bf16.mxu0 0
        %8151 = vmatpush1.bf16.msra.mxu0 0
        %8152 = vmatprep.subr.bf16.mxu0 0
        %8153 = vmatpush1.bf16.msra.mxu0 0
        %8154 = vmatprep.subr.bf16.mxu0 0
        %8155 = vmatpush1.bf16.msra.mxu0 %v8138
        %8156 = vmatprep.subr.bf16.mxu0 0
        %8157 = vmatpush2.bf16.msra.mxu0 0
        %8158 = vmatprep.subr.bf16.mxu0 0
        %8159 = vmatpush2.bf16.msra.mxu0 0
        %8160 = vmatprep.subr.bf16.mxu0 0
        %8161 = vmatpush2.bf16.msra.mxu0 0
        %8162 = vmatprep.subr.bf16.mxu0 0
        %8163 = vmatpush2.bf16.msra.mxu0 0
        %8164 = vmatprep.subr.bf16.mxu0 0
        %8165 = vmatpush2.bf16.msra.mxu0 0
        %8166 = vmatprep.subr.bf16.mxu0 0
        %8167 = vmatpush2.bf16.msra.mxu0 0
        %8168 = vmatprep.subr.bf16.mxu0 0
        %8169 = vmatpush2.bf16.msra.mxu0 0
        %8170 = vmatprep.subr.bf16.mxu0 0
        %8171 = vmatpush2.bf16.msra.mxu0 0
        %8172 = vmatprep.mubr.bf16.mxu0 0
        %8173 = vmatmul.mubr.bf16.gmra.mxu0 %v8135
        %v8174 = vpop.f32.mrf.mxu0
        %v8175 = vadd.f32 0.0, %v8174
        %v8176 = vpop.f32.mrf.mxu0
        %v8177 = vpop.f32.mrf.mxu0
        %v8178 = vpop.f32.mrf.mxu0
        %8179 = vdwg.mxu0
        %8180 = vrot.lane.b32.xlu0 %v5897, 64
        %v8181 = vpop.permute.xlu0 %8180
        %v8183 = vsel %vm2514, %v7913, 0
        %v8186 = vsel %vm2904, %v8181, 0
        %8188 = vmatprep.subr.bf16.mxu0 0
        %8189 = vmatpush1.bf16.msra.mxu0 0
        %8190 = vmatprep.subr.bf16.mxu0 0
        %8191 = vmatpush1.bf16.msra.mxu0 0
        %8192 = vmatprep.subr.bf16.mxu0 0
        %8193 = vmatpush1.bf16.msra.mxu0 0
        %8194 = vmatprep.subr.bf16.mxu0 0
        %8195 = vmatpush1.bf16.msra.mxu0 0
        %8196 = vmatprep.subr.bf16.mxu0 0
        %8197 = vmatpush1.bf16.msra.mxu0 0
        %8198 = vmatprep.subr.bf16.mxu0 0
        %8199 = vmatpush1.bf16.msra.mxu0 0
        %8200 = vmatprep.subr.bf16.mxu0 0
        %8201 = vmatpush1.bf16.msra.mxu0 0
        %8202 = vmatprep.subr.bf16.mxu0 0
        %8203 = vmatpush1.bf16.msra.mxu0 %v8186
        %8204 = vmatprep.subr.bf16.mxu0 0
        %8205 = vmatpush2.bf16.msra.mxu0 0
        %8206 = vmatprep.subr.bf16.mxu0 0
        %8207 = vmatpush2.bf16.msra.mxu0 0
        %8208 = vmatprep.subr.bf16.mxu0 0
        %8209 = vmatpush2.bf16.msra.mxu0 0
        %8210 = vmatprep.subr.bf16.mxu0 0
        %8211 = vmatpush2.bf16.msra.mxu0 0
        %8212 = vmatprep.subr.bf16.mxu0 0
        %8213 = vmatpush2.bf16.msra.mxu0 0
        %8214 = vmatprep.subr.bf16.mxu0 0
        %8215 = vmatpush2.bf16.msra.mxu0 0
        %8216 = vmatprep.subr.bf16.mxu0 0
        %8217 = vmatpush2.bf16.msra.mxu0 0
        %8218 = vmatprep.subr.bf16.mxu0 0
        %8219 = vmatpush2.bf16.msra.mxu0 0
        %8220 = vmatprep.mubr.bf16.mxu0 0
        %8221 = vmatmul.mubr.bf16.gmra.mxu0 %v8183
        %v8222 = vpop.f32.mrf.mxu0
        %v8223 = vadd.f32 0.0, %v8222
        %v8224 = vpop.f32.mrf.mxu0
        %v8225 = vpop.f32.mrf.mxu0
        %v8226 = vpop.f32.mrf.mxu0
        %8227 = vdwg.mxu0
        %8228 = vrot.lane.b32.xlu0 %v5898, 64
        %v8229 = vpop.permute.xlu0 %8228
        %v8231 = vsel %vm2514, %v7914, 0
        %v8234 = vsel %vm2904, %v8229, 0
        %8236 = vmatprep.subr.bf16.mxu0 0
        %8237 = vmatpush1.bf16.msra.mxu0 0
        %8238 = vmatprep.subr.bf16.mxu0 0
        %8239 = vmatpush1.bf16.msra.mxu0 0
        %8240 = vmatprep.subr.bf16.mxu0 0
        %8241 = vmatpush1.bf16.msra.mxu0 0
        %8242 = vmatprep.subr.bf16.mxu0 0
        %8243 = vmatpush1.bf16.msra.mxu0 0
        %8244 = vmatprep.subr.bf16.mxu0 0
        %8245 = vmatpush1.bf16.msra.mxu0 0
        %8246 = vmatprep.subr.bf16.mxu0 0
        %8247 = vmatpush1.bf16.msra.mxu0 0
        %8248 = vmatprep.subr.bf16.mxu0 0
        %8249 = vmatpush1.bf16.msra.mxu0 0
        %8250 = vmatprep.subr.bf16.mxu0 0
        %8251 = vmatpush1.bf16.msra.mxu0 %v8234
        %8252 = vmatprep.subr.bf16.mxu0 0
        %8253 = vmatpush2.bf16.msra.mxu0 0
        %8254 = vmatprep.subr.bf16.mxu0 0
        %8255 = vmatpush2.bf16.msra.mxu0 0
        %8256 = vmatprep.subr.bf16.mxu0 0
        %8257 = vmatpush2.bf16.msra.mxu0 0
        %8258 = vmatprep.subr.bf16.mxu0 0
        %8259 = vmatpush2.bf16.msra.mxu0 0
        %8260 = vmatprep.subr.bf16.mxu0 0
        %8261 = vmatpush2.bf16.msra.mxu0 0
        %8262 = vmatprep.subr.bf16.mxu0 0
        %8263 = vmatpush2.bf16.msra.mxu0 0
        %8264 = vmatprep.subr.bf16.mxu0 0
        %8265 = vmatpush2.bf16.msra.mxu0 0
        %8266 = vmatprep.subr.bf16.mxu0 0
        %8267 = vmatpush2.bf16.msra.mxu0 0
        %8268 = vmatprep.mubr.bf16.mxu0 0
        %8269 = vmatmul.mubr.bf16.gmra.mxu0 %v8231
        %v8270 = vpop.f32.mrf.mxu0
        %v8271 = vadd.f32 0.0, %v8270
        %v8272 = vpop.f32.mrf.mxu0
        %v8273 = vpop.f32.mrf.mxu0
        %v8274 = vpop.f32.mrf.mxu0
        %8275 = vdwg.mxu0
        %8276 = vrot.lane.b32.xlu0 %v5899, 64
        %v8277 = vpop.permute.xlu0 %8276
        %v8279 = vsel %vm2514, %v7915, 0
        %v8282 = vsel %vm2904, %v8277, 0
        %8284 = vmatprep.subr.bf16.mxu0 0
        %8285 = vmatpush1.bf16.msra.mxu0 0
        %8286 = vmatprep.subr.bf16.mxu0 0
        %8287 = vmatpush1.bf16.msra.mxu0 0
        %8288 = vmatprep.subr.bf16.mxu0 0
        %8289 = vmatpush1.bf16.msra.mxu0 0
        %8290 = vmatprep.subr.bf16.mxu0 0
        %8291 = vmatpush1.bf16.msra.mxu0 0
        %8292 = vmatprep.subr.bf16.mxu0 0
        %8293 = vmatpush1.bf16.msra.mxu0 0
        %8294 = vmatprep.subr.bf16.mxu0 0
        %8295 = vmatpush1.bf16.msra.mxu0 0
        %8296 = vmatprep.subr.bf16.mxu0 0
        %8297 = vmatpush1.bf16.msra.mxu0 0
        %8298 = vmatprep.subr.bf16.mxu0 0
        %8299 = vmatpush1.bf16.msra.mxu0 %v8282
        %8300 = vmatprep.subr.bf16.mxu0 0
        %8301 = vmatpush2.bf16.msra.mxu0 0
        %8302 = vmatprep.subr.bf16.mxu0 0
        %8303 = vmatpush2.bf16.msra.mxu0 0
        %8304 = vmatprep.subr.bf16.mxu0 0
        %8305 = vmatpush2.bf16.msra.mxu0 0
        %8306 = vmatprep.subr.bf16.mxu0 0
        %8307 = vmatpush2.bf16.msra.mxu0 0
        %8308 = vmatprep.subr.bf16.mxu0 0
        %8309 = vmatpush2.bf16.msra.mxu0 0
        %8310 = vmatprep.subr.bf16.mxu0 0
        %8311 = vmatpush2.bf16.msra.mxu0 0
        %8312 = vmatprep.subr.bf16.mxu0 0
        %8313 = vmatpush2.bf16.msra.mxu0 0
        %8314 = vmatprep.subr.bf16.mxu0 0
        %8315 = vmatpush2.bf16.msra.mxu0 0
        %8316 = vmatprep.mubr.bf16.mxu0 0
        %8317 = vmatmul.mubr.bf16.gmra.mxu0 %v8279
        %v8318 = vpop.f32.mrf.mxu0
        %v8319 = vadd.f32 0.0, %v8318
        %v8320 = vpop.f32.mrf.mxu0
        %v8321 = vpop.f32.mrf.mxu0
        %v8322 = vpop.f32.mrf.mxu0
        %8323 = vdwg.mxu0
        %8324 = vrot.lane.b32.xlu0 %v5900, 64
        %v8325 = vpop.permute.xlu0 %8324
        %v8327 = vsel %vm2514, %v7916, 0
        %v8330 = vsel %vm2904, %v8325, 0
        %8332 = vmatprep.subr.bf16.mxu0 0
        %8333 = vmatpush1.bf16.msra.mxu0 0
        %8334 = vmatprep.subr.bf16.mxu0 0
        %8335 = vmatpush1.bf16.msra.mxu0 0
        %8336 = vmatprep.subr.bf16.mxu0 0
        %8337 = vmatpush1.bf16.msra.mxu0 0
        %8338 = vmatprep.subr.bf16.mxu0 0
        %8339 = vmatpush1.bf16.msra.mxu0 0
        %8340 = vmatprep.subr.bf16.mxu0 0
        %8341 = vmatpush1.bf16.msra.mxu0 0
        %8342 = vmatprep.subr.bf16.mxu0 0
        %8343 = vmatpush1.bf16.msra.mxu0 0
        %8344 = vmatprep.subr.bf16.mxu0 0
        %8345 = vmatpush1.bf16.msra.mxu0 0
        %8346 = vmatprep.subr.bf16.mxu0 0
        %8347 = vmatpush1.bf16.msra.mxu0 %v8330
        %8348 = vmatprep.subr.bf16.mxu0 0
        %8349 = vmatpush2.bf16.msra.mxu0 0
        %8350 = vmatprep.subr.bf16.mxu0 0
        %8351 = vmatpush2.bf16.msra.mxu0 0
        %8352 = vmatprep.subr.bf16.mxu0 0
        %8353 = vmatpush2.bf16.msra.mxu0 0
        %8354 = vmatprep.subr.bf16.mxu0 0
        %8355 = vmatpush2.bf16.msra.mxu0 0
        %8356 = vmatprep.subr.bf16.mxu0 0
        %8357 = vmatpush2.bf16.msra.mxu0 0
        %8358 = vmatprep.subr.bf16.mxu0 0
        %8359 = vmatpush2.bf16.msra.mxu0 0
        %8360 = vmatprep.subr.bf16.mxu0 0
        %8361 = vmatpush2.bf16.msra.mxu0 0
        %8362 = vmatprep.subr.bf16.mxu0 0
        %8363 = vmatpush2.bf16.msra.mxu0 0
        %8364 = vmatprep.mubr.bf16.mxu0 0
        %8365 = vmatmul.mubr.bf16.gmra.mxu0 %v8327
        %v8366 = vpop.f32.mrf.mxu0
        %v8367 = vadd.f32 0.0, %v8366
        %v8368 = vpop.f32.mrf.mxu0
        %v8369 = vpop.f32.mrf.mxu0
        %v8370 = vpop.f32.mrf.mxu0
        %8371 = vdwg.mxu0
        %8372 = vrot.lane.b32.xlu0 %v5901, 64
        %v8373 = vpop.permute.xlu0 %8372
        %v8375 = vsel %vm2514, %v7917, 0
        %v8378 = vsel %vm2904, %v8373, 0
        %8380 = vmatprep.subr.bf16.mxu0 0
        %8381 = vmatpush1.bf16.msra.mxu0 0
        %8382 = vmatprep.subr.bf16.mxu0 0
        %8383 = vmatpush1.bf16.msra.mxu0 0
        %8384 = vmatprep.subr.bf16.mxu0 0
        %8385 = vmatpush1.bf16.msra.mxu0 0
        %8386 = vmatprep.subr.bf16.mxu0 0
        %8387 = vmatpush1.bf16.msra.mxu0 0
        %8388 = vmatprep.subr.bf16.mxu0 0
        %8389 = vmatpush1.bf16.msra.mxu0 0
        %8390 = vmatprep.subr.bf16.mxu0 0
        %8391 = vmatpush1.bf16.msra.mxu0 0
        %8392 = vmatprep.subr.bf16.mxu0 0
        %8393 = vmatpush1.bf16.msra.mxu0 0
        %8394 = vmatprep.subr.bf16.mxu0 0
        %8395 = vmatpush1.bf16.msra.mxu0 %v8378
        %8396 = vmatprep.subr.bf16.mxu0 0
        %8397 = vmatpush2.bf16.msra.mxu0 0
        %8398 = vmatprep.subr.bf16.mxu0 0
        %8399 = vmatpush2.bf16.msra.mxu0 0
        %8400 = vmatprep.subr.bf16.mxu0 0
        %8401 = vmatpush2.bf16.msra.mxu0 0
        %8402 = vmatprep.subr.bf16.mxu0 0
        %8403 = vmatpush2.bf16.msra.mxu0 0
        %8404 = vmatprep.subr.bf16.mxu0 0
        %8405 = vmatpush2.bf16.msra.mxu0 0
        %8406 = vmatprep.subr.bf16.mxu0 0
        %8407 = vmatpush2.bf16.msra.mxu0 0
        %8408 = vmatprep.subr.bf16.mxu0 0
        %8409 = vmatpush2.bf16.msra.mxu0 0
        %8410 = vmatprep.subr.bf16.mxu0 0
        %8411 = vmatpush2.bf16.msra.mxu0 0
        %8412 = vmatprep.mubr.bf16.mxu0 0
        %8413 = vmatmul.mubr.bf16.gmra.mxu0 %v8375
        %v8414 = vpop.f32.mrf.mxu0
        %v8415 = vadd.f32 0.0, %v8414
        %v8416 = vpop.f32.mrf.mxu0
        %v8417 = vpop.f32.mrf.mxu0
        %v8418 = vpop.f32.mrf.mxu0
        %8419 = vdwg.mxu0
        %8420 = vrot.lane.b32.xlu0 %v5902, 64
        %v8421 = vpop.permute.xlu0 %8420
        %v8423 = vsel %vm2514, %v7918, 0
        %v8426 = vsel %vm2904, %v8421, 0
        %8428 = vmatprep.subr.bf16.mxu0 0
        %8429 = vmatpush1.bf16.msra.mxu0 0
        %8430 = vmatprep.subr.bf16.mxu0 0
        %8431 = vmatpush1.bf16.msra.mxu0 0
        %8432 = vmatprep.subr.bf16.mxu0 0
        %8433 = vmatpush1.bf16.msra.mxu0 0
        %8434 = vmatprep.subr.bf16.mxu0 0
        %8435 = vmatpush1.bf16.msra.mxu0 0
        %8436 = vmatprep.subr.bf16.mxu0 0
        %8437 = vmatpush1.bf16.msra.mxu0 0
        %8438 = vmatprep.subr.bf16.mxu0 0
        %8439 = vmatpush1.bf16.msra.mxu0 0
        %8440 = vmatprep.subr.bf16.mxu0 0
        %8441 = vmatpush1.bf16.msra.mxu0 0
        %8442 = vmatprep.subr.bf16.mxu0 0
        %8443 = vmatpush1.bf16.msra.mxu0 %v8426
        %8444 = vmatprep.subr.bf16.mxu0 0
        %8445 = vmatpush2.bf16.msra.mxu0 0
        %8446 = vmatprep.subr.bf16.mxu0 0
        %8447 = vmatpush2.bf16.msra.mxu0 0
        %8448 = vmatprep.subr.bf16.mxu0 0
        %8449 = vmatpush2.bf16.msra.mxu0 0
        %8450 = vmatprep.subr.bf16.mxu0 0
        %8451 = vmatpush2.bf16.msra.mxu0 0
        %8452 = vmatprep.subr.bf16.mxu0 0
        %8453 = vmatpush2.bf16.msra.mxu0 0
        %8454 = vmatprep.subr.bf16.mxu0 0
        %8455 = vmatpush2.bf16.msra.mxu0 0
        %8456 = vmatprep.subr.bf16.mxu0 0
        %8457 = vmatpush2.bf16.msra.mxu0 0
        %8458 = vmatprep.subr.bf16.mxu0 0
        %8459 = vmatpush2.bf16.msra.mxu0 0
        %8460 = vmatprep.mubr.bf16.mxu0 0
        %8461 = vmatmul.mubr.bf16.gmra.mxu0 %v8423
        %v8462 = vpop.f32.mrf.mxu0
        %v8463 = vadd.f32 0.0, %v8462
        %v8464 = vpop.f32.mrf.mxu0
        %v8465 = vpop.f32.mrf.mxu0
        %v8466 = vpop.f32.mrf.mxu0
        %8467 = vdwg.mxu0
        %8468 = vrot.lane.b32.xlu0 %v5903, 64
        %v8469 = vpop.permute.xlu0 %8468
        %v8471 = vsel %vm2514, %v7919, 0
        %v8474 = vsel %vm2904, %v8469, 0
        %8476 = vmatprep.subr.bf16.mxu0 0
        %8477 = vmatpush1.bf16.msra.mxu0 0
        %8478 = vmatprep.subr.bf16.mxu0 0
        %8479 = vmatpush1.bf16.msra.mxu0 0
        %8480 = vmatprep.subr.bf16.mxu0 0
        %8481 = vmatpush1.bf16.msra.mxu0 0
        %8482 = vmatprep.subr.bf16.mxu0 0
        %8483 = vmatpush1.bf16.msra.mxu0 0
        %8484 = vmatprep.subr.bf16.mxu0 0
        %8485 = vmatpush1.bf16.msra.mxu0 0
        %8486 = vmatprep.subr.bf16.mxu0 0
        %8487 = vmatpush1.bf16.msra.mxu0 0
        %8488 = vmatprep.subr.bf16.mxu0 0
        %8489 = vmatpush1.bf16.msra.mxu0 0
        %8490 = vmatprep.subr.bf16.mxu0 0
        %8491 = vmatpush1.bf16.msra.mxu0 %v8474
        %8492 = vmatprep.subr.bf16.mxu0 0
        %8493 = vmatpush2.bf16.msra.mxu0 0
        %8494 = vmatprep.subr.bf16.mxu0 0
        %8495 = vmatpush2.bf16.msra.mxu0 0
        %8496 = vmatprep.subr.bf16.mxu0 0
        %8497 = vmatpush2.bf16.msra.mxu0 0
        %8498 = vmatprep.subr.bf16.mxu0 0
        %8499 = vmatpush2.bf16.msra.mxu0 0
        %8500 = vmatprep.subr.bf16.mxu0 0
        %8501 = vmatpush2.bf16.msra.mxu0 0
        %8502 = vmatprep.subr.bf16.mxu0 0
        %8503 = vmatpush2.bf16.msra.mxu0 0
        %8504 = vmatprep.subr.bf16.mxu0 0
        %8505 = vmatpush2.bf16.msra.mxu0 0
        %8506 = vmatprep.subr.bf16.mxu0 0
        %8507 = vmatpush2.bf16.msra.mxu0 0
        %8508 = vmatprep.mubr.bf16.mxu0 0
        %8509 = vmatmul.mubr.bf16.gmra.mxu0 %v8471
        %v8510 = vpop.f32.mrf.mxu0
        %v8511 = vadd.f32 0.0, %v8510
        %v8512 = vpop.f32.mrf.mxu0
        %v8513 = vpop.f32.mrf.mxu0
        %v8514 = vpop.f32.mrf.mxu0
        %8515 = vdwg.mxu0
        %8516 = vrot.lane.b32.xlu0 %v5904, 64
        %v8517 = vpop.permute.xlu0 %8516
        %v8519 = vsel %vm2514, %v7920, 0
        %v8522 = vsel %vm2904, %v8517, 0
        %8524 = vmatprep.subr.bf16.mxu0 0
        %8525 = vmatpush1.bf16.msra.mxu0 0
        %8526 = vmatprep.subr.bf16.mxu0 0
        %8527 = vmatpush1.bf16.msra.mxu0 0
        %8528 = vmatprep.subr.bf16.mxu0 0
        %8529 = vmatpush1.bf16.msra.mxu0 0
        %8530 = vmatprep.subr.bf16.mxu0 0
        %8531 = vmatpush1.bf16.msra.mxu0 0
        %8532 = vmatprep.subr.bf16.mxu0 0
        %8533 = vmatpush1.bf16.msra.mxu0 0
        %8534 = vmatprep.subr.bf16.mxu0 0
        %8535 = vmatpush1.bf16.msra.mxu0 0
        %8536 = vmatprep.subr.bf16.mxu0 0
        %8537 = vmatpush1.bf16.msra.mxu0 0
        %8538 = vmatprep.subr.bf16.mxu0 0
        %8539 = vmatpush1.bf16.msra.mxu0 %v8522
        %8540 = vmatprep.subr.bf16.mxu0 0
        %8541 = vmatpush2.bf16.msra.mxu0 0
        %8542 = vmatprep.subr.bf16.mxu0 0
        %8543 = vmatpush2.bf16.msra.mxu0 0
        %8544 = vmatprep.subr.bf16.mxu0 0
        %8545 = vmatpush2.bf16.msra.mxu0 0
        %8546 = vmatprep.subr.bf16.mxu0 0
        %8547 = vmatpush2.bf16.msra.mxu0 0
        %8548 = vmatprep.subr.bf16.mxu0 0
        %8549 = vmatpush2.bf16.msra.mxu0 0
        %8550 = vmatprep.subr.bf16.mxu0 0
        %8551 = vmatpush2.bf16.msra.mxu0 0
        %8552 = vmatprep.subr.bf16.mxu0 0
        %8553 = vmatpush2.bf16.msra.mxu0 0
        %8554 = vmatprep.subr.bf16.mxu0 0
        %8555 = vmatpush2.bf16.msra.mxu0 0
        %8556 = vmatprep.mubr.bf16.mxu0 0
        %8557 = vmatmul.mubr.bf16.gmra.mxu0 %v8519
        %v8558 = vpop.f32.mrf.mxu0
        %v8559 = vadd.f32 0.0, %v8558
        %v8560 = vpop.f32.mrf.mxu0
        %v8561 = vpop.f32.mrf.mxu0
        %v8562 = vpop.f32.mrf.mxu0
        %8563 = vdwg.mxu0
        %8564 = vrot.lane.b32.xlu0 %v5905, 64
        %v8565 = vpop.permute.xlu0 %8564
        %v8567 = vsel %vm2514, %v7921, 0
        %v8570 = vsel %vm2904, %v8565, 0
        %8572 = vmatprep.subr.bf16.mxu0 0
        %8573 = vmatpush1.bf16.msra.mxu0 0
        %8574 = vmatprep.subr.bf16.mxu0 0
        %8575 = vmatpush1.bf16.msra.mxu0 0
        %8576 = vmatprep.subr.bf16.mxu0 0
        %8577 = vmatpush1.bf16.msra.mxu0 0
        %8578 = vmatprep.subr.bf16.mxu0 0
        %8579 = vmatpush1.bf16.msra.mxu0 0
        %8580 = vmatprep.subr.bf16.mxu0 0
        %8581 = vmatpush1.bf16.msra.mxu0 0
        %8582 = vmatprep.subr.bf16.mxu0 0
        %8583 = vmatpush1.bf16.msra.mxu0 0
        %8584 = vmatprep.subr.bf16.mxu0 0
        %8585 = vmatpush1.bf16.msra.mxu0 0
        %8586 = vmatprep.subr.bf16.mxu0 0
        %8587 = vmatpush1.bf16.msra.mxu0 %v8570
        %8588 = vmatprep.subr.bf16.mxu0 0
        %8589 = vmatpush2.bf16.msra.mxu0 0
        %8590 = vmatprep.subr.bf16.mxu0 0
        %8591 = vmatpush2.bf16.msra.mxu0 0
        %8592 = vmatprep.subr.bf16.mxu0 0
        %8593 = vmatpush2.bf16.msra.mxu0 0
        %8594 = vmatprep.subr.bf16.mxu0 0
        %8595 = vmatpush2.bf16.msra.mxu0 0
        %8596 = vmatprep.subr.bf16.mxu0 0
        %8597 = vmatpush2.bf16.msra.mxu0 0
        %8598 = vmatprep.subr.bf16.mxu0 0
        %8599 = vmatpush2.bf16.msra.mxu0 0
        %8600 = vmatprep.subr.bf16.mxu0 0
        %8601 = vmatpush2.bf16.msra.mxu0 0
        %8602 = vmatprep.subr.bf16.mxu0 0
        %8603 = vmatpush2.bf16.msra.mxu0 0
        %8604 = vmatprep.mubr.bf16.mxu0 0
        %8605 = vmatmul.mubr.bf16.gmra.mxu0 %v8567
        %v8606 = vpop.f32.mrf.mxu0
        %v8607 = vadd.f32 0.0, %v8606
        %v8608 = vpop.f32.mrf.mxu0
        %v8609 = vpop.f32.mrf.mxu0
        %v8610 = vpop.f32.mrf.mxu0
        %8611 = vdwg.mxu0
        %8612 = vrot.lane.b32.xlu0 %v5906, 64
        %v8613 = vpop.permute.xlu0 %8612
        %v8615 = vsel %vm2514, %v7922, 0
        %v8618 = vsel %vm2904, %v8613, 0
        %8620 = vmatprep.subr.bf16.mxu0 0
        %8621 = vmatpush1.bf16.msra.mxu0 0
        %8622 = vmatprep.subr.bf16.mxu0 0
        %8623 = vmatpush1.bf16.msra.mxu0 0
        %8624 = vmatprep.subr.bf16.mxu0 0
        %8625 = vmatpush1.bf16.msra.mxu0 0
        %8626 = vmatprep.subr.bf16.mxu0 0
        %8627 = vmatpush1.bf16.msra.mxu0 0
        %8628 = vmatprep.subr.bf16.mxu0 0
        %8629 = vmatpush1.bf16.msra.mxu0 0
        %8630 = vmatprep.subr.bf16.mxu0 0
        %8631 = vmatpush1.bf16.msra.mxu0 0
        %8632 = vmatprep.subr.bf16.mxu0 0
        %8633 = vmatpush1.bf16.msra.mxu0 0
        %8634 = vmatprep.subr.bf16.mxu0 0
        %8635 = vmatpush1.bf16.msra.mxu0 %v8618
        %8636 = vmatprep.subr.bf16.mxu0 0
        %8637 = vmatpush2.bf16.msra.mxu0 0
        %8638 = vmatprep.subr.bf16.mxu0 0
        %8639 = vmatpush2.bf16.msra.mxu0 0
        %8640 = vmatprep.subr.bf16.mxu0 0
        %8641 = vmatpush2.bf16.msra.mxu0 0
        %8642 = vmatprep.subr.bf16.mxu0 0
        %8643 = vmatpush2.bf16.msra.mxu0 0
        %8644 = vmatprep.subr.bf16.mxu0 0
        %8645 = vmatpush2.bf16.msra.mxu0 0
        %8646 = vmatprep.subr.bf16.mxu0 0
        %8647 = vmatpush2.bf16.msra.mxu0 0
        %8648 = vmatprep.subr.bf16.mxu0 0
        %8649 = vmatpush2.bf16.msra.mxu0 0
        %8650 = vmatprep.subr.bf16.mxu0 0
        %8651 = vmatpush2.bf16.msra.mxu0 0
        %8652 = vmatprep.mubr.bf16.mxu0 0
        %8653 = vmatmul.mubr.bf16.gmra.mxu0 %v8615
        %v8654 = vpop.f32.mrf.mxu0
        %v8655 = vadd.f32 0.0, %v8654
        %v8656 = vpop.f32.mrf.mxu0
        %v8657 = vpop.f32.mrf.mxu0
        %v8658 = vpop.f32.mrf.mxu0
        %8659 = vdwg.mxu0
        %8660 = vrot.lane.b32.xlu0 %v5907, 64
        %v8661 = vpop.permute.xlu0 %8660
        %v8663 = vsel %vm2514, %v7923, 0
        %v8666 = vsel %vm2904, %v8661, 0
        %8668 = vmatprep.subr.bf16.mxu0 0
        %8669 = vmatpush1.bf16.msra.mxu0 0
        %8670 = vmatprep.subr.bf16.mxu0 0
        %8671 = vmatpush1.bf16.msra.mxu0 0
        %8672 = vmatprep.subr.bf16.mxu0 0
        %8673 = vmatpush1.bf16.msra.mxu0 0
        %8674 = vmatprep.subr.bf16.mxu0 0
        %8675 = vmatpush1.bf16.msra.mxu0 0
        %8676 = vmatprep.subr.bf16.mxu0 0
        %8677 = vmatpush1.bf16.msra.mxu0 0
        %8678 = vmatprep.subr.bf16.mxu0 0
        %8679 = vmatpush1.bf16.msra.mxu0 0
        %8680 = vmatprep.subr.bf16.mxu0 0
        %8681 = vmatpush1.bf16.msra.mxu0 0
        %8682 = vmatprep.subr.bf16.mxu0 0
        %8683 = vmatpush1.bf16.msra.mxu0 %v8666
        %8684 = vmatprep.subr.bf16.mxu0 0
        %8685 = vmatpush2.bf16.msra.mxu0 0
        %8686 = vmatprep.subr.bf16.mxu0 0
        %8687 = vmatpush2.bf16.msra.mxu0 0
        %8688 = vmatprep.subr.bf16.mxu0 0
        %8689 = vmatpush2.bf16.msra.mxu0 0
        %8690 = vmatprep.subr.bf16.mxu0 0
        %8691 = vmatpush2.bf16.msra.mxu0 0
        %8692 = vmatprep.subr.bf16.mxu0 0
        %8693 = vmatpush2.bf16.msra.mxu0 0
        %8694 = vmatprep.subr.bf16.mxu0 0
        %8695 = vmatpush2.bf16.msra.mxu0 0
        %8696 = vmatprep.subr.bf16.mxu0 0
        %8697 = vmatpush2.bf16.msra.mxu0 0
        %8698 = vmatprep.subr.bf16.mxu0 0
        %8699 = vmatpush2.bf16.msra.mxu0 0
        %8700 = vmatprep.mubr.bf16.mxu0 0
        %8701 = vmatmul.mubr.bf16.gmra.mxu0 %v8663
        %v8702 = vpop.f32.mrf.mxu0
        %v8703 = vadd.f32 0.0, %v8702
        %v8704 = vpop.f32.mrf.mxu0
        %v8705 = vpop.f32.mrf.mxu0
        %v8706 = vpop.f32.mrf.mxu0
        %8707 = vdwg.mxu0
        %8708 = vrot.lane.b32.xlu0 %v5908, 64
        %v8709 = vpop.permute.xlu0 %8708
        %v8711 = vsel %vm2514, %v7924, 0
        %v8714 = vsel %vm2904, %v8709, 0
        %8716 = vmatprep.subr.bf16.mxu0 0
        %8717 = vmatpush1.bf16.msra.mxu0 0
        %8718 = vmatprep.subr.bf16.mxu0 0
        %8719 = vmatpush1.bf16.msra.mxu0 0
        %8720 = vmatprep.subr.bf16.mxu0 0
        %8721 = vmatpush1.bf16.msra.mxu0 0
        %8722 = vmatprep.subr.bf16.mxu0 0
        %8723 = vmatpush1.bf16.msra.mxu0 0
        %8724 = vmatprep.subr.bf16.mxu0 0
        %8725 = vmatpush1.bf16.msra.mxu0 0
        %8726 = vmatprep.subr.bf16.mxu0 0
        %8727 = vmatpush1.bf16.msra.mxu0 0
        %8728 = vmatprep.subr.bf16.mxu0 0
        %8729 = vmatpush1.bf16.msra.mxu0 0
        %8730 = vmatprep.subr.bf16.mxu0 0
        %8731 = vmatpush1.bf16.msra.mxu0 %v8714
        %8732 = vmatprep.subr.bf16.mxu0 0
        %8733 = vmatpush2.bf16.msra.mxu0 0
        %8734 = vmatprep.subr.bf16.mxu0 0
        %8735 = vmatpush2.bf16.msra.mxu0 0
        %8736 = vmatprep.subr.bf16.mxu0 0
        %8737 = vmatpush2.bf16.msra.mxu0 0
        %8738 = vmatprep.subr.bf16.mxu0 0
        %8739 = vmatpush2.bf16.msra.mxu0 0
        %8740 = vmatprep.subr.bf16.mxu0 0
        %8741 = vmatpush2.bf16.msra.mxu0 0
        %8742 = vmatprep.subr.bf16.mxu0 0
        %8743 = vmatpush2.bf16.msra.mxu0 0
        %8744 = vmatprep.subr.bf16.mxu0 0
        %8745 = vmatpush2.bf16.msra.mxu0 0
        %8746 = vmatprep.subr.bf16.mxu0 0
        %8747 = vmatpush2.bf16.msra.mxu0 0
        %8748 = vmatprep.mubr.bf16.mxu0 0
        %8749 = vmatmul.mubr.bf16.gmra.mxu0 %v8711
        %v8750 = vpop.f32.mrf.mxu0
        %v8751 = vadd.f32 0.0, %v8750
        %v8752 = vpop.f32.mrf.mxu0
        %v8753 = vpop.f32.mrf.mxu0
        %v8754 = vpop.f32.mrf.mxu0
        %8755 = vdwg.mxu0
        %8756 = vrot.lane.b32.xlu0 %v5909, 64
        %v8757 = vpop.permute.xlu0 %8756
        %v8759 = vsel %vm2514, %v7925, 0
        %v8762 = vsel %vm2904, %v8757, 0
        %8764 = vmatprep.subr.bf16.mxu0 0
        %8765 = vmatpush1.bf16.msra.mxu0 0
        %8766 = vmatprep.subr.bf16.mxu0 0
        %8767 = vmatpush1.bf16.msra.mxu0 0
        %8768 = vmatprep.subr.bf16.mxu0 0
        %8769 = vmatpush1.bf16.msra.mxu0 0
        %8770 = vmatprep.subr.bf16.mxu0 0
        %8771 = vmatpush1.bf16.msra.mxu0 0
        %8772 = vmatprep.subr.bf16.mxu0 0
        %8773 = vmatpush1.bf16.msra.mxu0 0
        %8774 = vmatprep.subr.bf16.mxu0 0
        %8775 = vmatpush1.bf16.msra.mxu0 0
        %8776 = vmatprep.subr.bf16.mxu0 0
        %8777 = vmatpush1.bf16.msra.mxu0 0
        %8778 = vmatprep.subr.bf16.mxu0 0
        %8779 = vmatpush1.bf16.msra.mxu0 %v8762
        %8780 = vmatprep.subr.bf16.mxu0 0
        %8781 = vmatpush2.bf16.msra.mxu0 0
        %8782 = vmatprep.subr.bf16.mxu0 0
        %8783 = vmatpush2.bf16.msra.mxu0 0
        %8784 = vmatprep.subr.bf16.mxu0 0
        %8785 = vmatpush2.bf16.msra.mxu0 0
        %8786 = vmatprep.subr.bf16.mxu0 0
        %8787 = vmatpush2.bf16.msra.mxu0 0
        %8788 = vmatprep.subr.bf16.mxu0 0
        %8789 = vmatpush2.bf16.msra.mxu0 0
        %8790 = vmatprep.subr.bf16.mxu0 0
        %8791 = vmatpush2.bf16.msra.mxu0 0
        %8792 = vmatprep.subr.bf16.mxu0 0
        %8793 = vmatpush2.bf16.msra.mxu0 0
        %8794 = vmatprep.subr.bf16.mxu0 0
        %8795 = vmatpush2.bf16.msra.mxu0 0
        %8796 = vmatprep.mubr.bf16.mxu0 0
        %8797 = vmatmul.mubr.bf16.gmra.mxu0 %v8759
        %v8798 = vpop.f32.mrf.mxu0
        %v8799 = vadd.f32 0.0, %v8798
        %v8800 = vpop.f32.mrf.mxu0
        %v8801 = vpop.f32.mrf.mxu0
        %v8802 = vpop.f32.mrf.mxu0
        %8803 = vdwg.mxu0
        %8804 = vrot.lane.b32.xlu0 %v5910, 64
        %v8805 = vpop.permute.xlu0 %8804
        %v8807 = vsel %vm2514, %v7926, 0
        %v8810 = vsel %vm2904, %v8805, 0
        %8812 = vmatprep.subr.bf16.mxu0 0
        %8813 = vmatpush1.bf16.msra.mxu0 0
        %8814 = vmatprep.subr.bf16.mxu0 0
        %8815 = vmatpush1.bf16.msra.mxu0 0
        %8816 = vmatprep.subr.bf16.mxu0 0
        %8817 = vmatpush1.bf16.msra.mxu0 0
        %8818 = vmatprep.subr.bf16.mxu0 0
        %8819 = vmatpush1.bf16.msra.mxu0 0
        %8820 = vmatprep.subr.bf16.mxu0 0
        %8821 = vmatpush1.bf16.msra.mxu0 0
        %8822 = vmatprep.subr.bf16.mxu0 0
        %8823 = vmatpush1.bf16.msra.mxu0 0
        %8824 = vmatprep.subr.bf16.mxu0 0
        %8825 = vmatpush1.bf16.msra.mxu0 0
        %8826 = vmatprep.subr.bf16.mxu0 0
        %8827 = vmatpush1.bf16.msra.mxu0 %v8810
        %8828 = vmatprep.subr.bf16.mxu0 0
        %8829 = vmatpush2.bf16.msra.mxu0 0
        %8830 = vmatprep.subr.bf16.mxu0 0
        %8831 = vmatpush2.bf16.msra.mxu0 0
        %8832 = vmatprep.subr.bf16.mxu0 0
        %8833 = vmatpush2.bf16.msra.mxu0 0
        %8834 = vmatprep.subr.bf16.mxu0 0
        %8835 = vmatpush2.bf16.msra.mxu0 0
        %8836 = vmatprep.subr.bf16.mxu0 0
        %8837 = vmatpush2.bf16.msra.mxu0 0
        %8838 = vmatprep.subr.bf16.mxu0 0
        %8839 = vmatpush2.bf16.msra.mxu0 0
        %8840 = vmatprep.subr.bf16.mxu0 0
        %8841 = vmatpush2.bf16.msra.mxu0 0
        %8842 = vmatprep.subr.bf16.mxu0 0
        %8843 = vmatpush2.bf16.msra.mxu0 0
        %8844 = vmatprep.mubr.bf16.mxu0 0
        %8845 = vmatmul.mubr.bf16.gmra.mxu0 %v8807
        %v8846 = vpop.f32.mrf.mxu0
        %v8847 = vadd.f32 0.0, %v8846
        %v8848 = vpop.f32.mrf.mxu0
        %v8849 = vpop.f32.mrf.mxu0
        %v8850 = vpop.f32.mrf.mxu0
        %8851 = vdwg.mxu0
        %8852 = vrot.lane.b32.xlu0 %v5911, 64
        %v8853 = vpop.permute.xlu0 %8852
        %v8855 = vsel %vm2514, %v7927, 0
        %v8858 = vsel %vm2904, %v8853, 0
        %8860 = vmatprep.subr.bf16.mxu0 0
        %8861 = vmatpush1.bf16.msra.mxu0 0
        %8862 = vmatprep.subr.bf16.mxu0 0
        %8863 = vmatpush1.bf16.msra.mxu0 0
        %8864 = vmatprep.subr.bf16.mxu0 0
        %8865 = vmatpush1.bf16.msra.mxu0 0
        %8866 = vmatprep.subr.bf16.mxu0 0
        %8867 = vmatpush1.bf16.msra.mxu0 0
        %8868 = vmatprep.subr.bf16.mxu0 0
        %8869 = vmatpush1.bf16.msra.mxu0 0
        %8870 = vmatprep.subr.bf16.mxu0 0
        %8871 = vmatpush1.bf16.msra.mxu0 0
        %8872 = vmatprep.subr.bf16.mxu0 0
        %8873 = vmatpush1.bf16.msra.mxu0 0
        %8874 = vmatprep.subr.bf16.mxu0 0
        %8875 = vmatpush1.bf16.msra.mxu0 %v8858
        %8876 = vmatprep.subr.bf16.mxu0 0
        %8877 = vmatpush2.bf16.msra.mxu0 0
        %8878 = vmatprep.subr.bf16.mxu0 0
        %8879 = vmatpush2.bf16.msra.mxu0 0
        %8880 = vmatprep.subr.bf16.mxu0 0
        %8881 = vmatpush2.bf16.msra.mxu0 0
        %8882 = vmatprep.subr.bf16.mxu0 0
        %8883 = vmatpush2.bf16.msra.mxu0 0
        %8884 = vmatprep.subr.bf16.mxu0 0
        %8885 = vmatpush2.bf16.msra.mxu0 0
        %8886 = vmatprep.subr.bf16.mxu0 0
        %8887 = vmatpush2.bf16.msra.mxu0 0
        %8888 = vmatprep.subr.bf16.mxu0 0
        %8889 = vmatpush2.bf16.msra.mxu0 0
        %8890 = vmatprep.subr.bf16.mxu0 0
        %8891 = vmatpush2.bf16.msra.mxu0 0
        %8892 = vmatprep.mubr.bf16.mxu0 0
        %8893 = vmatmul.mubr.bf16.gmra.mxu0 %v8855
        %v8894 = vpop.f32.mrf.mxu0
        %v8895 = vadd.f32 0.0, %v8894
        %v8896 = vpop.f32.mrf.mxu0
        %v8897 = vpop.f32.mrf.mxu0
        %v8898 = vpop.f32.mrf.mxu0
        %8899 = vdwg.mxu0
        %8900 = vrot.lane.b32.xlu0 %v5912, 64
        %v8901 = vpop.permute.xlu0 %8900
        %v8903 = vsel %vm2514, %v7928, 0
        %v8906 = vsel %vm2904, %v8901, 0
        %8908 = vmatprep.subr.bf16.mxu0 0
        %8909 = vmatpush1.bf16.msra.mxu0 0
        %8910 = vmatprep.subr.bf16.mxu0 0
        %8911 = vmatpush1.bf16.msra.mxu0 0
        %8912 = vmatprep.subr.bf16.mxu0 0
        %8913 = vmatpush1.bf16.msra.mxu0 0
        %8914 = vmatprep.subr.bf16.mxu0 0
        %8915 = vmatpush1.bf16.msra.mxu0 0
        %8916 = vmatprep.subr.bf16.mxu0 0
        %8917 = vmatpush1.bf16.msra.mxu0 0
        %8918 = vmatprep.subr.bf16.mxu0 0
        %8919 = vmatpush1.bf16.msra.mxu0 0
        %8920 = vmatprep.subr.bf16.mxu0 0
        %8921 = vmatpush1.bf16.msra.mxu0 0
        %8922 = vmatprep.subr.bf16.mxu0 0
        %8923 = vmatpush1.bf16.msra.mxu0 %v8906
        %8924 = vmatprep.subr.bf16.mxu0 0
        %8925 = vmatpush2.bf16.msra.mxu0 0
        %8926 = vmatprep.subr.bf16.mxu0 0
        %8927 = vmatpush2.bf16.msra.mxu0 0
        %8928 = vmatprep.subr.bf16.mxu0 0
        %8929 = vmatpush2.bf16.msra.mxu0 0
        %8930 = vmatprep.subr.bf16.mxu0 0
        %8931 = vmatpush2.bf16.msra.mxu0 0
        %8932 = vmatprep.subr.bf16.mxu0 0
        %8933 = vmatpush2.bf16.msra.mxu0 0
        %8934 = vmatprep.subr.bf16.mxu0 0
        %8935 = vmatpush2.bf16.msra.mxu0 0
        %8936 = vmatprep.subr.bf16.mxu0 0
        %8937 = vmatpush2.bf16.msra.mxu0 0
        %8938 = vmatprep.subr.bf16.mxu0 0
        %8939 = vmatpush2.bf16.msra.mxu0 0
        %8940 = vmatprep.mubr.bf16.mxu0 0
        %8941 = vmatmul.mubr.bf16.gmra.mxu0 %v8903
        %v8942 = vpop.f32.mrf.mxu0
        %v8943 = vadd.f32 0.0, %v8942
        %v8944 = vpop.f32.mrf.mxu0
        %v8945 = vpop.f32.mrf.mxu0
        %v8946 = vpop.f32.mrf.mxu0
        %8947 = vdwg.mxu0
        %8948 = vrot.lane.b32.xlu0 %v5913, 64
        %v8949 = vpop.permute.xlu0 %8948
        %v8951 = vsel %vm2514, %v7929, 0
        %v8954 = vsel %vm2904, %v8949, 0
        %8956 = vmatprep.subr.bf16.mxu0 0
        %8957 = vmatpush1.bf16.msra.mxu0 0
        %8958 = vmatprep.subr.bf16.mxu0 0
        %8959 = vmatpush1.bf16.msra.mxu0 0
        %8960 = vmatprep.subr.bf16.mxu0 0
        %8961 = vmatpush1.bf16.msra.mxu0 0
        %8962 = vmatprep.subr.bf16.mxu0 0
        %8963 = vmatpush1.bf16.msra.mxu0 0
        %8964 = vmatprep.subr.bf16.mxu0 0
        %8965 = vmatpush1.bf16.msra.mxu0 0
        %8966 = vmatprep.subr.bf16.mxu0 0
        %8967 = vmatpush1.bf16.msra.mxu0 0
        %8968 = vmatprep.subr.bf16.mxu0 0
        %8969 = vmatpush1.bf16.msra.mxu0 0
        %8970 = vmatprep.subr.bf16.mxu0 0
        %8971 = vmatpush1.bf16.msra.mxu0 %v8954
        %8972 = vmatprep.subr.bf16.mxu0 0
        %8973 = vmatpush2.bf16.msra.mxu0 0
        %8974 = vmatprep.subr.bf16.mxu0 0
        %8975 = vmatpush2.bf16.msra.mxu0 0
        %8976 = vmatprep.subr.bf16.mxu0 0
        %8977 = vmatpush2.bf16.msra.mxu0 0
        %8978 = vmatprep.subr.bf16.mxu0 0
        %8979 = vmatpush2.bf16.msra.mxu0 0
        %8980 = vmatprep.subr.bf16.mxu0 0
        %8981 = vmatpush2.bf16.msra.mxu0 0
        %8982 = vmatprep.subr.bf16.mxu0 0
        %8983 = vmatpush2.bf16.msra.mxu0 0
        %8984 = vmatprep.subr.bf16.mxu0 0
        %8985 = vmatpush2.bf16.msra.mxu0 0
        %8986 = vmatprep.subr.bf16.mxu0 0
        %8987 = vmatpush2.bf16.msra.mxu0 0
        %8988 = vmatprep.mubr.bf16.mxu0 0
        %8989 = vmatmul.mubr.bf16.gmra.mxu0 %v8951
        %v8990 = vpop.f32.mrf.mxu0
        %v8991 = vadd.f32 0.0, %v8990
        %v8992 = vpop.f32.mrf.mxu0
        %v8993 = vpop.f32.mrf.mxu0
        %v8994 = vpop.f32.mrf.mxu0
        %8995 = vdwg.mxu0
        %8996 = vrot.lane.b32.xlu0 %v5914, 64
        %v8997 = vpop.permute.xlu0 %8996
        %v8999 = vsel %vm2514, %v7930, 0
        %v9002 = vsel %vm2904, %v8997, 0
        %9004 = vmatprep.subr.bf16.mxu0 0
        %9005 = vmatpush1.bf16.msra.mxu0 0
        %9006 = vmatprep.subr.bf16.mxu0 0
        %9007 = vmatpush1.bf16.msra.mxu0 0
        %9008 = vmatprep.subr.bf16.mxu0 0
        %9009 = vmatpush1.bf16.msra.mxu0 0
        %9010 = vmatprep.subr.bf16.mxu0 0
        %9011 = vmatpush1.bf16.msra.mxu0 0
        %9012 = vmatprep.subr.bf16.mxu0 0
        %9013 = vmatpush1.bf16.msra.mxu0 0
        %9014 = vmatprep.subr.bf16.mxu0 0
        %9015 = vmatpush1.bf16.msra.mxu0 0
        %9016 = vmatprep.subr.bf16.mxu0 0
        %9017 = vmatpush1.bf16.msra.mxu0 0
        %9018 = vmatprep.subr.bf16.mxu0 0
        %9019 = vmatpush1.bf16.msra.mxu0 %v9002
        %9020 = vmatprep.subr.bf16.mxu0 0
        %9021 = vmatpush2.bf16.msra.mxu0 0
        %9022 = vmatprep.subr.bf16.mxu0 0
        %9023 = vmatpush2.bf16.msra.mxu0 0
        %9024 = vmatprep.subr.bf16.mxu0 0
        %9025 = vmatpush2.bf16.msra.mxu0 0
        %9026 = vmatprep.subr.bf16.mxu0 0
        %9027 = vmatpush2.bf16.msra.mxu0 0
        %9028 = vmatprep.subr.bf16.mxu0 0
        %9029 = vmatpush2.bf16.msra.mxu0 0
        %9030 = vmatprep.subr.bf16.mxu0 0
        %9031 = vmatpush2.bf16.msra.mxu0 0
        %9032 = vmatprep.subr.bf16.mxu0 0
        %9033 = vmatpush2.bf16.msra.mxu0 0
        %9034 = vmatprep.subr.bf16.mxu0 0
        %9035 = vmatpush2.bf16.msra.mxu0 0
        %9036 = vmatprep.mubr.bf16.mxu0 0
        %9037 = vmatmul.mubr.bf16.gmra.mxu0 %v8999
        %v9038 = vpop.f32.mrf.mxu0
        %v9039 = vadd.f32 0.0, %v9038
        %v9040 = vpop.f32.mrf.mxu0
        %v9041 = vpop.f32.mrf.mxu0
        %v9042 = vpop.f32.mrf.mxu0
        %9043 = vdwg.mxu0
        %9044 = vrot.lane.b32.xlu0 %v5915, 64
        %v9045 = vpop.permute.xlu0 %9044
        %v9047 = vsel %vm2514, %v7931, 0
        %v9050 = vsel %vm2904, %v9045, 0
        %9052 = vmatprep.subr.bf16.mxu0 0
        %9053 = vmatpush1.bf16.msra.mxu0 0
        %9054 = vmatprep.subr.bf16.mxu0 0
        %9055 = vmatpush1.bf16.msra.mxu0 0
        %9056 = vmatprep.subr.bf16.mxu0 0
        %9057 = vmatpush1.bf16.msra.mxu0 0
        %9058 = vmatprep.subr.bf16.mxu0 0
        %9059 = vmatpush1.bf16.msra.mxu0 0
        %9060 = vmatprep.subr.bf16.mxu0 0
        %9061 = vmatpush1.bf16.msra.mxu0 0
        %9062 = vmatprep.subr.bf16.mxu0 0
        %9063 = vmatpush1.bf16.msra.mxu0 0
        %9064 = vmatprep.subr.bf16.mxu0 0
        %9065 = vmatpush1.bf16.msra.mxu0 0
        %9066 = vmatprep.subr.bf16.mxu0 0
        %9067 = vmatpush1.bf16.msra.mxu0 %v9050
        %9068 = vmatprep.subr.bf16.mxu0 0
        %9069 = vmatpush2.bf16.msra.mxu0 0
        %9070 = vmatprep.subr.bf16.mxu0 0
        %9071 = vmatpush2.bf16.msra.mxu0 0
        %9072 = vmatprep.subr.bf16.mxu0 0
        %9073 = vmatpush2.bf16.msra.mxu0 0
        %9074 = vmatprep.subr.bf16.mxu0 0
        %9075 = vmatpush2.bf16.msra.mxu0 0
        %9076 = vmatprep.subr.bf16.mxu0 0
        %9077 = vmatpush2.bf16.msra.mxu0 0
        %9078 = vmatprep.subr.bf16.mxu0 0
        %9079 = vmatpush2.bf16.msra.mxu0 0
        %9080 = vmatprep.subr.bf16.mxu0 0
        %9081 = vmatpush2.bf16.msra.mxu0 0
        %9082 = vmatprep.subr.bf16.mxu0 0
        %9083 = vmatpush2.bf16.msra.mxu0 0
        %9084 = vmatprep.mubr.bf16.mxu0 0
        %9085 = vmatmul.mubr.bf16.gmra.mxu0 %v9047
        %v9086 = vpop.f32.mrf.mxu0
        %v9087 = vadd.f32 0.0, %v9086
        %v9088 = vpop.f32.mrf.mxu0
        %v9089 = vpop.f32.mrf.mxu0
        %v9090 = vpop.f32.mrf.mxu0
        %9091 = vdwg.mxu0
        %9092 = vrot.lane.b32.xlu0 %v5916, 64
        %v9093 = vpop.permute.xlu0 %9092
        %v9095 = vsel %vm2514, %v7932, 0
        %v9098 = vsel %vm2904, %v9093, 0
        %9100 = vmatprep.subr.bf16.mxu0 0
        %9101 = vmatpush1.bf16.msra.mxu0 0
        %9102 = vmatprep.subr.bf16.mxu0 0
        %9103 = vmatpush1.bf16.msra.mxu0 0
        %9104 = vmatprep.subr.bf16.mxu0 0
        %9105 = vmatpush1.bf16.msra.mxu0 0
        %9106 = vmatprep.subr.bf16.mxu0 0
        %9107 = vmatpush1.bf16.msra.mxu0 0
        %9108 = vmatprep.subr.bf16.mxu0 0
        %9109 = vmatpush1.bf16.msra.mxu0 0
        %9110 = vmatprep.subr.bf16.mxu0 0
        %9111 = vmatpush1.bf16.msra.mxu0 0
        %9112 = vmatprep.subr.bf16.mxu0 0
        %9113 = vmatpush1.bf16.msra.mxu0 0
        %9114 = vmatprep.subr.bf16.mxu0 0
        %9115 = vmatpush1.bf16.msra.mxu0 %v9098
        %9116 = vmatprep.subr.bf16.mxu0 0
        %9117 = vmatpush2.bf16.msra.mxu0 0
        %9118 = vmatprep.subr.bf16.mxu0 0
        %9119 = vmatpush2.bf16.msra.mxu0 0
        %9120 = vmatprep.subr.bf16.mxu0 0
        %9121 = vmatpush2.bf16.msra.mxu0 0
        %9122 = vmatprep.subr.bf16.mxu0 0
        %9123 = vmatpush2.bf16.msra.mxu0 0
        %9124 = vmatprep.subr.bf16.mxu0 0
        %9125 = vmatpush2.bf16.msra.mxu0 0
        %9126 = vmatprep.subr.bf16.mxu0 0
        %9127 = vmatpush2.bf16.msra.mxu0 0
        %9128 = vmatprep.subr.bf16.mxu0 0
        %9129 = vmatpush2.bf16.msra.mxu0 0
        %9130 = vmatprep.subr.bf16.mxu0 0
        %9131 = vmatpush2.bf16.msra.mxu0 0
        %9132 = vmatprep.mubr.bf16.mxu0 0
        %9133 = vmatmul.mubr.bf16.gmra.mxu0 %v9095
        %v9134 = vpop.f32.mrf.mxu0
        %v9135 = vadd.f32 0.0, %v9134
        %v9136 = vpop.f32.mrf.mxu0
        %v9137 = vpop.f32.mrf.mxu0
        %v9138 = vpop.f32.mrf.mxu0
        %9139 = vdwg.mxu0
        %9140 = vrot.lane.b32.xlu0 %v5917, 64
        %v9141 = vpop.permute.xlu0 %9140
        %v9143 = vsel %vm2514, %v7933, 0
        %v9146 = vsel %vm2904, %v9141, 0
        %9148 = vmatprep.subr.bf16.mxu0 0
        %9149 = vmatpush1.bf16.msra.mxu0 0
        %9150 = vmatprep.subr.bf16.mxu0 0
        %9151 = vmatpush1.bf16.msra.mxu0 0
        %9152 = vmatprep.subr.bf16.mxu0 0
        %9153 = vmatpush1.bf16.msra.mxu0 0
        %9154 = vmatprep.subr.bf16.mxu0 0
        %9155 = vmatpush1.bf16.msra.mxu0 0
        %9156 = vmatprep.subr.bf16.mxu0 0
        %9157 = vmatpush1.bf16.msra.mxu0 0
        %9158 = vmatprep.subr.bf16.mxu0 0
        %9159 = vmatpush1.bf16.msra.mxu0 0
        %9160 = vmatprep.subr.bf16.mxu0 0
        %9161 = vmatpush1.bf16.msra.mxu0 0
        %9162 = vmatprep.subr.bf16.mxu0 0
        %9163 = vmatpush1.bf16.msra.mxu0 %v9146
        %9164 = vmatprep.subr.bf16.mxu0 0
        %9165 = vmatpush2.bf16.msra.mxu0 0
        %9166 = vmatprep.subr.bf16.mxu0 0
        %9167 = vmatpush2.bf16.msra.mxu0 0
        %9168 = vmatprep.subr.bf16.mxu0 0
        %9169 = vmatpush2.bf16.msra.mxu0 0
        %9170 = vmatprep.subr.bf16.mxu0 0
        %9171 = vmatpush2.bf16.msra.mxu0 0
        %9172 = vmatprep.subr.bf16.mxu0 0
        %9173 = vmatpush2.bf16.msra.mxu0 0
        %9174 = vmatprep.subr.bf16.mxu0 0
        %9175 = vmatpush2.bf16.msra.mxu0 0
        %9176 = vmatprep.subr.bf16.mxu0 0
        %9177 = vmatpush2.bf16.msra.mxu0 0
        %9178 = vmatprep.subr.bf16.mxu0 0
        %9179 = vmatpush2.bf16.msra.mxu0 0
        %9180 = vmatprep.mubr.bf16.mxu0 0
        %9181 = vmatmul.mubr.bf16.gmra.mxu0 %v9143
        %v9182 = vpop.f32.mrf.mxu0
        %v9183 = vadd.f32 0.0, %v9182
        %v9184 = vpop.f32.mrf.mxu0
        %v9185 = vpop.f32.mrf.mxu0
        %v9186 = vpop.f32.mrf.mxu0
        %9187 = vdwg.mxu0
        %9188 = vrot.lane.b32.xlu0 %v5918, 64
        %v9189 = vpop.permute.xlu0 %9188
        %v9191 = vsel %vm2514, %v7934, 0
        %v9194 = vsel %vm2904, %v9189, 0
        %9196 = vmatprep.subr.bf16.mxu0 0
        %9197 = vmatpush1.bf16.msra.mxu0 0
        %9198 = vmatprep.subr.bf16.mxu0 0
        %9199 = vmatpush1.bf16.msra.mxu0 0
        %9200 = vmatprep.subr.bf16.mxu0 0
        %9201 = vmatpush1.bf16.msra.mxu0 0
        %9202 = vmatprep.subr.bf16.mxu0 0
        %9203 = vmatpush1.bf16.msra.mxu0 0
        %9204 = vmatprep.subr.bf16.mxu0 0
        %9205 = vmatpush1.bf16.msra.mxu0 0
        %9206 = vmatprep.subr.bf16.mxu0 0
        %9207 = vmatpush1.bf16.msra.mxu0 0
        %9208 = vmatprep.subr.bf16.mxu0 0
        %9209 = vmatpush1.bf16.msra.mxu0 0
        %9210 = vmatprep.subr.bf16.mxu0 0
        %9211 = vmatpush1.bf16.msra.mxu0 %v9194
        %9212 = vmatprep.subr.bf16.mxu0 0
        %9213 = vmatpush2.bf16.msra.mxu0 0
        %9214 = vmatprep.subr.bf16.mxu0 0
        %9215 = vmatpush2.bf16.msra.mxu0 0
        %9216 = vmatprep.subr.bf16.mxu0 0
        %9217 = vmatpush2.bf16.msra.mxu0 0
        %9218 = vmatprep.subr.bf16.mxu0 0
        %9219 = vmatpush2.bf16.msra.mxu0 0
        %9220 = vmatprep.subr.bf16.mxu0 0
        %9221 = vmatpush2.bf16.msra.mxu0 0
        %9222 = vmatprep.subr.bf16.mxu0 0
        %9223 = vmatpush2.bf16.msra.mxu0 0
        %9224 = vmatprep.subr.bf16.mxu0 0
        %9225 = vmatpush2.bf16.msra.mxu0 0
        %9226 = vmatprep.subr.bf16.mxu0 0
        %9227 = vmatpush2.bf16.msra.mxu0 0
        %9228 = vmatprep.mubr.bf16.mxu0 0
        %9229 = vmatmul.mubr.bf16.gmra.mxu0 %v9191
        %v9230 = vpop.f32.mrf.mxu0
        %v9231 = vadd.f32 0.0, %v9230
        %v9232 = vpop.f32.mrf.mxu0
        %v9233 = vpop.f32.mrf.mxu0
        %v9234 = vpop.f32.mrf.mxu0
        %9235 = vdwg.mxu0
        %9236 = vrot.lane.b32.xlu0 %v5919, 64
        %v9237 = vpop.permute.xlu0 %9236
        %v9239 = vsel %vm2514, %v7935, 0
        %v9242 = vsel %vm2904, %v9237, 0
        %9244 = vmatprep.subr.bf16.mxu0 0
        %9245 = vmatpush1.bf16.msra.mxu0 0
        %9246 = vmatprep.subr.bf16.mxu0 0
        %9247 = vmatpush1.bf16.msra.mxu0 0
        %9248 = vmatprep.subr.bf16.mxu0 0
        %9249 = vmatpush1.bf16.msra.mxu0 0
        %9250 = vmatprep.subr.bf16.mxu0 0
        %9251 = vmatpush1.bf16.msra.mxu0 0
        %9252 = vmatprep.subr.bf16.mxu0 0
        %9253 = vmatpush1.bf16.msra.mxu0 0
        %9254 = vmatprep.subr.bf16.mxu0 0
        %9255 = vmatpush1.bf16.msra.mxu0 0
        %9256 = vmatprep.subr.bf16.mxu0 0
        %9257 = vmatpush1.bf16.msra.mxu0 0
        %9258 = vmatprep.subr.bf16.mxu0 0
        %9259 = vmatpush1.bf16.msra.mxu0 %v9242
        %9260 = vmatprep.subr.bf16.mxu0 0
        %9261 = vmatpush2.bf16.msra.mxu0 0
        %9262 = vmatprep.subr.bf16.mxu0 0
        %9263 = vmatpush2.bf16.msra.mxu0 0
        %9264 = vmatprep.subr.bf16.mxu0 0
        %9265 = vmatpush2.bf16.msra.mxu0 0
        %9266 = vmatprep.subr.bf16.mxu0 0
        %9267 = vmatpush2.bf16.msra.mxu0 0
        %9268 = vmatprep.subr.bf16.mxu0 0
        %9269 = vmatpush2.bf16.msra.mxu0 0
        %9270 = vmatprep.subr.bf16.mxu0 0
        %9271 = vmatpush2.bf16.msra.mxu0 0
        %9272 = vmatprep.subr.bf16.mxu0 0
        %9273 = vmatpush2.bf16.msra.mxu0 0
        %9274 = vmatprep.subr.bf16.mxu0 0
        %9275 = vmatpush2.bf16.msra.mxu0 0
        %9276 = vmatprep.mubr.bf16.mxu0 0
        %9277 = vmatmul.mubr.bf16.gmra.mxu0 %v9239
        %v9278 = vpop.f32.mrf.mxu0
        %v9279 = vadd.f32 0.0, %v9278
        %v9280 = vpop.f32.mrf.mxu0
        %v9281 = vpop.f32.mrf.mxu0
        %v9282 = vpop.f32.mrf.mxu0
        %9283 = vdwg.mxu0
        %9284 = vrot.lane.b32.xlu0 %v5920, 64
        %v9285 = vpop.permute.xlu0 %9284
        %v9287 = vsel %vm2514, %v7936, 0
        %v9290 = vsel %vm2904, %v9285, 0
        %9292 = vmatprep.subr.bf16.mxu0 0
        %9293 = vmatpush1.bf16.msra.mxu0 0
        %9294 = vmatprep.subr.bf16.mxu0 0
        %9295 = vmatpush1.bf16.msra.mxu0 0
        %9296 = vmatprep.subr.bf16.mxu0 0
        %9297 = vmatpush1.bf16.msra.mxu0 0
        %9298 = vmatprep.subr.bf16.mxu0 0
        %9299 = vmatpush1.bf16.msra.mxu0 0
        %9300 = vmatprep.subr.bf16.mxu0 0
        %9301 = vmatpush1.bf16.msra.mxu0 0
        %9302 = vmatprep.subr.bf16.mxu0 0
        %9303 = vmatpush1.bf16.msra.mxu0 0
        %9304 = vmatprep.subr.bf16.mxu0 0
        %9305 = vmatpush1.bf16.msra.mxu0 0
        %9306 = vmatprep.subr.bf16.mxu0 0
        %9307 = vmatpush1.bf16.msra.mxu0 %v9290
        %9308 = vmatprep.subr.bf16.mxu0 0
        %9309 = vmatpush2.bf16.msra.mxu0 0
        %9310 = vmatprep.subr.bf16.mxu0 0
        %9311 = vmatpush2.bf16.msra.mxu0 0
        %9312 = vmatprep.subr.bf16.mxu0 0
        %9313 = vmatpush2.bf16.msra.mxu0 0
        %9314 = vmatprep.subr.bf16.mxu0 0
        %9315 = vmatpush2.bf16.msra.mxu0 0
        %9316 = vmatprep.subr.bf16.mxu0 0
        %9317 = vmatpush2.bf16.msra.mxu0 0
        %9318 = vmatprep.subr.bf16.mxu0 0
        %9319 = vmatpush2.bf16.msra.mxu0 0
        %9320 = vmatprep.subr.bf16.mxu0 0
        %9321 = vmatpush2.bf16.msra.mxu0 0
        %9322 = vmatprep.subr.bf16.mxu0 0
        %9323 = vmatpush2.bf16.msra.mxu0 0
        %9324 = vmatprep.mubr.bf16.mxu0 0
        %9325 = vmatmul.mubr.bf16.gmra.mxu0 %v9287
        %v9326 = vpop.f32.mrf.mxu0
        %v9327 = vadd.f32 0.0, %v9326
        %v9328 = vpop.f32.mrf.mxu0
        %v9329 = vpop.f32.mrf.mxu0
        %v9330 = vpop.f32.mrf.mxu0
        %9331 = vdwg.mxu0
        %9332 = vrot.lane.b32.xlu0 %v5921, 64
        %v9333 = vpop.permute.xlu0 %9332
        %v9335 = vsel %vm2514, %v7937, 0
        %v9338 = vsel %vm2904, %v9333, 0
        %9340 = vmatprep.subr.bf16.mxu0 0
        %9341 = vmatpush1.bf16.msra.mxu0 0
        %9342 = vmatprep.subr.bf16.mxu0 0
        %9343 = vmatpush1.bf16.msra.mxu0 0
        %9344 = vmatprep.subr.bf16.mxu0 0
        %9345 = vmatpush1.bf16.msra.mxu0 0
        %9346 = vmatprep.subr.bf16.mxu0 0
        %9347 = vmatpush1.bf16.msra.mxu0 0
        %9348 = vmatprep.subr.bf16.mxu0 0
        %9349 = vmatpush1.bf16.msra.mxu0 0
        %9350 = vmatprep.subr.bf16.mxu0 0
        %9351 = vmatpush1.bf16.msra.mxu0 0
        %9352 = vmatprep.subr.bf16.mxu0 0
        %9353 = vmatpush1.bf16.msra.mxu0 0
        %9354 = vmatprep.subr.bf16.mxu0 0
        %9355 = vmatpush1.bf16.msra.mxu0 %v9338
        %9356 = vmatprep.subr.bf16.mxu0 0
        %9357 = vmatpush2.bf16.msra.mxu0 0
        %9358 = vmatprep.subr.bf16.mxu0 0
        %9359 = vmatpush2.bf16.msra.mxu0 0
        %9360 = vmatprep.subr.bf16.mxu0 0
        %9361 = vmatpush2.bf16.msra.mxu0 0
        %9362 = vmatprep.subr.bf16.mxu0 0
        %9363 = vmatpush2.bf16.msra.mxu0 0
        %9364 = vmatprep.subr.bf16.mxu0 0
        %9365 = vmatpush2.bf16.msra.mxu0 0
        %9366 = vmatprep.subr.bf16.mxu0 0
        %9367 = vmatpush2.bf16.msra.mxu0 0
        %9368 = vmatprep.subr.bf16.mxu0 0
        %9369 = vmatpush2.bf16.msra.mxu0 0
        %9370 = vmatprep.subr.bf16.mxu0 0
        %9371 = vmatpush2.bf16.msra.mxu0 0
        %9372 = vmatprep.mubr.bf16.mxu0 0
        %9373 = vmatmul.mubr.bf16.gmra.mxu0 %v9335
        %v9374 = vpop.f32.mrf.mxu0
        %v9375 = vadd.f32 0.0, %v9374
        %v9376 = vpop.f32.mrf.mxu0
        %v9377 = vpop.f32.mrf.mxu0
        %v9378 = vpop.f32.mrf.mxu0
        %9379 = vdwg.mxu0
        %9380 = vrot.lane.b32.xlu0 %v5922, 64
        %v9381 = vpop.permute.xlu0 %9380
        %v9383 = vsel %vm2514, %v7938, 0
        %v9386 = vsel %vm2904, %v9381, 0
        %9388 = vmatprep.subr.bf16.mxu0 0
        %9389 = vmatpush1.bf16.msra.mxu0 0
        %9390 = vmatprep.subr.bf16.mxu0 0
        %9391 = vmatpush1.bf16.msra.mxu0 0
        %9392 = vmatprep.subr.bf16.mxu0 0
        %9393 = vmatpush1.bf16.msra.mxu0 0
        %9394 = vmatprep.subr.bf16.mxu0 0
        %9395 = vmatpush1.bf16.msra.mxu0 0
        %9396 = vmatprep.subr.bf16.mxu0 0
        %9397 = vmatpush1.bf16.msra.mxu0 0
        %9398 = vmatprep.subr.bf16.mxu0 0
        %9399 = vmatpush1.bf16.msra.mxu0 0
        %9400 = vmatprep.subr.bf16.mxu0 0
        %9401 = vmatpush1.bf16.msra.mxu0 0
        %9402 = vmatprep.subr.bf16.mxu0 0
        %9403 = vmatpush1.bf16.msra.mxu0 %v9386
        %9404 = vmatprep.subr.bf16.mxu0 0
        %9405 = vmatpush2.bf16.msra.mxu0 0
        %9406 = vmatprep.subr.bf16.mxu0 0
        %9407 = vmatpush2.bf16.msra.mxu0 0
        %9408 = vmatprep.subr.bf16.mxu0 0
        %9409 = vmatpush2.bf16.msra.mxu0 0
        %9410 = vmatprep.subr.bf16.mxu0 0
        %9411 = vmatpush2.bf16.msra.mxu0 0
        %9412 = vmatprep.subr.bf16.mxu0 0
        %9413 = vmatpush2.bf16.msra.mxu0 0
        %9414 = vmatprep.subr.bf16.mxu0 0
        %9415 = vmatpush2.bf16.msra.mxu0 0
        %9416 = vmatprep.subr.bf16.mxu0 0
        %9417 = vmatpush2.bf16.msra.mxu0 0
        %9418 = vmatprep.subr.bf16.mxu0 0
        %9419 = vmatpush2.bf16.msra.mxu0 0
        %9420 = vmatprep.mubr.bf16.mxu0 0
        %9421 = vmatmul.mubr.bf16.gmra.mxu0 %v9383
        %v9422 = vpop.f32.mrf.mxu0
        %v9423 = vadd.f32 0.0, %v9422
        %v9424 = vpop.f32.mrf.mxu0
        %v9425 = vpop.f32.mrf.mxu0
        %v9426 = vpop.f32.mrf.mxu0
        %9427 = vdwg.mxu0
        %9428 = vrot.lane.b32.xlu0 %v5923, 64
        %v9429 = vpop.permute.xlu0 %9428
        %v9431 = vsel %vm2514, %v7939, 0
        %v9434 = vsel %vm2904, %v9429, 0
        %9436 = vmatprep.subr.bf16.mxu0 0
        %9437 = vmatpush1.bf16.msra.mxu0 0
        %9438 = vmatprep.subr.bf16.mxu0 0
        %9439 = vmatpush1.bf16.msra.mxu0 0
        %9440 = vmatprep.subr.bf16.mxu0 0
        %9441 = vmatpush1.bf16.msra.mxu0 0
        %9442 = vmatprep.subr.bf16.mxu0 0
        %9443 = vmatpush1.bf16.msra.mxu0 0
        %9444 = vmatprep.subr.bf16.mxu0 0
        %9445 = vmatpush1.bf16.msra.mxu0 0
        %9446 = vmatprep.subr.bf16.mxu0 0
        %9447 = vmatpush1.bf16.msra.mxu0 0
        %9448 = vmatprep.subr.bf16.mxu0 0
        %9449 = vmatpush1.bf16.msra.mxu0 0
        %9450 = vmatprep.subr.bf16.mxu0 0
        %9451 = vmatpush1.bf16.msra.mxu0 %v9434
        %9452 = vmatprep.subr.bf16.mxu0 0
        %9453 = vmatpush2.bf16.msra.mxu0 0
        %9454 = vmatprep.subr.bf16.mxu0 0
        %9455 = vmatpush2.bf16.msra.mxu0 0
        %9456 = vmatprep.subr.bf16.mxu0 0
        %9457 = vmatpush2.bf16.msra.mxu0 0
        %9458 = vmatprep.subr.bf16.mxu0 0
        %9459 = vmatpush2.bf16.msra.mxu0 0
        %9460 = vmatprep.subr.bf16.mxu0 0
        %9461 = vmatpush2.bf16.msra.mxu0 0
        %9462 = vmatprep.subr.bf16.mxu0 0
        %9463 = vmatpush2.bf16.msra.mxu0 0
        %9464 = vmatprep.subr.bf16.mxu0 0
        %9465 = vmatpush2.bf16.msra.mxu0 0
        %9466 = vmatprep.subr.bf16.mxu0 0
        %9467 = vmatpush2.bf16.msra.mxu0 0
        %9468 = vmatprep.mubr.bf16.mxu0 0
        %9469 = vmatmul.mubr.bf16.gmra.mxu0 %v9431
        %v9470 = vpop.f32.mrf.mxu0
        %v9471 = vadd.f32 0.0, %v9470
        %v9472 = vpop.f32.mrf.mxu0
        %v9473 = vpop.f32.mrf.mxu0
        %v9474 = vpop.f32.mrf.mxu0
        %9475 = vdwg.mxu0
        %9492 = vrot.lane.b32.xlu0 %v8751, 16
        %v9493 = vpop.permute.xlu0 %9492
        %9494 = vrot.lane.b32.xlu0 %v8799, 16
        %v9495 = vpop.permute.xlu0 %9494
        %9496 = vrot.lane.b32.xlu0 %v8847, 16
        %v9497 = vpop.permute.xlu0 %9496
        %9498 = vrot.lane.b32.xlu0 %v8895, 16
        %v9499 = vpop.permute.xlu0 %9498
        %9500 = vrot.lane.b32.xlu0 %v8943, 16
        %v9501 = vpop.permute.xlu0 %9500
        %9502 = vrot.lane.b32.xlu0 %v8991, 16
        %v9503 = vpop.permute.xlu0 %9502
        %9504 = vrot.lane.b32.xlu0 %v9039, 16
        %v9505 = vpop.permute.xlu0 %9504
        %9506 = vrot.lane.b32.xlu0 %v9087, 16
        %v9507 = vpop.permute.xlu0 %9506
        %9508 = vrot.lane.b32.xlu0 %v9135, 16
        %v9509 = vpop.permute.xlu0 %9508
        %9510 = vrot.lane.b32.xlu0 %v9183, 16
        %v9511 = vpop.permute.xlu0 %9510
        %9512 = vrot.lane.b32.xlu0 %v9231, 16
        %v9513 = vpop.permute.xlu0 %9512
        %9514 = vrot.lane.b32.xlu0 %v9279, 16
        %v9515 = vpop.permute.xlu0 %9514
        %9516 = vrot.lane.b32.xlu0 %v9327, 16
        %v9517 = vpop.permute.xlu0 %9516
        %9518 = vrot.lane.b32.xlu0 %v9375, 16
        %v9519 = vpop.permute.xlu0 %9518
        %9520 = vrot.lane.b32.xlu0 %v9423, 16
        %v9521 = vpop.permute.xlu0 %9520
        %9522 = vrot.lane.b32.xlu0 %v9471, 16
        %v9523 = vpop.permute.xlu0 %9522
        %v9540 = vsel %vm884, %v7983, %v9493
        %v9541 = vsel %vm884, %v8031, %v9495
        %v9542 = vsel %vm884, %v8079, %v9497
        %v9543 = vsel %vm884, %v8127, %v9499
        %v9544 = vsel %vm884, %v8175, %v9501
        %v9545 = vsel %vm884, %v8223, %v9503
        %v9546 = vsel %vm884, %v8271, %v9505
        %v9547 = vsel %vm884, %v8319, %v9507
        %v9548 = vsel %vm884, %v8367, %v9509
        %v9549 = vsel %vm884, %v8415, %v9511
        %v9550 = vsel %vm884, %v8463, %v9513
        %v9551 = vsel %vm884, %v8511, %v9515
        %v9552 = vsel %vm884, %v8559, %v9517
        %v9553 = vsel %vm884, %v8607, %v9519
        %v9554 = vsel %vm884, %v8655, %v9521
        %v9555 = vsel %vm884, %v8703, %v9523
        %v9556 = vpack.c.bf16 %v9541, %v9540
        %v9557 = vpack.c.bf16 %v9543, %v9542
        %v9558 = vpack.c.bf16 %v9545, %v9544
        %v9559 = vpack.c.bf16 %v9547, %v9546
        %v9560 = vpack.c.bf16 %v9549, %v9548
        %v9561 = vpack.c.bf16 %v9551, %v9550
        %v9562 = vpack.c.bf16 %v9553, %v9552
        %v9563 = vpack.c.bf16 %v9555, %v9554
        %s9564 = scalar_lea.vmem %s4, 16
        %v9565 = vld [vmem:[%s9564] sm:$0xf]
        %v9566 = vld [vmem:[%s9564 + $0x4] sm:$0xf]
        %v9567 = vld [vmem:[%s9564 + $0x8] sm:$0xf]
        %v9568 = vld [vmem:[%s9564 + $0xc] sm:$0xf]
        %s9569 = scalar_lea.vmem %s5, 1
        %v9570 = vld [vmem:[%s9569] sm:$0x1]
        %v9572 = vlaneseq
        %v9573 = vshrl.u32 %v9572, 7
        %v9574 = vsub.s32 0, %v9573
        %v9575 = vrot.slane %v9570, %v9574
        %v9581 = vunpack.c.l.b16 %v9565
        %v9582 = vunpack.c.l.b16 %v9566
        %v9583 = vunpack.c.l.b16 %v9567
        %v9584 = vunpack.c.l.b16 %v9568
        %v9585 = vpack.c.b16 %v9582, %v9581
        %v9586 = vpack.c.b16 %v9584, %v9583
        %v9590 = vsel %vm663, %v9556, 0
        %v9593 = vsel %vm663, %v9557, 0
        %v9596 = vsel %vm663, %v9558, 0
        %v9599 = vsel %vm663, %v9559, 0
        %v9602 = vsel %vm663, %v9560, 0
        %v9605 = vsel %vm663, %v9561, 0
        %v9608 = vsel %vm663, %v9562, 0
        %v9611 = vsel %vm663, %v9563, 0
        %9613 = vmatprep.subr.bf16.mxu0 0
        %9614 = vmatpush1.bf16.msra.mxu0 0
        %9615 = vmatprep.subr.bf16.mxu0 0
        %9616 = vmatpush1.bf16.msra.mxu0 0
        %9617 = vmatprep.subr.bf16.mxu0 0
        %9618 = vmatpush1.bf16.msra.mxu0 0
        %9619 = vmatprep.subr.bf16.mxu0 0
        %9620 = vmatpush1.bf16.msra.mxu0 0
        %9621 = vmatprep.subr.bf16.mxu0 0
        %9622 = vmatpush1.bf16.msra.mxu0 0
        %9623 = vmatprep.subr.bf16.mxu0 0
        %9624 = vmatpush1.bf16.msra.mxu0 0
        %9625 = vmatprep.subr.bf16.mxu0 0
        %9626 = vmatpush1.bf16.msra.mxu0 %v9586
        %9627 = vmatprep.subr.bf16.mxu0 0
        %9628 = vmatpush1.bf16.msra.mxu0 %v9585
        %9629 = vmatprep.subr.bf16.mxu0 0
        %9630 = vmatpush2.bf16.msra.mxu0 0
        %9631 = vmatprep.subr.bf16.mxu0 0
        %9632 = vmatpush2.bf16.msra.mxu0 0
        %9633 = vmatprep.subr.bf16.mxu0 0
        %9634 = vmatpush2.bf16.msra.mxu0 0
        %9635 = vmatprep.subr.bf16.mxu0 0
        %9636 = vmatpush2.bf16.msra.mxu0 0
        %9637 = vmatprep.subr.bf16.mxu0 0
        %9638 = vmatpush2.bf16.msra.mxu0 0
        %9639 = vmatprep.subr.bf16.mxu0 0
        %9640 = vmatpush2.bf16.msra.mxu0 0
        %9641 = vmatprep.subr.bf16.mxu0 0
        %9642 = vmatpush2.bf16.msra.mxu0 0
        %9643 = vmatprep.subr.bf16.mxu0 0
        %9644 = vmatpush2.bf16.msra.mxu0 0
        %9645 = vmatprep.mubr.bf16.mxu0 0
        %9646 = vmatmul.mubr.bf16.gmra.mxu0 %v9590
        %v9647 = vpop.f32.mrf.mxu0
        %v9648 = vadd.f32 %v9575, %v9647
        %v9649 = vpop.f32.mrf.mxu0
        %v9650 = vpop.f32.mrf.mxu0
        %v9651 = vadd.f32 %v9575, %v9650
        %v9652 = vpop.f32.mrf.mxu0
        %9653 = vmatprep.mubr.bf16.mxu0 0
        %9654 = vmatmul.mubr.bf16.gmra.mxu0 %v9593
        %v9655 = vpop.f32.mrf.mxu0
        %v9656 = vadd.f32 %v9575, %v9655
        %v9657 = vpop.f32.mrf.mxu0
        %v9658 = vpop.f32.mrf.mxu0
        %v9659 = vadd.f32 %v9575, %v9658
        %v9660 = vpop.f32.mrf.mxu0
        %9661 = vmatprep.mubr.bf16.mxu0 0
        %9662 = vmatmul.mubr.bf16.gmra.mxu0 %v9596
        %v9663 = vpop.f32.mrf.mxu0
        %v9664 = vadd.f32 %v9575, %v9663
        %v9665 = vpop.f32.mrf.mxu0
        %v9666 = vpop.f32.mrf.mxu0
        %v9667 = vadd.f32 %v9575, %v9666
        %v9668 = vpop.f32.mrf.mxu0
        %9669 = vmatprep.mubr.bf16.mxu0 0
        %9670 = vmatmul.mubr.bf16.gmra.mxu0 %v9599
        %v9671 = vpop.f32.mrf.mxu0
        %v9672 = vadd.f32 %v9575, %v9671
        %v9673 = vpop.f32.mrf.mxu0
        %v9674 = vpop.f32.mrf.mxu0
        %v9675 = vadd.f32 %v9575, %v9674
        %v9676 = vpop.f32.mrf.mxu0
        %9677 = vmatprep.mubr.bf16.mxu0 0
        %9678 = vmatmul.mubr.bf16.gmra.mxu0 %v9602
        %v9679 = vpop.f32.mrf.mxu0
        %v9680 = vadd.f32 %v9575, %v9679
        %v9681 = vpop.f32.mrf.mxu0
        %v9682 = vpop.f32.mrf.mxu0
        %v9683 = vadd.f32 %v9575, %v9682
        %v9684 = vpop.f32.mrf.mxu0
        %9685 = vmatprep.mubr.bf16.mxu0 0
        %9686 = vmatmul.mubr.bf16.gmra.mxu0 %v9605
        %v9687 = vpop.f32.mrf.mxu0
        %v9688 = vadd.f32 %v9575, %v9687
        %v9689 = vpop.f32.mrf.mxu0
        %v9690 = vpop.f32.mrf.mxu0
        %v9691 = vadd.f32 %v9575, %v9690
        %v9692 = vpop.f32.mrf.mxu0
        %9693 = vmatprep.mubr.bf16.mxu0 0
        %9694 = vmatmul.mubr.bf16.gmra.mxu0 %v9608
        %v9695 = vpop.f32.mrf.mxu0
        %v9696 = vadd.f32 %v9575, %v9695
        %v9697 = vpop.f32.mrf.mxu0
        %v9698 = vpop.f32.mrf.mxu0
        %v9699 = vadd.f32 %v9575, %v9698
        %v9700 = vpop.f32.mrf.mxu0
        %9701 = vmatprep.mubr.bf16.mxu0 0
        %9702 = vmatmul.mubr.bf16.gmra.mxu0 %v9611
        %v9703 = vpop.f32.mrf.mxu0
        %v9704 = vadd.f32 %v9575, %v9703
        %v9705 = vpop.f32.mrf.mxu0
        %v9706 = vpop.f32.mrf.mxu0
        %v9707 = vadd.f32 %v9575, %v9706
        %v9708 = vpop.f32.mrf.mxu0
        %9709 = vdwg.mxu0
        %v9710 = vadd.f32 %v5658, %v9648
        %v9711 = vadd.f32 %v5659, %v9651
        %v9712 = vadd.f32 %v5660, %v9656
        %v9713 = vadd.f32 %v5661, %v9659
        %v9714 = vadd.f32 %v5662, %v9664
        %v9715 = vadd.f32 %v5663, %v9667
        %v9716 = vadd.f32 %v5664, %v9672
        %v9717 = vadd.f32 %v5665, %v9675
        %v9718 = vadd.f32 %v5666, %v9680
        %v9719 = vadd.f32 %v5667, %v9683
        %v9720 = vadd.f32 %v5668, %v9688
        %v9721 = vadd.f32 %v5669, %v9691
        %v9722 = vadd.f32 %v5670, %v9696
        %v9723 = vadd.f32 %v5671, %v9699
        %v9724 = vadd.f32 %v5672, %v9704
        %v9725 = vadd.f32 %v5673, %v9707
        %s9726 = scalar_lea.vmem %s6, 1
        %v9727 = vld [vmem:[%s9726] sm:$0x1]
        %s9728 = scalar_lea.vmem %s7, 1
        %v9729 = vld [vmem:[%s9728] sm:$0x1]
        %v9730 = vsel %vm663, %v9710, 0.0
        %9731 = vadd.xlane.f32.xlu0 %v9730
        %v9732 = vpop.xlane.xlu0 %9731
        %v9733 = vsel %vm663, %v9711, 0.0
        %9734 = vadd.xlane.f32.xlu0 %v9733
        %v9735 = vpop.xlane.xlu0 %9734
        %v9736 = vsel %vm663, %v9712, 0.0
        %9737 = vadd.xlane.f32.xlu0 %v9736
        %v9738 = vpop.xlane.xlu0 %9737
        %v9739 = vsel %vm663, %v9713, 0.0
        %9740 = vadd.xlane.f32.xlu0 %v9739
        %v9741 = vpop.xlane.xlu0 %9740
        %v9742 = vsel %vm663, %v9714, 0.0
        %9743 = vadd.xlane.f32.xlu0 %v9742
        %v9744 = vpop.xlane.xlu0 %9743
        %v9745 = vsel %vm663, %v9715, 0.0
        %9746 = vadd.xlane.f32.xlu0 %v9745
        %v9747 = vpop.xlane.xlu0 %9746
        %v9748 = vsel %vm663, %v9716, 0.0
        %9749 = vadd.xlane.f32.xlu0 %v9748
        %v9750 = vpop.xlane.xlu0 %9749
        %v9751 = vsel %vm663, %v9717, 0.0
        %9752 = vadd.xlane.f32.xlu0 %v9751
        %v9753 = vpop.xlane.xlu0 %9752
        %v9754 = vsel %vm663, %v9718, 0.0
        %9755 = vadd.xlane.f32.xlu0 %v9754
        %v9756 = vpop.xlane.xlu0 %9755
        %v9757 = vsel %vm663, %v9719, 0.0
        %9758 = vadd.xlane.f32.xlu0 %v9757
        %v9759 = vpop.xlane.xlu0 %9758
        %v9760 = vsel %vm663, %v9720, 0.0
        %9761 = vadd.xlane.f32.xlu0 %v9760
        %v9762 = vpop.xlane.xlu0 %9761
        %v9763 = vsel %vm663, %v9721, 0.0
        %9764 = vadd.xlane.f32.xlu0 %v9763
        %v9765 = vpop.xlane.xlu0 %9764
        %v9766 = vsel %vm663, %v9722, 0.0
        %9767 = vadd.xlane.f32.xlu0 %v9766
        %v9768 = vpop.xlane.xlu0 %9767
        %v9769 = vsel %vm663, %v9723, 0.0
        %9770 = vadd.xlane.f32.xlu0 %v9769
        %v9771 = vpop.xlane.xlu0 %9770
        %v9772 = vsel %vm663, %v9724, 0.0
        %9773 = vadd.xlane.f32.xlu0 %v9772
        %v9774 = vpop.xlane.xlu0 %9773
        %v9775 = vsel %vm663, %v9725, 0.0
        %9776 = vadd.xlane.f32.xlu0 %v9775
        %v9777 = vpop.xlane.xlu0 %9776
        %v9778 = vmul.f32 %v9732, %v4734
        %v9779 = vmul.f32 %v9735, %v4734
        %v9780 = vmul.f32 %v9738, %v4734
        %v9781 = vmul.f32 %v9741, %v4734
        %v9782 = vmul.f32 %v9744, %v4734
        %v9783 = vmul.f32 %v9747, %v4734
        %v9784 = vmul.f32 %v9750, %v4734
        %v9785 = vmul.f32 %v9753, %v4734
        %v9786 = vmul.f32 %v9756, %v4734
        %v9787 = vmul.f32 %v9759, %v4734
        %v9788 = vmul.f32 %v9762, %v4734
        %v9789 = vmul.f32 %v9765, %v4734
        %v9790 = vmul.f32 %v9768, %v4734
        %v9791 = vmul.f32 %v9771, %v4734
        %v9792 = vmul.f32 %v9774, %v4734
        %v9793 = vmul.f32 %v9777, %v4734
        %v9794 = vsub.f32 %v9710, %v9778
        %v9795 = vsub.f32 %v9711, %v9779
        %v9796 = vsub.f32 %v9712, %v9780
        %v9797 = vsub.f32 %v9713, %v9781
        %v9798 = vsub.f32 %v9714, %v9782
        %v9799 = vsub.f32 %v9715, %v9783
        %v9800 = vsub.f32 %v9716, %v9784
        %v9801 = vsub.f32 %v9717, %v9785
        %v9802 = vsub.f32 %v9718, %v9786
        %v9803 = vsub.f32 %v9719, %v9787
        %v9804 = vsub.f32 %v9720, %v9788
        %v9805 = vsub.f32 %v9721, %v9789
        %v9806 = vsub.f32 %v9722, %v9790
        %v9807 = vsub.f32 %v9723, %v9791
        %v9808 = vsub.f32 %v9724, %v9792
        %v9809 = vsub.f32 %v9725, %v9793
        %v9810 = vmul.f32 %v9794, %v9794
        %v9811 = vmul.f32 %v9795, %v9795
        %v9812 = vmul.f32 %v9796, %v9796
        %v9813 = vmul.f32 %v9797, %v9797
        %v9814 = vmul.f32 %v9798, %v9798
        %v9815 = vmul.f32 %v9799, %v9799
        %v9816 = vmul.f32 %v9800, %v9800
        %v9817 = vmul.f32 %v9801, %v9801
        %v9818 = vmul.f32 %v9802, %v9802
        %v9819 = vmul.f32 %v9803, %v9803
        %v9820 = vmul.f32 %v9804, %v9804
        %v9821 = vmul.f32 %v9805, %v9805
        %v9822 = vmul.f32 %v9806, %v9806
        %v9823 = vmul.f32 %v9807, %v9807
        %v9824 = vmul.f32 %v9808, %v9808
        %v9825 = vmul.f32 %v9809, %v9809
        %v9826 = vsel %vm663, %v9810, 0.0
        %9827 = vadd.xlane.f32.xlu0 %v9826
        %v9828 = vpop.xlane.xlu0 %9827
        %v9829 = vsel %vm663, %v9811, 0.0
        %9830 = vadd.xlane.f32.xlu0 %v9829
        %v9831 = vpop.xlane.xlu0 %9830
        %v9832 = vsel %vm663, %v9812, 0.0
        %9833 = vadd.xlane.f32.xlu0 %v9832
        %v9834 = vpop.xlane.xlu0 %9833
        %v9835 = vsel %vm663, %v9813, 0.0
        %9836 = vadd.xlane.f32.xlu0 %v9835
        %v9837 = vpop.xlane.xlu0 %9836
        %v9838 = vsel %vm663, %v9814, 0.0
        %9839 = vadd.xlane.f32.xlu0 %v9838
        %v9840 = vpop.xlane.xlu0 %9839
        %v9841 = vsel %vm663, %v9815, 0.0
        %9842 = vadd.xlane.f32.xlu0 %v9841
        %v9843 = vpop.xlane.xlu0 %9842
        %v9844 = vsel %vm663, %v9816, 0.0
        %9845 = vadd.xlane.f32.xlu0 %v9844
        %v9846 = vpop.xlane.xlu0 %9845
        %v9847 = vsel %vm663, %v9817, 0.0
        %9848 = vadd.xlane.f32.xlu0 %v9847
        %v9849 = vpop.xlane.xlu0 %9848
        %v9850 = vsel %vm663, %v9818, 0.0
        %9851 = vadd.xlane.f32.xlu0 %v9850
        %v9852 = vpop.xlane.xlu0 %9851
        %v9853 = vsel %vm663, %v9819, 0.0
        %9854 = vadd.xlane.f32.xlu0 %v9853
        %v9855 = vpop.xlane.xlu0 %9854
        %v9856 = vsel %vm663, %v9820, 0.0
        %9857 = vadd.xlane.f32.xlu0 %v9856
        %v9858 = vpop.xlane.xlu0 %9857
        %v9859 = vsel %vm663, %v9821, 0.0
        %9860 = vadd.xlane.f32.xlu0 %v9859
        %v9861 = vpop.xlane.xlu0 %9860
        %v9862 = vsel %vm663, %v9822, 0.0
        %9863 = vadd.xlane.f32.xlu0 %v9862
        %v9864 = vpop.xlane.xlu0 %9863
        %v9865 = vsel %vm663, %v9823, 0.0
        %9866 = vadd.xlane.f32.xlu0 %v9865
        %v9867 = vpop.xlane.xlu0 %9866
        %v9868 = vsel %vm663, %v9824, 0.0
        %9869 = vadd.xlane.f32.xlu0 %v9868
        %v9870 = vpop.xlane.xlu0 %9869
        %v9871 = vsel %vm663, %v9825, 0.0
        %9872 = vadd.xlane.f32.xlu0 %v9871
        %v9873 = vpop.xlane.xlu0 %9872
        %v9874 = vmul.f32 %v9828, %v4734
        %v9875 = vmul.f32 %v9831, %v4734
        %v9876 = vmul.f32 %v9834, %v4734
        %v9877 = vmul.f32 %v9837, %v4734
        %v9878 = vmul.f32 %v9840, %v4734
        %v9879 = vmul.f32 %v9843, %v4734
        %v9880 = vmul.f32 %v9846, %v4734
        %v9881 = vmul.f32 %v9849, %v4734
        %v9882 = vmul.f32 %v9852, %v4734
        %v9883 = vmul.f32 %v9855, %v4734
        %v9884 = vmul.f32 %v9858, %v4734
        %v9885 = vmul.f32 %v9861, %v4734
        %v9886 = vmul.f32 %v9864, %v4734
        %v9887 = vmul.f32 %v9867, %v4734
        %v9888 = vmul.f32 %v9870, %v4734
        %v9889 = vmul.f32 %v9873, %v4734
        %v9890 = vadd.f32 %v9874, 1e-12
        %v9891 = vadd.f32 %v9875, 1e-12
        %v9892 = vadd.f32 %v9876, 1e-12
        %v9893 = vadd.f32 %v9877, 1e-12
        %v9894 = vadd.f32 %v9878, 1e-12
        %v9895 = vadd.f32 %v9879, 1e-12
        %v9896 = vadd.f32 %v9880, 1e-12
        %v9897 = vadd.f32 %v9881, 1e-12
        %v9898 = vadd.f32 %v9882, 1e-12
        %v9899 = vadd.f32 %v9883, 1e-12
        %v9900 = vadd.f32 %v9884, 1e-12
        %v9901 = vadd.f32 %v9885, 1e-12
        %v9902 = vadd.f32 %v9886, 1e-12
        %v9903 = vadd.f32 %v9887, 1e-12
        %v9904 = vadd.f32 %v9888, 1e-12
        %v9905 = vadd.f32 %v9889, 1e-12
        %v9906 = vrsqrt.pop %v9890
        %v9907 = vrsqrt.pop %v9891
        %v9908 = vrsqrt.pop %v9892
        %v9909 = vrsqrt.pop %v9893
        %v9910 = vrsqrt.pop %v9894
        %v9911 = vrsqrt.pop %v9895
        %v9912 = vrsqrt.pop %v9896
        %v9913 = vrsqrt.pop %v9897
        %v9914 = vrsqrt.pop %v9898
        %v9915 = vrsqrt.pop %v9899
        %v9916 = vrsqrt.pop %v9900
        %v9917 = vrsqrt.pop %v9901
        %v9918 = vrsqrt.pop %v9902
        %v9919 = vrsqrt.pop %v9903
        %v9920 = vrsqrt.pop %v9904
        %v9921 = vrsqrt.pop %v9905
        %v9922 = vmul.f32 %v9794, %v9906
        %v9923 = vmul.f32 %v9795, %v9907
        %v9924 = vmul.f32 %v9796, %v9908
        %v9925 = vmul.f32 %v9797, %v9909
        %v9926 = vmul.f32 %v9798, %v9910
        %v9927 = vmul.f32 %v9799, %v9911
        %v9928 = vmul.f32 %v9800, %v9912
        %v9929 = vmul.f32 %v9801, %v9913
        %v9930 = vmul.f32 %v9802, %v9914
        %v9931 = vmul.f32 %v9803, %v9915
        %v9932 = vmul.f32 %v9804, %v9916
        %v9933 = vmul.f32 %v9805, %v9917
        %v9934 = vmul.f32 %v9806, %v9918
        %v9935 = vmul.f32 %v9807, %v9919
        %v9936 = vmul.f32 %v9808, %v9920
        %v9937 = vmul.f32 %v9809, %v9921
        %v9939 = vlaneseq
        %v9940 = vshrl.u32 %v9939, 7
        %v9941 = vsub.s32 0, %v9940
        %v9942 = vrot.slane %v9727, %v9941
        %v9944 = vmul.f32 %v9922, %v9942
        %v9945 = vmul.f32 %v9923, %v9942
        %v9946 = vmul.f32 %v9924, %v9942
        %v9947 = vmul.f32 %v9925, %v9942
        %v9948 = vmul.f32 %v9926, %v9942
        %v9949 = vmul.f32 %v9927, %v9942
        %v9950 = vmul.f32 %v9928, %v9942
        %v9951 = vmul.f32 %v9929, %v9942
        %v9952 = vmul.f32 %v9930, %v9942
        %v9953 = vmul.f32 %v9931, %v9942
        %v9954 = vmul.f32 %v9932, %v9942
        %v9955 = vmul.f32 %v9933, %v9942
        %v9956 = vmul.f32 %v9934, %v9942
        %v9957 = vmul.f32 %v9935, %v9942
        %v9958 = vmul.f32 %v9936, %v9942
        %v9959 = vmul.f32 %v9937, %v9942
        %v9961 = vlaneseq
        %v9962 = vshrl.u32 %v9961, 7
        %v9963 = vsub.s32 0, %v9962
        %v9964 = vrot.slane %v9729, %v9963
        %v9966 = vadd.f32 %v9944, %v9964
        %v9967 = vadd.f32 %v9945, %v9964
        %v9968 = vadd.f32 %v9946, %v9964
        %v9969 = vadd.f32 %v9947, %v9964
        %v9970 = vadd.f32 %v9948, %v9964
        %v9971 = vadd.f32 %v9949, %v9964
        %v9972 = vadd.f32 %v9950, %v9964
        %v9973 = vadd.f32 %v9951, %v9964
        %v9974 = vadd.f32 %v9952, %v9964
        %v9975 = vadd.f32 %v9953, %v9964
        %v9976 = vadd.f32 %v9954, %v9964
        %v9977 = vadd.f32 %v9955, %v9964
        %v9978 = vadd.f32 %v9956, %v9964
        %v9979 = vadd.f32 %v9957, %v9964
        %v9980 = vadd.f32 %v9958, %v9964
        %v9981 = vadd.f32 %v9959, %v9964
        %v9982 = vpack.c.bf16 %v9967, %v9966
        %v9983 = vpack.c.bf16 %v9969, %v9968
        %v9984 = vpack.c.bf16 %v9971, %v9970
        %v9985 = vpack.c.bf16 %v9973, %v9972
        %v9986 = vpack.c.bf16 %v9975, %v9974
        %v9987 = vpack.c.bf16 %v9977, %v9976
        %v9988 = vpack.c.bf16 %v9979, %v9978
        %v9989 = vpack.c.bf16 %v9981, %v9980
        %s9990 = scalar_lea.vmem %s8, 16
        %v9991 = vld [vmem:[%s9990] sm:$0xf]
        %v9992 = vld [vmem:[%s9990 + $0x4] sm:$0xf]
        %v9993 = vld [vmem:[%s9990 + $0x8] sm:$0xf]
        %v9994 = vld [vmem:[%s9990 + $0xc] sm:$0xf]
        %s9995 = scalar_lea.vmem %s9, 1
        %v9996 = vld [vmem:[%s9995] sm:$0x1]
        %v9998 = vlaneseq
        %v9999 = vshrl.u32 %v9998, 7
        %v10000 = vsub.s32 0, %v9999
        %v10001 = vrot.slane %v9996, %v10000
        %v10007 = vunpack.c.l.b16 %v9991
        %v10008 = vunpack.c.l.b16 %v9992
        %v10009 = vunpack.c.l.b16 %v9993
        %v10010 = vunpack.c.l.b16 %v9994
        %v10011 = vpack.c.b16 %v10008, %v10007
        %v10012 = vpack.c.b16 %v10010, %v10009
        %v10016 = vsel %vm663, %v9982, 0
        %v10019 = vsel %vm663, %v9983, 0
        %v10022 = vsel %vm663, %v9984, 0
        %v10025 = vsel %vm663, %v9985, 0
        %v10028 = vsel %vm663, %v9986, 0
        %v10031 = vsel %vm663, %v9987, 0
        %v10034 = vsel %vm663, %v9988, 0
        %v10037 = vsel %vm663, %v9989, 0
        %10039 = vmatprep.subr.bf16.mxu0 0
        %10040 = vmatpush1.bf16.msra.mxu0 0
        %10041 = vmatprep.subr.bf16.mxu0 0
        %10042 = vmatpush1.bf16.msra.mxu0 0
        %10043 = vmatprep.subr.bf16.mxu0 0
        %10044 = vmatpush1.bf16.msra.mxu0 0
        %10045 = vmatprep.subr.bf16.mxu0 0
        %10046 = vmatpush1.bf16.msra.mxu0 0
        %10047 = vmatprep.subr.bf16.mxu0 0
        %10048 = vmatpush1.bf16.msra.mxu0 0
        %10049 = vmatprep.subr.bf16.mxu0 0
        %10050 = vmatpush1.bf16.msra.mxu0 0
        %10051 = vmatprep.subr.bf16.mxu0 0
        %10052 = vmatpush1.bf16.msra.mxu0 %v10012
        %10053 = vmatprep.subr.bf16.mxu0 0
        %10054 = vmatpush1.bf16.msra.mxu0 %v10011
        %10055 = vmatprep.subr.bf16.mxu0 0
        %10056 = vmatpush2.bf16.msra.mxu0 0
        %10057 = vmatprep.subr.bf16.mxu0 0
        %10058 = vmatpush2.bf16.msra.mxu0 0
        %10059 = vmatprep.subr.bf16.mxu0 0
        %10060 = vmatpush2.bf16.msra.mxu0 0
        %10061 = vmatprep.subr.bf16.mxu0 0
        %10062 = vmatpush2.bf16.msra.mxu0 0
        %10063 = vmatprep.subr.bf16.mxu0 0
        %10064 = vmatpush2.bf16.msra.mxu0 0
        %10065 = vmatprep.subr.bf16.mxu0 0
        %10066 = vmatpush2.bf16.msra.mxu0 0
        %10067 = vmatprep.subr.bf16.mxu0 0
        %10068 = vmatpush2.bf16.msra.mxu0 0
        %10069 = vmatprep.subr.bf16.mxu0 0
        %10070 = vmatpush2.bf16.msra.mxu0 0
        %10071 = vmatprep.mubr.bf16.mxu0 0
        %10072 = vmatmul.mubr.bf16.gmra.mxu0 %v10016
        %v10073 = vpop.f32.mrf.mxu0
        %v10074 = vadd.f32 %v10001, %v10073
        %v10075 = vpop.f32.mrf.mxu0
        %v10076 = vpop.f32.mrf.mxu0
        %v10077 = vadd.f32 %v10001, %v10076
        %v10078 = vpop.f32.mrf.mxu0
        %10079 = vmatprep.mubr.bf16.mxu0 0
        %10080 = vmatmul.mubr.bf16.gmra.mxu0 %v10019
        %v10081 = vpop.f32.mrf.mxu0
        %v10082 = vadd.f32 %v10001, %v10081
        %v10083 = vpop.f32.mrf.mxu0
        %v10084 = vpop.f32.mrf.mxu0
        %v10085 = vadd.f32 %v10001, %v10084
        %v10086 = vpop.f32.mrf.mxu0
        %10087 = vmatprep.mubr.bf16.mxu0 0
        %10088 = vmatmul.mubr.bf16.gmra.mxu0 %v10022
        %v10089 = vpop.f32.mrf.mxu0
        %v10090 = vadd.f32 %v10001, %v10089
        %v10091 = vpop.f32.mrf.mxu0
        %v10092 = vpop.f32.mrf.mxu0
        %v10093 = vadd.f32 %v10001, %v10092
        %v10094 = vpop.f32.mrf.mxu0
        %10095 = vmatprep.mubr.bf16.mxu0 0
        %10096 = vmatmul.mubr.bf16.gmra.mxu0 %v10025
        %v10097 = vpop.f32.mrf.mxu0
        %v10098 = vadd.f32 %v10001, %v10097
        %v10099 = vpop.f32.mrf.mxu0
        %v10100 = vpop.f32.mrf.mxu0
        %v10101 = vadd.f32 %v10001, %v10100
        %v10102 = vpop.f32.mrf.mxu0
        %10103 = vmatprep.mubr.bf16.mxu0 0
        %10104 = vmatmul.mubr.bf16.gmra.mxu0 %v10028
        %v10105 = vpop.f32.mrf.mxu0
        %v10106 = vadd.f32 %v10001, %v10105
        %v10107 = vpop.f32.mrf.mxu0
        %v10108 = vpop.f32.mrf.mxu0
        %v10109 = vadd.f32 %v10001, %v10108
        %v10110 = vpop.f32.mrf.mxu0
        %10111 = vmatprep.mubr.bf16.mxu0 0
        %10112 = vmatmul.mubr.bf16.gmra.mxu0 %v10031
        %v10113 = vpop.f32.mrf.mxu0
        %v10114 = vadd.f32 %v10001, %v10113
        %v10115 = vpop.f32.mrf.mxu0
        %v10116 = vpop.f32.mrf.mxu0
        %v10117 = vadd.f32 %v10001, %v10116
        %v10118 = vpop.f32.mrf.mxu0
        %10119 = vmatprep.mubr.bf16.mxu0 0
        %10120 = vmatmul.mubr.bf16.gmra.mxu0 %v10034
        %v10121 = vpop.f32.mrf.mxu0
        %v10122 = vadd.f32 %v10001, %v10121
        %v10123 = vpop.f32.mrf.mxu0
        %v10124 = vpop.f32.mrf.mxu0
        %v10125 = vadd.f32 %v10001, %v10124
        %v10126 = vpop.f32.mrf.mxu0
        %10127 = vmatprep.mubr.bf16.mxu0 0
        %10128 = vmatmul.mubr.bf16.gmra.mxu0 %v10037
        %v10129 = vpop.f32.mrf.mxu0
        %v10130 = vadd.f32 %v10001, %v10129
        %v10131 = vpop.f32.mrf.mxu0
        %v10132 = vpop.f32.mrf.mxu0
        %v10133 = vadd.f32 %v10001, %v10132
        %v10134 = vpop.f32.mrf.mxu0
        %10135 = vdwg.mxu0
        %v10136 = vmul.f32 %v10074, %v10074
        %v10137 = vmul.f32 %v10077, %v10077
        %v10138 = vmul.f32 %v10082, %v10082
        %v10139 = vmul.f32 %v10085, %v10085
        %v10140 = vmul.f32 %v10090, %v10090
        %v10141 = vmul.f32 %v10093, %v10093
        %v10142 = vmul.f32 %v10098, %v10098
        %v10143 = vmul.f32 %v10101, %v10101
        %v10144 = vmul.f32 %v10106, %v10106
        %v10145 = vmul.f32 %v10109, %v10109
        %v10146 = vmul.f32 %v10114, %v10114
        %v10147 = vmul.f32 %v10117, %v10117
        %v10148 = vmul.f32 %v10122, %v10122
        %v10149 = vmul.f32 %v10125, %v10125
        %v10150 = vmul.f32 %v10130, %v10130
        %v10151 = vmul.f32 %v10133, %v10133
        %v10152 = vmul.f32 %v10074, %v10136
        %v10153 = vmul.f32 %v10077, %v10137
        %v10154 = vmul.f32 %v10082, %v10138
        %v10155 = vmul.f32 %v10085, %v10139
        %v10156 = vmul.f32 %v10090, %v10140
        %v10157 = vmul.f32 %v10093, %v10141
        %v10158 = vmul.f32 %v10098, %v10142
        %v10159 = vmul.f32 %v10101, %v10143
        %v10160 = vmul.f32 %v10106, %v10144
        %v10161 = vmul.f32 %v10109, %v10145
        %v10162 = vmul.f32 %v10114, %v10146
        %v10163 = vmul.f32 %v10117, %v10147
        %v10164 = vmul.f32 %v10122, %v10148
        %v10165 = vmul.f32 %v10125, %v10149
        %v10166 = vmul.f32 %v10130, %v10150
        %v10167 = vmul.f32 %v10133, %v10151
        %v10168 = vmul.f32 %v10152, 0.044715
        %v10169 = vmul.f32 %v10153, 0.044715
        %v10170 = vmul.f32 %v10154, 0.044715
        %v10171 = vmul.f32 %v10155, 0.044715
        %v10172 = vmul.f32 %v10156, 0.044715
        %v10173 = vmul.f32 %v10157, 0.044715
        %v10174 = vmul.f32 %v10158, 0.044715
        %v10175 = vmul.f32 %v10159, 0.044715
        %v10176 = vmul.f32 %v10160, 0.044715
        %v10177 = vmul.f32 %v10161, 0.044715
        %v10178 = vmul.f32 %v10162, 0.044715
        %v10179 = vmul.f32 %v10163, 0.044715
        %v10180 = vmul.f32 %v10164, 0.044715
        %v10181 = vmul.f32 %v10165, 0.044715
        %v10182 = vmul.f32 %v10166, 0.044715
        %v10183 = vmul.f32 %v10167, 0.044715
        %v10184 = vadd.f32 %v10074, %v10168
        %v10185 = vadd.f32 %v10077, %v10169
        %v10186 = vadd.f32 %v10082, %v10170
        %v10187 = vadd.f32 %v10085, %v10171
        %v10188 = vadd.f32 %v10090, %v10172
        %v10189 = vadd.f32 %v10093, %v10173
        %v10190 = vadd.f32 %v10098, %v10174
        %v10191 = vadd.f32 %v10101, %v10175
        %v10192 = vadd.f32 %v10106, %v10176
        %v10193 = vadd.f32 %v10109, %v10177
        %v10194 = vadd.f32 %v10114, %v10178
        %v10195 = vadd.f32 %v10117, %v10179
        %v10196 = vadd.f32 %v10122, %v10180
        %v10197 = vadd.f32 %v10125, %v10181
        %v10198 = vadd.f32 %v10130, %v10182
        %v10199 = vadd.f32 %v10133, %v10183
        %v10200 = vmul.f32 %v10184, 0.7978846
        %v10201 = vmul.f32 %v10185, 0.7978846
        %v10202 = vmul.f32 %v10186, 0.7978846
        %v10203 = vmul.f32 %v10187, 0.7978846
        %v10204 = vmul.f32 %v10188, 0.7978846
        %v10205 = vmul.f32 %v10189, 0.7978846
        %v10206 = vmul.f32 %v10190, 0.7978846
        %v10207 = vmul.f32 %v10191, 0.7978846
        %v10208 = vmul.f32 %v10192, 0.7978846
        %v10209 = vmul.f32 %v10193, 0.7978846
        %v10210 = vmul.f32 %v10194, 0.7978846
        %v10211 = vmul.f32 %v10195, 0.7978846
        %v10212 = vmul.f32 %v10196, 0.7978846
        %v10213 = vmul.f32 %v10197, 0.7978846
        %v10214 = vmul.f32 %v10198, 0.7978846
        %v10215 = vmul.f32 %v10199, 0.7978846
        %v10216 = vtanh.pop %v10200
        %v10217 = vtanh.pop %v10201
        %v10218 = vtanh.pop %v10202
        %v10219 = vtanh.pop %v10203
        %v10220 = vtanh.pop %v10204
        %v10221 = vtanh.pop %v10205
        %v10222 = vtanh.pop %v10206
        %v10223 = vtanh.pop %v10207
        %v10224 = vtanh.pop %v10208
        %v10225 = vtanh.pop %v10209
        %v10226 = vtanh.pop %v10210
        %v10227 = vtanh.pop %v10211
        %v10228 = vtanh.pop %v10212
        %v10229 = vtanh.pop %v10213
        %v10230 = vtanh.pop %v10214
        %v10231 = vtanh.pop %v10215
        %v10232 = vadd.f32 %v10216, 1.0
        %v10233 = vadd.f32 %v10217, 1.0
        %v10234 = vadd.f32 %v10218, 1.0
        %v10235 = vadd.f32 %v10219, 1.0
        %v10236 = vadd.f32 %v10220, 1.0
        %v10237 = vadd.f32 %v10221, 1.0
        %v10238 = vadd.f32 %v10222, 1.0
        %v10239 = vadd.f32 %v10223, 1.0
        %v10240 = vadd.f32 %v10224, 1.0
        %v10241 = vadd.f32 %v10225, 1.0
        %v10242 = vadd.f32 %v10226, 1.0
        %v10243 = vadd.f32 %v10227, 1.0
        %v10244 = vadd.f32 %v10228, 1.0
        %v10245 = vadd.f32 %v10229, 1.0
        %v10246 = vadd.f32 %v10230, 1.0
        %v10247 = vadd.f32 %v10231, 1.0
        %v10248 = vmul.f32 %v10232, 0.5
        %v10249 = vmul.f32 %v10233, 0.5
        %v10250 = vmul.f32 %v10234, 0.5
        %v10251 = vmul.f32 %v10235, 0.5
        %v10252 = vmul.f32 %v10236, 0.5
        %v10253 = vmul.f32 %v10237, 0.5
        %v10254 = vmul.f32 %v10238, 0.5
        %v10255 = vmul.f32 %v10239, 0.5
        %v10256 = vmul.f32 %v10240, 0.5
        %v10257 = vmul.f32 %v10241, 0.5
        %v10258 = vmul.f32 %v10242, 0.5
        %v10259 = vmul.f32 %v10243, 0.5
        %v10260 = vmul.f32 %v10244, 0.5
        %v10261 = vmul.f32 %v10245, 0.5
        %v10262 = vmul.f32 %v10246, 0.5
        %v10263 = vmul.f32 %v10247, 0.5
        %v10264 = vmul.f32 %v10074, %v10248
        %v10265 = vmul.f32 %v10077, %v10249
        %v10266 = vmul.f32 %v10082, %v10250
        %v10267 = vmul.f32 %v10085, %v10251
        %v10268 = vmul.f32 %v10090, %v10252
        %v10269 = vmul.f32 %v10093, %v10253
        %v10270 = vmul.f32 %v10098, %v10254
        %v10271 = vmul.f32 %v10101, %v10255
        %v10272 = vmul.f32 %v10106, %v10256
        %v10273 = vmul.f32 %v10109, %v10257
        %v10274 = vmul.f32 %v10114, %v10258
        %v10275 = vmul.f32 %v10117, %v10259
        %v10276 = vmul.f32 %v10122, %v10260
        %v10277 = vmul.f32 %v10125, %v10261
        %v10278 = vmul.f32 %v10130, %v10262
        %v10279 = vmul.f32 %v10133, %v10263
        %v10280 = vpack.c.bf16 %v10265, %v10264
        %v10281 = vpack.c.bf16 %v10267, %v10266
        %v10282 = vpack.c.bf16 %v10269, %v10268
        %v10283 = vpack.c.bf16 %v10271, %v10270
        %v10284 = vpack.c.bf16 %v10273, %v10272
        %v10285 = vpack.c.bf16 %v10275, %v10274
        %v10286 = vpack.c.bf16 %v10277, %v10276
        %v10287 = vpack.c.bf16 %v10279, %v10278
        %s10288 = scalar_lea.vmem %s10, 32
        %v10289 = vld [vmem:[%s10288] sm:$0xf]
        %v10290 = vld [vmem:[%s10288 + $0x4] sm:$0xf]
        %v10291 = vld [vmem:[%s10288 + $0x8] sm:$0xf]
        %v10292 = vld [vmem:[%s10288 + $0xc] sm:$0xf]
        %v10293 = vld [vmem:[%s10288 + $0x10] sm:$0xf]
        %v10294 = vld [vmem:[%s10288 + $0x14] sm:$0xf]
        %v10295 = vld [vmem:[%s10288 + $0x18] sm:$0xf]
        %v10296 = vld [vmem:[%s10288 + $0x1c] sm:$0xf]
        %s10297 = scalar_lea.vmem %s11, 1
        %v10298 = vld [vmem:[%s10297] sm:$0x1]
        %v10300 = vlaneseq
        %v10301 = vshrl.u32 %v10300, 7
        %v10302 = vsub.s32 0, %v10301
        %v10303 = vrot.slane %v10298, %v10302
        %v10313 = vunpack.c.l.b16 %v10289
        %v10314 = vunpack.c.l.b16 %v10290
        %v10315 = vunpack.c.l.b16 %v10291
        %v10316 = vunpack.c.l.b16 %v10292
        %v10317 = vunpack.c.l.b16 %v10293
        %v10318 = vunpack.c.l.b16 %v10294
        %v10319 = vunpack.c.l.b16 %v10295
        %v10320 = vunpack.c.l.b16 %v10296
        %v10321 = vpack.c.b16 %v10314, %v10313
        %v10322 = vpack.c.b16 %v10316, %v10315
        %v10323 = vpack.c.b16 %v10318, %v10317
        %v10324 = vpack.c.b16 %v10320, %v10319
        %v10330 = vsel %vm5282, %v10280, 0
        %v10333 = vsel %vm5282, %v10281, 0
        %v10336 = vsel %vm5282, %v10282, 0
        %v10339 = vsel %vm5282, %v10283, 0
        %v10342 = vsel %vm5282, %v10284, 0
        %v10345 = vsel %vm5282, %v10285, 0
        %v10348 = vsel %vm5282, %v10286, 0
        %v10351 = vsel %vm5282, %v10287, 0
        %10353 = vmatprep.subr.bf16.mxu0 0
        %10354 = vmatpush1.bf16.msra.mxu0 0
        %10355 = vmatprep.subr.bf16.mxu0 0
        %10356 = vmatpush1.bf16.msra.mxu0 0
        %10357 = vmatprep.subr.bf16.mxu0 0
        %10358 = vmatpush1.bf16.msra.mxu0 0
        %10359 = vmatprep.subr.bf16.mxu0 0
        %10360 = vmatpush1.bf16.msra.mxu0 0
        %10361 = vmatprep.subr.bf16.mxu0 0
        %10362 = vmatpush1.bf16.msra.mxu0 %v10324
        %10363 = vmatprep.subr.bf16.mxu0 0
        %10364 = vmatpush1.bf16.msra.mxu0 %v10323
        %10365 = vmatprep.subr.bf16.mxu0 0
        %10366 = vmatpush1.bf16.msra.mxu0 %v10322
        %10367 = vmatprep.subr.bf16.mxu0 0
        %10368 = vmatpush1.bf16.msra.mxu0 %v10321
        %10369 = vmatprep.subr.bf16.mxu0 0
        %10370 = vmatpush2.bf16.msra.mxu0 0
        %10371 = vmatprep.subr.bf16.mxu0 0
        %10372 = vmatpush2.bf16.msra.mxu0 0
        %10373 = vmatprep.subr.bf16.mxu0 0
        %10374 = vmatpush2.bf16.msra.mxu0 0
        %10375 = vmatprep.subr.bf16.mxu0 0
        %10376 = vmatpush2.bf16.msra.mxu0 0
        %10377 = vmatprep.subr.bf16.mxu0 0
        %10378 = vmatpush2.bf16.msra.mxu0 0
        %10379 = vmatprep.subr.bf16.mxu0 0
        %10380 = vmatpush2.bf16.msra.mxu0 0
        %10381 = vmatprep.subr.bf16.mxu0 0
        %10382 = vmatpush2.bf16.msra.mxu0 0
        %10383 = vmatprep.subr.bf16.mxu0 0
        %10384 = vmatpush2.bf16.msra.mxu0 0
        %10385 = vmatprep.mubr.bf16.mxu0 0
        %10386 = vmatmul.mubr.bf16.gmra.mxu0 %v10330
        %v10387 = vpop.f32.mrf.mxu0
        %v10388 = vadd.f32 %v10303, %v10387
        %v10389 = vpop.f32.mrf.mxu0
        %v10390 = vpop.f32.mrf.mxu0
        %v10391 = vadd.f32 %v10303, %v10390
        %v10392 = vpop.f32.mrf.mxu0
        %10393 = vmatprep.mubr.bf16.mxu0 0
        %10394 = vmatmul.mubr.bf16.gmra.mxu0 %v10333
        %v10395 = vpop.f32.mrf.mxu0
        %v10396 = vadd.f32 %v10303, %v10395
        %v10397 = vpop.f32.mrf.mxu0
        %v10398 = vpop.f32.mrf.mxu0
        %v10399 = vadd.f32 %v10303, %v10398
        %v10400 = vpop.f32.mrf.mxu0
        %10401 = vmatprep.mubr.bf16.mxu0 0
        %10402 = vmatmul.mubr.bf16.gmra.mxu0 %v10336
        %v10403 = vpop.f32.mrf.mxu0
        %v10404 = vadd.f32 %v10303, %v10403
        %v10405 = vpop.f32.mrf.mxu0
        %v10406 = vpop.f32.mrf.mxu0
        %v10407 = vadd.f32 %v10303, %v10406
        %v10408 = vpop.f32.mrf.mxu0
        %10409 = vmatprep.mubr.bf16.mxu0 0
        %10410 = vmatmul.mubr.bf16.gmra.mxu0 %v10339
        %v10411 = vpop.f32.mrf.mxu0
        %v10412 = vadd.f32 %v10303, %v10411
        %v10413 = vpop.f32.mrf.mxu0
        %v10414 = vpop.f32.mrf.mxu0
        %v10415 = vadd.f32 %v10303, %v10414
        %v10416 = vpop.f32.mrf.mxu0
        %10417 = vmatprep.mubr.bf16.mxu0 0
        %10418 = vmatmul.mubr.bf16.gmra.mxu0 %v10342
        %v10419 = vpop.f32.mrf.mxu0
        %v10420 = vadd.f32 %v10303, %v10419
        %v10421 = vpop.f32.mrf.mxu0
        %v10422 = vpop.f32.mrf.mxu0
        %v10423 = vadd.f32 %v10303, %v10422
        %v10424 = vpop.f32.mrf.mxu0
        %10425 = vmatprep.mubr.bf16.mxu0 0
        %10426 = vmatmul.mubr.bf16.gmra.mxu0 %v10345
        %v10427 = vpop.f32.mrf.mxu0
        %v10428 = vadd.f32 %v10303, %v10427
        %v10429 = vpop.f32.mrf.mxu0
        %v10430 = vpop.f32.mrf.mxu0
        %v10431 = vadd.f32 %v10303, %v10430
        %v10432 = vpop.f32.mrf.mxu0
        %10433 = vmatprep.mubr.bf16.mxu0 0
        %10434 = vmatmul.mubr.bf16.gmra.mxu0 %v10348
        %v10435 = vpop.f32.mrf.mxu0
        %v10436 = vadd.f32 %v10303, %v10435
        %v10437 = vpop.f32.mrf.mxu0
        %v10438 = vpop.f32.mrf.mxu0
        %v10439 = vadd.f32 %v10303, %v10438
        %v10440 = vpop.f32.mrf.mxu0
        %10441 = vmatprep.mubr.bf16.mxu0 0
        %10442 = vmatmul.mubr.bf16.gmra.mxu0 %v10351
        %v10443 = vpop.f32.mrf.mxu0
        %v10444 = vadd.f32 %v10303, %v10443
        %v10445 = vpop.f32.mrf.mxu0
        %v10446 = vpop.f32.mrf.mxu0
        %v10447 = vadd.f32 %v10303, %v10446
        %v10448 = vpop.f32.mrf.mxu0
        %10449 = vdwg.mxu0
        %v10450 = vadd.f32 %v9966, %v10388
        %v10451 = vadd.f32 %v9967, %v10391
        %v10452 = vadd.f32 %v9968, %v10396
        %v10453 = vadd.f32 %v9969, %v10399
        %v10454 = vadd.f32 %v9970, %v10404
        %v10455 = vadd.f32 %v9971, %v10407
        %v10456 = vadd.f32 %v9972, %v10412
        %v10457 = vadd.f32 %v9973, %v10415
        %v10458 = vadd.f32 %v9974, %v10420
        %v10459 = vadd.f32 %v9975, %v10423
        %v10460 = vadd.f32 %v9976, %v10428
        %v10461 = vadd.f32 %v9977, %v10431
        %v10462 = vadd.f32 %v9978, %v10436
        %v10463 = vadd.f32 %v9979, %v10439
        %v10464 = vadd.f32 %v9980, %v10444
        %v10465 = vadd.f32 %v9981, %v10447
        %s10466 = scalar_lea.vmem %s12, 1
        %v10467 = vld [vmem:[%s10466] sm:$0x1]
        %s10468 = scalar_lea.vmem %s13, 1
        %v10469 = vld [vmem:[%s10468] sm:$0x1]
        %v10470 = vsel %vm663, %v10450, 0.0
        %10471 = vadd.xlane.f32.xlu0 %v10470
        %v10472 = vpop.xlane.xlu0 %10471
        %v10473 = vsel %vm663, %v10451, 0.0
        %10474 = vadd.xlane.f32.xlu0 %v10473
        %v10475 = vpop.xlane.xlu0 %10474
        %v10476 = vsel %vm663, %v10452, 0.0
        %10477 = vadd.xlane.f32.xlu0 %v10476
        %v10478 = vpop.xlane.xlu0 %10477
        %v10479 = vsel %vm663, %v10453, 0.0
        %10480 = vadd.xlane.f32.xlu0 %v10479
        %v10481 = vpop.xlane.xlu0 %10480
        %v10482 = vsel %vm663, %v10454, 0.0
        %10483 = vadd.xlane.f32.xlu0 %v10482
        %v10484 = vpop.xlane.xlu0 %10483
        %v10485 = vsel %vm663, %v10455, 0.0
        %10486 = vadd.xlane.f32.xlu0 %v10485
        %v10487 = vpop.xlane.xlu0 %10486
        %v10488 = vsel %vm663, %v10456, 0.0
        %10489 = vadd.xlane.f32.xlu0 %v10488
        %v10490 = vpop.xlane.xlu0 %10489
        %v10491 = vsel %vm663, %v10457, 0.0
        %10492 = vadd.xlane.f32.xlu0 %v10491
        %v10493 = vpop.xlane.xlu0 %10492
        %v10494 = vsel %vm663, %v10458, 0.0
        %10495 = vadd.xlane.f32.xlu0 %v10494
        %v10496 = vpop.xlane.xlu0 %10495
        %v10497 = vsel %vm663, %v10459, 0.0
        %10498 = vadd.xlane.f32.xlu0 %v10497
        %v10499 = vpop.xlane.xlu0 %10498
        %v10500 = vsel %vm663, %v10460, 0.0
        %10501 = vadd.xlane.f32.xlu0 %v10500
        %v10502 = vpop.xlane.xlu0 %10501
        %v10503 = vsel %vm663, %v10461, 0.0
        %10504 = vadd.xlane.f32.xlu0 %v10503
        %v10505 = vpop.xlane.xlu0 %10504
        %v10506 = vsel %vm663, %v10462, 0.0
        %10507 = vadd.xlane.f32.xlu0 %v10506
        %v10508 = vpop.xlane.xlu0 %10507
        %v10509 = vsel %vm663, %v10463, 0.0
        %10510 = vadd.xlane.f32.xlu0 %v10509
        %v10511 = vpop.xlane.xlu0 %10510
        %v10512 = vsel %vm663, %v10464, 0.0
        %10513 = vadd.xlane.f32.xlu0 %v10512
        %v10514 = vpop.xlane.xlu0 %10513
        %v10515 = vsel %vm663, %v10465, 0.0
        %10516 = vadd.xlane.f32.xlu0 %v10515
        %v10517 = vpop.xlane.xlu0 %10516
        %v10518 = vmul.f32 %v10472, %v4734
        %v10519 = vmul.f32 %v10475, %v4734
        %v10520 = vmul.f32 %v10478, %v4734
        %v10521 = vmul.f32 %v10481, %v4734
        %v10522 = vmul.f32 %v10484, %v4734
        %v10523 = vmul.f32 %v10487, %v4734
        %v10524 = vmul.f32 %v10490, %v4734
        %v10525 = vmul.f32 %v10493, %v4734
        %v10526 = vmul.f32 %v10496, %v4734
        %v10527 = vmul.f32 %v10499, %v4734
        %v10528 = vmul.f32 %v10502, %v4734
        %v10529 = vmul.f32 %v10505, %v4734
        %v10530 = vmul.f32 %v10508, %v4734
        %v10531 = vmul.f32 %v10511, %v4734
        %v10532 = vmul.f32 %v10514, %v4734
        %v10533 = vmul.f32 %v10517, %v4734
        %v10534 = vsub.f32 %v10450, %v10518
        %v10535 = vsub.f32 %v10451, %v10519
        %v10536 = vsub.f32 %v10452, %v10520
        %v10537 = vsub.f32 %v10453, %v10521
        %v10538 = vsub.f32 %v10454, %v10522
        %v10539 = vsub.f32 %v10455, %v10523
        %v10540 = vsub.f32 %v10456, %v10524
        %v10541 = vsub.f32 %v10457, %v10525
        %v10542 = vsub.f32 %v10458, %v10526
        %v10543 = vsub.f32 %v10459, %v10527
        %v10544 = vsub.f32 %v10460, %v10528
        %v10545 = vsub.f32 %v10461, %v10529
        %v10546 = vsub.f32 %v10462, %v10530
        %v10547 = vsub.f32 %v10463, %v10531
        %v10548 = vsub.f32 %v10464, %v10532
        %v10549 = vsub.f32 %v10465, %v10533
        %v10550 = vmul.f32 %v10534, %v10534
        %v10551 = vmul.f32 %v10535, %v10535
        %v10552 = vmul.f32 %v10536, %v10536
        %v10553 = vmul.f32 %v10537, %v10537
        %v10554 = vmul.f32 %v10538, %v10538
        %v10555 = vmul.f32 %v10539, %v10539
        %v10556 = vmul.f32 %v10540, %v10540
        %v10557 = vmul.f32 %v10541, %v10541
        %v10558 = vmul.f32 %v10542, %v10542
        %v10559 = vmul.f32 %v10543, %v10543
        %v10560 = vmul.f32 %v10544, %v10544
        %v10561 = vmul.f32 %v10545, %v10545
        %v10562 = vmul.f32 %v10546, %v10546
        %v10563 = vmul.f32 %v10547, %v10547
        %v10564 = vmul.f32 %v10548, %v10548
        %v10565 = vmul.f32 %v10549, %v10549
        %v10566 = vsel %vm663, %v10550, 0.0
        %10567 = vadd.xlane.f32.xlu0 %v10566
        %v10568 = vpop.xlane.xlu0 %10567
        %v10569 = vsel %vm663, %v10551, 0.0
        %10570 = vadd.xlane.f32.xlu0 %v10569
        %v10571 = vpop.xlane.xlu0 %10570
        %v10572 = vsel %vm663, %v10552, 0.0
        %10573 = vadd.xlane.f32.xlu0 %v10572
        %v10574 = vpop.xlane.xlu0 %10573
        %v10575 = vsel %vm663, %v10553, 0.0
        %10576 = vadd.xlane.f32.xlu0 %v10575
        %v10577 = vpop.xlane.xlu0 %10576
        %v10578 = vsel %vm663, %v10554, 0.0
        %10579 = vadd.xlane.f32.xlu0 %v10578
        %v10580 = vpop.xlane.xlu0 %10579
        %v10581 = vsel %vm663, %v10555, 0.0
        %10582 = vadd.xlane.f32.xlu0 %v10581
        %v10583 = vpop.xlane.xlu0 %10582
        %v10584 = vsel %vm663, %v10556, 0.0
        %10585 = vadd.xlane.f32.xlu0 %v10584
        %v10586 = vpop.xlane.xlu0 %10585
        %v10587 = vsel %vm663, %v10557, 0.0
        %10588 = vadd.xlane.f32.xlu0 %v10587
        %v10589 = vpop.xlane.xlu0 %10588
        %v10590 = vsel %vm663, %v10558, 0.0
        %10591 = vadd.xlane.f32.xlu0 %v10590
        %v10592 = vpop.xlane.xlu0 %10591
        %v10593 = vsel %vm663, %v10559, 0.0
        %10594 = vadd.xlane.f32.xlu0 %v10593
        %v10595 = vpop.xlane.xlu0 %10594
        %v10596 = vsel %vm663, %v10560, 0.0
        %10597 = vadd.xlane.f32.xlu0 %v10596
        %v10598 = vpop.xlane.xlu0 %10597
        %v10599 = vsel %vm663, %v10561, 0.0
        %10600 = vadd.xlane.f32.xlu0 %v10599
        %v10601 = vpop.xlane.xlu0 %10600
        %v10602 = vsel %vm663, %v10562, 0.0
        %10603 = vadd.xlane.f32.xlu0 %v10602
        %v10604 = vpop.xlane.xlu0 %10603
        %v10605 = vsel %vm663, %v10563, 0.0
        %10606 = vadd.xlane.f32.xlu0 %v10605
        %v10607 = vpop.xlane.xlu0 %10606
        %v10608 = vsel %vm663, %v10564, 0.0
        %10609 = vadd.xlane.f32.xlu0 %v10608
        %v10610 = vpop.xlane.xlu0 %10609
        %v10611 = vsel %vm663, %v10565, 0.0
        %10612 = vadd.xlane.f32.xlu0 %v10611
        %v10613 = vpop.xlane.xlu0 %10612
        %v10614 = vmul.f32 %v10568, %v4734
        %v10615 = vmul.f32 %v10571, %v4734
        %v10616 = vmul.f32 %v10574, %v4734
        %v10617 = vmul.f32 %v10577, %v4734
        %v10618 = vmul.f32 %v10580, %v4734
        %v10619 = vmul.f32 %v10583, %v4734
        %v10620 = vmul.f32 %v10586, %v4734
        %v10621 = vmul.f32 %v10589, %v4734
        %v10622 = vmul.f32 %v10592, %v4734
        %v10623 = vmul.f32 %v10595, %v4734
        %v10624 = vmul.f32 %v10598, %v4734
        %v10625 = vmul.f32 %v10601, %v4734
        %v10626 = vmul.f32 %v10604, %v4734
        %v10627 = vmul.f32 %v10607, %v4734
        %v10628 = vmul.f32 %v10610, %v4734
        %v10629 = vmul.f32 %v10613, %v4734
        %v10630 = vadd.f32 %v10614, 1e-12
        %v10631 = vadd.f32 %v10615, 1e-12
        %v10632 = vadd.f32 %v10616, 1e-12
        %v10633 = vadd.f32 %v10617, 1e-12
        %v10634 = vadd.f32 %v10618, 1e-12
        %v10635 = vadd.f32 %v10619, 1e-12
        %v10636 = vadd.f32 %v10620, 1e-12
        %v10637 = vadd.f32 %v10621, 1e-12
        %v10638 = vadd.f32 %v10622, 1e-12
        %v10639 = vadd.f32 %v10623, 1e-12
        %v10640 = vadd.f32 %v10624, 1e-12
        %v10641 = vadd.f32 %v10625, 1e-12
        %v10642 = vadd.f32 %v10626, 1e-12
        %v10643 = vadd.f32 %v10627, 1e-12
        %v10644 = vadd.f32 %v10628, 1e-12
        %v10645 = vadd.f32 %v10629, 1e-12
        %v10646 = vrsqrt.pop %v10630
        %v10647 = vrsqrt.pop %v10631
        %v10648 = vrsqrt.pop %v10632
        %v10649 = vrsqrt.pop %v10633
        %v10650 = vrsqrt.pop %v10634
        %v10651 = vrsqrt.pop %v10635
        %v10652 = vrsqrt.pop %v10636
        %v10653 = vrsqrt.pop %v10637
        %v10654 = vrsqrt.pop %v10638
        %v10655 = vrsqrt.pop %v10639
        %v10656 = vrsqrt.pop %v10640
        %v10657 = vrsqrt.pop %v10641
        %v10658 = vrsqrt.pop %v10642
        %v10659 = vrsqrt.pop %v10643
        %v10660 = vrsqrt.pop %v10644
        %v10661 = vrsqrt.pop %v10645
        %v10662 = vmul.f32 %v10534, %v10646
        %v10663 = vmul.f32 %v10535, %v10647
        %v10664 = vmul.f32 %v10536, %v10648
        %v10665 = vmul.f32 %v10537, %v10649
        %v10666 = vmul.f32 %v10538, %v10650
        %v10667 = vmul.f32 %v10539, %v10651
        %v10668 = vmul.f32 %v10540, %v10652
        %v10669 = vmul.f32 %v10541, %v10653
        %v10670 = vmul.f32 %v10542, %v10654
        %v10671 = vmul.f32 %v10543, %v10655
        %v10672 = vmul.f32 %v10544, %v10656
        %v10673 = vmul.f32 %v10545, %v10657
        %v10674 = vmul.f32 %v10546, %v10658
        %v10675 = vmul.f32 %v10547, %v10659
        %v10676 = vmul.f32 %v10548, %v10660
        %v10677 = vmul.f32 %v10549, %v10661
        %v10679 = vlaneseq
        %v10680 = vshrl.u32 %v10679, 7
        %v10681 = vsub.s32 0, %v10680
        %v10682 = vrot.slane %v10467, %v10681
        %v10684 = vmul.f32 %v10662, %v10682
        %v10685 = vmul.f32 %v10663, %v10682
        %v10686 = vmul.f32 %v10664, %v10682
        %v10687 = vmul.f32 %v10665, %v10682
        %v10688 = vmul.f32 %v10666, %v10682
        %v10689 = vmul.f32 %v10667, %v10682
        %v10690 = vmul.f32 %v10668, %v10682
        %v10691 = vmul.f32 %v10669, %v10682
        %v10692 = vmul.f32 %v10670, %v10682
        %v10693 = vmul.f32 %v10671, %v10682
        %v10694 = vmul.f32 %v10672, %v10682
        %v10695 = vmul.f32 %v10673, %v10682
        %v10696 = vmul.f32 %v10674, %v10682
        %v10697 = vmul.f32 %v10675, %v10682
        %v10698 = vmul.f32 %v10676, %v10682
        %v10699 = vmul.f32 %v10677, %v10682
        %v10701 = vlaneseq
        %v10702 = vshrl.u32 %v10701, 7
        %v10703 = vsub.s32 0, %v10702
        %v10704 = vrot.slane %v10469, %v10703
        %v10706 = vadd.f32 %v10684, %v10704
        %v10707 = vadd.f32 %v10685, %v10704
        %v10708 = vadd.f32 %v10686, %v10704
        %v10709 = vadd.f32 %v10687, %v10704
        %v10710 = vadd.f32 %v10688, %v10704
        %v10711 = vadd.f32 %v10689, %v10704
        %v10712 = vadd.f32 %v10690, %v10704
        %v10713 = vadd.f32 %v10691, %v10704
        %v10714 = vadd.f32 %v10692, %v10704
        %v10715 = vadd.f32 %v10693, %v10704
        %v10716 = vadd.f32 %v10694, %v10704
        %v10717 = vadd.f32 %v10695, %v10704
        %v10718 = vadd.f32 %v10696, %v10704
        %v10719 = vadd.f32 %v10697, %v10704
        %v10720 = vadd.f32 %v10698, %v10704
        %v10721 = vadd.f32 %v10699, %v10704
        %v10722 = vpack.c.bf16 %v10706, %v10706
        %v10723 = vpack.c.bf16 %v10707, %v10707
        %v10724 = vpack.c.bf16 %v10708, %v10708
        %v10725 = vpack.c.bf16 %v10709, %v10709
        %v10726 = vpack.c.bf16 %v10710, %v10710
        %v10727 = vpack.c.bf16 %v10711, %v10711
        %v10728 = vpack.c.bf16 %v10712, %v10712
        %v10729 = vpack.c.bf16 %v10713, %v10713
        %v10730 = vpack.c.bf16 %v10714, %v10714
        %v10731 = vpack.c.bf16 %v10715, %v10715
        %v10732 = vpack.c.bf16 %v10716, %v10716
        %v10733 = vpack.c.bf16 %v10717, %v10717
        %v10734 = vpack.c.bf16 %v10718, %v10718
        %v10735 = vpack.c.bf16 %v10719, %v10719
        %v10736 = vpack.c.bf16 %v10720, %v10720
        %v10737 = vpack.c.bf16 %v10721, %v10721
        %v10738 = vld [vmem:[%s14] sm:$0xf]
        %v10739 = vld [vmem:[%s14 + $0x4] sm:$0xf]
        %v10740 = vld [vmem:[%s14 + $0x8] sm:$0xf]
        %v10741 = vld [vmem:[%s14 + $0xc] sm:$0xf]
        %v10742 = vld [vmem:[%s15] sm:$0x1]
        %v10744 = vlaneseq
        %v10745 = vshrl.u32 %v10744, 7
        %v10746 = vsub.s32 0, %v10745
        %v10747 = vrot.slane %v10742, %v10746
        %v10765 = vunpack.c.l.b16 %v10722
        %v10766 = vunpack.c.l.b16 %v10723
        %v10767 = vunpack.c.l.b16 %v10724
        %v10768 = vunpack.c.l.b16 %v10725
        %v10769 = vunpack.c.l.b16 %v10726
        %v10770 = vunpack.c.l.b16 %v10727
        %v10771 = vunpack.c.l.b16 %v10728
        %v10772 = vunpack.c.l.b16 %v10729
        %v10773 = vunpack.c.l.b16 %v10730
        %v10774 = vunpack.c.l.b16 %v10731
        %v10775 = vunpack.c.l.b16 %v10732
        %v10776 = vunpack.c.l.b16 %v10733
        %v10777 = vunpack.c.l.b16 %v10734
        %v10778 = vunpack.c.l.b16 %v10735
        %v10779 = vunpack.c.l.b16 %v10736
        %v10780 = vunpack.c.l.b16 %v10737
        %v10781 = vrot.slane %v10766, 7
        %vm10782 = vcmask 1041409
        %v10783 = vsel %vm10782, %v10781, %v10765
        %v10784 = vrot.slane %v10767, 6
        %vm10785 = vcmask 1042434
        %v10786 = vsel %vm10785, %v10784, %v10783
        %v10787 = vrot.slane %v10768, 5
        %vm10788 = vcmask 1043459
        %v10789 = vsel %vm10788, %v10787, %v10786
        %v10790 = vrot.slane %v10769, 4
        %vm10791 = vcmask 1044484
        %v10792 = vsel %vm10791, %v10790, %v10789
        %v10793 = vrot.slane %v10770, 3
        %vm10794 = vcmask 1045509
        %v10795 = vsel %vm10794, %v10793, %v10792
        %v10796 = vrot.slane %v10771, 2
        %vm10797 = vcmask 1046534
        %v10798 = vsel %vm10797, %v10796, %v10795
        %v10799 = vrot.slane %v10772, 1
        %vm10800 = vcmask 1047559
        %v10801 = vsel %vm10800, %v10799, %v10798
        %v10802 = vrot.slane %v10774, 7
        %v10803 = vsel %vm10782, %v10802, %v10773
        %v10804 = vrot.slane %v10775, 6
        %v10805 = vsel %vm10785, %v10804, %v10803
        %v10806 = vrot.slane %v10776, 5
        %v10807 = vsel %vm10788, %v10806, %v10805
        %v10808 = vrot.slane %v10777, 4
        %v10809 = vsel %vm10791, %v10808, %v10807
        %v10810 = vrot.slane %v10778, 3
        %v10811 = vsel %vm10794, %v10810, %v10809
        %v10812 = vrot.slane %v10779, 2
        %v10813 = vsel %vm10797, %v10812, %v10811
        %v10814 = vrot.slane %v10780, 1
        %v10815 = vsel %vm10800, %v10814, %v10813
        %v10816 = vpack.c.b16 %v10815, %v10801
        %v10821 = vunpack.c.l.b16 %v10738
        %v10822 = vunpack.c.l.b16 %v10739
        %v10823 = vunpack.c.l.b16 %v10740
        %v10824 = vunpack.c.l.b16 %v10741
        %v10825 = vpack.c.b16 %v10822, %v10821
        %v10826 = vpack.c.b16 %v10824, %v10823
        %v10830 = vsel %vm663, %v10816, 0
        %10832 = vmatprep.subr.bf16.mxu0 0
        %10833 = vmatpush1.bf16.msra.mxu0 0
        %10834 = vmatprep.subr.bf16.mxu0 0
        %10835 = vmatpush1.bf16.msra.mxu0 0
        %10836 = vmatprep.subr.bf16.mxu0 0
        %10837 = vmatpush1.bf16.msra.mxu0 0
        %10838 = vmatprep.subr.bf16.mxu0 0
        %10839 = vmatpush1.bf16.msra.mxu0 0
        %10840 = vmatprep.subr.bf16.mxu0 0
        %10841 = vmatpush1.bf16.msra.mxu0 0
        %10842 = vmatprep.subr.bf16.mxu0 0
        %10843 = vmatpush1.bf16.msra.mxu0 0
        %10844 = vmatprep.subr.bf16.mxu0 0
        %10845 = vmatpush1.bf16.msra.mxu0 %v10826
        %10846 = vmatprep.subr.bf16.mxu0 0
        %10847 = vmatpush1.bf16.msra.mxu0 %v10825
        %10848 = vmatprep.subr.bf16.mxu0 0
        %10849 = vmatpush2.bf16.msra.mxu0 0
        %10850 = vmatprep.subr.bf16.mxu0 0
        %10851 = vmatpush2.bf16.msra.mxu0 0
        %10852 = vmatprep.subr.bf16.mxu0 0
        %10853 = vmatpush2.bf16.msra.mxu0 0
        %10854 = vmatprep.subr.bf16.mxu0 0
        %10855 = vmatpush2.bf16.msra.mxu0 0
        %10856 = vmatprep.subr.bf16.mxu0 0
        %10857 = vmatpush2.bf16.msra.mxu0 0
        %10858 = vmatprep.subr.bf16.mxu0 0
        %10859 = vmatpush2.bf16.msra.mxu0 0
        %10860 = vmatprep.subr.bf16.mxu0 0
        %10861 = vmatpush2.bf16.msra.mxu0 0
        %10862 = vmatprep.subr.bf16.mxu0 0
        %10863 = vmatpush2.bf16.msra.mxu0 0
        %10864 = vmatprep.mubr.bf16.mxu0 0
        %10865 = vmatmul.mubr.bf16.gmra.mxu0 %v10830
        %v10866 = vpop.f32.mrf.mxu0
        %v10867 = vadd.f32 %v10747, %v10866
        %v10868 = vpop.f32.mrf.mxu0
        %v10869 = vpop.f32.mrf.mxu0
        %v10870 = vadd.f32 %v10747, %v10869
        %v10871 = vpop.f32.mrf.mxu0
        %10872 = vdwg.mxu0
        %v10873 = vtanh.pop %v10867
        %v10874 = vtanh.pop %v10870
        %v10875 = vpack.c.bf16 %v10874, %v10873
        %v10876 = vld [vmem:[%s16] sm:$0xf]
        %v10877 = vld [vmem:[%s16 + $0x4] sm:$0xf]
        %v10878 = vld [vmem:[%s16 + $0x8] sm:$0xf]
        %v10879 = vld [vmem:[%s16 + $0xc] sm:$0xf]
        %v10880 = vld [vmem:[%s17] sm:$0x1]
        %v10882 = vlaneseq
        %v10883 = vshrl.u32 %v10882, 7
        %v10884 = vsub.s32 0, %v10883
        %v10885 = vrot.slane %v10880, %v10884
        %v10891 = vunpack.c.l.b16 %v10876
        %v10892 = vunpack.c.l.b16 %v10877
        %v10893 = vunpack.c.l.b16 %v10878
        %v10894 = vunpack.c.l.b16 %v10879
        %v10895 = vpack.c.b16 %v10892, %v10891
        %v10896 = vpack.c.b16 %v10894, %v10893
        %v10900 = vsel %vm663, %v10875, 0
        %10902 = vmatprep.subr.bf16.mxu0 0
        %10903 = vmatpush1.bf16.msra.mxu0 0
        %10904 = vmatprep.subr.bf16.mxu0 0
        %10905 = vmatpush1.bf16.msra.mxu0 0
        %10906 = vmatprep.subr.bf16.mxu0 0
        %10907 = vmatpush1.bf16.msra.mxu0 0
        %10908 = vmatprep.subr.bf16.mxu0 0
        %10909 = vmatpush1.bf16.msra.mxu0 0
        %10910 = vmatprep.subr.bf16.mxu0 0
        %10911 = vmatpush1.bf16.msra.mxu0 0
        %10912 = vmatprep.subr.bf16.mxu0 0
        %10913 = vmatpush1.bf16.msra.mxu0 0
        %10914 = vmatprep.subr.bf16.mxu0 0
        %10915 = vmatpush1.bf16.msra.mxu0 %v10896
        %10916 = vmatprep.subr.bf16.mxu0 0
        %10917 = vmatpush1.bf16.msra.mxu0 %v10895
        %10918 = vmatprep.subr.bf16.mxu0 0
        %10919 = vmatpush2.bf16.msra.mxu0 0
        %10920 = vmatprep.subr.bf16.mxu0 0
        %10921 = vmatpush2.bf16.msra.mxu0 0
        %10922 = vmatprep.subr.bf16.mxu0 0
        %10923 = vmatpush2.bf16.msra.mxu0 0
        %10924 = vmatprep.subr.bf16.mxu0 0
        %10925 = vmatpush2.bf16.msra.mxu0 0
        %10926 = vmatprep.subr.bf16.mxu0 0
        %10927 = vmatpush2.bf16.msra.mxu0 0
        %10928 = vmatprep.subr.bf16.mxu0 0
        %10929 = vmatpush2.bf16.msra.mxu0 0
        %10930 = vmatprep.subr.bf16.mxu0 0
        %10931 = vmatpush2.bf16.msra.mxu0 0
        %10932 = vmatprep.subr.bf16.mxu0 0
        %10933 = vmatpush2.bf16.msra.mxu0 0
        %10934 = vmatprep.mubr.bf16.mxu0 0
        %10935 = vmatmul.mubr.bf16.gmra.mxu0 %v10900
        %v10936 = vpop.f32.mrf.mxu0
        %v10937 = vadd.f32 %v10885, %v10936
        %v10938 = vpop.f32.mrf.mxu0
        %v10939 = vpop.f32.mrf.mxu0
        %v10940 = vadd.f32 %v10885, %v10939
        %v10941 = vpop.f32.mrf.mxu0
        %10942 = vdwg.mxu0
        %10943 = vst [vmem:[%s585] sm:$0xff] %v10937
        %10944 = vst [vmem:[%s585 + $0x8] sm:$0xff] %v10940
        %s10945 = sand.u32 %s428, 1
        %s10946 = scalar_lea.sflag [#allocation3], %s10945
        %s10947 = sand.u32 %s428, 1
        %s10948 = smul.addr %s10947, 16
        %s10949 = scalar_lea.vmem [#allocation2], %s10948
        // Predicated region
        $region93: #{tpu_custom_call.1} parent=91 // pred_check
          %p10950 = pneg %p438
        $region94: #{tpu_custom_call.1} parent=91 // pred_check_branch
          %10952 = sbr.rel (%p10950) target = $region96
        $region95: #{tpu_custom_call.1} parent=91 // pred_region
          %s10953 = smul.u32 2, %s32
          %s10955 = ssub.s32 256, 256
          %10956 = vsyncadd %s10946, %s10955
          %s10957 = smul.addr %s10953, 128
          %s10958 = scalar_lea.hbm %s18, %s10957
          %s10959 = sshll.u32 %s10949, 4
          %s10960 = int_to_ptr.vmem [resolvable:$true] %s10959
          %10965 = dma.vmem_to_hbm [thread:$0]  %s10960, 256, %s10958, %s10946, 128, 128, 8
        $region96: #{tpu_custom_call.1} parent=91 // pred_fallthru
          _
      $region92: #{tpu_custom_call.1} parent=5 // pred_fallthru
        _
      %p10966 = scmp.le.s32.totalorder 2, %s27
      // Predicated region
      $region97: #{tpu_custom_call.1} parent=5 // pred_check
        %p10967 = pneg %p10966
      $region98: #{tpu_custom_call.1} parent=5 // pred_check_branch
        %10969 = sbr.rel (%p10967) target = $region100
      $region99: #{tpu_custom_call.1} parent=5 // pred_region
        %s10970 = ssub.s32 %s27, 2
        // Predicated region
        $region101: #{tpu_custom_call.1} parent=99 // pred_check
          %p10971 = pneg %p444
        $region102: #{tpu_custom_call.1} parent=99 // pred_check_branch
          %10973 = sbr.rel (%p10971) target = $region104
        $region103: #{tpu_custom_call.1} parent=99 // pred_region
          %s10974 = sand.u32 %s429, 1
          %s10975 = scalar_lea.sflag [#allocation3], %s10974
          %s10976 = sand.u32 %s429, 1
          %s10977 = smul.addr %s10976, 16
          %s10978 = scalar_lea.vmem [#allocation2], %s10977
          %10979 = dma.done %s10975, 256
        $region104: #{tpu_custom_call.1} parent=99 // pred_fallthru
          _
      $region100: #{tpu_custom_call.1} parent=5 // pred_fallthru
        _
    $region6: #{tpu_custom_call.1} parent=1 // loop_footer
      %s31 = sadd.s32 1, %s27
    $region7: #{tpu_custom_call.1} parent=1 // loop_footer_branch
      %26 = sbr.rel target = $region3
    $region8: #{tpu_custom_call.1} parent=1 // loop_exit
      _
    %10980 = vsyncpa [#allocation3], 1
    %s10981 = scalar_lea.sflag [#allocation3], 1
    %10982 = vsyncpa %s10981, 1

</llo_original>
